<compile_context>
chip_gen: v5e
topology: v5e:2x2
jax: 0.10.0
libtpu: 0.0.40
codegen_flags: <defaults>
</compile_context>

<pallas_src>
import functools
import math

import jax
import jax.numpy as jnp
from jax.experimental import pallas as pl
from jax.experimental.pallas import tpu as pltpu


_PARALLEL_1D = pltpu.CompilerParams(dimension_semantics=("parallel",))


# ----------------------------- in-kernel helpers -----------------------------

def _sigmoid(y):
    # Numerically stable logistic; reciprocal on the EUP (approx) is effectively free.
    z = jnp.exp(-jnp.abs(y))
    r = pl.reciprocal(1.0 + z, approx=True)
    return jnp.where(y >= 0.0, r, z * r)


def _activate(y, act, alpha):
    if act == "prelu":
        return jnp.where(y >= 0.0, y, alpha * y)
    if act == "silu":
        return y * _sigmoid(y)
    return y


def _layernorm(x, g, b, eps):
    mu = jnp.mean(x, axis=-1, keepdims=True)
    var = jnp.mean(jnp.square(x - mu), axis=-1, keepdims=True)
    return (x - mu) * jax.lax.rsqrt(var + eps) * g + b


# ----------------------------- Pallas kernels -------------------------------

def _conv_mm_kernel(x_ref, w_ref, b_ref, o_ref, *, act, alpha):
    # o = act(W_eff @ X + shift);  X is (K, M_tile) with M lane-dense, BN scale pre-folded.
    y = jnp.dot(w_ref[...], x_ref[...], preferred_element_type=jnp.float32)
    o_ref[...] = _activate(y + b_ref[...], act, alpha)


def _conv_mm_res_kernel(x_ref, w_ref, b_ref, r_ref, o_ref, *, act, alpha):
    # Same as above with the skip connection fused into the epilogue (free on the VPU).
    y = jnp.dot(w_ref[...], x_ref[...], preferred_element_type=jnp.float32)
    o_ref[...] = _activate(y + b_ref[...], act, alpha) + r_ref[...]


def _transformer_kernel(x_ref, ln1g_ref, ln1b_ref, wqkv_ref, wout_ref, bout_ref,
                        ln2g_ref, ln2b_ref, wff1_ref, bff1_ref, wff2_ref, bff2_ref,
                        o_ref, *, depth, heads, dim_head, eps):
    # One (batch, patch-position) attention group per grid step; the full depth-layer stack
    # runs here with the tokens resident in VMEM — no HBM round trips between sub-ops.
    inner = heads * dim_head
    scale = dim_head ** -0.5
    x = x_ref[0]                                   # (n_tokens, D)
    for l in range(depth):                         # depth is static -> unrolled
        # ---- PreNorm + multi-head self-attention ----
        xn = _layernorm(x, ln1g_ref[l], ln1b_ref[l], eps)
        qkv = jnp.dot(xn, wqkv_ref[l], preferred_element_type=jnp.float32)
        heads_out = []
        for h in range(heads):
            q = qkv[:, h * dim_head:(h + 1) * dim_head]
            k = qkv[:, inner + h * dim_head:inner + (h + 1) * dim_head]
            v = qkv[:, 2 * inner + h * dim_head:2 * inner + (h + 1) * dim_head]
            # q @ k^T without materializing the transpose (contract last axes of both).
            s = jax.lax.dot_general(q, k, (((1,), (1,)), ((), ())),
                                    preferred_element_type=jnp.float32) * scale
            s = s - jnp.max(s, axis=-1, keepdims=True)
            p = jnp.exp(s)
            p = p * pl.reciprocal(jnp.sum(p, axis=-1, keepdims=True), approx=True)
            heads_out.append(jnp.dot(p, v, preferred_element_type=jnp.float32))
        attn = jnp.concatenate(heads_out, axis=-1)                       # (n, inner)
        attn = jnp.dot(attn, wout_ref[l], preferred_element_type=jnp.float32) + bout_ref[l]
        x = x + attn                                                     # fused residual
        # ---- PreNorm + FeedForward (Linear -> SiLU -> Linear) ----
        xn = _layernorm(x, ln2g_ref[l], ln2b_ref[l], eps)
        h1 = jnp.dot(xn, wff1_ref[l], preferred_element_type=jnp.float32) + bff1_ref[l]
        h1 = h1 * _sigmoid(h1)
        x = x + jnp.dot(h1, wff2_ref[l], preferred_element_type=jnp.float32) + bff2_ref[l]
    o_ref[0] = x


# ----------------------------- Pallas wrappers -------------------------------

def conv_mm(x_km, w_eff, shift, act="none", alpha=0.25, residual=None):
    """act(W_eff @ X + shift) [+ residual] with X (K, M): M = B*H*W on the lane axis."""
    c_out, k = w_eff.shape
    k2, m = x_km.shape
    assert k == k2
    mt = 256 if (m % 256 == 0 and m > 256) else m     # grid>=2 -> v7x megacore split
    shift2 = shift.reshape(c_out, 1)
    x_spec = pl.BlockSpec((k, mt), lambda i: (0, i))
    w_spec = pl.BlockSpec((c_out, k), lambda i: (0, 0))
    b_spec = pl.BlockSpec((c_out, 1), lambda i: (0, 0))
    o_spec = pl.BlockSpec((c_out, mt), lambda i: (0, i))
    if residual is None:
        kern = functools.partial(_conv_mm_kernel, act=act, alpha=float(alpha))
        in_specs = [x_spec, w_spec, b_spec]
        args = (x_km, w_eff, shift2)
    else:
        kern = functools.partial(_conv_mm_res_kernel, act=act, alpha=float(alpha))
        in_specs = [x_spec, w_spec, b_spec, pl.BlockSpec((c_out, mt), lambda i: (0, i))]
        args = (x_km, w_eff, shift2, residual)
    return pl.pallas_call(
        kern,
        out_shape=jax.ShapeDtypeStruct((c_out, m), jnp.float32),
        grid=(m // mt,),
        in_specs=in_specs,
        out_specs=o_spec,
        compiler_params=_PARALLEL_1D,
    )(*args)


def transformer(tokens, tp, *, heads, dim_head, eps=1e-5):
    """tokens: (G, n, D) with G = B * (ph*pw) independent attention groups.
    Runs the whole depth-layer transformer in a single pallas_call, one group per grid step."""
    g, n, d = tokens.shape
    depth = tp["w_qkv"].shape[0]
    kern = functools.partial(_transformer_kernel, depth=depth, heads=heads,
                             dim_head=dim_head, eps=eps)
    tok_spec = pl.BlockSpec((1, n, d), lambda i: (i, 0, 0))

    def wspec(arr):
        return pl.BlockSpec(arr.shape, lambda i: (0, 0, 0))

    weights = [tp["ln1_g"], tp["ln1_b"], tp["w_qkv"], tp["w_out"], tp["b_out"],
               tp["ln2_g"], tp["ln2_b"], tp["w_ff1"], tp["b_ff1"], tp["w_ff2"], tp["b_ff2"]]
    return pl.pallas_call(
        kern,
        out_shape=jax.ShapeDtypeStruct((g, n, d), jnp.float32),
        grid=(g,),
        in_specs=[tok_spec] + [wspec(w) for w in weights],
        out_specs=tok_spec,
        compiler_params=_PARALLEL_1D,
    )(tokens, *weights)


# ----------------------------- glue (plain JAX, tiny copies) ------------------

def _im2col_t(x_cm, B, H, W):
    # (C, M) -> (9*C, M), row order (kh, kw, cin); 'same' padding for a 3x3 conv.
    c = x_cm.shape[0]
    x4 = x_cm.reshape(c, B, H, W)
    xp = jnp.pad(x4, ((0, 0), (0, 0), (1, 1), (1, 1)))
    slabs = [xp[:, :, dh:dh + H, dw:dw + W].reshape(c, B * H * W)
             for dh in range(3) for dw in range(3)]
    return jnp.concatenate(slabs, axis=0)


def _fold_conv_bn(w2d, conv_bias, bn, eps=1e-5):
    # Fold inference BatchNorm into the conv so the kernel epilogue is only +shift (+act).
    scale = bn["gamma"] * jax.lax.rsqrt(bn["var"] + eps)
    return w2d * scale[:, None], (conv_bias - bn["mean"]) * scale + bn["beta"]


# ----------------------------- parameters -------------------------------

def init_params(key, C, D, depth, mlp_dim, heads, dim_head):
    inner = heads * dim_head
    keys = iter(jax.random.split(key, 64))

    def nrm(shape, fan_in):
        return jax.random.normal(next(keys), shape, jnp.float32) / math.sqrt(fan_in)

    def bn(c):
        return dict(gamma=jnp.ones((c,), jnp.float32), beta=jnp.zeros((c,), jnp.float32),
                    mean=jnp.zeros((c,), jnp.float32), var=jnp.ones((c,), jnp.float32))

    p = {}
    # NOTE: conv weights stored as (C_out, 9*C_in) with (kh, kw, cin) column order; to import
    # real PyTorch Conv2d weights use w.permute(0, 2, 3, 1).reshape(C_out, -1).
    p["conv1_w"] = nrm((C, 9 * C), 9 * C)            # Conv2d(C,C,3,pad=1,bias=True)+BN+PReLU
    p["conv1_b"] = 0.01 * jax.random.normal(next(keys), (C,), jnp.float32)
    p["conv1_bn"] = bn(C)

    p["mv_conv1_w"] = nrm((C, 9 * C), 9 * C)         # MobileViT local 3x3 conv (bias=False)
    p["mv_conv1_bn"] = bn(C)
    p["mv_conv2_w"] = nrm((D, C), C)                 # 1x1 conv C -> dim
    p["mv_conv2_bn"] = bn(D)

    p["transformer"] = dict(                         # stacked over depth
        ln1_g=jnp.ones((depth, 1, D), jnp.float32), ln1_b=jnp.zeros((depth, 1, D), jnp.float32),
        w_qkv=nrm((depth, D, 3 * inner), D),                                   # bias=False
        w_out=nrm((depth, inner, D), inner), b_out=jnp.zeros((depth, 1, D), jnp.float32),
        ln2_g=jnp.ones((depth, 1, D), jnp.float32), ln2_b=jnp.zeros((depth, 1, D), jnp.float32),
        w_ff1=nrm((depth, D, mlp_dim), D), b_ff1=jnp.zeros((depth, 1, mlp_dim), jnp.float32),
        w_ff2=nrm((depth, mlp_dim, D), mlp_dim), b_ff2=jnp.zeros((depth, 1, D), jnp.float32),
    )

    p["mv_conv3_w"] = nrm((C, D), D)                 # 1x1 conv dim -> C
    p["mv_conv3_bn"] = bn(C)
    p["mv_conv4_w"] = nrm((C, 9 * 2 * C), 9 * 2 * C)  # fusion 3x3 conv 2C -> C
    p["mv_conv4_bn"] = bn(C)
    return p


# ----------------------------- forward -------------------------------

def mobilevit_residual_block(x_nchw, params, *, patch_size=(2, 2), heads=4, dim_head=8,
                             prelu_alpha=0.25):
    # prelu_alpha: nn.PReLU() default single shared parameter (init 0.25); kept static here.
    # TODO(synk): for a learnable / per-channel PReLU, pass alpha as a (C,1) kernel input.
    x = x_nchw.astype(jnp.float32)
    B, C, H, W = x.shape
    M = B * H * W
    ph, pw = patch_size
    hh, ww = H // ph, W // pw

    # channel-major layout (C, M): the large M = B*H*W axis sits on the 128 lanes.
    x_cm = jnp.transpose(x, (1, 0, 2, 3)).reshape(C, M)

    # conv_block1: 3x3 conv + BN + PReLU (BN folded into the weight)
    w1, s1 = _fold_conv_bn(params["conv1_w"], params["conv1_b"], params["conv1_bn"])
    t = conv_mm(_im2col_t(x_cm, B, H, W), w1, s1, act="prelu", alpha=prelu_alpha)

    # ---------------- MobileViT block ----------------
    y_skip = t
    w2, s2 = _fold_conv_bn(params["mv_conv1_w"], jnp.zeros((C,), jnp.float32),
                           params["mv_conv1_bn"])
    a = conv_mm(_im2col_t(t, B, H, W), w2, s2, act="silu")          # local 3x3 conv
    Dm = params["mv_conv2_w"].shape[0]
    w3, s3 = _fold_conv_bn(params["mv_conv2_w"], jnp.zeros((Dm,), jnp.float32),
                           params["mv_conv2_bn"])
    a = conv_mm(a, w3, s3, act="silu")                              # 1x1 conv -> (D, M)

    # einops 'b d (h ph) (w pw) -> b (ph pw) (h w) d' : (D, M) -> (B*P, n, D)
    tok = a.reshape(Dm, B, hh, ph, ww, pw).transpose(1, 3, 5, 2, 4, 0)
    tok = tok.reshape(B * ph * pw, hh * ww, Dm)

    tok = transformer(tok, params["transformer"], heads=heads, dim_head=dim_head)

    # inverse: 'b (ph pw) (h w) d -> b d (h ph) (w pw)' : (B*P, n, D) -> (D, M)
    a = tok.reshape(B, ph, pw, hh, ww, Dm).transpose(5, 0, 3, 1, 4, 2).reshape(Dm, M)

    w4, s4 = _fold_conv_bn(params["mv_conv3_w"], jnp.zeros((C,), jnp.float32),
                           params["mv_conv3_bn"])
    a = conv_mm(a, w4, s4, act="silu")                              # 1x1 conv -> (C, M)

    fused = jnp.concatenate([a, y_skip], axis=0)                    # torch.cat(..., dim=1)
    w5, s5 = _fold_conv_bn(params["mv_conv4_w"], jnp.zeros((C,), jnp.float32),
                           params["mv_conv4_bn"])
    # fusion 3x3 conv + BN + SiLU with the OUTER residual add fused into the epilogue
    out = conv_mm(_im2col_t(fused, B, H, W), w5, s5, act="silu", residual=x_cm)

    return out.reshape(C, B, H, W).transpose(1, 0, 2, 3)            # back to NCHW


# ----------------------------- main -------------------------------

if __name__ == "__main__":
    # Small shapes consistent with the module: N=2, n_channels=8, H=W=16,
    # dim=16, depth=2, patch_size=(2,2), mlp_dim=32, heads=4, dim_head=8.
    B, C, H, W = 2, 8, 16, 16
    D, depth, mlp_dim = 16, 2, 32
    heads, dim_head = 4, 8

    key = jax.random.PRNGKey(0)
    kx, kp = jax.random.split(key)
    x = jax.random.normal(kx, (B, C, H, W), jnp.float32)
    params = init_params(kp, C, D, depth, mlp_dim, heads, dim_head)

    fwd = jax.jit(functools.partial(mobilevit_residual_block, patch_size=(2, 2),
                                    heads=heads, dim_head=dim_head, prelu_alpha=0.25))
    out = jax.block_until_ready(fwd(x, params))
    assert out.shape == (B, C, H, W)
    assert bool(jnp.all(jnp.isfinite(out)))
    print("KERNEL_OK")
</pallas_src>

<mosaic_0001>
module attributes {stable_mosaic.version = 11 : i64} {
  func.func @_conv_mm_kernel(%arg0: i32, %arg1: memref<72x256xf32, #tpu.memory_space<vmem>>, %arg2: memref<8x72xf32, #tpu.memory_space<vmem>>, %arg3: memref<8x1xf32, #tpu.memory_space<vmem>>, %arg4: memref<8x256xf32, #tpu.memory_space<vmem>>) attributes {dimension_semantics = [#tpu.dimension_semantics<parallel>], iteration_bounds = array<i64: 2>, scalar_prefetch = 0 : i64, scratch_operands = 0 : i64, tpu.core_type = #tpu.core_type<tc>, window_params = [{transform_indices = @transform_0, window_bounds = array<i64: 72, 256>}, {pipeline_mode = #tpu.pipeline_mode<synchronous>, transform_indices = @transform_1, window_bounds = array<i64: 8, 72>}, {pipeline_mode = #tpu.pipeline_mode<synchronous>, transform_indices = @transform_2, window_bounds = array<i64: 8, 1>}, {transform_indices = @transform_3, window_bounds = array<i64: 8, 256>}]} {
    %c0 = arith.constant 0 : index
    %c0_0 = arith.constant 0 : index
    %0 = vector.load %arg2[%c0, %c0_0] : memref<8x72xf32, #tpu.memory_space<vmem>>, vector<8x72xf32>
    %c0_1 = arith.constant 0 : index
    %c0_2 = arith.constant 0 : index
    %1 = vector.load %arg1[%c0_1, %c0_2] : memref<72x256xf32, #tpu.memory_space<vmem>>, vector<72x256xf32>
    %cst = arith.constant dense<0.000000e+00> : vector<8x256xf32>
    %2 = tpu.matmul %0, %1, %cst {dimension_numbers = #tpu.dot_dimension_numbers<[1], [0], [0], [1], [0, 0, 1, 1], [], []>} : vector<8x72xf32>, vector<72x256xf32>, vector<8x256xf32> -> vector<8x256xf32>
    %c0_3 = arith.constant 0 : index
    %c0_4 = arith.constant 0 : index
    %3 = vector.load %arg3[%c0_3, %c0_4] : memref<8x1xf32, #tpu.memory_space<vmem>>, vector<8x1xf32>
    %4 = vector.broadcast %3 : vector<8x1xf32> to vector<8x256xf32>
    %5 = arith.addf %2, %4 : vector<8x256xf32>
    %cst_5 = arith.constant 0.000000e+00 : f32
    %6 = vector.broadcast %cst_5 : f32 to vector<8x256xf32>
    %7 = arith.cmpf oge, %5, %6 : vector<8x256xf32>
    %cst_6 = arith.constant 2.500000e-01 : f32
    %8 = vector.broadcast %cst_6 : f32 to vector<8x256xf32>
    %9 = arith.mulf %8, %5 : vector<8x256xf32>
    %10 = arith.select %7, %5, %9 : vector<8x256xi1>, vector<8x256xf32>
    %c0_7 = arith.constant 0 : index
    %c0_8 = arith.constant 0 : index
    %11 = vector.load %arg4[%c0_7, %c0_8] : memref<8x256xf32, #tpu.memory_space<vmem>>, vector<8x256xf32>
    tpu.vector_store %arg4[%c0_7, %c0_8], %10 {strides = array<i32>} : memref<8x256xf32, #tpu.memory_space<vmem>>, vector<8x256xf32>,
    return
  }
  func.func @transform_0(%arg0: i32) -> (i32, i32) {
    %c0_i32 = arith.constant 0 : i32
    %c0_i32_0 = arith.constant 0 : i32
    return %c0_i32, %arg0 : i32, i32
  }
  func.func @transform_1(%arg0: i32) -> (i32, i32) {
    %c0_i32 = arith.constant 0 : i32
    %c0_i32_0 = arith.constant 0 : i32
    %c0_i32_1 = arith.constant 0 : i32
    return %c0_i32, %c0_i32_0 : i32, i32
  }
  func.func @transform_2(%arg0: i32) -> (i32, i32) {
    %c0_i32 = arith.constant 0 : i32
    %c0_i32_0 = arith.constant 0 : i32
    %c0_i32_1 = arith.constant 0 : i32
    return %c0_i32, %c0_i32_0 : i32, i32
  }
  func.func @transform_3(%arg0: i32) -> (i32, i32) {
    %c0_i32 = arith.constant 0 : i32
    %c0_i32_0 = arith.constant 0 : i32
    return %c0_i32, %arg0 : i32, i32
  }
}

module attributes {stable_mosaic.version = 11 : i64} {
  func.func @_conv_mm_kernel(%arg0: i32, %arg1: memref<72x256xf32, #tpu.memory_space<vmem>>, %arg2: memref<8x72xf32, #tpu.memory_space<vmem>>, %arg3: memref<8x1xf32, #tpu.memory_space<vmem>>, %arg4: memref<8x256xf32, #tpu.memory_space<vmem>>) attributes {dimension_semantics = [#tpu.dimension_semantics<parallel>], iteration_bounds = array<i64: 2>, scalar_prefetch = 0 : i64, scratch_operands = 0 : i64, tpu.core_type = #tpu.core_type<tc>, window_params = [{transform_indices = @transform_0, window_bounds = array<i64: 72, 256>}, {pipeline_mode = #tpu.pipeline_mode<synchronous>, transform_indices = @transform_1, window_bounds = array<i64: 8, 72>}, {pipeline_mode = #tpu.pipeline_mode<synchronous>, transform_indices = @transform_2, window_bounds = array<i64: 8, 1>}, {transform_indices = @transform_3, window_bounds = array<i64: 8, 256>}]} {
    %c0 = arith.constant 0 : index
    %c0_0 = arith.constant 0 : index
    %0 = vector.load %arg2[%c0, %c0_0] : memref<8x72xf32, #tpu.memory_space<vmem>>, vector<8x72xf32>
    %c0_1 = arith.constant 0 : index
    %c0_2 = arith.constant 0 : index
    %1 = vector.load %arg1[%c0_1, %c0_2] : memref<72x256xf32, #tpu.memory_space<vmem>>, vector<72x256xf32>
    %cst = arith.constant dense<0.000000e+00> : vector<8x256xf32>
    %2 = tpu.matmul %0, %1, %cst {dimension_numbers = #tpu.dot_dimension_numbers<[1], [0], [0], [1], [0, 0, 1, 1], [], []>} : vector<8x72xf32>, vector<72x256xf32>, vector<8x256xf32> -> vector<8x256xf32>
    %c0_3 = arith.constant 0 : index
    %c0_4 = arith.constant 0 : index
    %3 = vector.load %arg3[%c0_3, %c0_4] : memref<8x1xf32, #tpu.memory_space<vmem>>, vector<8x1xf32>
    %4 = vector.broadcast %3 : vector<8x1xf32> to vector<8x256xf32>
    %5 = arith.addf %2, %4 : vector<8x256xf32>
    %6 = math.absf %5 : vector<8x256xf32>
    %cst_5 = arith.constant 0.000000e+00 : f32
    %7 = vector.broadcast %cst_5 : f32 to vector<8x256xf32>
    %8 = arith.subf %7, %6 : vector<8x256xf32>
    %9 = math.exp %8 : vector<8x256xf32>
    %cst_6 = arith.constant 1.000000e+00 : f32
    %10 = vector.broadcast %cst_6 : f32 to vector<8x256xf32>
    %11 = arith.addf %10, %9 : vector<8x256xf32>
    %12 = tpu.reciprocal %11 {approx = true} : vector<8x256xf32> -> vector<8x256xf32>
    %cst_7 = arith.constant 0.000000e+00 : f32
    %13 = vector.broadcast %cst_7 : f32 to vector<8x256xf32>
    %14 = arith.cmpf oge, %5, %13 : vector<8x256xf32>
    %15 = arith.mulf %9, %12 : vector<8x256xf32>
    %16 = arith.select %14, %12, %15 : vector<8x256xi1>, vector<8x256xf32>
    %17 = arith.mulf %5, %16 : vector<8x256xf32>
    %c0_8 = arith.constant 0 : index
    %c0_9 = arith.constant 0 : index
    %18 = vector.load %arg4[%c0_8, %c0_9] : memref<8x256xf32, #tpu.memory_space<vmem>>, vector<8x256xf32>
    tpu.vector_store %arg4[%c0_8, %c0_9], %17 {strides = array<i32>} : memref<8x256xf32, #tpu.memory_space<vmem>>, vector<8x256xf32>,
    return
  }
  func.func @transform_0(%arg0: i32) -> (i32, i32) {
    %c0_i32 = arith.constant 0 : i32
    %c0_i32_0 = arith.constant 0 : i32
    return %c0_i32, %arg0 : i32, i32
  }
  func.func @transform_1(%arg0: i32) -> (i32, i32) {
    %c0_i32 = arith.constant 0 : i32
    %c0_i32_0 = arith.constant 0 : i32
    %c0_i32_1 = arith.constant 0 : i32
    return %c0_i32, %c0_i32_0 : i32, i32
  }
  func.func @transform_2(%arg0: i32) -> (i32, i32) {
    %c0_i32 = arith.constant 0 : i32
    %c0_i32_0 = arith.constant 0 : i32
    %c0_i32_1 = arith.constant 0 : i32
    return %c0_i32, %c0_i32_0 : i32, i32
  }
  func.func @transform_3(%arg0: i32) -> (i32, i32) {
    %c0_i32 = arith.constant 0 : i32
    %c0_i32_0 = arith.constant 0 : i32
    return %c0_i32, %arg0 : i32, i32
  }
}

module attributes {stable_mosaic.version = 11 : i64} {
  func.func @_conv_mm_kernel(%arg0: i32, %arg1: memref<8x256xf32, #tpu.memory_space<vmem>>, %arg2: memref<16x8xf32, #tpu.memory_space<vmem>>, %arg3: memref<16x1xf32, #tpu.memory_space<vmem>>, %arg4: memref<16x256xf32, #tpu.memory_space<vmem>>) attributes {dimension_semantics = [#tpu.dimension_semantics<parallel>], iteration_bounds = array<i64: 2>, scalar_prefetch = 0 : i64, scratch_operands = 0 : i64, tpu.core_type = #tpu.core_type<tc>, window_params = [{transform_indices = @transform_0, window_bounds = array<i64: 8, 256>}, {pipeline_mode = #tpu.pipeline_mode<synchronous>, transform_indices = @transform_1, window_bounds = array<i64: 16, 8>}, {pipeline_mode = #tpu.pipeline_mode<synchronous>, transform_indices = @transform_2, window_bounds = array<i64: 16, 1>}, {transform_indices = @transform_3, window_bounds = array<i64: 16, 256>}]} {
    %c0 = arith.constant 0 : index
    %c0_0 = arith.constant 0 : index
    %0 = vector.load %arg2[%c0, %c0_0] : memref<16x8xf32, #tpu.memory_space<vmem>>, vector<16x8xf32>
    %c0_1 = arith.constant 0 : index
    %c0_2 = arith.constant 0 : index
    %1 = vector.load %arg1[%c0_1, %c0_2] : memref<8x256xf32, #tpu.memory_space<vmem>>, vector<8x256xf32>
    %cst = arith.constant dense<0.000000e+00> : vector<16x256xf32>
    %2 = tpu.matmul %0, %1, %cst {dimension_numbers = #tpu.dot_dimension_numbers<[1], [0], [0], [1], [0, 0, 1, 1], [], []>} : vector<16x8xf32>, vector<8x256xf32>, vector<16x256xf32> -> vector<16x256xf32>
    %c0_3 = arith.constant 0 : index
    %c0_4 = arith.constant 0 : index
    %3 = vector.load %arg3[%c0_3, %c0_4] : memref<16x1xf32, #tpu.memory_space<vmem>>, vector<16x1xf32>
    %4 = vector.broadcast %3 : vector<16x1xf32> to vector<16x256xf32>
    %5 = arith.addf %2, %4 : vector<16x256xf32>
    %6 = math.absf %5 : vector<16x256xf32>
    %cst_5 = arith.constant 0.000000e+00 : f32
    %7 = vector.broadcast %cst_5 : f32 to vector<16x256xf32>
    %8 = arith.subf %7, %6 : vector<16x256xf32>
    %9 = math.exp %8 : vector<16x256xf32>
    %cst_6 = arith.constant 1.000000e+00 : f32
    %10 = vector.broadcast %cst_6 : f32 to vector<16x256xf32>
    %11 = arith.addf %10, %9 : vector<16x256xf32>
    %12 = tpu.reciprocal %11 {approx = true} : vector<16x256xf32> -> vector<16x256xf32>
    %cst_7 = arith.constant 0.000000e+00 : f32
    %13 = vector.broadcast %cst_7 : f32 to vector<16x256xf32>
    %14 = arith.cmpf oge, %5, %13 : vector<16x256xf32>
    %15 = arith.mulf %9, %12 : vector<16x256xf32>
    %16 = arith.select %14, %12, %15 : vector<16x256xi1>, vector<16x256xf32>
    %17 = arith.mulf %5, %16 : vector<16x256xf32>
    %c0_8 = arith.constant 0 : index
    %c0_9 = arith.constant 0 : index
    %18 = vector.load %arg4[%c0_8, %c0_9] : memref<16x256xf32, #tpu.memory_space<vmem>>, vector<16x256xf32>
    tpu.vector_store %arg4[%c0_8, %c0_9], %17 {strides = array<i32>} : memref<16x256xf32, #tpu.memory_space<vmem>>, vector<16x256xf32>,
    return
  }
  func.func @transform_0(%arg0: i32) -> (i32, i32) {
    %c0_i32 = arith.constant 0 : i32
    %c0_i32_0 = arith.constant 0 : i32
    return %c0_i32, %arg0 : i32, i32
  }
  func.func @transform_1(%arg0: i32) -> (i32, i32) {
    %c0_i32 = arith.constant 0 : i32
    %c0_i32_0 = arith.constant 0 : i32
    %c0_i32_1 = arith.constant 0 : i32
    return %c0_i32, %c0_i32_0 : i32, i32
  }
  func.func @transform_2(%arg0: i32) -> (i32, i32) {
    %c0_i32 = arith.constant 0 : i32
    %c0_i32_0 = arith.constant 0 : i32
    %c0_i32_1 = arith.constant 0 : i32
    return %c0_i32, %c0_i32_0 : i32, i32
  }
  func.func @transform_3(%arg0: i32) -> (i32, i32) {
    %c0_i32 = arith.constant 0 : i32
    %c0_i32_0 = arith.constant 0 : i32
    return %c0_i32, %arg0 : i32, i32
  }
}

module attributes {stable_mosaic.version = 11 : i64} {
  func.func @_transformer_kernel(%arg0: i32, %arg1: memref<1x64x16xf32, #tpu.memory_space<vmem>>, %arg2: memref<2x1x16xf32, #tpu.memory_space<vmem>>, %arg3: memref<2x1x16xf32, #tpu.memory_space<vmem>>, %arg4: memref<2x16x96xf32, #tpu.memory_space<vmem>>, %arg5: memref<2x32x16xf32, #tpu.memory_space<vmem>>, %arg6: memref<2x1x16xf32, #tpu.memory_space<vmem>>, %arg7: memref<2x1x16xf32, #tpu.memory_space<vmem>>, %arg8: memref<2x1x16xf32, #tpu.memory_space<vmem>>, %arg9: memref<2x16x32xf32, #tpu.memory_space<vmem>>, %arg10: memref<2x1x32xf32, #tpu.memory_space<vmem>>, %arg11: memref<2x32x16xf32, #tpu.memory_space<vmem>>, %arg12: memref<2x1x16xf32, #tpu.memory_space<vmem>>, %arg13: memref<1x64x16xf32, #tpu.memory_space<vmem>>) attributes {dimension_semantics = [#tpu.dimension_semantics<parallel>], iteration_bounds = array<i64: 8>, scalar_prefetch = 0 : i64, scratch_operands = 0 : i64, tpu.core_type = #tpu.core_type<tc>, window_params = [{transform_indices = @transform_0, window_bounds = array<i64: 1, 64, 16>}, {pipeline_mode = #tpu.pipeline_mode<synchronous>, transform_indices = @transform_1, window_bounds = array<i64: 2, 1, 16>}, {pipeline_mode = #tpu.pipeline_mode<synchronous>, transform_indices = @transform_2, window_bounds = array<i64: 2, 1, 16>}, {pipeline_mode = #tpu.pipeline_mode<synchronous>, transform_indices = @transform_3, window_bounds = array<i64: 2, 16, 96>}, {pipeline_mode = #tpu.pipeline_mode<synchronous>, transform_indices = @transform_4, window_bounds = array<i64: 2, 32, 16>}, {pipeline_mode = #tpu.pipeline_mode<synchronous>, transform_indices = @transform_5, window_bounds = array<i64: 2, 1, 16>}, {pipeline_mode = #tpu.pipeline_mode<synchronous>, transform_indices = @transform_6, window_bounds = array<i64: 2, 1, 16>}, {pipeline_mode = #tpu.pipeline_mode<synchronous>, transform_indices = @transform_7, window_bounds = array<i64: 2, 1, 16>}, {pipeline_mode = #tpu.pipeline_mode<synchronous>, transform_indices = @transform_8, window_bounds = array<i64: 2, 16, 32>}, {pipeline_mode = #tpu.pipeline_mode<synchronous>, transform_indices = @transform_9, window_bounds = array<i64: 2, 1, 32>}, {pipeline_mode = #tpu.pipeline_mode<synchronous>, transform_indices = @transform_10, window_bounds = array<i64: 2, 32, 16>}, {pipeline_mode = #tpu.pipeline_mode<synchronous>, transform_indices = @transform_11, window_bounds = array<i64: 2, 1, 16>}, {transform_indices = @transform_12, window_bounds = array<i64: 1, 64, 16>}]} {
    %c0 = arith.constant 0 : index
    %c0_0 = arith.constant 0 : index
    %c0_1 = arith.constant 0 : index
    %0 = vector.load %arg1[%c0, %c0_0, %c0_1] : memref<1x64x16xf32, #tpu.memory_space<vmem>>, vector<1x64x16xf32>
    %1 = vector.shape_cast %0 : vector<1x64x16xf32> to vector<64x16xf32>
    %c0_2 = arith.constant 0 : index
    %c0_3 = arith.constant 0 : index
    %c0_4 = arith.constant 0 : index
    %2 = vector.load %arg2[%c0_2, %c0_3, %c0_4] : memref<2x1x16xf32, #tpu.memory_space<vmem>>, vector<1x1x16xf32>
    %3 = vector.shape_cast %2 : vector<1x1x16xf32> to vector<1x16xf32>
    %c0_5 = arith.constant 0 : index
    %c0_6 = arith.constant 0 : index
    %c0_7 = arith.constant 0 : index
    %4 = vector.load %arg3[%c0_5, %c0_6, %c0_7] : memref<2x1x16xf32, #tpu.memory_space<vmem>>, vector<1x1x16xf32>
    %5 = vector.shape_cast %4 : vector<1x1x16xf32> to vector<1x16xf32>
    %cst = arith.constant dense<0.000000e+00> : vector<64xf32>
    %6 = vector.multi_reduction <add>, %1, %cst [1] : vector<64x16xf32> to vector<64xf32>
    %7 = vector.shape_cast %6 : vector<64xf32> to vector<64x1xf32>
    %cst_8 = arith.constant 1.600000e+01 : f32
    %8 = vector.broadcast %cst_8 : f32 to vector<64x1xf32>
    %9 = arith.divf %7, %8 : vector<64x1xf32>
    %10 = vector.broadcast %9 : vector<64x1xf32> to vector<64x16xf32>
    %11 = arith.subf %1, %10 : vector<64x16xf32>
    %12 = arith.mulf %11, %11 : vector<64x16xf32>
    %cst_9 = arith.constant dense<0.000000e+00> : vector<64xf32>
    %13 = vector.multi_reduction <add>, %12, %cst_9 [1] : vector<64x16xf32> to vector<64xf32>
    %14 = vector.shape_cast %13 : vector<64xf32> to vector<64x1xf32>
    %cst_10 = arith.constant 1.600000e+01 : f32
    %15 = vector.broadcast %cst_10 : f32 to vector<64x1xf32>
    %16 = arith.divf %14, %15 : vector<64x1xf32>
    %17 = vector.broadcast %9 : vector<64x1xf32> to vector<64x16xf32>
    %18 = arith.subf %1, %17 : vector<64x16xf32>
    %cst_11 = arith.constant 9.99999974E-6 : f32
    %19 = vector.broadcast %cst_11 : f32 to vector<64x1xf32>
    %20 = arith.addf %16, %19 : vector<64x1xf32>
    %21 = math.rsqrt %20 : vector<64x1xf32>
    %22 = vector.broadcast %21 : vector<64x1xf32> to vector<64x16xf32>
    %23 = arith.mulf %18, %22 : vector<64x16xf32>
    %24 = vector.broadcast %3 : vector<1x16xf32> to vector<64x16xf32>
    %25 = arith.mulf %23, %24 : vector<64x16xf32>
    %26 = vector.broadcast %5 : vector<1x16xf32> to vector<64x16xf32>
    %27 = arith.addf %25, %26 : vector<64x16xf32>
    %c0_12 = arith.constant 0 : index
    %c0_13 = arith.constant 0 : index
    %c0_14 = arith.constant 0 : index
    %28 = vector.load %arg4[%c0_12, %c0_13, %c0_14] : memref<2x16x96xf32, #tpu.memory_space<vmem>>, vector<1x16x96xf32>
    %29 = vector.shape_cast %28 : vector<1x16x96xf32> to vector<16x96xf32>
    %cst_15 = arith.constant dense<0.000000e+00> : vector<64x96xf32>
    %30 = tpu.matmul %27, %29, %cst_15 {dimension_numbers = #tpu.dot_dimension_numbers<[1], [0], [0], [1], [0, 0, 1, 1], [], []>} : vector<64x16xf32>, vector<16x96xf32>, vector<64x96xf32> -> vector<64x96xf32>
    %31 = vector.extract_strided_slice %30 {offsets = [0, 0], sizes = [64, 8], strides = [1, 1]} : vector<64x96xf32> to vector<64x8xf32>
    %32 = vector.extract_strided_slice %30 {offsets = [0, 32], sizes = [64, 8], strides = [1, 1]} : vector<64x96xf32> to vector<64x8xf32>
    %33 = vector.extract_strided_slice %30 {offsets = [0, 64], sizes = [64, 8], strides = [1, 1]} : vector<64x96xf32> to vector<64x8xf32>
    %cst_16 = arith.constant dense<0.000000e+00> : vector<64x64xf32>
    %34 = tpu.matmul %31, %32, %cst_16 {dimension_numbers = #tpu.dot_dimension_numbers<[1], [1], [0], [0], [0, 0, 1, 0], [], []>} : vector<64x8xf32>, vector<64x8xf32>, vector<64x64xf32> -> vector<64x64xf32>
    %cst_17 = arith.constant 0.353553385 : f32
    %35 = vector.broadcast %cst_17 : f32 to vector<64x64xf32>
    %36 = arith.mulf %34, %35 : vector<64x64xf32>
    %cst_18 = arith.constant dense<0xFF800000> : vector<64xf32>
    %37 = vector.multi_reduction <maximumf>, %36, %cst_18 [1] : vector<64x64xf32> to vector<64xf32>
    %38 = vector.shape_cast %37 : vector<64xf32> to vector<64x1xf32>
    %39 = vector.broadcast %38 : vector<64x1xf32> to vector<64x64xf32>
    %40 = arith.subf %36, %39 : vector<64x64xf32>
    %41 = math.exp %40 : vector<64x64xf32>
    %cst_19 = arith.constant dense<0.000000e+00> : vector<64xf32>
    %42 = vector.multi_reduction <add>, %41, %cst_19 [1] : vector<64x64xf32> to vector<64xf32>
    %43 = vector.shape_cast %42 : vector<64xf32> to vector<64x1xf32>
    %44 = tpu.reciprocal %43 {approx = true} : vector<64x1xf32> -> vector<64x1xf32>
    %45 = vector.broadcast %44 : vector<64x1xf32> to vector<64x64xf32>
    %46 = arith.mulf %41, %45 : vector<64x64xf32>
    %cst_20 = arith.constant dense<0.000000e+00> : vector<64x8xf32>
    %47 = tpu.matmul %46, %33, %cst_20 {dimension_numbers = #tpu.dot_dimension_numbers<[1], [0], [0], [1], [0, 0, 1, 1], [], []>} : vector<64x64xf32>, vector<64x8xf32>, vector<64x8xf32> -> vector<64x8xf32>
    %48 = vector.extract_strided_slice %30 {offsets = [0, 8], sizes = [64, 8], strides = [1, 1]} : vector<64x96xf32> to vector<64x8xf32>
    %49 = vector.extract_strided_slice %30 {offsets = [0, 40], sizes = [64, 8], strides = [1, 1]} : vector<64x96xf32> to vector<64x8xf32>
    %50 = vector.extract_strided_slice %30 {offsets = [0, 72], sizes = [64, 8], strides = [1, 1]} : vector<64x96xf32> to vector<64x8xf32>
    %cst_21 = arith.constant dense<0.000000e+00> : vector<64x64xf32>
    %51 = tpu.matmul %48, %49, %cst_21 {dimension_numbers = #tpu.dot_dimension_numbers<[1], [1], [0], [0], [0, 0, 1, 0], [], []>} : vector<64x8xf32>, vector<64x8xf32>, vector<64x64xf32> -> vector<64x64xf32>
    %cst_22 = arith.constant 0.353553385 : f32
    %52 = vector.broadcast %cst_22 : f32 to vector<64x64xf32>
    %53 = arith.mulf %51, %52 : vector<64x64xf32>
    %cst_23 = arith.constant dense<0xFF800000> : vector<64xf32>
    %54 = vector.multi_reduction <maximumf>, %53, %cst_23 [1] : vector<64x64xf32> to vector<64xf32>
    %55 = vector.shape_cast %54 : vector<64xf32> to vector<64x1xf32>
    %56 = vector.broadcast %55 : vector<64x1xf32> to vector<64x64xf32>
    %57 = arith.subf %53, %56 : vector<64x64xf32>
    %58 = math.exp %57 : vector<64x64xf32>
    %cst_24 = arith.constant dense<0.000000e+00> : vector<64xf32>
    %59 = vector.multi_reduction <add>, %58, %cst_24 [1] : vector<64x64xf32> to vector<64xf32>
    %60 = vector.shape_cast %59 : vector<64xf32> to vector<64x1xf32>
    %61 = tpu.reciprocal %60 {approx = true} : vector<64x1xf32> -> vector<64x1xf32>
    %62 = vector.broadcast %61 : vector<64x1xf32> to vector<64x64xf32>
    %63 = arith.mulf %58, %62 : vector<64x64xf32>
    %cst_25 = arith.constant dense<0.000000e+00> : vector<64x8xf32>
    %64 = tpu.matmul %63, %50, %cst_25 {dimension_numbers = #tpu.dot_dimension_numbers<[1], [0], [0], [1], [0, 0, 1, 1], [], []>} : vector<64x64xf32>, vector<64x8xf32>, vector<64x8xf32> -> vector<64x8xf32>
    %65 = vector.extract_strided_slice %30 {offsets = [0, 16], sizes = [64, 8], strides = [1, 1]} : vector<64x96xf32> to vector<64x8xf32>
    %66 = vector.extract_strided_slice %30 {offsets = [0, 48], sizes = [64, 8], strides = [1, 1]} : vector<64x96xf32> to vector<64x8xf32>
    %67 = vector.extract_strided_slice %30 {offsets = [0, 80], sizes = [64, 8], strides = [1, 1]} : vector<64x96xf32> to vector<64x8xf32>
    %cst_26 = arith.constant dense<0.000000e+00> : vector<64x64xf32>
    %68 = tpu.matmul %65, %66, %cst_26 {dimension_numbers = #tpu.dot_dimension_numbers<[1], [1], [0], [0], [0, 0, 1, 0], [], []>} : vector<64x8xf32>, vector<64x8xf32>, vector<64x64xf32> -> vector<64x64xf32>
    %cst_27 = arith.constant 0.353553385 : f32
    %69 = vector.broadcast %cst_27 : f32 to vector<64x64xf32>
    %70 = arith.mulf %68, %69 : vector<64x64xf32>
    %cst_28 = arith.constant dense<0xFF800000> : vector<64xf32>
    %71 = vector.multi_reduction <maximumf>, %70, %cst_28 [1] : vector<64x64xf32> to vector<64xf32>
    %72 = vector.shape_cast %71 : vector<64xf32> to vector<64x1xf32>
    %73 = vector.broadcast %72 : vector<64x1xf32> to vector<64x64xf32>
    %74 = arith.subf %70, %73 : vector<64x64xf32>
    %75 = math.exp %74 : vector<64x64xf32>
    %cst_29 = arith.constant dense<0.000000e+00> : vector<64xf32>
    %76 = vector.multi_reduction <add>, %75, %cst_29 [1] : vector<64x64xf32> to vector<64xf32>
    %77 = vector.shape_cast %76 : vector<64xf32> to vector<64x1xf32>
    %78 = tpu.reciprocal %77 {approx = true} : vector<64x1xf32> -> vector<64x1xf32>
    %79 = vector.broadcast %78 : vector<64x1xf32> to vector<64x64xf32>
    %80 = arith.mulf %75, %79 : vector<64x64xf32>
    %cst_30 = arith.constant dense<0.000000e+00> : vector<64x8xf32>
    %81 = tpu.matmul %80, %67, %cst_30 {dimension_numbers = #tpu.dot_dimension_numbers<[1], [0], [0], [1], [0, 0, 1, 1], [], []>} : vector<64x64xf32>, vector<64x8xf32>, vector<64x8xf32> -> vector<64x8xf32>
    %82 = vector.extract_strided_slice %30 {offsets = [0, 24], sizes = [64, 8], strides = [1, 1]} : vector<64x96xf32> to vector<64x8xf32>
    %83 = vector.extract_strided_slice %30 {offsets = [0, 56], sizes = [64, 8], strides = [1, 1]} : vector<64x96xf32> to vector<64x8xf32>
    %84 = vector.extract_strided_slice %30 {offsets = [0, 88], sizes = [64, 8], strides = [1, 1]} : vector<64x96xf32> to vector<64x8xf32>
    %cst_31 = arith.constant dense<0.000000e+00> : vector<64x64xf32>
    %85 = tpu.matmul %82, %83, %cst_31 {dimension_numbers = #tpu.dot_dimension_numbers<[1], [1], [0], [0], [0, 0, 1, 0], [], []>} : vector<64x8xf32>, vector<64x8xf32>, vector<64x64xf32> -> vector<64x64xf32>
    %cst_32 = arith.constant 0.353553385 : f32
    %86 = vector.broadcast %cst_32 : f32 to vector<64x64xf32>
    %87 = arith.mulf %85, %86 : vector<64x64xf32>
    %cst_33 = arith.constant dense<0xFF800000> : vector<64xf32>
    %88 = vector.multi_reduction <maximumf>, %87, %cst_33 [1] : vector<64x64xf32> to vector<64xf32>
    %89 = vector.shape_cast %88 : vector<64xf32> to vector<64x1xf32>
    %90 = vector.broadcast %89 : vector<64x1xf32> to vector<64x64xf32>
    %91 = arith.subf %87, %90 : vector<64x64xf32>
    %92 = math.exp %91 : vector<64x64xf32>
    %cst_34 = arith.constant dense<0.000000e+00> : vector<64xf32>
    %93 = vector.multi_reduction <add>, %92, %cst_34 [1] : vector<64x64xf32> to vector<64xf32>
    %94 = vector.shape_cast %93 : vector<64xf32> to vector<64x1xf32>
    %95 = tpu.reciprocal %94 {approx = true} : vector<64x1xf32> -> vector<64x1xf32>
    %96 = vector.broadcast %95 : vector<64x1xf32> to vector<64x64xf32>
    %97 = arith.mulf %92, %96 : vector<64x64xf32>
    %cst_35 = arith.constant dense<0.000000e+00> : vector<64x8xf32>
    %98 = tpu.matmul %97, %84, %cst_35 {dimension_numbers = #tpu.dot_dimension_numbers<[1], [0], [0], [1], [0, 0, 1, 1], [], []>} : vector<64x64xf32>, vector<64x8xf32>, vector<64x8xf32> -> vector<64x8xf32>
    %99 = tpu.concatenate %47, %64, %81, %98 in 1 : vector<64x8xf32>, vector<64x8xf32>, vector<64x8xf32>, vector<64x8xf32> -> vector<64x32xf32>
    %c0_36 = arith.constant 0 : index
    %c0_37 = arith.constant 0 : index
    %c0_38 = arith.constant 0 : index
    %100 = vector.load %arg5[%c0_36, %c0_37, %c0_38] : memref<2x32x16xf32, #tpu.memory_space<vmem>>, vector<1x32x16xf32>
    %101 = vector.shape_cast %100 : vector<1x32x16xf32> to vector<32x16xf32>
    %cst_39 = arith.constant dense<0.000000e+00> : vector<64x16xf32>
    %102 = tpu.matmul %99, %101, %cst_39 {dimension_numbers = #tpu.dot_dimension_numbers<[1], [0], [0], [1], [0, 0, 1, 1], [], []>} : vector<64x32xf32>, vector<32x16xf32>, vector<64x16xf32> -> vector<64x16xf32>
    %c0_40 = arith.constant 0 : index
    %c0_41 = arith.constant 0 : index
    %c0_42 = arith.constant 0 : index
    %103 = vector.load %arg6[%c0_40, %c0_41, %c0_42] : memref<2x1x16xf32, #tpu.memory_space<vmem>>, vector<1x1x16xf32>
    %104 = vector.shape_cast %103 : vector<1x1x16xf32> to vector<1x16xf32>
    %105 = vector.broadcast %104 : vector<1x16xf32> to vector<64x16xf32>
    %106 = arith.addf %102, %105 : vector<64x16xf32>
    %107 = arith.addf %1, %106 : vector<64x16xf32>
    %c0_43 = arith.constant 0 : index
    %c0_44 = arith.constant 0 : index
    %c0_45 = arith.constant 0 : index
    %108 = vector.load %arg7[%c0_43, %c0_44, %c0_45] : memref<2x1x16xf32, #tpu.memory_space<vmem>>, vector<1x1x16xf32>
    %109 = vector.shape_cast %108 : vector<1x1x16xf32> to vector<1x16xf32>
    %c0_46 = arith.constant 0 : index
    %c0_47 = arith.constant 0 : index
    %c0_48 = arith.constant 0 : index
    %110 = vector.load %arg8[%c0_46, %c0_47, %c0_48] : memref<2x1x16xf32, #tpu.memory_space<vmem>>, vector<1x1x16xf32>
    %111 = vector.shape_cast %110 : vector<1x1x16xf32> to vector<1x16xf32>
    %cst_49 = arith.constant dense<0.000000e+00> : vector<64xf32>
    %112 = vector.multi_reduction <add>, %107, %cst_49 [1] : vector<64x16xf32> to vector<64xf32>
    %113 = vector.shape_cast %112 : vector<64xf32> to vector<64x1xf32>
    %cst_50 = arith.constant 1.600000e+01 : f32
    %114 = vector.broadcast %cst_50 : f32 to vector<64x1xf32>
    %115 = arith.divf %113, %114 : vector<64x1xf32>
    %116 = vector.broadcast %115 : vector<64x1xf32> to vector<64x16xf32>
    %117 = arith.subf %107, %116 : vector<64x16xf32>
    %118 = arith.mulf %117, %117 : vector<64x16xf32>
    %cst_51 = arith.constant dense<0.000000e+00> : vector<64xf32>
    %119 = vector.multi_reduction <add>, %118, %cst_51 [1] : vector<64x16xf32> to vector<64xf32>
    %120 = vector.shape_cast %119 : vector<64xf32> to vector<64x1xf32>
    %cst_52 = arith.constant 1.600000e+01 : f32
    %121 = vector.broadcast %cst_52 : f32 to vector<64x1xf32>
    %122 = arith.divf %120, %121 : vector<64x1xf32>
    %123 = vector.broadcast %115 : vector<64x1xf32> to vector<64x16xf32>
    %124 = arith.subf %107, %123 : vector<64x16xf32>
    %cst_53 = arith.constant 9.99999974E-6 : f32
    %125 = vector.broadcast %cst_53 : f32 to vector<64x1xf32>
    %126 = arith.addf %122, %125 : vector<64x1xf32>
    %127 = math.rsqrt %126 : vector<64x1xf32>
    %128 = vector.broadcast %127 : vector<64x1xf32> to vector<64x16xf32>
    %129 = arith.mulf %124, %128 : vector<64x16xf32>
    %130 = vector.broadcast %109 : vector<1x16xf32> to vector<64x16xf32>
    %131 = arith.mulf %129, %130 : vector<64x16xf32>
    %132 = vector.broadcast %111 : vector<1x16xf32> to vector<64x16xf32>
    %133 = arith.addf %131, %132 : vector<64x16xf32>
    %c0_54 = arith.constant 0 : index
    %c0_55 = arith.constant 0 : index
    %c0_56 = arith.constant 0 : index
    %134 = vector.load %arg9[%c0_54, %c0_55, %c0_56] : memref<2x16x32xf32, #tpu.memory_space<vmem>>, vector<1x16x32xf32>
    %135 = vector.shape_cast %134 : vector<1x16x32xf32> to vector<16x32xf32>
    %cst_57 = arith.constant dense<0.000000e+00> : vector<64x32xf32>
    %136 = tpu.matmul %133, %135, %cst_57 {dimension_numbers = #tpu.dot_dimension_numbers<[1], [0], [0], [1], [0, 0, 1, 1], [], []>} : vector<64x16xf32>, vector<16x32xf32>, vector<64x32xf32> -> vector<64x32xf32>
    %c0_58 = arith.constant 0 : index
    %c0_59 = arith.constant 0 : index
    %c0_60 = arith.constant 0 : index
    %137 = vector.load %arg10[%c0_58, %c0_59, %c0_60] : memref<2x1x32xf32, #tpu.memory_space<vmem>>, vector<1x1x32xf32>
    %138 = vector.shape_cast %137 : vector<1x1x32xf32> to vector<1x32xf32>
    %139 = vector.broadcast %138 : vector<1x32xf32> to vector<64x32xf32>
    %140 = arith.addf %136, %139 : vector<64x32xf32>
    %141 = math.absf %140 : vector<64x32xf32>
    %cst_61 = arith.constant 0.000000e+00 : f32
    %142 = vector.broadcast %cst_61 : f32 to vector<64x32xf32>
    %143 = arith.subf %142, %141 : vector<64x32xf32>
    %144 = math.exp %143 : vector<64x32xf32>
    %cst_62 = arith.constant 1.000000e+00 : f32
    %145 = vector.broadcast %cst_62 : f32 to vector<64x32xf32>
    %146 = arith.addf %145, %144 : vector<64x32xf32>
    %147 = tpu.reciprocal %146 {approx = true} : vector<64x32xf32> -> vector<64x32xf32>
    %cst_63 = arith.constant 0.000000e+00 : f32
    %148 = vector.broadcast %cst_63 : f32 to vector<64x32xf32>
    %149 = arith.cmpf oge, %140, %148 : vector<64x32xf32>
    %150 = arith.mulf %144, %147 : vector<64x32xf32>
    %151 = arith.select %149, %147, %150 : vector<64x32xi1>, vector<64x32xf32>
    %152 = arith.mulf %140, %151 : vector<64x32xf32>
    %c0_64 = arith.constant 0 : index
    %c0_65 = arith.constant 0 : index
    %c0_66 = arith.constant 0 : index
    %153 = vector.load %arg11[%c0_64, %c0_65, %c0_66] : memref<2x32x16xf32, #tpu.memory_space<vmem>>, vector<1x32x16xf32>
    %154 = vector.shape_cast %153 : vector<1x32x16xf32> to vector<32x16xf32>
    %cst_67 = arith.constant dense<0.000000e+00> : vector<64x16xf32>
    %155 = tpu.matmul %152, %154, %cst_67 {dimension_numbers = #tpu.dot_dimension_numbers<[1], [0], [0], [1], [0, 0, 1, 1], [], []>} : vector<64x32xf32>, vector<32x16xf32>, vector<64x16xf32> -> vector<64x16xf32>
    %156 = arith.addf %107, %155 : vector<64x16xf32>
    %c0_68 = arith.constant 0 : index
    %c0_69 = arith.constant 0 : index
    %c0_70 = arith.constant 0 : index
    %157 = vector.load %arg12[%c0_68, %c0_69, %c0_70] : memref<2x1x16xf32, #tpu.memory_space<vmem>>, vector<1x1x16xf32>
    %158 = vector.shape_cast %157 : vector<1x1x16xf32> to vector<1x16xf32>
    %159 = vector.broadcast %158 : vector<1x16xf32> to vector<64x16xf32>
    %160 = arith.addf %156, %159 : vector<64x16xf32>
    %c1 = arith.constant 1 : index
    %c0_71 = arith.constant 0 : index
    %c0_72 = arith.constant 0 : index
    %161 = vector.load %arg2[%c1, %c0_71, %c0_72] : memref<2x1x16xf32, #tpu.memory_space<vmem>>, vector<1x1x16xf32>
    %162 = vector.shape_cast %161 : vector<1x1x16xf32> to vector<1x16xf32>
    %c1_73 = arith.constant 1 : index
    %c0_74 = arith.constant 0 : index
    %c0_75 = arith.constant 0 : index
    %163 = vector.load %arg3[%c1_73, %c0_74, %c0_75] : memref<2x1x16xf32, #tpu.memory_space<vmem>>, vector<1x1x16xf32>
    %164 = vector.shape_cast %163 : vector<1x1x16xf32> to vector<1x16xf32>
    %cst_76 = arith.constant dense<0.000000e+00> : vector<64xf32>
    %165 = vector.multi_reduction <add>, %160, %cst_76 [1] : vector<64x16xf32> to vector<64xf32>
    %166 = vector.shape_cast %165 : vector<64xf32> to vector<64x1xf32>
    %cst_77 = arith.constant 1.600000e+01 : f32
    %167 = vector.broadcast %cst_77 : f32 to vector<64x1xf32>
    %168 = arith.divf %166, %167 : vector<64x1xf32>
    %169 = vector.broadcast %168 : vector<64x1xf32> to vector<64x16xf32>
    %170 = arith.subf %160, %169 : vector<64x16xf32>
    %171 = arith.mulf %170, %170 : vector<64x16xf32>
    %cst_78 = arith.constant dense<0.000000e+00> : vector<64xf32>
    %172 = vector.multi_reduction <add>, %171, %cst_78 [1] : vector<64x16xf32> to vector<64xf32>
    %173 = vector.shape_cast %172 : vector<64xf32> to vector<64x1xf32>
    %cst_79 = arith.constant 1.600000e+01 : f32
    %174 = vector.broadcast %cst_79 : f32 to vector<64x1xf32>
    %175 = arith.divf %173, %174 : vector<64x1xf32>
    %176 = vector.broadcast %168 : vector<64x1xf32> to vector<64x16xf32>
    %177 = arith.subf %160, %176 : vector<64x16xf32>
    %cst_80 = arith.constant 9.99999974E-6 : f32
    %178 = vector.broadcast %cst_80 : f32 to vector<64x1xf32>
    %179 = arith.addf %175, %178 : vector<64x1xf32>
    %180 = math.rsqrt %179 : vector<64x1xf32>
    %181 = vector.broadcast %180 : vector<64x1xf32> to vector<64x16xf32>
    %182 = arith.mulf %177, %181 : vector<64x16xf32>
    %183 = vector.broadcast %162 : vector<1x16xf32> to vector<64x16xf32>
    %184 = arith.mulf %182, %183 : vector<64x16xf32>
    %185 = vector.broadcast %164 : vector<1x16xf32> to vector<64x16xf32>
    %186 = arith.addf %184, %185 : vector<64x16xf32>
    %c1_81 = arith.constant 1 : index
    %c0_82 = arith.constant 0 : index
    %c0_83 = arith.constant 0 : index
    %187 = vector.load %arg4[%c1_81, %c0_82, %c0_83] : memref<2x16x96xf32, #tpu.memory_space<vmem>>, vector<1x16x96xf32>
    %188 = vector.shape_cast %187 : vector<1x16x96xf32> to vector<16x96xf32>
    %cst_84 = arith.constant dense<0.000000e+00> : vector<64x96xf32>
    %189 = tpu.matmul %186, %188, %cst_84 {dimension_numbers = #tpu.dot_dimension_numbers<[1], [0], [0], [1], [0, 0, 1, 1], [], []>} : vector<64x16xf32>, vector<16x96xf32>, vector<64x96xf32> -> vector<64x96xf32>
    %190 = vector.extract_strided_slice %189 {offsets = [0, 0], sizes = [64, 8], strides = [1, 1]} : vector<64x96xf32> to vector<64x8xf32>
    %191 = vector.extract_strided_slice %189 {offsets = [0, 32], sizes = [64, 8], strides = [1, 1]} : vector<64x96xf32> to vector<64x8xf32>
    %192 = vector.extract_strided_slice %189 {offsets = [0, 64], sizes = [64, 8], strides = [1, 1]} : vector<64x96xf32> to vector<64x8xf32>
    %cst_85 = arith.constant dense<0.000000e+00> : vector<64x64xf32>
    %193 = tpu.matmul %190, %191, %cst_85 {dimension_numbers = #tpu.dot_dimension_numbers<[1], [1], [0], [0], [0, 0, 1, 0], [], []>} : vector<64x8xf32>, vector<64x8xf32>, vector<64x64xf32> -> vector<64x64xf32>
    %cst_86 = arith.constant 0.353553385 : f32
    %194 = vector.broadcast %cst_86 : f32 to vector<64x64xf32>
    %195 = arith.mulf %193, %194 : vector<64x64xf32>
    %cst_87 = arith.constant dense<0xFF800000> : vector<64xf32>
    %196 = vector.multi_reduction <maximumf>, %195, %cst_87 [1] : vector<64x64xf32> to vector<64xf32>
    %197 = vector.shape_cast %196 : vector<64xf32> to vector<64x1xf32>
    %198 = vector.broadcast %197 : vector<64x1xf32> to vector<64x64xf32>
    %199 = arith.subf %195, %198 : vector<64x64xf32>
    %200 = math.exp %199 : vector<64x64xf32>
    %cst_88 = arith.constant dense<0.000000e+00> : vector<64xf32>
    %201 = vector.multi_reduction <add>, %200, %cst_88 [1] : vector<64x64xf32> to vector<64xf32>
    %202 = vector.shape_cast %201 : vector<64xf32> to vector<64x1xf32>
    %203 = tpu.reciprocal %202 {approx = true} : vector<64x1xf32> -> vector<64x1xf32>
    %204 = vector.broadcast %203 : vector<64x1xf32> to vector<64x64xf32>
    %205 = arith.mulf %200, %204 : vector<64x64xf32>
    %cst_89 = arith.constant dense<0.000000e+00> : vector<64x8xf32>
    %206 = tpu.matmul %205, %192, %cst_89 {dimension_numbers = #tpu.dot_dimension_numbers<[1], [0], [0], [1], [0, 0, 1, 1], [], []>} : vector<64x64xf32>, vector<64x8xf32>, vector<64x8xf32> -> vector<64x8xf32>
    %207 = vector.extract_strided_slice %189 {offsets = [0, 8], sizes = [64, 8], strides = [1, 1]} : vector<64x96xf32> to vector<64x8xf32>
    %208 = vector.extract_strided_slice %189 {offsets = [0, 40], sizes = [64, 8], strides = [1, 1]} : vector<64x96xf32> to vector<64x8xf32>
    %209 = vector.extract_strided_slice %189 {offsets = [0, 72], sizes = [64, 8], strides = [1, 1]} : vector<64x96xf32> to vector<64x8xf32>
    %cst_90 = arith.constant dense<0.000000e+00> : vector<64x64xf32>
    %210 = tpu.matmul %207, %208, %cst_90 {dimension_numbers = #tpu.dot_dimension_numbers<[1], [1], [0], [0], [0, 0, 1, 0], [], []>} : vector<64x8xf32>, vector<64x8xf32>, vector<64x64xf32> -> vector<64x64xf32>
    %cst_91 = arith.constant 0.353553385 : f32
    %211 = vector.broadcast %cst_91 : f32 to vector<64x64xf32>
    %212 = arith.mulf %210, %211 : vector<64x64xf32>
    %cst_92 = arith.constant dense<0xFF800000> : vector<64xf32>
    %213 = vector.multi_reduction <maximumf>, %212, %cst_92 [1] : vector<64x64xf32> to vector<64xf32>
    %214 = vector.shape_cast %213 : vector<64xf32> to vector<64x1xf32>
    %215 = vector.broadcast %214 : vector<64x1xf32> to vector<64x64xf32>
    %216 = arith.subf %212, %215 : vector<64x64xf32>
    %217 = math.exp %216 : vector<64x64xf32>
    %cst_93 = arith.constant dense<0.000000e+00> : vector<64xf32>
    %218 = vector.multi_reduction <add>, %217, %cst_93 [1] : vector<64x64xf32> to vector<64xf32>
    %219 = vector.shape_cast %218 : vector<64xf32> to vector<64x1xf32>
    %220 = tpu.reciprocal %219 {approx = true} : vector<64x1xf32> -> vector<64x1xf32>
    %221 = vector.broadcast %220 : vector<64x1xf32> to vector<64x64xf32>
    %222 = arith.mulf %217, %221 : vector<64x64xf32>
    %cst_94 = arith.constant dense<0.000000e+00> : vector<64x8xf32>
    %223 = tpu.matmul %222, %209, %cst_94 {dimension_numbers = #tpu.dot_dimension_numbers<[1], [0], [0], [1], [0, 0, 1, 1], [], []>} : vector<64x64xf32>, vector<64x8xf32>, vector<64x8xf32> -> vector<64x8xf32>
    %224 = vector.extract_strided_slice %189 {offsets = [0, 16], sizes = [64, 8], strides = [1, 1]} : vector<64x96xf32> to vector<64x8xf32>
    %225 = vector.extract_strided_slice %189 {offsets = [0, 48], sizes = [64, 8], strides = [1, 1]} : vector<64x96xf32> to vector<64x8xf32>
    %226 = vector.extract_strided_slice %189 {offsets = [0, 80], sizes = [64, 8], strides = [1, 1]} : vector<64x96xf32> to vector<64x8xf32>
    %cst_95 = arith.constant dense<0.000000e+00> : vector<64x64xf32>
    %227 = tpu.matmul %224, %225, %cst_95 {dimension_numbers = #tpu.dot_dimension_numbers<[1], [1], [0], [0], [0, 0, 1, 0], [], []>} : vector<64x8xf32>, vector<64x8xf32>, vector<64x64xf32> -> vector<64x64xf32>
    %cst_96 = arith.constant 0.353553385 : f32
    %228 = vector.broadcast %cst_96 : f32 to vector<64x64xf32>
    %229 = arith.mulf %227, %228 : vector<64x64xf32>
    %cst_97 = arith.constant dense<0xFF800000> : vector<64xf32>
    %230 = vector.multi_reduction <maximumf>, %229, %cst_97 [1] : vector<64x64xf32> to vector<64xf32>
    %231 = vector.shape_cast %230 : vector<64xf32> to vector<64x1xf32>
    %232 = vector.broadcast %231 : vector<64x1xf32> to vector<64x64xf32>
    %233 = arith.subf %229, %232 : vector<64x64xf32>
    %234 = math.exp %233 : vector<64x64xf32>
    %cst_98 = arith.constant dense<0.000000e+00> : vector<64xf32>
    %235 = vector.multi_reduction <add>, %234, %cst_98 [1] : vector<64x64xf32> to vector<64xf32>
    %236 = vector.shape_cast %235 : vector<64xf32> to vector<64x1xf32>
    %237 = tpu.reciprocal %236 {approx = true} : vector<64x1xf32> -> vector<64x1xf32>
    %238 = vector.broadcast %237 : vector<64x1xf32> to vector<64x64xf32>
    %239 = arith.mulf %234, %238 : vector<64x64xf32>
    %cst_99 = arith.constant dense<0.000000e+00> : vector<64x8xf32>
    %240 = tpu.matmul %239, %226, %cst_99 {dimension_numbers = #tpu.dot_dimension_numbers<[1], [0], [0], [1], [0, 0, 1, 1], [], []>} : vector<64x64xf32>, vector<64x8xf32>, vector<64x8xf32> -> vector<64x8xf32>
    %241 = vector.extract_strided_slice %189 {offsets = [0, 24], sizes = [64, 8], strides = [1, 1]} : vector<64x96xf32> to vector<64x8xf32>
    %242 = vector.extract_strided_slice %189 {offsets = [0, 56], sizes = [64, 8], strides = [1, 1]} : vector<64x96xf32> to vector<64x8xf32>
    %243 = vector.extract_strided_slice %189 {offsets = [0, 88], sizes = [64, 8], strides = [1, 1]} : vector<64x96xf32> to vector<64x8xf32>
    %cst_100 = arith.constant dense<0.000000e+00> : vector<64x64xf32>
    %244 = tpu.matmul %241, %242, %cst_100 {dimension_numbers = #tpu.dot_dimension_numbers<[1], [1], [0], [0], [0, 0, 1, 0], [], []>} : vector<64x8xf32>, vector<64x8xf32>, vector<64x64xf32> -> vector<64x64xf32>
    %cst_101 = arith.constant 0.353553385 : f32
    %245 = vector.broadcast %cst_101 : f32 to vector<64x64xf32>
    %246 = arith.mulf %244, %245 : vector<64x64xf32>
    %cst_102 = arith.constant dense<0xFF800000> : vector<64xf32>
    %247 = vector.multi_reduction <maximumf>, %246, %cst_102 [1] : vector<64x64xf32> to vector<64xf32>
    %248 = vector.shape_cast %247 : vector<64xf32> to vector<64x1xf32>
    %249 = vector.broadcast %248 : vector<64x1xf32> to vector<64x64xf32>
    %250 = arith.subf %246, %249 : vector<64x64xf32>
    %251 = math.exp %250 : vector<64x64xf32>
    %cst_103 = arith.constant dense<0.000000e+00> : vector<64xf32>
    %252 = vector.multi_reduction <add>, %251, %cst_103 [1] : vector<64x64xf32> to vector<64xf32>
    %253 = vector.shape_cast %252 : vector<64xf32> to vector<64x1xf32>
    %254 = tpu.reciprocal %253 {approx = true} : vector<64x1xf32> -> vector<64x1xf32>
    %255 = vector.broadcast %254 : vector<64x1xf32> to vector<64x64xf32>
    %256 = arith.mulf %251, %255 : vector<64x64xf32>
    %cst_104 = arith.constant dense<0.000000e+00> : vector<64x8xf32>
    %257 = tpu.matmul %256, %243, %cst_104 {dimension_numbers = #tpu.dot_dimension_numbers<[1], [0], [0], [1], [0, 0, 1, 1], [], []>} : vector<64x64xf32>, vector<64x8xf32>, vector<64x8xf32> -> vector<64x8xf32>
    %258 = tpu.concatenate %206, %223, %240, %257 in 1 : vector<64x8xf32>, vector<64x8xf32>, vector<64x8xf32>, vector<64x8xf32> -> vector<64x32xf32>
    %c1_105 = arith.constant 1 : index
    %c0_106 = arith.constant 0 : index
    %c0_107 = arith.constant 0 : index
    %259 = vector.load %arg5[%c1_105, %c0_106, %c0_107] : memref<2x32x16xf32, #tpu.memory_space<vmem>>, vector<1x32x16xf32>
    %260 = vector.shape_cast %259 : vector<1x32x16xf32> to vector<32x16xf32>
    %cst_108 = arith.constant dense<0.000000e+00> : vector<64x16xf32>
    %261 = tpu.matmul %258, %260, %cst_108 {dimension_numbers = #tpu.dot_dimension_numbers<[1], [0], [0], [1], [0, 0, 1, 1], [], []>} : vector<64x32xf32>, vector<32x16xf32>, vector<64x16xf32> -> vector<64x16xf32>
    %c1_109 = arith.constant 1 : index
    %c0_110 = arith.constant 0 : index
    %c0_111 = arith.constant 0 : index
    %262 = vector.load %arg6[%c1_109, %c0_110, %c0_111] : memref<2x1x16xf32, #tpu.memory_space<vmem>>, vector<1x1x16xf32>
    %263 = vector.shape_cast %262 : vector<1x1x16xf32> to vector<1x16xf32>
    %264 = vector.broadcast %263 : vector<1x16xf32> to vector<64x16xf32>
    %265 = arith.addf %261, %264 : vector<64x16xf32>
    %266 = arith.addf %160, %265 : vector<64x16xf32>
    %c1_112 = arith.constant 1 : index
    %c0_113 = arith.constant 0 : index
    %c0_114 = arith.constant 0 : index
    %267 = vector.load %arg7[%c1_112, %c0_113, %c0_114] : memref<2x1x16xf32, #tpu.memory_space<vmem>>, vector<1x1x16xf32>
    %268 = vector.shape_cast %267 : vector<1x1x16xf32> to vector<1x16xf32>
    %c1_115 = arith.constant 1 : index
    %c0_116 = arith.constant 0 : index
    %c0_117 = arith.constant 0 : index
    %269 = vector.load %arg8[%c1_115, %c0_116, %c0_117] : memref<2x1x16xf32, #tpu.memory_space<vmem>>, vector<1x1x16xf32>
    %270 = vector.shape_cast %269 : vector<1x1x16xf32> to vector<1x16xf32>
    %cst_118 = arith.constant dense<0.000000e+00> : vector<64xf32>
    %271 = vector.multi_reduction <add>, %266, %cst_118 [1] : vector<64x16xf32> to vector<64xf32>
    %272 = vector.shape_cast %271 : vector<64xf32> to vector<64x1xf32>
    %cst_119 = arith.constant 1.600000e+01 : f32
    %273 = vector.broadcast %cst_119 : f32 to vector<64x1xf32>
    %274 = arith.divf %272, %273 : vector<64x1xf32>
    %275 = vector.broadcast %274 : vector<64x1xf32> to vector<64x16xf32>
    %276 = arith.subf %266, %275 : vector<64x16xf32>
    %277 = arith.mulf %276, %276 : vector<64x16xf32>
    %cst_120 = arith.constant dense<0.000000e+00> : vector<64xf32>
    %278 = vector.multi_reduction <add>, %277, %cst_120 [1] : vector<64x16xf32> to vector<64xf32>
    %279 = vector.shape_cast %278 : vector<64xf32> to vector<64x1xf32>
    %cst_121 = arith.constant 1.600000e+01 : f32
    %280 = vector.broadcast %cst_121 : f32 to vector<64x1xf32>
    %281 = arith.divf %279, %280 : vector<64x1xf32>
    %282 = vector.broadcast %274 : vector<64x1xf32> to vector<64x16xf32>
    %283 = arith.subf %266, %282 : vector<64x16xf32>
    %cst_122 = arith.constant 9.99999974E-6 : f32
    %284 = vector.broadcast %cst_122 : f32 to vector<64x1xf32>
    %285 = arith.addf %281, %284 : vector<64x1xf32>
    %286 = math.rsqrt %285 : vector<64x1xf32>
    %287 = vector.broadcast %286 : vector<64x1xf32> to vector<64x16xf32>
    %288 = arith.mulf %283, %287 : vector<64x16xf32>
    %289 = vector.broadcast %268 : vector<1x16xf32> to vector<64x16xf32>
    %290 = arith.mulf %288, %289 : vector<64x16xf32>
    %291 = vector.broadcast %270 : vector<1x16xf32> to vector<64x16xf32>
    %292 = arith.addf %290, %291 : vector<64x16xf32>
    %c1_123 = arith.constant 1 : index
    %c0_124 = arith.constant 0 : index
    %c0_125 = arith.constant 0 : index
    %293 = vector.load %arg9[%c1_123, %c0_124, %c0_125] : memref<2x16x32xf32, #tpu.memory_space<vmem>>, vector<1x16x32xf32>
    %294 = vector.shape_cast %293 : vector<1x16x32xf32> to vector<16x32xf32>
    %cst_126 = arith.constant dense<0.000000e+00> : vector<64x32xf32>
    %295 = tpu.matmul %292, %294, %cst_126 {dimension_numbers = #tpu.dot_dimension_numbers<[1], [0], [0], [1], [0, 0, 1, 1], [], []>} : vector<64x16xf32>, vector<16x32xf32>, vector<64x32xf32> -> vector<64x32xf32>
    %c1_127 = arith.constant 1 : index
    %c0_128 = arith.constant 0 : index
    %c0_129 = arith.constant 0 : index
    %296 = vector.load %arg10[%c1_127, %c0_128, %c0_129] : memref<2x1x32xf32, #tpu.memory_space<vmem>>, vector<1x1x32xf32>
    %297 = vector.shape_cast %296 : vector<1x1x32xf32> to vector<1x32xf32>
    %298 = vector.broadcast %297 : vector<1x32xf32> to vector<64x32xf32>
    %299 = arith.addf %295, %298 : vector<64x32xf32>
    %300 = math.absf %299 : vector<64x32xf32>
    %cst_130 = arith.constant 0.000000e+00 : f32
    %301 = vector.broadcast %cst_130 : f32 to vector<64x32xf32>
    %302 = arith.subf %301, %300 : vector<64x32xf32>
    %303 = math.exp %302 : vector<64x32xf32>
    %cst_131 = arith.constant 1.000000e+00 : f32
    %304 = vector.broadcast %cst_131 : f32 to vector<64x32xf32>
    %305 = arith.addf %304, %303 : vector<64x32xf32>
    %306 = tpu.reciprocal %305 {approx = true} : vector<64x32xf32> -> vector<64x32xf32>
    %cst_132 = arith.constant 0.000000e+00 : f32
    %307 = vector.broadcast %cst_132 : f32 to vector<64x32xf32>
    %308 = arith.cmpf oge, %299, %307 : vector<64x32xf32>
    %309 = arith.mulf %303, %306 : vector<64x32xf32>
    %310 = arith.select %308, %306, %309 : vector<64x32xi1>, vector<64x32xf32>
    %311 = arith.mulf %299, %310 : vector<64x32xf32>
    %c1_133 = arith.constant 1 : index
    %c0_134 = arith.constant 0 : index
    %c0_135 = arith.constant 0 : index
    %312 = vector.load %arg11[%c1_133, %c0_134, %c0_135] : memref<2x32x16xf32, #tpu.memory_space<vmem>>, vector<1x32x16xf32>
    %313 = vector.shape_cast %312 : vector<1x32x16xf32> to vector<32x16xf32>
    %cst_136 = arith.constant dense<0.000000e+00> : vector<64x16xf32>
    %314 = tpu.matmul %311, %313, %cst_136 {dimension_numbers = #tpu.dot_dimension_numbers<[1], [0], [0], [1], [0, 0, 1, 1], [], []>} : vector<64x32xf32>, vector<32x16xf32>, vector<64x16xf32> -> vector<64x16xf32>
    %315 = arith.addf %266, %314 : vector<64x16xf32>
    %c1_137 = arith.constant 1 : index
    %c0_138 = arith.constant 0 : index
    %c0_139 = arith.constant 0 : index
    %316 = vector.load %arg12[%c1_137, %c0_138, %c0_139] : memref<2x1x16xf32, #tpu.memory_space<vmem>>, vector<1x1x16xf32>
    %317 = vector.shape_cast %316 : vector<1x1x16xf32> to vector<1x16xf32>
    %318 = vector.broadcast %317 : vector<1x16xf32> to vector<64x16xf32>
    %319 = arith.addf %315, %318 : vector<64x16xf32>
    %c0_140 = arith.constant 0 : index
    %c0_141 = arith.constant 0 : index
    %c0_142 = arith.constant 0 : index
    %320 = vector.load %arg13[%c0_140, %c0_141, %c0_142] : memref<1x64x16xf32, #tpu.memory_space<vmem>>, vector<1x64x16xf32>
    %321 = vector.shape_cast %320 : vector<1x64x16xf32> to vector<64x16xf32>
    %322 = vector.shape_cast %319 : vector<64x16xf32> to vector<1x64x16xf32>
    tpu.vector_store %arg13[%c0_140, %c0_141, %c0_142], %322 {strides = array<i32>} : memref<1x64x16xf32, #tpu.memory_space<vmem>>, vector<1x64x16xf32>,
    return
  }
  func.func @transform_0(%arg0: i32) -> (i32, i32, i32) {
    %c0_i32 = arith.constant 0 : i32
    %c0_i32_0 = arith.constant 0 : i32
    %c0_i32_1 = arith.constant 0 : i32
    return %arg0, %c0_i32, %c0_i32_0 : i32, i32, i32
  }
  func.func @transform_1(%arg0: i32) -> (i32, i32, i32) {
    %c0_i32 = arith.constant 0 : i32
    %c0_i32_0 = arith.constant 0 : i32
    %c0_i32_1 = arith.constant 0 : i32
    %c0_i32_2 = arith.constant 0 : i32
    return %c0_i32, %c0_i32_0, %c0_i32_1 : i32, i32, i32
  }
  func.func @transform_2(%arg0: i32) -> (i32, i32, i32) {
    %c0_i32 = arith.constant 0 : i32
    %c0_i32_0 = arith.constant 0 : i32
    %c0_i32_1 = arith.constant 0 : i32
    %c0_i32_2 = arith.constant 0 : i32
    return %c0_i32, %c0_i32_0, %c0_i32_1 : i32, i32, i32
  }
  func.func @transform_3(%arg0: i32) -> (i32, i32, i32) {
    %c0_i32 = arith.constant 0 : i32
    %c0_i32_0 = arith.constant 0 : i32
    %c0_i32_1 = arith.constant 0 : i32
    %c0_i32_2 = arith.constant 0 : i32
    return %c0_i32, %c0_i32_0, %c0_i32_1 : i32, i32, i32
  }
  func.func @transform_4(%arg0: i32) -> (i32, i32, i32) {
    %c0_i32 = arith.constant 0 : i32
    %c0_i32_0 = arith.constant 0 : i32
    %c0_i32_1 = arith.constant 0 : i32
    %c0_i32_2 = arith.constant 0 : i32
    return %c0_i32, %c0_i32_0, %c0_i32_1 : i32, i32, i32
  }
  func.func @transform_5(%arg0: i32) -> (i32, i32, i32) {
    %c0_i32 = arith.constant 0 : i32
    %c0_i32_0 = arith.constant 0 : i32
    %c0_i32_1 = arith.constant 0 : i32
    %c0_i32_2 = arith.constant 0 : i32
    return %c0_i32, %c0_i32_0, %c0_i32_1 : i32, i32, i32
  }
  func.func @transform_6(%arg0: i32) -> (i32, i32, i32) {
    %c0_i32 = arith.constant 0 : i32
    %c0_i32_0 = arith.constant 0 : i32
    %c0_i32_1 = arith.constant 0 : i32
    %c0_i32_2 = arith.constant 0 : i32
    return %c0_i32, %c0_i32_0, %c0_i32_1 : i32, i32, i32
  }
  func.func @transform_7(%arg0: i32) -> (i32, i32, i32) {
    %c0_i32 = arith.constant 0 : i32
    %c0_i32_0 = arith.constant 0 : i32
    %c0_i32_1 = arith.constant 0 : i32
    %c0_i32_2 = arith.constant 0 : i32
    return %c0_i32, %c0_i32_0, %c0_i32_1 : i32, i32, i32
  }
  func.func @transform_8(%arg0: i32) -> (i32, i32, i32) {
    %c0_i32 = arith.constant 0 : i32
    %c0_i32_0 = arith.constant 0 : i32
    %c0_i32_1 = arith.constant 0 : i32
    %c0_i32_2 = arith.constant 0 : i32
    return %c0_i32, %c0_i32_0, %c0_i32_1 : i32, i32, i32
  }
  func.func @transform_9(%arg0: i32) -> (i32, i32, i32) {
    %c0_i32 = arith.constant 0 : i32
    %c0_i32_0 = arith.constant 0 : i32
    %c0_i32_1 = arith.constant 0 : i32
    %c0_i32_2 = arith.constant 0 : i32
    return %c0_i32, %c0_i32_0, %c0_i32_1 : i32, i32, i32
  }
  func.func @transform_10(%arg0: i32) -> (i32, i32, i32) {
    %c0_i32 = arith.constant 0 : i32
    %c0_i32_0 = arith.constant 0 : i32
    %c0_i32_1 = arith.constant 0 : i32
    %c0_i32_2 = arith.constant 0 : i32
    return %c0_i32, %c0_i32_0, %c0_i32_1 : i32, i32, i32
  }
  func.func @transform_11(%arg0: i32) -> (i32, i32, i32) {
    %c0_i32 = arith.constant 0 : i32
    %c0_i32_0 = arith.constant 0 : i32
    %c0_i32_1 = arith.constant 0 : i32
    %c0_i32_2 = arith.constant 0 : i32
    return %c0_i32, %c0_i32_0, %c0_i32_1 : i32, i32, i32
  }
  func.func @transform_12(%arg0: i32) -> (i32, i32, i32) {
    %c0_i32 = arith.constant 0 : i32
    %c0_i32_0 = arith.constant 0 : i32
    %c0_i32_1 = arith.constant 0 : i32
    return %arg0, %c0_i32, %c0_i32_0 : i32, i32, i32
  }
}

module attributes {stable_mosaic.version = 11 : i64} {
  func.func @_conv_mm_kernel(%arg0: i32, %arg1: memref<16x256xf32, #tpu.memory_space<vmem>>, %arg2: memref<8x16xf32, #tpu.memory_space<vmem>>, %arg3: memref<8x1xf32, #tpu.memory_space<vmem>>, %arg4: memref<8x256xf32, #tpu.memory_space<vmem>>) attributes {dimension_semantics = [#tpu.dimension_semantics<parallel>], iteration_bounds = array<i64: 2>, scalar_prefetch = 0 : i64, scratch_operands = 0 : i64, tpu.core_type = #tpu.core_type<tc>, window_params = [{transform_indices = @transform_0, window_bounds = array<i64: 16, 256>}, {pipeline_mode = #tpu.pipeline_mode<synchronous>, transform_indices = @transform_1, window_bounds = array<i64: 8, 16>}, {pipeline_mode = #tpu.pipeline_mode<synchronous>, transform_indices = @transform_2, window_bounds = array<i64: 8, 1>}, {transform_indices = @transform_3, window_bounds = array<i64: 8, 256>}]} {
    %c0 = arith.constant 0 : index
    %c0_0 = arith.constant 0 : index
    %0 = vector.load %arg2[%c0, %c0_0] : memref<8x16xf32, #tpu.memory_space<vmem>>, vector<8x16xf32>
    %c0_1 = arith.constant 0 : index
    %c0_2 = arith.constant 0 : index
    %1 = vector.load %arg1[%c0_1, %c0_2] : memref<16x256xf32, #tpu.memory_space<vmem>>, vector<16x256xf32>
    %cst = arith.constant dense<0.000000e+00> : vector<8x256xf32>
    %2 = tpu.matmul %0, %1, %cst {dimension_numbers = #tpu.dot_dimension_numbers<[1], [0], [0], [1], [0, 0, 1, 1], [], []>} : vector<8x16xf32>, vector<16x256xf32>, vector<8x256xf32> -> vector<8x256xf32>
    %c0_3 = arith.constant 0 : index
    %c0_4 = arith.constant 0 : index
    %3 = vector.load %arg3[%c0_3, %c0_4] : memref<8x1xf32, #tpu.memory_space<vmem>>, vector<8x1xf32>
    %4 = vector.broadcast %3 : vector<8x1xf32> to vector<8x256xf32>
    %5 = arith.addf %2, %4 : vector<8x256xf32>
    %6 = math.absf %5 : vector<8x256xf32>
    %cst_5 = arith.constant 0.000000e+00 : f32
    %7 = vector.broadcast %cst_5 : f32 to vector<8x256xf32>
    %8 = arith.subf %7, %6 : vector<8x256xf32>
    %9 = math.exp %8 : vector<8x256xf32>
    %cst_6 = arith.constant 1.000000e+00 : f32
    %10 = vector.broadcast %cst_6 : f32 to vector<8x256xf32>
    %11 = arith.addf %10, %9 : vector<8x256xf32>
    %12 = tpu.reciprocal %11 {approx = true} : vector<8x256xf32> -> vector<8x256xf32>
    %cst_7 = arith.constant 0.000000e+00 : f32
    %13 = vector.broadcast %cst_7 : f32 to vector<8x256xf32>
    %14 = arith.cmpf oge, %5, %13 : vector<8x256xf32>
    %15 = arith.mulf %9, %12 : vector<8x256xf32>
    %16 = arith.select %14, %12, %15 : vector<8x256xi1>, vector<8x256xf32>
    %17 = arith.mulf %5, %16 : vector<8x256xf32>
    %c0_8 = arith.constant 0 : index
    %c0_9 = arith.constant 0 : index
    %18 = vector.load %arg4[%c0_8, %c0_9] : memref<8x256xf32, #tpu.memory_space<vmem>>, vector<8x256xf32>
    tpu.vector_store %arg4[%c0_8, %c0_9], %17 {strides = array<i32>} : memref<8x256xf32, #tpu.memory_space<vmem>>, vector<8x256xf32>,
    return
  }
  func.func @transform_0(%arg0: i32) -> (i32, i32) {
    %c0_i32 = arith.constant 0 : i32
    %c0_i32_0 = arith.constant 0 : i32
    return %c0_i32, %arg0 : i32, i32
  }
  func.func @transform_1(%arg0: i32) -> (i32, i32) {
    %c0_i32 = arith.constant 0 : i32
    %c0_i32_0 = arith.constant 0 : i32
    %c0_i32_1 = arith.constant 0 : i32
    return %c0_i32, %c0_i32_0 : i32, i32
  }
  func.func @transform_2(%arg0: i32) -> (i32, i32) {
    %c0_i32 = arith.constant 0 : i32
    %c0_i32_0 = arith.constant 0 : i32
    %c0_i32_1 = arith.constant 0 : i32
    return %c0_i32, %c0_i32_0 : i32, i32
  }
  func.func @transform_3(%arg0: i32) -> (i32, i32) {
    %c0_i32 = arith.constant 0 : i32
    %c0_i32_0 = arith.constant 0 : i32
    return %c0_i32, %arg0 : i32, i32
  }
}

module attributes {stable_mosaic.version = 11 : i64} {
  func.func @_conv_mm_res_kernel(%arg0: i32, %arg1: memref<144x256xf32, #tpu.memory_space<vmem>>, %arg2: memref<8x144xf32, #tpu.memory_space<vmem>>, %arg3: memref<8x1xf32, #tpu.memory_space<vmem>>, %arg4: memref<8x256xf32, #tpu.memory_space<vmem>>, %arg5: memref<8x256xf32, #tpu.memory_space<vmem>>) attributes {dimension_semantics = [#tpu.dimension_semantics<parallel>], iteration_bounds = array<i64: 2>, scalar_prefetch = 0 : i64, scratch_operands = 0 : i64, tpu.core_type = #tpu.core_type<tc>, window_params = [{transform_indices = @transform_0, window_bounds = array<i64: 144, 256>}, {pipeline_mode = #tpu.pipeline_mode<synchronous>, transform_indices = @transform_1, window_bounds = array<i64: 8, 144>}, {pipeline_mode = #tpu.pipeline_mode<synchronous>, transform_indices = @transform_2, window_bounds = array<i64: 8, 1>}, {transform_indices = @transform_3, window_bounds = array<i64: 8, 256>}, {transform_indices = @transform_4, window_bounds = array<i64: 8, 256>}]} {
    %c0 = arith.constant 0 : index
    %c0_0 = arith.constant 0 : index
    %0 = vector.load %arg2[%c0, %c0_0] : memref<8x144xf32, #tpu.memory_space<vmem>>, vector<8x144xf32>
    %c0_1 = arith.constant 0 : index
    %c0_2 = arith.constant 0 : index
    %1 = vector.load %arg1[%c0_1, %c0_2] : memref<144x256xf32, #tpu.memory_space<vmem>>, vector<144x256xf32>
    %cst = arith.constant dense<0.000000e+00> : vector<8x256xf32>
    %2 = tpu.matmul %0, %1, %cst {dimension_numbers = #tpu.dot_dimension_numbers<[1], [0], [0], [1], [0, 0, 1, 1], [], []>} : vector<8x144xf32>, vector<144x256xf32>, vector<8x256xf32> -> vector<8x256xf32>
    %c0_3 = arith.constant 0 : index
    %c0_4 = arith.constant 0 : index
    %3 = vector.load %arg3[%c0_3, %c0_4] : memref<8x1xf32, #tpu.memory_space<vmem>>, vector<8x1xf32>
    %4 = vector.broadcast %3 : vector<8x1xf32> to vector<8x256xf32>
    %5 = arith.addf %2, %4 : vector<8x256xf32>
    %6 = math.absf %5 : vector<8x256xf32>
    %cst_5 = arith.constant 0.000000e+00 : f32
    %7 = vector.broadcast %cst_5 : f32 to vector<8x256xf32>
    %8 = arith.subf %7, %6 : vector<8x256xf32>
    %9 = math.exp %8 : vector<8x256xf32>
    %cst_6 = arith.constant 1.000000e+00 : f32
    %10 = vector.broadcast %cst_6 : f32 to vector<8x256xf32>
    %11 = arith.addf %10, %9 : vector<8x256xf32>
    %12 = tpu.reciprocal %11 {approx = true} : vector<8x256xf32> -> vector<8x256xf32>
    %cst_7 = arith.constant 0.000000e+00 : f32
    %13 = vector.broadcast %cst_7 : f32 to vector<8x256xf32>
    %14 = arith.cmpf oge, %5, %13 : vector<8x256xf32>
    %15 = arith.mulf %9, %12 : vector<8x256xf32>
    %16 = arith.select %14, %12, %15 : vector<8x256xi1>, vector<8x256xf32>
    %17 = arith.mulf %5, %16 : vector<8x256xf32>
    %c0_8 = arith.constant 0 : index
    %c0_9 = arith.constant 0 : index
    %18 = vector.load %arg4[%c0_8, %c0_9] : memref<8x256xf32, #tpu.memory_space<vmem>>, vector<8x256xf32>
    %19 = arith.addf %17, %18 : vector<8x256xf32>
    %c0_10 = arith.constant 0 : index
    %c0_11 = arith.constant 0 : index
    %20 = vector.load %arg5[%c0_10, %c0_11] : memref<8x256xf32, #tpu.memory_space<vmem>>, vector<8x256xf32>
    tpu.vector_store %arg5[%c0_10, %c0_11], %19 {strides = array<i32>} : memref<8x256xf32, #tpu.memory_space<vmem>>, vector<8x256xf32>,
    return
  }
  func.func @transform_0(%arg0: i32) -> (i32, i32) {
    %c0_i32 = arith.constant 0 : i32
    %c0_i32_0 = arith.constant 0 : i32
    return %c0_i32, %arg0 : i32, i32
  }
  func.func @transform_1(%arg0: i32) -> (i32, i32) {
    %c0_i32 = arith.constant 0 : i32
    %c0_i32_0 = arith.constant 0 : i32
    %c0_i32_1 = arith.constant 0 : i32
    return %c0_i32, %c0_i32_0 : i32, i32
  }
  func.func @transform_2(%arg0: i32) -> (i32, i32) {
    %c0_i32 = arith.constant 0 : i32
    %c0_i32_0 = arith.constant 0 : i32
    %c0_i32_1 = arith.constant 0 : i32
    return %c0_i32, %c0_i32_0 : i32, i32
  }
  func.func @transform_3(%arg0: i32) -> (i32, i32) {
    %c0_i32 = arith.constant 0 : i32
    %c0_i32_0 = arith.constant 0 : i32
    return %c0_i32, %arg0 : i32, i32
  }
  func.func @transform_4(%arg0: i32) -> (i32, i32) {
    %c0_i32 = arith.constant 0 : i32
    %c0_i32_0 = arith.constant 0 : i32
    return %c0_i32, %arg0 : i32, i32
  }
}

</mosaic_0001>

<llo_original>
// kernel: mobilevit_residual_block.7
$region0: #{mobilevit_residual_block.7}
  #allocation0 [shape = 'u32[]', space=smem, size = 0x4, offset = 0x4, fixed_abs, tag = 'smem constant byte address 0x4 - core index']
  #allocation1 [shape = 'u32[72,128]{1,0:T(1,128)}', space=vmem, size = 0x9000, scoped, tag = 'internal scratch']
  %s0 = inlined_call_operand.vmem [shape: f32[72,512], index: 0, kind: input, shape index: {}]
  %s1 = inlined_call_operand.vmem [shape: f32[8,72], index: 1, kind: input, shape index: {}]
  %s2 = inlined_call_operand.vmem [shape: f32[8,1], index: 2, kind: input, shape index: {}]
  %s3 = inlined_call_operand.vmem [shape: f32[8,512], index: 3, kind: output, shape index: {}]
  %s4 = sld [smem:[#allocation0]]
  $region68: #{mobilevit_residual_block.7} parent=0
    _
  %s6 = ssub.s32 1, %s4
  %s7 = scalar_select 0, %s6, %s4
  $region1: #{mobilevit_residual_block.7} parent=0
    #allocation2 [shape = 'u8[147456]{0}', space=vmem, size = 0x24000, scoped, tag = 'input window, operand 0']
    loop: start=0, step=1, limit=4
    $region2: #{mobilevit_residual_block.7} parent=1 // loop_pre_header
      _
    $region3: #{mobilevit_residual_block.7} parent=1 // loop_header
      %s9 = sphi 0, %s13
      %p10 = scmp.ge.s32.totalorder %s9, 4
      %s19 = sphi 0, %s21
      %s22 = sphi 0, %s19
      %s23 = sphi 0, %s22
      %s39 = sphi 0, %s23
      %s43 = sphi 0, %s43
      %s45 = sphi 0, %s43
      %s46 = sphi 0, %s45
      %s60 = sphi 0, %s46
      %s64 = sphi 0, %s64
      %s66 = sphi 0, %s64
      %s67 = sphi 0, %s66
      %s81 = sphi 0, %s67
      %s87 = sphi 0, %s89
      %s90 = sphi 0, %s87
      %s91 = sphi 0, %s90
      %s107 = sphi 0, %s91
    $region4: #{mobilevit_residual_block.7} parent=1 // loop_header_branch
      %12 = sbr.rel (%p10) target = $region8
    $region5: #{mobilevit_residual_block.7} parent=1 // loop_body
      %s14 = ssub.s32 %s9, 1
      %s15 = ssub.s32 %s9, 2
      %s16 = sadd.s32 %s9, 1
      %s17 = ssub.s32 %s9, %s16
      %p18 = scmp.eq.s32.totalorder %s17, 0
      %s20 = sadd.s32 %s19, 1
      %s21 = scalar_select %p18, %s19, %s20
      %p24 = pneg %p18
      %p25 = scmp.eq.s32.totalorder %s9, 1
      %p26 = por %p24, %p25
      %p27 = scmp.ne.s32.totalorder %s19, %s22
      %p28 = scmp.eq.s32.totalorder %s9, 0
      %p29 = por %p27, %p28
      %p30 = scmp.ne.s32.totalorder %s19, %s22
      %p31 = scmp.eq.s32.totalorder %s14, 1
      %p32 = por %p30, %p31
      %p33 = scmp.ne.s32.totalorder %s22, %s23
      %p34 = scmp.eq.s32.totalorder %s14, 0
      %p35 = por %p33, %p34
      %p36 = scmp.ne.s32.totalorder %s22, %s23
      %p37 = scmp.eq.s32.totalorder %s15, 1
      %p38 = por %p36, %p37
      %p40 = scmp.ne.s32.totalorder %s23, %s39
      %p41 = scmp.eq.s32.totalorder %s15, 0
      %p42 = por %p40, %p41
      %s44 = sadd.s32 %s43, 1
      %p47 = scmp.eq.s32.totalorder %s9, 1
      %p48 = scmp.ne.s32.totalorder %s43, %s45
      %p49 = scmp.eq.s32.totalorder %s9, 0
      %p50 = por %p48, %p49
      %p51 = scmp.ne.s32.totalorder %s43, %s45
      %p52 = scmp.eq.s32.totalorder %s14, 1
      %p53 = por %p51, %p52
      %p54 = scmp.ne.s32.totalorder %s45, %s46
      %p55 = scmp.eq.s32.totalorder %s14, 0
      %p56 = por %p54, %p55
      %p57 = scmp.ne.s32.totalorder %s45, %s46
      %p58 = scmp.eq.s32.totalorder %s15, 1
      %p59 = por %p57, %p58
      %p61 = scmp.ne.s32.totalorder %s46, %s60
      %p62 = scmp.eq.s32.totalorder %s15, 0
      %p63 = por %p61, %p62
      %s65 = sadd.s32 %s64, 1
      %p68 = scmp.eq.s32.totalorder %s9, 1
      %p69 = scmp.ne.s32.totalorder %s64, %s66
      %p70 = scmp.eq.s32.totalorder %s9, 0
      %p71 = por %p69, %p70
      %p72 = scmp.ne.s32.totalorder %s64, %s66
      %p73 = scmp.eq.s32.totalorder %s14, 1
      %p74 = por %p72, %p73
      %p75 = scmp.ne.s32.totalorder %s66, %s67
      %p76 = scmp.eq.s32.totalorder %s14, 0
      %p77 = por %p75, %p76
      %p78 = scmp.ne.s32.totalorder %s66, %s67
      %p79 = scmp.eq.s32.totalorder %s15, 1
      %p80 = por %p78, %p79
      %p82 = scmp.ne.s32.totalorder %s67, %s81
      %p83 = scmp.eq.s32.totalorder %s15, 0
      %p84 = por %p82, %p83
      %s85 = ssub.s32 %s9, %s16
      %p86 = scmp.eq.s32.totalorder %s85, 0
      %s88 = sadd.s32 %s87, 1
      %s89 = scalar_select %p86, %s87, %s88
      %p92 = pneg %p86
      %p93 = scmp.eq.s32.totalorder %s9, 1
      %p94 = por %p92, %p93
      %p95 = scmp.ne.s32.totalorder %s87, %s90
      %p96 = scmp.eq.s32.totalorder %s9, 0
      %p97 = por %p95, %p96
      %p98 = scmp.ne.s32.totalorder %s87, %s90
      %p99 = scmp.eq.s32.totalorder %s14, 1
      %p100 = por %p98, %p99
      %p101 = scmp.ne.s32.totalorder %s90, %s91
      %p102 = scmp.eq.s32.totalorder %s14, 0
      %p103 = por %p101, %p102
      %p104 = scmp.ne.s32.totalorder %s90, %s91
      %p105 = scmp.eq.s32.totalorder %s15, 1
      %p106 = por %p104, %p105
      %p108 = scmp.ne.s32.totalorder %s91, %s107
      %p109 = scmp.eq.s32.totalorder %s15, 0
      %p110 = por %p108, %p109
      %p111 = scmp.le.s32.totalorder 1, %s9
      %p112 = scmp.lt.s32.totalorder %s9, 3
      %p113 = pnand %p111, %p112
      %p114 = pneg %p113
      // Predicated region
      $region9: #{mobilevit_residual_block.7} parent=5 // pred_check
        _
      $region10: #{mobilevit_residual_block.7} parent=5 // pred_check_branch
        %116 = sbr.rel (%p113) target = $region12
      $region11: #{mobilevit_residual_block.7} parent=5 // pred_region
        %s117 = ssub.s32 %s9, 1
        // Predicated region
        $region13: #{mobilevit_residual_block.7} parent=11 // pred_check
          %p118 = pneg %p56
        $region14: #{mobilevit_residual_block.7} parent=11 // pred_check_branch
          %120 = sbr.rel (%p118) target = $region16
        $region15: #{mobilevit_residual_block.7} parent=11 // pred_region
          _
        $region16: #{mobilevit_residual_block.7} parent=11 // pred_fallthru
          _
        // Predicated region
        $region17: #{mobilevit_residual_block.7} parent=11 // pred_check
          %p121 = pneg %p77
        $region18: #{mobilevit_residual_block.7} parent=11 // pred_check_branch
          %123 = sbr.rel (%p121) target = $region20
        $region19: #{mobilevit_residual_block.7} parent=11 // pred_region
          _
        $region20: #{mobilevit_residual_block.7} parent=11 // pred_fallthru
          _
      $region12: #{mobilevit_residual_block.7} parent=5 // pred_fallthru
        _
      %p124 = scmp.lt.s32.totalorder %s9, 2
      // Predicated region
      $region21: #{mobilevit_residual_block.7} parent=5 // pred_check
        %p125 = pneg %p124
      $region22: #{mobilevit_residual_block.7} parent=5 // pred_check_branch
        %127 = sbr.rel (%p125) target = $region24
      $region23: #{mobilevit_residual_block.7} parent=5 // pred_region
        // Predicated region
        $region25: #{mobilevit_residual_block.7} parent=23 // pred_check
          %p128 = pneg %p29
        $region26: #{mobilevit_residual_block.7} parent=23 // pred_check_branch
          %130 = sbr.rel (%p128) target = $region28
        $region27: #{mobilevit_residual_block.7} parent=23 // pred_region
          %s131 = sand.u32 %s19, 1
          %s132 = sand.u32 %s19, 1
          %s133 = smul.addr %s132, 144
          %s134 = scalar_lea.vmem [#allocation2], %s133
          %s135 = smul.u32 2, %s9
          %s136 = smul.addr %s135, 8
          %s137 = scalar_lea.vmem %s0, %s136
          // Predicated region
          $region29: #{mobilevit_residual_block.7} parent=27 // pred_check
            _
          $region30: #{mobilevit_residual_block.7} parent=27 // pred_check_branch
            %139 = sbr.rel (0) target = $region32
          $region31: #{mobilevit_residual_block.7} parent=27 // pred_region
            // Predicated region
            $region33: #{mobilevit_residual_block.7} parent=31 // pred_check
              _
            $region34: #{mobilevit_residual_block.7} parent=31 // pred_check_branch
              %141 = sbr.rel (0) target = $region36
            $region35: #{mobilevit_residual_block.7} parent=31 // pred_region
              loop: start=0, step=1, limit=1
              $region37: #{mobilevit_residual_block.7} parent=35 // loop_pre_header
                _
              $region38: #{mobilevit_residual_block.7} parent=35 // loop_header
                %s143 = sphi 0, %s147
                %p144 = scmp.ge.s32.totalorder %s143, 1
                %s148 = sphi %s137, %s137
                %s149 = sphi %s134, %s134
              $region39: #{mobilevit_residual_block.7} parent=35 // loop_header_branch
                %146 = sbr.rel (%p144) target = $region43
              $region40: #{mobilevit_residual_block.7} parent=35 // loop_body
                %v150 = vld [vmem:[%s148] sm:$0xff]
                %151 = vst [vmem:[%s149] sm:$0xff] %v150
                %v152 = vld [vmem:[%s148 + $0x8] sm:$0xff]
                %153 = vst [vmem:[%s149 + $0x8] sm:$0xff] %v152
                %v154 = vld [vmem:[%s148 + $0x20] sm:$0xff]
                %155 = vst [vmem:[%s149 + $0x10] sm:$0xff] %v154
                %v156 = vld [vmem:[%s148 + $0x28] sm:$0xff]
                %157 = vst [vmem:[%s149 + $0x18] sm:$0xff] %v156
                %v158 = vld [vmem:[%s148 + $0x40] sm:$0xff]
                %159 = vst [vmem:[%s149 + $0x20] sm:$0xff] %v158
                %v160 = vld [vmem:[%s148 + $0x48] sm:$0xff]
                %161 = vst [vmem:[%s149 + $0x28] sm:$0xff] %v160
                %v162 = vld [vmem:[%s148 + $0x60] sm:$0xff]
                %163 = vst [vmem:[%s149 + $0x30] sm:$0xff] %v162
                %v164 = vld [vmem:[%s148 + $0x68] sm:$0xff]
                %165 = vst [vmem:[%s149 + $0x38] sm:$0xff] %v164
                %v166 = vld [vmem:[%s148 + $0x80] sm:$0xff]
                %167 = vst [vmem:[%s149 + $0x40] sm:$0xff] %v166
                %v168 = vld [vmem:[%s148 + $0x88] sm:$0xff]
                %169 = vst [vmem:[%s149 + $0x48] sm:$0xff] %v168
                %v170 = vld [vmem:[%s148 + $0xa0] sm:$0xff]
                %171 = vst [vmem:[%s149 + $0x50] sm:$0xff] %v170
                %v172 = vld [vmem:[%s148 + $0xa8] sm:$0xff]
                %173 = vst [vmem:[%s149 + $0x58] sm:$0xff] %v172
                %v174 = vld [vmem:[%s148 + $0xc0] sm:$0xff]
                %175 = vst [vmem:[%s149 + $0x60] sm:$0xff] %v174
                %v176 = vld [vmem:[%s148 + $0xc8] sm:$0xff]
                %177 = vst [vmem:[%s149 + $0x68] sm:$0xff] %v176
                %v178 = vld [vmem:[%s148 + $0xe0] sm:$0xff]
                %179 = vst [vmem:[%s149 + $0x70] sm:$0xff] %v178
                %v180 = vld [vmem:[%s148 + $0xe8] sm:$0xff]
                %181 = vst [vmem:[%s149 + $0x78] sm:$0xff] %v180
                %v182 = vld [vmem:[%s148 + $0x100] sm:$0xff]
                %183 = vst [vmem:[%s149 + $0x80] sm:$0xff] %v182
                %v184 = vld [vmem:[%s148 + $0x108] sm:$0xff]
                %185 = vst [vmem:[%s149 + $0x88] sm:$0xff] %v184
              $region41: #{mobilevit_residual_block.7} parent=35 // loop_footer
                %s147 = sadd.s32 1, %s143
              $region42: #{mobilevit_residual_block.7} parent=35 // loop_footer_branch
                %142 = sbr.rel target = $region38
              $region43: #{mobilevit_residual_block.7} parent=35 // loop_exit
                _
            $region36: #{mobilevit_residual_block.7} parent=31 // pred_fallthru
              _
            // Predicated region
            $region44: #{mobilevit_residual_block.7} parent=31 // pred_check
              _
            $region45: #{mobilevit_residual_block.7} parent=31 // pred_check_branch
              %187 = sbr.rel target = $region47
            $region46: #{mobilevit_residual_block.7} parent=31 // pred_region
              _
            $region47: #{mobilevit_residual_block.7} parent=31 // pred_fallthru
              _
          $region32: #{mobilevit_residual_block.7} parent=27 // pred_fallthru
            _
          %188 = vnop
        $region28: #{mobilevit_residual_block.7} parent=23 // pred_fallthru
          _
      $region24: #{mobilevit_residual_block.7} parent=5 // pred_fallthru
        _
      %p189 = scmp.le.s32.totalorder 1, %s9
      %p190 = scmp.lt.s32.totalorder %s9, 3
      %p191 = pnand %p189, %p190
      %p192 = pneg %p191
      // Predicated region
      $region48: #{mobilevit_residual_block.7} parent=5 // pred_check
        _
      $region49: #{mobilevit_residual_block.7} parent=5 // pred_check_branch
        %194 = sbr.rel (%p191) target = $region51
      $region50: #{mobilevit_residual_block.7} parent=5 // pred_region
        %s195 = ssub.s32 %s9, 1
        %s196 = sand.u32 %s22, 1
        %s197 = sand.u32 %s22, 1
        %s198 = smul.addr %s197, 144
        %s199 = scalar_lea.vmem [#allocation2], %s198
        // Predicated region
        $region52: #{mobilevit_residual_block.7} parent=50 // pred_check
          %p200 = pneg %p35
        $region53: #{mobilevit_residual_block.7} parent=50 // pred_check_branch
          %202 = sbr.rel (%p200) target = $region55
        $region54: #{mobilevit_residual_block.7} parent=50 // pred_region
          _
        $region55: #{mobilevit_residual_block.7} parent=50 // pred_fallthru
          _
        %s203 = sand.u32 %s22, 1
        %s204 = sand.u32 %s22, 1
        %s205 = smul.addr %s204, 144
        %s206 = scalar_lea.vmem [#allocation2], %s205
        %p207 = pneg %p35
        %p208 = pneg %p32
        %p209 = pneg %p56
        %p210 = pneg %p53
        %p211 = pneg %p77
        %p212 = pneg %p74
        %p213 = pneg %p103
        %p214 = pneg %p100
        %s215 = smul.u32 2, %s14
        %p216 = scmp.lt.s32.totalorder %s215, 3
        %s217 = scalar_select %p216, %s215, 3
        %s218 = smul.addr %s217, 8
        %s219 = scalar_lea.vmem %s3, %s218
        %s220 = smul.u32 2, %s14
        %s221 = smul.u32 2, %s14
        %p222 = scmp.lt.s32.totalorder %s221, 3
        %s223 = scalar_select %p222, %s221, 3
        %s224 = smul.addr %s223, 8
        %s225 = scalar_lea.vmem %s3, %s224
        %s226 = smul.u32 2, %s14
        %v227 = vld [vmem:[%s1] sm:$0xff]
        %v228 = vld [vmem:[%s199] sm:$0xff]
        %v229 = vld [vmem:[%s199 + $0x8] sm:$0xff]
        %v230 = vld [vmem:[%s199 + $0x10] sm:$0xff]
        %v231 = vld [vmem:[%s199 + $0x18] sm:$0xff]
        %v232 = vld [vmem:[%s199 + $0x20] sm:$0xff]
        %v233 = vld [vmem:[%s199 + $0x28] sm:$0xff]
        %v234 = vld [vmem:[%s199 + $0x30] sm:$0xff]
        %v235 = vld [vmem:[%s199 + $0x38] sm:$0xff]
        %v236 = vld [vmem:[%s199 + $0x40] sm:$0xff]
        %v237 = vld [vmem:[%s199 + $0x48] sm:$0xff]
        %v238 = vld [vmem:[%s199 + $0x50] sm:$0xff]
        %v239 = vld [vmem:[%s199 + $0x58] sm:$0xff]
        %v240 = vld [vmem:[%s199 + $0x60] sm:$0xff]
        %v241 = vld [vmem:[%s199 + $0x68] sm:$0xff]
        %v242 = vld [vmem:[%s199 + $0x70] sm:$0xff]
        %v243 = vld [vmem:[%s199 + $0x78] sm:$0xff]
        %v244 = vld [vmem:[%s199 + $0x80] sm:$0xff]
        %v245 = vld [vmem:[%s199 + $0x88] sm:$0xff]
        %v246 = vld [vmem:[%s2] sm:$0xff]
        %248 = vset.pattern.permute.xlu0 0
        %249 = vperm.xlu0 %248, %v246
        %v250 = vpop.permute.xlu0 %249
        %vm252 = vcmask 588800
        %v254 = vsel %vm252, %v227, 0
        %256 = vmatpush.msra.mxu0 0.0
        %257 = vmatpush.msra.mxu0 0.0
        %258 = vmatpush.msra.mxu0 0.0
        %259 = vmatpush.msra.mxu0 0.0
        %260 = vmatpush.msra.mxu0 0.0
        %261 = vmatpush.msra.mxu0 0.0
        %262 = vmatpush.msra.mxu0 0.0
        %263 = vmatpush.msra.mxu0 %v244
        %264 = vmatpush.msra.mxu0 %v242
        %265 = vmatpush.msra.mxu0 %v240
        %266 = vmatpush.msra.mxu0 %v238
        %267 = vmatpush.msra.mxu0 %v236
        %268 = vmatpush.msra.mxu0 %v234
        %269 = vmatpush.msra.mxu0 %v232
        %270 = vmatpush.msra.mxu0 %v230
        %271 = vmatpush.msra.mxu0 %v228
        %272 = vmatmul.f32.gmra.mxu0 %v254
        %v273 = vpop.f32.mrf.mxu0
        %v274 = vadd.f32 %v250, %v273
        %275 = vdwg.mxu0
        %276 = vmatpush.msra.mxu0 0.0
        %277 = vmatpush.msra.mxu0 0.0
        %278 = vmatpush.msra.mxu0 0.0
        %279 = vmatpush.msra.mxu0 0.0
        %280 = vmatpush.msra.mxu0 0.0
        %281 = vmatpush.msra.mxu0 0.0
        %282 = vmatpush.msra.mxu0 0.0
        %283 = vmatpush.msra.mxu0 %v245
        %284 = vmatpush.msra.mxu0 %v243
        %285 = vmatpush.msra.mxu0 %v241
        %286 = vmatpush.msra.mxu0 %v239
        %287 = vmatpush.msra.mxu0 %v237
        %288 = vmatpush.msra.mxu0 %v235
        %289 = vmatpush.msra.mxu0 %v233
        %290 = vmatpush.msra.mxu0 %v231
        %291 = vmatpush.msra.mxu0 %v229
        %292 = vmatmul.f32.gmra.mxu0 %v254
        %v293 = vpop.f32.mrf.mxu0
        %v294 = vadd.f32 %v250, %v293
        %295 = vdwg.mxu0
        %v296 = vand.u32 2147483647, %v274
        %v297 = vand.u32 2147483647, %v294
        %v298 = vsub.f32 0.0, %v296
        %v299 = vsub.f32 0.0, %v297
        %v300 = vmul.f32 %v298, 1.442695
        %v301 = vpow.pop %v300
        %v302 = vmul.f32 %v299, 1.442695
        %v303 = vpow.pop %v302
        %v304 = vadd.f32 %v301, 1.0
        %v305 = vadd.f32 %v303, 1.0
        %v306 = vrcp.pop %v304
        %v307 = vrcp.pop %v305
        %vm308 = vcmp.ge.f32.partialorder %v274, 0.0
        %vm309 = vcmp.ge.f32.partialorder %v294, 0.0
        %v310 = vmul.f32 %v301, %v306
        %v311 = vmul.f32 %v303, %v307
        %v312 = vsel %vm308, %v306, %v310
        %v313 = vsel %vm309, %v307, %v311
        %v314 = vmul.f32 %v274, %v312
        %v315 = vmul.f32 %v294, %v313
        %316 = vst [vmem:[%s225] sm:$0xff] %v314
        %317 = vst [vmem:[%s225 + $0x8] sm:$0xff] %v315
        %s318 = smul.u32 2, %s14
        %p319 = scmp.lt.s32.totalorder %s318, 3
        %s320 = scalar_select %p319, %s318, 3
        %s321 = smul.addr %s320, 8
        %s322 = scalar_lea.vmem %s3, %s321
        // Predicated region
        $region56: #{mobilevit_residual_block.7} parent=50 // pred_check
          %p323 = pneg %p100
        $region57: #{mobilevit_residual_block.7} parent=50 // pred_check_branch
          %325 = sbr.rel (%p323) target = $region59
        $region58: #{mobilevit_residual_block.7} parent=50 // pred_region
          %s326 = smul.u32 2, %s14
        $region59: #{mobilevit_residual_block.7} parent=50 // pred_fallthru
          _
      $region51: #{mobilevit_residual_block.7} parent=5 // pred_fallthru
        _
      %p327 = scmp.le.s32.totalorder 2, %s9
      // Predicated region
      $region60: #{mobilevit_residual_block.7} parent=5 // pred_check
        %p328 = pneg %p327
      $region61: #{mobilevit_residual_block.7} parent=5 // pred_check_branch
        %330 = sbr.rel (%p328) target = $region63
      $region62: #{mobilevit_residual_block.7} parent=5 // pred_region
        %s331 = ssub.s32 %s9, 2
        // Predicated region
        $region64: #{mobilevit_residual_block.7} parent=62 // pred_check
          %p332 = pneg %p106
        $region65: #{mobilevit_residual_block.7} parent=62 // pred_check_branch
          %334 = sbr.rel (%p332) target = $region67
        $region66: #{mobilevit_residual_block.7} parent=62 // pred_region
          %s335 = smul.u32 2, %s15
          %p336 = scmp.lt.s32.totalorder %s335, 3
          %s337 = scalar_select %p336, %s335, 3
          %s338 = smul.addr %s337, 8
          %s339 = scalar_lea.vmem %s3, %s338
        $region67: #{mobilevit_residual_block.7} parent=62 // pred_fallthru
          _
      $region63: #{mobilevit_residual_block.7} parent=5 // pred_fallthru
        _
    $region6: #{mobilevit_residual_block.7} parent=1 // loop_footer
      %s13 = sadd.s32 1, %s9
    $region7: #{mobilevit_residual_block.7} parent=1 // loop_footer_branch
      %8 = sbr.rel target = $region3
    $region8: #{mobilevit_residual_block.7} parent=1 // loop_exit
      _

// kernel: mobilevit_residual_block.6
$region0: #{mobilevit_residual_block.6}
  #allocation0 [shape = 'u32[]', space=smem, size = 0x4, offset = 0x4, fixed_abs, tag = 'smem constant byte address 0x4 - core index']
  #allocation1 [shape = 'u32[72,128]{1,0:T(1,128)}', space=vmem, size = 0x9000, scoped, tag = 'internal scratch']
  %s0 = inlined_call_operand.vmem [shape: f32[72,512], index: 0, kind: input, shape index: {}]
  %s1 = inlined_call_operand.vmem [shape: f32[8,72], index: 1, kind: input, shape index: {}]
  %s2 = inlined_call_operand.vmem [shape: f32[8,1], index: 2, kind: input, shape index: {}]
  %s3 = inlined_call_operand.vmem [shape: f32[8,512], index: 3, kind: output, shape index: {}]
  %s4 = sld [smem:[#allocation0]]
  $region68: #{mobilevit_residual_block.6} parent=0
    _
  %s6 = ssub.s32 1, %s4
  %s7 = scalar_select 0, %s6, %s4
  $region1: #{mobilevit_residual_block.6} parent=0
    #allocation2 [shape = 'u8[147456]{0}', space=vmem, size = 0x24000, scoped, tag = 'input window, operand 0']
    loop: start=0, step=1, limit=4
    $region2: #{mobilevit_residual_block.6} parent=1 // loop_pre_header
      _
    $region3: #{mobilevit_residual_block.6} parent=1 // loop_header
      %s9 = sphi 0, %s13
      %p10 = scmp.ge.s32.totalorder %s9, 4
      %s19 = sphi 0, %s21
      %s22 = sphi 0, %s19
      %s23 = sphi 0, %s22
      %s39 = sphi 0, %s23
      %s43 = sphi 0, %s43
      %s45 = sphi 0, %s43
      %s46 = sphi 0, %s45
      %s60 = sphi 0, %s46
      %s64 = sphi 0, %s64
      %s66 = sphi 0, %s64
      %s67 = sphi 0, %s66
      %s81 = sphi 0, %s67
      %s87 = sphi 0, %s89
      %s90 = sphi 0, %s87
      %s91 = sphi 0, %s90
      %s107 = sphi 0, %s91
    $region4: #{mobilevit_residual_block.6} parent=1 // loop_header_branch
      %12 = sbr.rel (%p10) target = $region8
    $region5: #{mobilevit_residual_block.6} parent=1 // loop_body
      %s14 = ssub.s32 %s9, 1
      %s15 = ssub.s32 %s9, 2
      %s16 = sadd.s32 %s9, 1
      %s17 = ssub.s32 %s9, %s16
      %p18 = scmp.eq.s32.totalorder %s17, 0
      %s20 = sadd.s32 %s19, 1
      %s21 = scalar_select %p18, %s19, %s20
      %p24 = pneg %p18
      %p25 = scmp.eq.s32.totalorder %s9, 1
      %p26 = por %p24, %p25
      %p27 = scmp.ne.s32.totalorder %s19, %s22
      %p28 = scmp.eq.s32.totalorder %s9, 0
      %p29 = por %p27, %p28
      %p30 = scmp.ne.s32.totalorder %s19, %s22
      %p31 = scmp.eq.s32.totalorder %s14, 1
      %p32 = por %p30, %p31
      %p33 = scmp.ne.s32.totalorder %s22, %s23
      %p34 = scmp.eq.s32.totalorder %s14, 0
      %p35 = por %p33, %p34
      %p36 = scmp.ne.s32.totalorder %s22, %s23
      %p37 = scmp.eq.s32.totalorder %s15, 1
      %p38 = por %p36, %p37
      %p40 = scmp.ne.s32.totalorder %s23, %s39
      %p41 = scmp.eq.s32.totalorder %s15, 0
      %p42 = por %p40, %p41
      %s44 = sadd.s32 %s43, 1
      %p47 = scmp.eq.s32.totalorder %s9, 1
      %p48 = scmp.ne.s32.totalorder %s43, %s45
      %p49 = scmp.eq.s32.totalorder %s9, 0
      %p50 = por %p48, %p49
      %p51 = scmp.ne.s32.totalorder %s43, %s45
      %p52 = scmp.eq.s32.totalorder %s14, 1
      %p53 = por %p51, %p52
      %p54 = scmp.ne.s32.totalorder %s45, %s46
      %p55 = scmp.eq.s32.totalorder %s14, 0
      %p56 = por %p54, %p55
      %p57 = scmp.ne.s32.totalorder %s45, %s46
      %p58 = scmp.eq.s32.totalorder %s15, 1
      %p59 = por %p57, %p58
      %p61 = scmp.ne.s32.totalorder %s46, %s60
      %p62 = scmp.eq.s32.totalorder %s15, 0
      %p63 = por %p61, %p62
      %s65 = sadd.s32 %s64, 1
      %p68 = scmp.eq.s32.totalorder %s9, 1
      %p69 = scmp.ne.s32.totalorder %s64, %s66
      %p70 = scmp.eq.s32.totalorder %s9, 0
      %p71 = por %p69, %p70
      %p72 = scmp.ne.s32.totalorder %s64, %s66
      %p73 = scmp.eq.s32.totalorder %s14, 1
      %p74 = por %p72, %p73
      %p75 = scmp.ne.s32.totalorder %s66, %s67
      %p76 = scmp.eq.s32.totalorder %s14, 0
      %p77 = por %p75, %p76
      %p78 = scmp.ne.s32.totalorder %s66, %s67
      %p79 = scmp.eq.s32.totalorder %s15, 1
      %p80 = por %p78, %p79
      %p82 = scmp.ne.s32.totalorder %s67, %s81
      %p83 = scmp.eq.s32.totalorder %s15, 0
      %p84 = por %p82, %p83
      %s85 = ssub.s32 %s9, %s16
      %p86 = scmp.eq.s32.totalorder %s85, 0
      %s88 = sadd.s32 %s87, 1
      %s89 = scalar_select %p86, %s87, %s88
      %p92 = pneg %p86
      %p93 = scmp.eq.s32.totalorder %s9, 1
      %p94 = por %p92, %p93
      %p95 = scmp.ne.s32.totalorder %s87, %s90
      %p96 = scmp.eq.s32.totalorder %s9, 0
      %p97 = por %p95, %p96
      %p98 = scmp.ne.s32.totalorder %s87, %s90
      %p99 = scmp.eq.s32.totalorder %s14, 1
      %p100 = por %p98, %p99
      %p101 = scmp.ne.s32.totalorder %s90, %s91
      %p102 = scmp.eq.s32.totalorder %s14, 0
      %p103 = por %p101, %p102
      %p104 = scmp.ne.s32.totalorder %s90, %s91
      %p105 = scmp.eq.s32.totalorder %s15, 1
      %p106 = por %p104, %p105
      %p108 = scmp.ne.s32.totalorder %s91, %s107
      %p109 = scmp.eq.s32.totalorder %s15, 0
      %p110 = por %p108, %p109
      %p111 = scmp.le.s32.totalorder 1, %s9
      %p112 = scmp.lt.s32.totalorder %s9, 3
      %p113 = pnand %p111, %p112
      %p114 = pneg %p113
      // Predicated region
      $region9: #{mobilevit_residual_block.6} parent=5 // pred_check
        _
      $region10: #{mobilevit_residual_block.6} parent=5 // pred_check_branch
        %116 = sbr.rel (%p113) target = $region12
      $region11: #{mobilevit_residual_block.6} parent=5 // pred_region
        %s117 = ssub.s32 %s9, 1
        // Predicated region
        $region13: #{mobilevit_residual_block.6} parent=11 // pred_check
          %p118 = pneg %p56
        $region14: #{mobilevit_residual_block.6} parent=11 // pred_check_branch
          %120 = sbr.rel (%p118) target = $region16
        $region15: #{mobilevit_residual_block.6} parent=11 // pred_region
          _
        $region16: #{mobilevit_residual_block.6} parent=11 // pred_fallthru
          _
        // Predicated region
        $region17: #{mobilevit_residual_block.6} parent=11 // pred_check
          %p121 = pneg %p77
        $region18: #{mobilevit_residual_block.6} parent=11 // pred_check_branch
          %123 = sbr.rel (%p121) target = $region20
        $region19: #{mobilevit_residual_block.6} parent=11 // pred_region
          _
        $region20: #{mobilevit_residual_block.6} parent=11 // pred_fallthru
          _
      $region12: #{mobilevit_residual_block.6} parent=5 // pred_fallthru
        _
      %p124 = scmp.lt.s32.totalorder %s9, 2
      // Predicated region
      $region21: #{mobilevit_residual_block.6} parent=5 // pred_check
        %p125 = pneg %p124
      $region22: #{mobilevit_residual_block.6} parent=5 // pred_check_branch
        %127 = sbr.rel (%p125) target = $region24
      $region23: #{mobilevit_residual_block.6} parent=5 // pred_region
        // Predicated region
        $region25: #{mobilevit_residual_block.6} parent=23 // pred_check
          %p128 = pneg %p29
        $region26: #{mobilevit_residual_block.6} parent=23 // pred_check_branch
          %130 = sbr.rel (%p128) target = $region28
        $region27: #{mobilevit_residual_block.6} parent=23 // pred_region
          %s131 = sand.u32 %s19, 1
          %s132 = sand.u32 %s19, 1
          %s133 = smul.addr %s132, 144
          %s134 = scalar_lea.vmem [#allocation2], %s133
          %s135 = smul.u32 2, %s9
          %s136 = smul.addr %s135, 8
          %s137 = scalar_lea.vmem %s0, %s136
          // Predicated region
          $region29: #{mobilevit_residual_block.6} parent=27 // pred_check
            _
          $region30: #{mobilevit_residual_block.6} parent=27 // pred_check_branch
            %139 = sbr.rel (0) target = $region32
          $region31: #{mobilevit_residual_block.6} parent=27 // pred_region
            // Predicated region
            $region33: #{mobilevit_residual_block.6} parent=31 // pred_check
              _
            $region34: #{mobilevit_residual_block.6} parent=31 // pred_check_branch
              %141 = sbr.rel (0) target = $region36
            $region35: #{mobilevit_residual_block.6} parent=31 // pred_region
              loop: start=0, step=1, limit=1
              $region37: #{mobilevit_residual_block.6} parent=35 // loop_pre_header
                _
              $region38: #{mobilevit_residual_block.6} parent=35 // loop_header
                %s143 = sphi 0, %s147
                %p144 = scmp.ge.s32.totalorder %s143, 1
                %s148 = sphi %s137, %s137
                %s149 = sphi %s134, %s134
              $region39: #{mobilevit_residual_block.6} parent=35 // loop_header_branch
                %146 = sbr.rel (%p144) target = $region43
              $region40: #{mobilevit_residual_block.6} parent=35 // loop_body
                %v150 = vld [vmem:[%s148] sm:$0xff]
                %151 = vst [vmem:[%s149] sm:$0xff] %v150
                %v152 = vld [vmem:[%s148 + $0x8] sm:$0xff]
                %153 = vst [vmem:[%s149 + $0x8] sm:$0xff] %v152
                %v154 = vld [vmem:[%s148 + $0x20] sm:$0xff]
                %155 = vst [vmem:[%s149 + $0x10] sm:$0xff] %v154
                %v156 = vld [vmem:[%s148 + $0x28] sm:$0xff]
                %157 = vst [vmem:[%s149 + $0x18] sm:$0xff] %v156
                %v158 = vld [vmem:[%s148 + $0x40] sm:$0xff]
                %159 = vst [vmem:[%s149 + $0x20] sm:$0xff] %v158
                %v160 = vld [vmem:[%s148 + $0x48] sm:$0xff]
                %161 = vst [vmem:[%s149 + $0x28] sm:$0xff] %v160
                %v162 = vld [vmem:[%s148 + $0x60] sm:$0xff]
                %163 = vst [vmem:[%s149 + $0x30] sm:$0xff] %v162
                %v164 = vld [vmem:[%s148 + $0x68] sm:$0xff]
                %165 = vst [vmem:[%s149 + $0x38] sm:$0xff] %v164
                %v166 = vld [vmem:[%s148 + $0x80] sm:$0xff]
                %167 = vst [vmem:[%s149 + $0x40] sm:$0xff] %v166
                %v168 = vld [vmem:[%s148 + $0x88] sm:$0xff]
                %169 = vst [vmem:[%s149 + $0x48] sm:$0xff] %v168
                %v170 = vld [vmem:[%s148 + $0xa0] sm:$0xff]
                %171 = vst [vmem:[%s149 + $0x50] sm:$0xff] %v170
                %v172 = vld [vmem:[%s148 + $0xa8] sm:$0xff]
                %173 = vst [vmem:[%s149 + $0x58] sm:$0xff] %v172
                %v174 = vld [vmem:[%s148 + $0xc0] sm:$0xff]
                %175 = vst [vmem:[%s149 + $0x60] sm:$0xff] %v174
                %v176 = vld [vmem:[%s148 + $0xc8] sm:$0xff]
                %177 = vst [vmem:[%s149 + $0x68] sm:$0xff] %v176
                %v178 = vld [vmem:[%s148 + $0xe0] sm:$0xff]
                %179 = vst [vmem:[%s149 + $0x70] sm:$0xff] %v178
                %v180 = vld [vmem:[%s148 + $0xe8] sm:$0xff]
                %181 = vst [vmem:[%s149 + $0x78] sm:$0xff] %v180
                %v182 = vld [vmem:[%s148 + $0x100] sm:$0xff]
                %183 = vst [vmem:[%s149 + $0x80] sm:$0xff] %v182
                %v184 = vld [vmem:[%s148 + $0x108] sm:$0xff]
                %185 = vst [vmem:[%s149 + $0x88] sm:$0xff] %v184
              $region41: #{mobilevit_residual_block.6} parent=35 // loop_footer
                %s147 = sadd.s32 1, %s143
              $region42: #{mobilevit_residual_block.6} parent=35 // loop_footer_branch
                %142 = sbr.rel target = $region38
              $region43: #{mobilevit_residual_block.6} parent=35 // loop_exit
                _
            $region36: #{mobilevit_residual_block.6} parent=31 // pred_fallthru
              _
            // Predicated region
            $region44: #{mobilevit_residual_block.6} parent=31 // pred_check
              _
            $region45: #{mobilevit_residual_block.6} parent=31 // pred_check_branch
              %187 = sbr.rel target = $region47
            $region46: #{mobilevit_residual_block.6} parent=31 // pred_region
              _
            $region47: #{mobilevit_residual_block.6} parent=31 // pred_fallthru
              _
          $region32: #{mobilevit_residual_block.6} parent=27 // pred_fallthru
            _
          %188 = vnop
        $region28: #{mobilevit_residual_block.6} parent=23 // pred_fallthru
          _
      $region24: #{mobilevit_residual_block.6} parent=5 // pred_fallthru
        _
      %p189 = scmp.le.s32.totalorder 1, %s9
      %p190 = scmp.lt.s32.totalorder %s9, 3
      %p191 = pnand %p189, %p190
      %p192 = pneg %p191
      // Predicated region
      $region48: #{mobilevit_residual_block.6} parent=5 // pred_check
        _
      $region49: #{mobilevit_residual_block.6} parent=5 // pred_check_branch
        %194 = sbr.rel (%p191) target = $region51
      $region50: #{mobilevit_residual_block.6} parent=5 // pred_region
        %s195 = ssub.s32 %s9, 1
        %s196 = sand.u32 %s22, 1
        %s197 = sand.u32 %s22, 1
        %s198 = smul.addr %s197, 144
        %s199 = scalar_lea.vmem [#allocation2], %s198
        // Predicated region
        $region52: #{mobilevit_residual_block.6} parent=50 // pred_check
          %p200 = pneg %p35
        $region53: #{mobilevit_residual_block.6} parent=50 // pred_check_branch
          %202 = sbr.rel (%p200) target = $region55
        $region54: #{mobilevit_residual_block.6} parent=50 // pred_region
          _
        $region55: #{mobilevit_residual_block.6} parent=50 // pred_fallthru
          _
        %s203 = sand.u32 %s22, 1
        %s204 = sand.u32 %s22, 1
        %s205 = smul.addr %s204, 144
        %s206 = scalar_lea.vmem [#allocation2], %s205
        %p207 = pneg %p35
        %p208 = pneg %p32
        %p209 = pneg %p56
        %p210 = pneg %p53
        %p211 = pneg %p77
        %p212 = pneg %p74
        %p213 = pneg %p103
        %p214 = pneg %p100
        %s215 = smul.u32 2, %s14
        %p216 = scmp.lt.s32.totalorder %s215, 3
        %s217 = scalar_select %p216, %s215, 3
        %s218 = smul.addr %s217, 8
        %s219 = scalar_lea.vmem %s3, %s218
        %s220 = smul.u32 2, %s14
        %s221 = smul.u32 2, %s14
        %p222 = scmp.lt.s32.totalorder %s221, 3
        %s223 = scalar_select %p222, %s221, 3
        %s224 = smul.addr %s223, 8
        %s225 = scalar_lea.vmem %s3, %s224
        %s226 = smul.u32 2, %s14
        %v227 = vld [vmem:[%s1] sm:$0xff]
        %v228 = vld [vmem:[%s199] sm:$0xff]
        %v229 = vld [vmem:[%s199 + $0x8] sm:$0xff]
        %v230 = vld [vmem:[%s199 + $0x10] sm:$0xff]
        %v231 = vld [vmem:[%s199 + $0x18] sm:$0xff]
        %v232 = vld [vmem:[%s199 + $0x20] sm:$0xff]
        %v233 = vld [vmem:[%s199 + $0x28] sm:$0xff]
        %v234 = vld [vmem:[%s199 + $0x30] sm:$0xff]
        %v235 = vld [vmem:[%s199 + $0x38] sm:$0xff]
        %v236 = vld [vmem:[%s199 + $0x40] sm:$0xff]
        %v237 = vld [vmem:[%s199 + $0x48] sm:$0xff]
        %v238 = vld [vmem:[%s199 + $0x50] sm:$0xff]
        %v239 = vld [vmem:[%s199 + $0x58] sm:$0xff]
        %v240 = vld [vmem:[%s199 + $0x60] sm:$0xff]
        %v241 = vld [vmem:[%s199 + $0x68] sm:$0xff]
        %v242 = vld [vmem:[%s199 + $0x70] sm:$0xff]
        %v243 = vld [vmem:[%s199 + $0x78] sm:$0xff]
        %v244 = vld [vmem:[%s199 + $0x80] sm:$0xff]
        %v245 = vld [vmem:[%s199 + $0x88] sm:$0xff]
        %v246 = vld [vmem:[%s2] sm:$0xff]
        %248 = vset.pattern.permute.xlu0 0
        %249 = vperm.xlu0 %248, %v246
        %v250 = vpop.permute.xlu0 %249
        %vm252 = vcmask 588800
        %v254 = vsel %vm252, %v227, 0
        %256 = vmatpush.msra.mxu0 0.0
        %257 = vmatpush.msra.mxu0 0.0
        %258 = vmatpush.msra.mxu0 0.0
        %259 = vmatpush.msra.mxu0 0.0
        %260 = vmatpush.msra.mxu0 0.0
        %261 = vmatpush.msra.mxu0 0.0
        %262 = vmatpush.msra.mxu0 0.0
        %263 = vmatpush.msra.mxu0 %v244
        %264 = vmatpush.msra.mxu0 %v242
        %265 = vmatpush.msra.mxu0 %v240
        %266 = vmatpush.msra.mxu0 %v238
        %267 = vmatpush.msra.mxu0 %v236
        %268 = vmatpush.msra.mxu0 %v234
        %269 = vmatpush.msra.mxu0 %v232
        %270 = vmatpush.msra.mxu0 %v230
        %271 = vmatpush.msra.mxu0 %v228
        %272 = vmatmul.f32.gmra.mxu0 %v254
        %v273 = vpop.f32.mrf.mxu0
        %v274 = vadd.f32 %v250, %v273
        %275 = vdwg.mxu0
        %276 = vmatpush.msra.mxu0 0.0
        %277 = vmatpush.msra.mxu0 0.0
        %278 = vmatpush.msra.mxu0 0.0
        %279 = vmatpush.msra.mxu0 0.0
        %280 = vmatpush.msra.mxu0 0.0
        %281 = vmatpush.msra.mxu0 0.0
        %282 = vmatpush.msra.mxu0 0.0
        %283 = vmatpush.msra.mxu0 %v245
        %284 = vmatpush.msra.mxu0 %v243
        %285 = vmatpush.msra.mxu0 %v241
        %286 = vmatpush.msra.mxu0 %v239
        %287 = vmatpush.msra.mxu0 %v237
        %288 = vmatpush.msra.mxu0 %v235
        %289 = vmatpush.msra.mxu0 %v233
        %290 = vmatpush.msra.mxu0 %v231
        %291 = vmatpush.msra.mxu0 %v229
        %292 = vmatmul.f32.gmra.mxu0 %v254
        %v293 = vpop.f32.mrf.mxu0
        %v294 = vadd.f32 %v250, %v293
        %295 = vdwg.mxu0
        %vm296 = vcmp.ge.f32.partialorder %v274, 0.0
        %vm297 = vcmp.ge.f32.partialorder %v294, 0.0
        %v298 = vmul.f32 %v274, 0.25
        %v299 = vmul.f32 %v294, 0.25
        %v300 = vsel %vm296, %v274, %v298
        %v301 = vsel %vm297, %v294, %v299
        %302 = vst [vmem:[%s225] sm:$0xff] %v300
        %303 = vst [vmem:[%s225 + $0x8] sm:$0xff] %v301
        %s304 = smul.u32 2, %s14
        %p305 = scmp.lt.s32.totalorder %s304, 3
        %s306 = scalar_select %p305, %s304, 3
        %s307 = smul.addr %s306, 8
        %s308 = scalar_lea.vmem %s3, %s307
        // Predicated region
        $region56: #{mobilevit_residual_block.6} parent=50 // pred_check
          %p309 = pneg %p100
        $region57: #{mobilevit_residual_block.6} parent=50 // pred_check_branch
          %311 = sbr.rel (%p309) target = $region59
        $region58: #{mobilevit_residual_block.6} parent=50 // pred_region
          %s312 = smul.u32 2, %s14
        $region59: #{mobilevit_residual_block.6} parent=50 // pred_fallthru
          _
      $region51: #{mobilevit_residual_block.6} parent=5 // pred_fallthru
        _
      %p313 = scmp.le.s32.totalorder 2, %s9
      // Predicated region
      $region60: #{mobilevit_residual_block.6} parent=5 // pred_check
        %p314 = pneg %p313
      $region61: #{mobilevit_residual_block.6} parent=5 // pred_check_branch
        %316 = sbr.rel (%p314) target = $region63
      $region62: #{mobilevit_residual_block.6} parent=5 // pred_region
        %s317 = ssub.s32 %s9, 2
        // Predicated region
        $region64: #{mobilevit_residual_block.6} parent=62 // pred_check
          %p318 = pneg %p106
        $region65: #{mobilevit_residual_block.6} parent=62 // pred_check_branch
          %320 = sbr.rel (%p318) target = $region67
        $region66: #{mobilevit_residual_block.6} parent=62 // pred_region
          %s321 = smul.u32 2, %s15
          %p322 = scmp.lt.s32.totalorder %s321, 3
          %s323 = scalar_select %p322, %s321, 3
          %s324 = smul.addr %s323, 8
          %s325 = scalar_lea.vmem %s3, %s324
        $region67: #{mobilevit_residual_block.6} parent=62 // pred_fallthru
          _
      $region63: #{mobilevit_residual_block.6} parent=5 // pred_fallthru
        _
    $region6: #{mobilevit_residual_block.6} parent=1 // loop_footer
      %s13 = sadd.s32 1, %s9
    $region7: #{mobilevit_residual_block.6} parent=1 // loop_footer_branch
      %8 = sbr.rel target = $region3
    $region8: #{mobilevit_residual_block.6} parent=1 // loop_exit
      _

// kernel: mobilevit_residual_block.8
$region0: #{mobilevit_residual_block.8}
  #allocation0 [shape = 'u32[]', space=smem, size = 0x4, offset = 0x4, fixed_abs, tag = 'smem constant byte address 0x4 - core index']
  #allocation1 [shape = 'u32[72,128]{1,0:T(1,128)}', space=vmem, size = 0x9000, scoped, tag = 'internal scratch']
  %s0 = inlined_call_operand.vmem [shape: f32[8,512], index: 0, kind: input, shape index: {}]
  %s1 = inlined_call_operand.vmem [shape: f32[16,8], index: 1, kind: input, shape index: {}]
  %s2 = inlined_call_operand.vmem [shape: f32[16,1], index: 2, kind: input, shape index: {}]
  %s3 = inlined_call_operand.vmem [shape: f32[16,512], index: 3, kind: output, shape index: {}]
  %s4 = sld [smem:[#allocation0]]
  $region64: #{mobilevit_residual_block.8} parent=0
    _
  %s6 = ssub.s32 1, %s4
  %s7 = scalar_select 0, %s6, %s4
  $region1: #{mobilevit_residual_block.8} parent=0
    #allocation2 [shape = 'u8[32768]{0}', space=vmem, size = 0x8000, scoped, tag = 'output window, operand 0']
    loop: start=0, step=1, limit=4
    $region2: #{mobilevit_residual_block.8} parent=1 // loop_pre_header
      _
    $region3: #{mobilevit_residual_block.8} parent=1 // loop_header
      %s9 = sphi 0, %s13
      %p10 = scmp.ge.s32.totalorder %s9, 4
      %s19 = sphi 0, %s21
      %s22 = sphi 0, %s19
      %s23 = sphi 0, %s22
      %s39 = sphi 0, %s23
      %s43 = sphi 0, %s43
      %s45 = sphi 0, %s43
      %s46 = sphi 0, %s45
      %s60 = sphi 0, %s46
      %s64 = sphi 0, %s64
      %s66 = sphi 0, %s64
      %s67 = sphi 0, %s66
      %s81 = sphi 0, %s67
      %s87 = sphi 0, %s89
      %s90 = sphi 0, %s87
      %s91 = sphi 0, %s90
      %s107 = sphi 0, %s91
    $region4: #{mobilevit_residual_block.8} parent=1 // loop_header_branch
      %12 = sbr.rel (%p10) target = $region8
    $region5: #{mobilevit_residual_block.8} parent=1 // loop_body
      %s14 = ssub.s32 %s9, 1
      %s15 = ssub.s32 %s9, 2
      %s16 = sadd.s32 %s9, 1
      %s17 = ssub.s32 %s9, %s16
      %p18 = scmp.eq.s32.totalorder %s17, 0
      %s20 = sadd.s32 %s19, 1
      %s21 = scalar_select %p18, %s19, %s20
      %p24 = pneg %p18
      %p25 = scmp.eq.s32.totalorder %s9, 1
      %p26 = por %p24, %p25
      %p27 = scmp.ne.s32.totalorder %s19, %s22
      %p28 = scmp.eq.s32.totalorder %s9, 0
      %p29 = por %p27, %p28
      %p30 = scmp.ne.s32.totalorder %s19, %s22
      %p31 = scmp.eq.s32.totalorder %s14, 1
      %p32 = por %p30, %p31
      %p33 = scmp.ne.s32.totalorder %s22, %s23
      %p34 = scmp.eq.s32.totalorder %s14, 0
      %p35 = por %p33, %p34
      %p36 = scmp.ne.s32.totalorder %s22, %s23
      %p37 = scmp.eq.s32.totalorder %s15, 1
      %p38 = por %p36, %p37
      %p40 = scmp.ne.s32.totalorder %s23, %s39
      %p41 = scmp.eq.s32.totalorder %s15, 0
      %p42 = por %p40, %p41
      %s44 = sadd.s32 %s43, 1
      %p47 = scmp.eq.s32.totalorder %s9, 1
      %p48 = scmp.ne.s32.totalorder %s43, %s45
      %p49 = scmp.eq.s32.totalorder %s9, 0
      %p50 = por %p48, %p49
      %p51 = scmp.ne.s32.totalorder %s43, %s45
      %p52 = scmp.eq.s32.totalorder %s14, 1
      %p53 = por %p51, %p52
      %p54 = scmp.ne.s32.totalorder %s45, %s46
      %p55 = scmp.eq.s32.totalorder %s14, 0
      %p56 = por %p54, %p55
      %p57 = scmp.ne.s32.totalorder %s45, %s46
      %p58 = scmp.eq.s32.totalorder %s15, 1
      %p59 = por %p57, %p58
      %p61 = scmp.ne.s32.totalorder %s46, %s60
      %p62 = scmp.eq.s32.totalorder %s15, 0
      %p63 = por %p61, %p62
      %s65 = sadd.s32 %s64, 1
      %p68 = scmp.eq.s32.totalorder %s9, 1
      %p69 = scmp.ne.s32.totalorder %s64, %s66
      %p70 = scmp.eq.s32.totalorder %s9, 0
      %p71 = por %p69, %p70
      %p72 = scmp.ne.s32.totalorder %s64, %s66
      %p73 = scmp.eq.s32.totalorder %s14, 1
      %p74 = por %p72, %p73
      %p75 = scmp.ne.s32.totalorder %s66, %s67
      %p76 = scmp.eq.s32.totalorder %s14, 0
      %p77 = por %p75, %p76
      %p78 = scmp.ne.s32.totalorder %s66, %s67
      %p79 = scmp.eq.s32.totalorder %s15, 1
      %p80 = por %p78, %p79
      %p82 = scmp.ne.s32.totalorder %s67, %s81
      %p83 = scmp.eq.s32.totalorder %s15, 0
      %p84 = por %p82, %p83
      %s85 = ssub.s32 %s9, %s16
      %p86 = scmp.eq.s32.totalorder %s85, 0
      %s88 = sadd.s32 %s87, 1
      %s89 = scalar_select %p86, %s87, %s88
      %p92 = pneg %p86
      %p93 = scmp.eq.s32.totalorder %s9, 1
      %p94 = por %p92, %p93
      %p95 = scmp.ne.s32.totalorder %s87, %s90
      %p96 = scmp.eq.s32.totalorder %s9, 0
      %p97 = por %p95, %p96
      %p98 = scmp.ne.s32.totalorder %s87, %s90
      %p99 = scmp.eq.s32.totalorder %s14, 1
      %p100 = por %p98, %p99
      %p101 = scmp.ne.s32.totalorder %s90, %s91
      %p102 = scmp.eq.s32.totalorder %s14, 0
      %p103 = por %p101, %p102
      %p104 = scmp.ne.s32.totalorder %s90, %s91
      %p105 = scmp.eq.s32.totalorder %s15, 1
      %p106 = por %p104, %p105
      %p108 = scmp.ne.s32.totalorder %s91, %s107
      %p109 = scmp.eq.s32.totalorder %s15, 0
      %p110 = por %p108, %p109
      %p111 = scmp.le.s32.totalorder 1, %s9
      %p112 = scmp.lt.s32.totalorder %s9, 3
      %p113 = pnand %p111, %p112
      %p114 = pneg %p113
      // Predicated region
      $region9: #{mobilevit_residual_block.8} parent=5 // pred_check
        _
      $region10: #{mobilevit_residual_block.8} parent=5 // pred_check_branch
        %116 = sbr.rel (%p113) target = $region12
      $region11: #{mobilevit_residual_block.8} parent=5 // pred_region
        %s117 = ssub.s32 %s9, 1
        // Predicated region
        $region13: #{mobilevit_residual_block.8} parent=11 // pred_check
          %p118 = pneg %p56
        $region14: #{mobilevit_residual_block.8} parent=11 // pred_check_branch
          %120 = sbr.rel (%p118) target = $region16
        $region15: #{mobilevit_residual_block.8} parent=11 // pred_region
          _
        $region16: #{mobilevit_residual_block.8} parent=11 // pred_fallthru
          _
        // Predicated region
        $region17: #{mobilevit_residual_block.8} parent=11 // pred_check
          %p121 = pneg %p77
        $region18: #{mobilevit_residual_block.8} parent=11 // pred_check_branch
          %123 = sbr.rel (%p121) target = $region20
        $region19: #{mobilevit_residual_block.8} parent=11 // pred_region
          _
        $region20: #{mobilevit_residual_block.8} parent=11 // pred_fallthru
          _
      $region12: #{mobilevit_residual_block.8} parent=5 // pred_fallthru
        _
      %p124 = scmp.lt.s32.totalorder %s9, 2
      // Predicated region
      $region21: #{mobilevit_residual_block.8} parent=5 // pred_check
        %p125 = pneg %p124
      $region22: #{mobilevit_residual_block.8} parent=5 // pred_check_branch
        %127 = sbr.rel (%p125) target = $region24
      $region23: #{mobilevit_residual_block.8} parent=5 // pred_region
        // Predicated region
        $region25: #{mobilevit_residual_block.8} parent=23 // pred_check
          %p128 = pneg %p29
        $region26: #{mobilevit_residual_block.8} parent=23 // pred_check_branch
          %130 = sbr.rel (%p128) target = $region28
        $region27: #{mobilevit_residual_block.8} parent=23 // pred_region
          %s131 = smul.u32 2, %s9
          %p132 = scmp.lt.s32.totalorder %s131, 3
          %s133 = scalar_select %p132, %s131, 3
          %s134 = smul.addr %s133, 8
          %s135 = scalar_lea.vmem %s0, %s134
          %s136 = smul.u32 2, %s9
        $region28: #{mobilevit_residual_block.8} parent=23 // pred_fallthru
          _
      $region24: #{mobilevit_residual_block.8} parent=5 // pred_fallthru
        _
      %p137 = scmp.le.s32.totalorder 1, %s9
      %p138 = scmp.lt.s32.totalorder %s9, 3
      %p139 = pnand %p137, %p138
      %p140 = pneg %p139
      // Predicated region
      $region29: #{mobilevit_residual_block.8} parent=5 // pred_check
        _
      $region30: #{mobilevit_residual_block.8} parent=5 // pred_check_branch
        %142 = sbr.rel (%p139) target = $region32
      $region31: #{mobilevit_residual_block.8} parent=5 // pred_region
        %s143 = ssub.s32 %s9, 1
        %s144 = smul.u32 2, %s14
        %p145 = scmp.lt.s32.totalorder %s144, 3
        %s146 = scalar_select %p145, %s144, 3
        %s147 = smul.addr %s146, 8
        %s148 = scalar_lea.vmem %s0, %s147
        %p149 = pneg %p35
        %p150 = pneg %p32
        %p151 = pneg %p56
        %p152 = pneg %p53
        %p153 = pneg %p77
        %p154 = pneg %p74
        %p155 = pneg %p103
        %p156 = pneg %p100
        %s157 = sand.u32 %s90, 1
        %s158 = sand.u32 %s90, 1
        %s159 = smul.addr %s158, 32
        %s160 = scalar_lea.vmem [#allocation2], %s159
        %s161 = smul.u32 2, %s14
        %p162 = scmp.lt.s32.totalorder %s161, 3
        %s163 = scalar_select %p162, %s161, 3
        %s164 = smul.addr %s163, 8
        %s165 = scalar_lea.vmem %s0, %s164
        %s166 = smul.u32 2, %s14
        %s167 = smul.u32 2, %s14
        %v168 = vld [vmem:[%s1] sm:$0xff]
        %v169 = vld [vmem:[%s1 + $0x8] sm:$0xff]
        %v170 = vld [vmem:[%s165] sm:$0xff]
        %v171 = vld [vmem:[%s165 + $0x8] sm:$0xff]
        %v172 = vld [vmem:[%s2] sm:$0xff]
        %v173 = vld [vmem:[%s2 + $0x8] sm:$0xff]
        %175 = vset.pattern.permute.xlu0 0
        %176 = vperm.xlu0 %175, %v172
        %v177 = vpop.permute.xlu0 %176
        %180 = vset.pattern.permute.xlu0 0
        %181 = vperm.xlu0 %180, %v173
        %v182 = vpop.permute.xlu0 %181
        %vm184 = vcmask 64512
        %v186 = vsel %vm184, %v168, 0
        %v189 = vsel %vm184, %v169, 0
        %191 = vmatpush.msra.mxu0 0.0
        %192 = vmatpush.msra.mxu0 0.0
        %193 = vmatpush.msra.mxu0 0.0
        %194 = vmatpush.msra.mxu0 0.0
        %195 = vmatpush.msra.mxu0 0.0
        %196 = vmatpush.msra.mxu0 0.0
        %197 = vmatpush.msra.mxu0 0.0
        %198 = vmatpush.msra.mxu0 0.0
        %199 = vmatpush.msra.mxu0 0.0
        %200 = vmatpush.msra.mxu0 0.0
        %201 = vmatpush.msra.mxu0 0.0
        %202 = vmatpush.msra.mxu0 0.0
        %203 = vmatpush.msra.mxu0 0.0
        %204 = vmatpush.msra.mxu0 0.0
        %205 = vmatpush.msra.mxu0 0.0
        %206 = vmatpush.msra.mxu0 %v170
        %207 = vmatmul.f32.gmra.mxu0 %v186
        %v208 = vpop.f32.mrf.mxu0
        %v209 = vadd.f32 %v177, %v208
        %210 = vmatmul.f32.gmra.mxu0 %v189
        %v211 = vpop.f32.mrf.mxu0
        %v212 = vadd.f32 %v182, %v211
        %213 = vdwg.mxu0
        %214 = vmatpush.msra.mxu0 0.0
        %215 = vmatpush.msra.mxu0 0.0
        %216 = vmatpush.msra.mxu0 0.0
        %217 = vmatpush.msra.mxu0 0.0
        %218 = vmatpush.msra.mxu0 0.0
        %219 = vmatpush.msra.mxu0 0.0
        %220 = vmatpush.msra.mxu0 0.0
        %221 = vmatpush.msra.mxu0 0.0
        %222 = vmatpush.msra.mxu0 0.0
        %223 = vmatpush.msra.mxu0 0.0
        %224 = vmatpush.msra.mxu0 0.0
        %225 = vmatpush.msra.mxu0 0.0
        %226 = vmatpush.msra.mxu0 0.0
        %227 = vmatpush.msra.mxu0 0.0
        %228 = vmatpush.msra.mxu0 0.0
        %229 = vmatpush.msra.mxu0 %v171
        %230 = vmatmul.f32.gmra.mxu0 %v186
        %v231 = vpop.f32.mrf.mxu0
        %v232 = vadd.f32 %v177, %v231
        %233 = vmatmul.f32.gmra.mxu0 %v189
        %v234 = vpop.f32.mrf.mxu0
        %v235 = vadd.f32 %v182, %v234
        %236 = vdwg.mxu0
        %v237 = vand.u32 2147483647, %v209
        %v238 = vand.u32 2147483647, %v232
        %v239 = vand.u32 2147483647, %v212
        %v240 = vand.u32 2147483647, %v235
        %v241 = vsub.f32 0.0, %v237
        %v242 = vsub.f32 0.0, %v238
        %v243 = vsub.f32 0.0, %v239
        %v244 = vsub.f32 0.0, %v240
        %v245 = vmul.f32 %v241, 1.442695
        %v246 = vpow.pop %v245
        %v247 = vmul.f32 %v242, 1.442695
        %v248 = vpow.pop %v247
        %v249 = vmul.f32 %v243, 1.442695
        %v250 = vpow.pop %v249
        %v251 = vmul.f32 %v244, 1.442695
        %v252 = vpow.pop %v251
        %v253 = vadd.f32 %v246, 1.0
        %v254 = vadd.f32 %v248, 1.0
        %v255 = vadd.f32 %v250, 1.0
        %v256 = vadd.f32 %v252, 1.0
        %v257 = vrcp.pop %v253
        %v258 = vrcp.pop %v254
        %v259 = vrcp.pop %v255
        %v260 = vrcp.pop %v256
        %vm261 = vcmp.ge.f32.partialorder %v209, 0.0
        %vm262 = vcmp.ge.f32.partialorder %v232, 0.0
        %vm263 = vcmp.ge.f32.partialorder %v212, 0.0
        %vm264 = vcmp.ge.f32.partialorder %v235, 0.0
        %v265 = vmul.f32 %v246, %v257
        %v266 = vmul.f32 %v248, %v258
        %v267 = vmul.f32 %v250, %v259
        %v268 = vmul.f32 %v252, %v260
        %v269 = vsel %vm261, %v257, %v265
        %v270 = vsel %vm262, %v258, %v266
        %v271 = vsel %vm263, %v259, %v267
        %v272 = vsel %vm264, %v260, %v268
        %v273 = vmul.f32 %v209, %v269
        %v274 = vmul.f32 %v232, %v270
        %v275 = vmul.f32 %v212, %v271
        %v276 = vmul.f32 %v235, %v272
        %277 = vst [vmem:[%s160] sm:$0xff] %v273
        %278 = vst [vmem:[%s160 + $0x8] sm:$0xff] %v274
        %279 = vst [vmem:[%s160 + $0x10] sm:$0xff] %v275
        %280 = vst [vmem:[%s160 + $0x18] sm:$0xff] %v276
        %s281 = sand.u32 %s90, 1
        %s282 = sand.u32 %s90, 1
        %s283 = smul.addr %s282, 32
        %s284 = scalar_lea.vmem [#allocation2], %s283
        // Predicated region
        $region33: #{mobilevit_residual_block.8} parent=31 // pred_check
          %p285 = pneg %p100
        $region34: #{mobilevit_residual_block.8} parent=31 // pred_check_branch
          %287 = sbr.rel (%p285) target = $region36
        $region35: #{mobilevit_residual_block.8} parent=31 // pred_region
          %s288 = smul.u32 2, %s14
          %s289 = smul.addr %s288, 8
          %s290 = scalar_lea.vmem %s3, %s289
          // Predicated region
          $region37: #{mobilevit_residual_block.8} parent=35 // pred_check
            _
          $region38: #{mobilevit_residual_block.8} parent=35 // pred_check_branch
            %292 = sbr.rel (0) target = $region40
          $region39: #{mobilevit_residual_block.8} parent=35 // pred_region
            // Predicated region
            $region41: #{mobilevit_residual_block.8} parent=39 // pred_check
              _
            $region42: #{mobilevit_residual_block.8} parent=39 // pred_check_branch
              %294 = sbr.rel (0) target = $region44
            $region43: #{mobilevit_residual_block.8} parent=39 // pred_region
              loop: start=0, step=1, limit=1
              $region45: #{mobilevit_residual_block.8} parent=43 // loop_pre_header
                _
              $region46: #{mobilevit_residual_block.8} parent=43 // loop_header
                %s296 = sphi 0, %s300
                %p297 = scmp.ge.s32.totalorder %s296, 1
                %s301 = sphi %s284, %s284
                %s302 = sphi %s290, %s290
              $region47: #{mobilevit_residual_block.8} parent=43 // loop_header_branch
                %299 = sbr.rel (%p297) target = $region51
              $region48: #{mobilevit_residual_block.8} parent=43 // loop_body
                %v303 = vld [vmem:[%s301] sm:$0xff]
                %304 = vst [vmem:[%s302] sm:$0xff] %v303
                %v305 = vld [vmem:[%s301 + $0x8] sm:$0xff]
                %306 = vst [vmem:[%s302 + $0x8] sm:$0xff] %v305
                %v307 = vld [vmem:[%s301 + $0x10] sm:$0xff]
                %308 = vst [vmem:[%s302 + $0x20] sm:$0xff] %v307
                %v309 = vld [vmem:[%s301 + $0x18] sm:$0xff]
                %310 = vst [vmem:[%s302 + $0x28] sm:$0xff] %v309
              $region49: #{mobilevit_residual_block.8} parent=43 // loop_footer
                %s300 = sadd.s32 1, %s296
              $region50: #{mobilevit_residual_block.8} parent=43 // loop_footer_branch
                %295 = sbr.rel target = $region46
              $region51: #{mobilevit_residual_block.8} parent=43 // loop_exit
                _
            $region44: #{mobilevit_residual_block.8} parent=39 // pred_fallthru
              _
            // Predicated region
            $region52: #{mobilevit_residual_block.8} parent=39 // pred_check
              _
            $region53: #{mobilevit_residual_block.8} parent=39 // pred_check_branch
              %312 = sbr.rel target = $region55
            $region54: #{mobilevit_residual_block.8} parent=39 // pred_region
              _
            $region55: #{mobilevit_residual_block.8} parent=39 // pred_fallthru
              _
          $region40: #{mobilevit_residual_block.8} parent=35 // pred_fallthru
            _
          %313 = vnop
        $region36: #{mobilevit_residual_block.8} parent=31 // pred_fallthru
          _
      $region32: #{mobilevit_residual_block.8} parent=5 // pred_fallthru
        _
      %p314 = scmp.le.s32.totalorder 2, %s9
      // Predicated region
      $region56: #{mobilevit_residual_block.8} parent=5 // pred_check
        %p315 = pneg %p314
      $region57: #{mobilevit_residual_block.8} parent=5 // pred_check_branch
        %317 = sbr.rel (%p315) target = $region59
      $region58: #{mobilevit_residual_block.8} parent=5 // pred_region
        %s318 = ssub.s32 %s9, 2
        // Predicated region
        $region60: #{mobilevit_residual_block.8} parent=58 // pred_check
          %p319 = pneg %p106
        $region61: #{mobilevit_residual_block.8} parent=58 // pred_check_branch
          %321 = sbr.rel (%p319) target = $region63
        $region62: #{mobilevit_residual_block.8} parent=58 // pred_region
          %s322 = sand.u32 %s91, 1
          %s323 = sand.u32 %s91, 1
          %s324 = smul.addr %s323, 32
          %s325 = scalar_lea.vmem [#allocation2], %s324
        $region63: #{mobilevit_residual_block.8} parent=58 // pred_fallthru
          _
      $region59: #{mobilevit_residual_block.8} parent=5 // pred_fallthru
        _
    $region6: #{mobilevit_residual_block.8} parent=1 // loop_footer
      %s13 = sadd.s32 1, %s9
    $region7: #{mobilevit_residual_block.8} parent=1 // loop_footer_branch
      %8 = sbr.rel target = $region3
    $region8: #{mobilevit_residual_block.8} parent=1 // loop_exit
      _

// kernel: mobilevit_residual_block.10
$region0: #{mobilevit_residual_block.10}
  #allocation0 [shape = 'u32[]', space=smem, size = 0x4, offset = 0x4, fixed_abs, tag = 'smem constant byte address 0x4 - core index']
  #allocation1 [shape = 'u32[72,128]{1,0:T(1,128)}', space=vmem, size = 0x9000, scoped, tag = 'internal scratch']
  %s0 = inlined_call_operand.vmem [shape: f32[16,512], index: 0, kind: input, shape index: {}]
  %s1 = inlined_call_operand.vmem [shape: f32[8,16], index: 1, kind: input, shape index: {}]
  %s2 = inlined_call_operand.vmem [shape: f32[8,1], index: 2, kind: input, shape index: {}]
  %s3 = inlined_call_operand.vmem [shape: f32[8,512], index: 3, kind: output, shape index: {}]
  %s4 = sld [smem:[#allocation0]]
  $region68: #{mobilevit_residual_block.10} parent=0
    _
  %s6 = ssub.s32 1, %s4
  %s7 = scalar_select 0, %s6, %s4
  $region1: #{mobilevit_residual_block.10} parent=0
    #allocation2 [shape = 'u8[32768]{0}', space=vmem, size = 0x8000, scoped, tag = 'input window, operand 0']
    loop: start=0, step=1, limit=4
    $region2: #{mobilevit_residual_block.10} parent=1 // loop_pre_header
      _
    $region3: #{mobilevit_residual_block.10} parent=1 // loop_header
      %s9 = sphi 0, %s13
      %p10 = scmp.ge.s32.totalorder %s9, 4
      %s19 = sphi 0, %s21
      %s22 = sphi 0, %s19
      %s23 = sphi 0, %s22
      %s39 = sphi 0, %s23
      %s43 = sphi 0, %s43
      %s45 = sphi 0, %s43
      %s46 = sphi 0, %s45
      %s60 = sphi 0, %s46
      %s64 = sphi 0, %s64
      %s66 = sphi 0, %s64
      %s67 = sphi 0, %s66
      %s81 = sphi 0, %s67
      %s87 = sphi 0, %s89
      %s90 = sphi 0, %s87
      %s91 = sphi 0, %s90
      %s107 = sphi 0, %s91
    $region4: #{mobilevit_residual_block.10} parent=1 // loop_header_branch
      %12 = sbr.rel (%p10) target = $region8
    $region5: #{mobilevit_residual_block.10} parent=1 // loop_body
      %s14 = ssub.s32 %s9, 1
      %s15 = ssub.s32 %s9, 2
      %s16 = sadd.s32 %s9, 1
      %s17 = ssub.s32 %s9, %s16
      %p18 = scmp.eq.s32.totalorder %s17, 0
      %s20 = sadd.s32 %s19, 1
      %s21 = scalar_select %p18, %s19, %s20
      %p24 = pneg %p18
      %p25 = scmp.eq.s32.totalorder %s9, 1
      %p26 = por %p24, %p25
      %p27 = scmp.ne.s32.totalorder %s19, %s22
      %p28 = scmp.eq.s32.totalorder %s9, 0
      %p29 = por %p27, %p28
      %p30 = scmp.ne.s32.totalorder %s19, %s22
      %p31 = scmp.eq.s32.totalorder %s14, 1
      %p32 = por %p30, %p31
      %p33 = scmp.ne.s32.totalorder %s22, %s23
      %p34 = scmp.eq.s32.totalorder %s14, 0
      %p35 = por %p33, %p34
      %p36 = scmp.ne.s32.totalorder %s22, %s23
      %p37 = scmp.eq.s32.totalorder %s15, 1
      %p38 = por %p36, %p37
      %p40 = scmp.ne.s32.totalorder %s23, %s39
      %p41 = scmp.eq.s32.totalorder %s15, 0
      %p42 = por %p40, %p41
      %s44 = sadd.s32 %s43, 1
      %p47 = scmp.eq.s32.totalorder %s9, 1
      %p48 = scmp.ne.s32.totalorder %s43, %s45
      %p49 = scmp.eq.s32.totalorder %s9, 0
      %p50 = por %p48, %p49
      %p51 = scmp.ne.s32.totalorder %s43, %s45
      %p52 = scmp.eq.s32.totalorder %s14, 1
      %p53 = por %p51, %p52
      %p54 = scmp.ne.s32.totalorder %s45, %s46
      %p55 = scmp.eq.s32.totalorder %s14, 0
      %p56 = por %p54, %p55
      %p57 = scmp.ne.s32.totalorder %s45, %s46
      %p58 = scmp.eq.s32.totalorder %s15, 1
      %p59 = por %p57, %p58
      %p61 = scmp.ne.s32.totalorder %s46, %s60
      %p62 = scmp.eq.s32.totalorder %s15, 0
      %p63 = por %p61, %p62
      %s65 = sadd.s32 %s64, 1
      %p68 = scmp.eq.s32.totalorder %s9, 1
      %p69 = scmp.ne.s32.totalorder %s64, %s66
      %p70 = scmp.eq.s32.totalorder %s9, 0
      %p71 = por %p69, %p70
      %p72 = scmp.ne.s32.totalorder %s64, %s66
      %p73 = scmp.eq.s32.totalorder %s14, 1
      %p74 = por %p72, %p73
      %p75 = scmp.ne.s32.totalorder %s66, %s67
      %p76 = scmp.eq.s32.totalorder %s14, 0
      %p77 = por %p75, %p76
      %p78 = scmp.ne.s32.totalorder %s66, %s67
      %p79 = scmp.eq.s32.totalorder %s15, 1
      %p80 = por %p78, %p79
      %p82 = scmp.ne.s32.totalorder %s67, %s81
      %p83 = scmp.eq.s32.totalorder %s15, 0
      %p84 = por %p82, %p83
      %s85 = ssub.s32 %s9, %s16
      %p86 = scmp.eq.s32.totalorder %s85, 0
      %s88 = sadd.s32 %s87, 1
      %s89 = scalar_select %p86, %s87, %s88
      %p92 = pneg %p86
      %p93 = scmp.eq.s32.totalorder %s9, 1
      %p94 = por %p92, %p93
      %p95 = scmp.ne.s32.totalorder %s87, %s90
      %p96 = scmp.eq.s32.totalorder %s9, 0
      %p97 = por %p95, %p96
      %p98 = scmp.ne.s32.totalorder %s87, %s90
      %p99 = scmp.eq.s32.totalorder %s14, 1
      %p100 = por %p98, %p99
      %p101 = scmp.ne.s32.totalorder %s90, %s91
      %p102 = scmp.eq.s32.totalorder %s14, 0
      %p103 = por %p101, %p102
      %p104 = scmp.ne.s32.totalorder %s90, %s91
      %p105 = scmp.eq.s32.totalorder %s15, 1
      %p106 = por %p104, %p105
      %p108 = scmp.ne.s32.totalorder %s91, %s107
      %p109 = scmp.eq.s32.totalorder %s15, 0
      %p110 = por %p108, %p109
      %p111 = scmp.le.s32.totalorder 1, %s9
      %p112 = scmp.lt.s32.totalorder %s9, 3
      %p113 = pnand %p111, %p112
      %p114 = pneg %p113
      // Predicated region
      $region9: #{mobilevit_residual_block.10} parent=5 // pred_check
        _
      $region10: #{mobilevit_residual_block.10} parent=5 // pred_check_branch
        %116 = sbr.rel (%p113) target = $region12
      $region11: #{mobilevit_residual_block.10} parent=5 // pred_region
        %s117 = ssub.s32 %s9, 1
        // Predicated region
        $region13: #{mobilevit_residual_block.10} parent=11 // pred_check
          %p118 = pneg %p56
        $region14: #{mobilevit_residual_block.10} parent=11 // pred_check_branch
          %120 = sbr.rel (%p118) target = $region16
        $region15: #{mobilevit_residual_block.10} parent=11 // pred_region
          _
        $region16: #{mobilevit_residual_block.10} parent=11 // pred_fallthru
          _
        // Predicated region
        $region17: #{mobilevit_residual_block.10} parent=11 // pred_check
          %p121 = pneg %p77
        $region18: #{mobilevit_residual_block.10} parent=11 // pred_check_branch
          %123 = sbr.rel (%p121) target = $region20
        $region19: #{mobilevit_residual_block.10} parent=11 // pred_region
          _
        $region20: #{mobilevit_residual_block.10} parent=11 // pred_fallthru
          _
      $region12: #{mobilevit_residual_block.10} parent=5 // pred_fallthru
        _
      %p124 = scmp.lt.s32.totalorder %s9, 2
      // Predicated region
      $region21: #{mobilevit_residual_block.10} parent=5 // pred_check
        %p125 = pneg %p124
      $region22: #{mobilevit_residual_block.10} parent=5 // pred_check_branch
        %127 = sbr.rel (%p125) target = $region24
      $region23: #{mobilevit_residual_block.10} parent=5 // pred_region
        // Predicated region
        $region25: #{mobilevit_residual_block.10} parent=23 // pred_check
          %p128 = pneg %p29
        $region26: #{mobilevit_residual_block.10} parent=23 // pred_check_branch
          %130 = sbr.rel (%p128) target = $region28
        $region27: #{mobilevit_residual_block.10} parent=23 // pred_region
          %s131 = sand.u32 %s19, 1
          %s132 = sand.u32 %s19, 1
          %s133 = smul.addr %s132, 32
          %s134 = scalar_lea.vmem [#allocation2], %s133
          %s135 = smul.u32 2, %s9
          %s136 = smul.addr %s135, 8
          %s137 = scalar_lea.vmem %s0, %s136
          // Predicated region
          $region29: #{mobilevit_residual_block.10} parent=27 // pred_check
            _
          $region30: #{mobilevit_residual_block.10} parent=27 // pred_check_branch
            %139 = sbr.rel (0) target = $region32
          $region31: #{mobilevit_residual_block.10} parent=27 // pred_region
            // Predicated region
            $region33: #{mobilevit_residual_block.10} parent=31 // pred_check
              _
            $region34: #{mobilevit_residual_block.10} parent=31 // pred_check_branch
              %141 = sbr.rel (0) target = $region36
            $region35: #{mobilevit_residual_block.10} parent=31 // pred_region
              loop: start=0, step=1, limit=1
              $region37: #{mobilevit_residual_block.10} parent=35 // loop_pre_header
                _
              $region38: #{mobilevit_residual_block.10} parent=35 // loop_header
                %s143 = sphi 0, %s147
                %p144 = scmp.ge.s32.totalorder %s143, 1
                %s148 = sphi %s137, %s137
                %s149 = sphi %s134, %s134
              $region39: #{mobilevit_residual_block.10} parent=35 // loop_header_branch
                %146 = sbr.rel (%p144) target = $region43
              $region40: #{mobilevit_residual_block.10} parent=35 // loop_body
                %v150 = vld [vmem:[%s148] sm:$0xff]
                %151 = vst [vmem:[%s149] sm:$0xff] %v150
                %v152 = vld [vmem:[%s148 + $0x8] sm:$0xff]
                %153 = vst [vmem:[%s149 + $0x8] sm:$0xff] %v152
                %v154 = vld [vmem:[%s148 + $0x20] sm:$0xff]
                %155 = vst [vmem:[%s149 + $0x10] sm:$0xff] %v154
                %v156 = vld [vmem:[%s148 + $0x28] sm:$0xff]
                %157 = vst [vmem:[%s149 + $0x18] sm:$0xff] %v156
              $region41: #{mobilevit_residual_block.10} parent=35 // loop_footer
                %s147 = sadd.s32 1, %s143
              $region42: #{mobilevit_residual_block.10} parent=35 // loop_footer_branch
                %142 = sbr.rel target = $region38
              $region43: #{mobilevit_residual_block.10} parent=35 // loop_exit
                _
            $region36: #{mobilevit_residual_block.10} parent=31 // pred_fallthru
              _
            // Predicated region
            $region44: #{mobilevit_residual_block.10} parent=31 // pred_check
              _
            $region45: #{mobilevit_residual_block.10} parent=31 // pred_check_branch
              %159 = sbr.rel target = $region47
            $region46: #{mobilevit_residual_block.10} parent=31 // pred_region
              _
            $region47: #{mobilevit_residual_block.10} parent=31 // pred_fallthru
              _
          $region32: #{mobilevit_residual_block.10} parent=27 // pred_fallthru
            _
          %160 = vnop
        $region28: #{mobilevit_residual_block.10} parent=23 // pred_fallthru
          _
      $region24: #{mobilevit_residual_block.10} parent=5 // pred_fallthru
        _
      %p161 = scmp.le.s32.totalorder 1, %s9
      %p162 = scmp.lt.s32.totalorder %s9, 3
      %p163 = pnand %p161, %p162
      %p164 = pneg %p163
      // Predicated region
      $region48: #{mobilevit_residual_block.10} parent=5 // pred_check
        _
      $region49: #{mobilevit_residual_block.10} parent=5 // pred_check_branch
        %166 = sbr.rel (%p163) target = $region51
      $region50: #{mobilevit_residual_block.10} parent=5 // pred_region
        %s167 = ssub.s32 %s9, 1
        %s168 = sand.u32 %s22, 1
        %s169 = sand.u32 %s22, 1
        %s170 = smul.addr %s169, 32
        %s171 = scalar_lea.vmem [#allocation2], %s170
        // Predicated region
        $region52: #{mobilevit_residual_block.10} parent=50 // pred_check
          %p172 = pneg %p35
        $region53: #{mobilevit_residual_block.10} parent=50 // pred_check_branch
          %174 = sbr.rel (%p172) target = $region55
        $region54: #{mobilevit_residual_block.10} parent=50 // pred_region
          _
        $region55: #{mobilevit_residual_block.10} parent=50 // pred_fallthru
          _
        %s175 = sand.u32 %s22, 1
        %s176 = sand.u32 %s22, 1
        %s177 = smul.addr %s176, 32
        %s178 = scalar_lea.vmem [#allocation2], %s177
        %p179 = pneg %p35
        %p180 = pneg %p32
        %p181 = pneg %p56
        %p182 = pneg %p53
        %p183 = pneg %p77
        %p184 = pneg %p74
        %p185 = pneg %p103
        %p186 = pneg %p100
        %s187 = smul.u32 2, %s14
        %p188 = scmp.lt.s32.totalorder %s187, 3
        %s189 = scalar_select %p188, %s187, 3
        %s190 = smul.addr %s189, 8
        %s191 = scalar_lea.vmem %s3, %s190
        %s192 = smul.u32 2, %s14
        %s193 = smul.u32 2, %s14
        %p194 = scmp.lt.s32.totalorder %s193, 3
        %s195 = scalar_select %p194, %s193, 3
        %s196 = smul.addr %s195, 8
        %s197 = scalar_lea.vmem %s3, %s196
        %s198 = smul.u32 2, %s14
        %v199 = vld [vmem:[%s1] sm:$0xff]
        %v200 = vld [vmem:[%s171] sm:$0xff]
        %v201 = vld [vmem:[%s171 + $0x8] sm:$0xff]
        %v202 = vld [vmem:[%s171 + $0x10] sm:$0xff]
        %v203 = vld [vmem:[%s171 + $0x18] sm:$0xff]
        %v204 = vld [vmem:[%s2] sm:$0xff]
        %206 = vset.pattern.permute.xlu0 0
        %207 = vperm.xlu0 %206, %v204
        %v208 = vpop.permute.xlu0 %207
        %vm210 = vcmask 130048
        %v212 = vsel %vm210, %v199, 0
        %214 = vmatpush.msra.mxu0 0.0
        %215 = vmatpush.msra.mxu0 0.0
        %216 = vmatpush.msra.mxu0 0.0
        %217 = vmatpush.msra.mxu0 0.0
        %218 = vmatpush.msra.mxu0 0.0
        %219 = vmatpush.msra.mxu0 0.0
        %220 = vmatpush.msra.mxu0 0.0
        %221 = vmatpush.msra.mxu0 0.0
        %222 = vmatpush.msra.mxu0 0.0
        %223 = vmatpush.msra.mxu0 0.0
        %224 = vmatpush.msra.mxu0 0.0
        %225 = vmatpush.msra.mxu0 0.0
        %226 = vmatpush.msra.mxu0 0.0
        %227 = vmatpush.msra.mxu0 0.0
        %228 = vmatpush.msra.mxu0 %v202
        %229 = vmatpush.msra.mxu0 %v200
        %230 = vmatmul.f32.gmra.mxu0 %v212
        %v231 = vpop.f32.mrf.mxu0
        %v232 = vadd.f32 %v208, %v231
        %233 = vdwg.mxu0
        %234 = vmatpush.msra.mxu0 0.0
        %235 = vmatpush.msra.mxu0 0.0
        %236 = vmatpush.msra.mxu0 0.0
        %237 = vmatpush.msra.mxu0 0.0
        %238 = vmatpush.msra.mxu0 0.0
        %239 = vmatpush.msra.mxu0 0.0
        %240 = vmatpush.msra.mxu0 0.0
        %241 = vmatpush.msra.mxu0 0.0
        %242 = vmatpush.msra.mxu0 0.0
        %243 = vmatpush.msra.mxu0 0.0
        %244 = vmatpush.msra.mxu0 0.0
        %245 = vmatpush.msra.mxu0 0.0
        %246 = vmatpush.msra.mxu0 0.0
        %247 = vmatpush.msra.mxu0 0.0
        %248 = vmatpush.msra.mxu0 %v203
        %249 = vmatpush.msra.mxu0 %v201
        %250 = vmatmul.f32.gmra.mxu0 %v212
        %v251 = vpop.f32.mrf.mxu0
        %v252 = vadd.f32 %v208, %v251
        %253 = vdwg.mxu0
        %v254 = vand.u32 2147483647, %v232
        %v255 = vand.u32 2147483647, %v252
        %v256 = vsub.f32 0.0, %v254
        %v257 = vsub.f32 0.0, %v255
        %v258 = vmul.f32 %v256, 1.442695
        %v259 = vpow.pop %v258
        %v260 = vmul.f32 %v257, 1.442695
        %v261 = vpow.pop %v260
        %v262 = vadd.f32 %v259, 1.0
        %v263 = vadd.f32 %v261, 1.0
        %v264 = vrcp.pop %v262
        %v265 = vrcp.pop %v263
        %vm266 = vcmp.ge.f32.partialorder %v232, 0.0
        %vm267 = vcmp.ge.f32.partialorder %v252, 0.0
        %v268 = vmul.f32 %v259, %v264
        %v269 = vmul.f32 %v261, %v265
        %v270 = vsel %vm266, %v264, %v268
        %v271 = vsel %vm267, %v265, %v269
        %v272 = vmul.f32 %v232, %v270
        %v273 = vmul.f32 %v252, %v271
        %274 = vst [vmem:[%s197] sm:$0xff] %v272
        %275 = vst [vmem:[%s197 + $0x8] sm:$0xff] %v273
        %s276 = smul.u32 2, %s14
        %p277 = scmp.lt.s32.totalorder %s276, 3
        %s278 = scalar_select %p277, %s276, 3
        %s279 = smul.addr %s278, 8
        %s280 = scalar_lea.vmem %s3, %s279
        // Predicated region
        $region56: #{mobilevit_residual_block.10} parent=50 // pred_check
          %p281 = pneg %p100
        $region57: #{mobilevit_residual_block.10} parent=50 // pred_check_branch
          %283 = sbr.rel (%p281) target = $region59
        $region58: #{mobilevit_residual_block.10} parent=50 // pred_region
          %s284 = smul.u32 2, %s14
        $region59: #{mobilevit_residual_block.10} parent=50 // pred_fallthru
          _
      $region51: #{mobilevit_residual_block.10} parent=5 // pred_fallthru
        _
      %p285 = scmp.le.s32.totalorder 2, %s9
      // Predicated region
      $region60: #{mobilevit_residual_block.10} parent=5 // pred_check
        %p286 = pneg %p285
      $region61: #{mobilevit_residual_block.10} parent=5 // pred_check_branch
        %288 = sbr.rel (%p286) target = $region63
      $region62: #{mobilevit_residual_block.10} parent=5 // pred_region
        %s289 = ssub.s32 %s9, 2
        // Predicated region
        $region64: #{mobilevit_residual_block.10} parent=62 // pred_check
          %p290 = pneg %p106
        $region65: #{mobilevit_residual_block.10} parent=62 // pred_check_branch
          %292 = sbr.rel (%p290) target = $region67
        $region66: #{mobilevit_residual_block.10} parent=62 // pred_region
          %s293 = smul.u32 2, %s15
          %p294 = scmp.lt.s32.totalorder %s293, 3
          %s295 = scalar_select %p294, %s293, 3
          %s296 = smul.addr %s295, 8
          %s297 = scalar_lea.vmem %s3, %s296
        $region67: #{mobilevit_residual_block.10} parent=62 // pred_fallthru
          _
      $region63: #{mobilevit_residual_block.10} parent=5 // pred_fallthru
        _
    $region6: #{mobilevit_residual_block.10} parent=1 // loop_footer
      %s13 = sadd.s32 1, %s9
    $region7: #{mobilevit_residual_block.10} parent=1 // loop_footer_branch
      %8 = sbr.rel target = $region3
    $region8: #{mobilevit_residual_block.10} parent=1 // loop_exit
      _

// kernel: mobilevit_residual_block.11
$region0: #{mobilevit_residual_block.11}
  #allocation0 [shape = 'u32[]', space=smem, size = 0x4, offset = 0x4, fixed_abs, tag = 'smem constant byte address 0x4 - core index']
  #allocation1 [shape = 'u32[72,128]{1,0:T(1,128)}', space=vmem, size = 0x9000, scoped, tag = 'internal scratch']
  %s0 = inlined_call_operand.vmem [shape: f32[144,512], index: 0, kind: input, shape index: {}]
  %s1 = inlined_call_operand.vmem [shape: f32[8,144], index: 1, kind: input, shape index: {}]
  %s2 = inlined_call_operand.vmem [shape: f32[8,1], index: 2, kind: input, shape index: {}]
  %s3 = inlined_call_operand.vmem [shape: f32[8,512], index: 3, kind: input, shape index: {}]
  %s4 = inlined_call_operand.vmem [shape: f32[8,512], index: 4, kind: output, shape index: {}]
  %s5 = sld [smem:[#allocation0]]
  $region72: #{mobilevit_residual_block.11} parent=0
    _
  %s7 = ssub.s32 1, %s5
  %s8 = scalar_select 0, %s7, %s5
  $region1: #{mobilevit_residual_block.11} parent=0
    #allocation2 [shape = 'u8[294912]{0}', space=vmem, size = 0x48000, scoped, tag = 'input window, operand 0']
    loop: start=0, step=1, limit=4
    $region2: #{mobilevit_residual_block.11} parent=1 // loop_pre_header
      _
    $region3: #{mobilevit_residual_block.11} parent=1 // loop_header
      %s10 = sphi 0, %s14
      %p11 = scmp.ge.s32.totalorder %s10, 4
      %s20 = sphi 0, %s22
      %s23 = sphi 0, %s20
      %s24 = sphi 0, %s23
      %s40 = sphi 0, %s24
      %s44 = sphi 0, %s44
      %s46 = sphi 0, %s44
      %s47 = sphi 0, %s46
      %s61 = sphi 0, %s47
      %s65 = sphi 0, %s65
      %s67 = sphi 0, %s65
      %s68 = sphi 0, %s67
      %s82 = sphi 0, %s68
      %s88 = sphi 0, %s90
      %s91 = sphi 0, %s88
      %s92 = sphi 0, %s91
      %s108 = sphi 0, %s92
      %s114 = sphi 0, %s116
      %s117 = sphi 0, %s114
      %s118 = sphi 0, %s117
      %s134 = sphi 0, %s118
    $region4: #{mobilevit_residual_block.11} parent=1 // loop_header_branch
      %13 = sbr.rel (%p11) target = $region8
    $region5: #{mobilevit_residual_block.11} parent=1 // loop_body
      %s15 = ssub.s32 %s10, 1
      %s16 = ssub.s32 %s10, 2
      %s17 = sadd.s32 %s10, 1
      %s18 = ssub.s32 %s10, %s17
      %p19 = scmp.eq.s32.totalorder %s18, 0
      %s21 = sadd.s32 %s20, 1
      %s22 = scalar_select %p19, %s20, %s21
      %p25 = pneg %p19
      %p26 = scmp.eq.s32.totalorder %s10, 1
      %p27 = por %p25, %p26
      %p28 = scmp.ne.s32.totalorder %s20, %s23
      %p29 = scmp.eq.s32.totalorder %s10, 0
      %p30 = por %p28, %p29
      %p31 = scmp.ne.s32.totalorder %s20, %s23
      %p32 = scmp.eq.s32.totalorder %s15, 1
      %p33 = por %p31, %p32
      %p34 = scmp.ne.s32.totalorder %s23, %s24
      %p35 = scmp.eq.s32.totalorder %s15, 0
      %p36 = por %p34, %p35
      %p37 = scmp.ne.s32.totalorder %s23, %s24
      %p38 = scmp.eq.s32.totalorder %s16, 1
      %p39 = por %p37, %p38
      %p41 = scmp.ne.s32.totalorder %s24, %s40
      %p42 = scmp.eq.s32.totalorder %s16, 0
      %p43 = por %p41, %p42
      %s45 = sadd.s32 %s44, 1
      %p48 = scmp.eq.s32.totalorder %s10, 1
      %p49 = scmp.ne.s32.totalorder %s44, %s46
      %p50 = scmp.eq.s32.totalorder %s10, 0
      %p51 = por %p49, %p50
      %p52 = scmp.ne.s32.totalorder %s44, %s46
      %p53 = scmp.eq.s32.totalorder %s15, 1
      %p54 = por %p52, %p53
      %p55 = scmp.ne.s32.totalorder %s46, %s47
      %p56 = scmp.eq.s32.totalorder %s15, 0
      %p57 = por %p55, %p56
      %p58 = scmp.ne.s32.totalorder %s46, %s47
      %p59 = scmp.eq.s32.totalorder %s16, 1
      %p60 = por %p58, %p59
      %p62 = scmp.ne.s32.totalorder %s47, %s61
      %p63 = scmp.eq.s32.totalorder %s16, 0
      %p64 = por %p62, %p63
      %s66 = sadd.s32 %s65, 1
      %p69 = scmp.eq.s32.totalorder %s10, 1
      %p70 = scmp.ne.s32.totalorder %s65, %s67
      %p71 = scmp.eq.s32.totalorder %s10, 0
      %p72 = por %p70, %p71
      %p73 = scmp.ne.s32.totalorder %s65, %s67
      %p74 = scmp.eq.s32.totalorder %s15, 1
      %p75 = por %p73, %p74
      %p76 = scmp.ne.s32.totalorder %s67, %s68
      %p77 = scmp.eq.s32.totalorder %s15, 0
      %p78 = por %p76, %p77
      %p79 = scmp.ne.s32.totalorder %s67, %s68
      %p80 = scmp.eq.s32.totalorder %s16, 1
      %p81 = por %p79, %p80
      %p83 = scmp.ne.s32.totalorder %s68, %s82
      %p84 = scmp.eq.s32.totalorder %s16, 0
      %p85 = por %p83, %p84
      %s86 = ssub.s32 %s10, %s17
      %p87 = scmp.eq.s32.totalorder %s86, 0
      %s89 = sadd.s32 %s88, 1
      %s90 = scalar_select %p87, %s88, %s89
      %p93 = pneg %p87
      %p94 = scmp.eq.s32.totalorder %s10, 1
      %p95 = por %p93, %p94
      %p96 = scmp.ne.s32.totalorder %s88, %s91
      %p97 = scmp.eq.s32.totalorder %s10, 0
      %p98 = por %p96, %p97
      %p99 = scmp.ne.s32.totalorder %s88, %s91
      %p100 = scmp.eq.s32.totalorder %s15, 1
      %p101 = por %p99, %p100
      %p102 = scmp.ne.s32.totalorder %s91, %s92
      %p103 = scmp.eq.s32.totalorder %s15, 0
      %p104 = por %p102, %p103
      %p105 = scmp.ne.s32.totalorder %s91, %s92
      %p106 = scmp.eq.s32.totalorder %s16, 1
      %p107 = por %p105, %p106
      %p109 = scmp.ne.s32.totalorder %s92, %s108
      %p110 = scmp.eq.s32.totalorder %s16, 0
      %p111 = por %p109, %p110
      %s112 = ssub.s32 %s10, %s17
      %p113 = scmp.eq.s32.totalorder %s112, 0
      %s115 = sadd.s32 %s114, 1
      %s116 = scalar_select %p113, %s114, %s115
      %p119 = pneg %p113
      %p120 = scmp.eq.s32.totalorder %s10, 1
      %p121 = por %p119, %p120
      %p122 = scmp.ne.s32.totalorder %s114, %s117
      %p123 = scmp.eq.s32.totalorder %s10, 0
      %p124 = por %p122, %p123
      %p125 = scmp.ne.s32.totalorder %s114, %s117
      %p126 = scmp.eq.s32.totalorder %s15, 1
      %p127 = por %p125, %p126
      %p128 = scmp.ne.s32.totalorder %s117, %s118
      %p129 = scmp.eq.s32.totalorder %s15, 0
      %p130 = por %p128, %p129
      %p131 = scmp.ne.s32.totalorder %s117, %s118
      %p132 = scmp.eq.s32.totalorder %s16, 1
      %p133 = por %p131, %p132
      %p135 = scmp.ne.s32.totalorder %s118, %s134
      %p136 = scmp.eq.s32.totalorder %s16, 0
      %p137 = por %p135, %p136
      %p138 = scmp.le.s32.totalorder 1, %s10
      %p139 = scmp.lt.s32.totalorder %s10, 3
      %p140 = pnand %p138, %p139
      %p141 = pneg %p140
      // Predicated region
      $region9: #{mobilevit_residual_block.11} parent=5 // pred_check
        _
      $region10: #{mobilevit_residual_block.11} parent=5 // pred_check_branch
        %143 = sbr.rel (%p140) target = $region12
      $region11: #{mobilevit_residual_block.11} parent=5 // pred_region
        %s144 = ssub.s32 %s10, 1
        // Predicated region
        $region13: #{mobilevit_residual_block.11} parent=11 // pred_check
          %p145 = pneg %p57
        $region14: #{mobilevit_residual_block.11} parent=11 // pred_check_branch
          %147 = sbr.rel (%p145) target = $region16
        $region15: #{mobilevit_residual_block.11} parent=11 // pred_region
          _
        $region16: #{mobilevit_residual_block.11} parent=11 // pred_fallthru
          _
        // Predicated region
        $region17: #{mobilevit_residual_block.11} parent=11 // pred_check
          %p148 = pneg %p78
        $region18: #{mobilevit_residual_block.11} parent=11 // pred_check_branch
          %150 = sbr.rel (%p148) target = $region20
        $region19: #{mobilevit_residual_block.11} parent=11 // pred_region
          _
        $region20: #{mobilevit_residual_block.11} parent=11 // pred_fallthru
          _
      $region12: #{mobilevit_residual_block.11} parent=5 // pred_fallthru
        _
      %p151 = scmp.lt.s32.totalorder %s10, 2
      // Predicated region
      $region21: #{mobilevit_residual_block.11} parent=5 // pred_check
        %p152 = pneg %p151
      $region22: #{mobilevit_residual_block.11} parent=5 // pred_check_branch
        %154 = sbr.rel (%p152) target = $region24
      $region23: #{mobilevit_residual_block.11} parent=5 // pred_region
        // Predicated region
        $region25: #{mobilevit_residual_block.11} parent=23 // pred_check
          %p155 = pneg %p30
        $region26: #{mobilevit_residual_block.11} parent=23 // pred_check_branch
          %157 = sbr.rel (%p155) target = $region28
        $region27: #{mobilevit_residual_block.11} parent=23 // pred_region
          %s158 = sand.u32 %s20, 1
          %s159 = sand.u32 %s20, 1
          %s160 = smul.addr %s159, 288
          %s161 = scalar_lea.vmem [#allocation2], %s160
          %s162 = smul.u32 2, %s10
          %s163 = smul.addr %s162, 8
          %s164 = scalar_lea.vmem %s0, %s163
          // Predicated region
          $region29: #{mobilevit_residual_block.11} parent=27 // pred_check
            _
          $region30: #{mobilevit_residual_block.11} parent=27 // pred_check_branch
            %166 = sbr.rel (0) target = $region32
          $region31: #{mobilevit_residual_block.11} parent=27 // pred_region
            // Predicated region
            $region33: #{mobilevit_residual_block.11} parent=31 // pred_check
              _
            $region34: #{mobilevit_residual_block.11} parent=31 // pred_check_branch
              %168 = sbr.rel (0) target = $region36
            $region35: #{mobilevit_residual_block.11} parent=31 // pred_region
              loop: start=0, step=1, limit=1
              $region37: #{mobilevit_residual_block.11} parent=35 // loop_pre_header
                _
              $region38: #{mobilevit_residual_block.11} parent=35 // loop_header
                %s170 = sphi 0, %s174
                %p171 = scmp.ge.s32.totalorder %s170, 1
                %s175 = sphi %s164, %s164
                %s176 = sphi %s161, %s161
              $region39: #{mobilevit_residual_block.11} parent=35 // loop_header_branch
                %173 = sbr.rel (%p171) target = $region43
              $region40: #{mobilevit_residual_block.11} parent=35 // loop_body
                %v177 = vld [vmem:[%s175] sm:$0xff]
                %178 = vst [vmem:[%s176] sm:$0xff] %v177
                %v179 = vld [vmem:[%s175 + $0x8] sm:$0xff]
                %180 = vst [vmem:[%s176 + $0x8] sm:$0xff] %v179
                %v181 = vld [vmem:[%s175 + $0x20] sm:$0xff]
                %182 = vst [vmem:[%s176 + $0x10] sm:$0xff] %v181
                %v183 = vld [vmem:[%s175 + $0x28] sm:$0xff]
                %184 = vst [vmem:[%s176 + $0x18] sm:$0xff] %v183
                %v185 = vld [vmem:[%s175 + $0x40] sm:$0xff]
                %186 = vst [vmem:[%s176 + $0x20] sm:$0xff] %v185
                %v187 = vld [vmem:[%s175 + $0x48] sm:$0xff]
                %188 = vst [vmem:[%s176 + $0x28] sm:$0xff] %v187
                %v189 = vld [vmem:[%s175 + $0x60] sm:$0xff]
                %190 = vst [vmem:[%s176 + $0x30] sm:$0xff] %v189
                %v191 = vld [vmem:[%s175 + $0x68] sm:$0xff]
                %192 = vst [vmem:[%s176 + $0x38] sm:$0xff] %v191
                %v193 = vld [vmem:[%s175 + $0x80] sm:$0xff]
                %194 = vst [vmem:[%s176 + $0x40] sm:$0xff] %v193
                %v195 = vld [vmem:[%s175 + $0x88] sm:$0xff]
                %196 = vst [vmem:[%s176 + $0x48] sm:$0xff] %v195
                %v197 = vld [vmem:[%s175 + $0xa0] sm:$0xff]
                %198 = vst [vmem:[%s176 + $0x50] sm:$0xff] %v197
                %v199 = vld [vmem:[%s175 + $0xa8] sm:$0xff]
                %200 = vst [vmem:[%s176 + $0x58] sm:$0xff] %v199
                %v201 = vld [vmem:[%s175 + $0xc0] sm:$0xff]
                %202 = vst [vmem:[%s176 + $0x60] sm:$0xff] %v201
                %v203 = vld [vmem:[%s175 + $0xc8] sm:$0xff]
                %204 = vst [vmem:[%s176 + $0x68] sm:$0xff] %v203
                %v205 = vld [vmem:[%s175 + $0xe0] sm:$0xff]
                %206 = vst [vmem:[%s176 + $0x70] sm:$0xff] %v205
                %v207 = vld [vmem:[%s175 + $0xe8] sm:$0xff]
                %208 = vst [vmem:[%s176 + $0x78] sm:$0xff] %v207
                %v209 = vld [vmem:[%s175 + $0x100] sm:$0xff]
                %210 = vst [vmem:[%s176 + $0x80] sm:$0xff] %v209
                %v211 = vld [vmem:[%s175 + $0x108] sm:$0xff]
                %212 = vst [vmem:[%s176 + $0x88] sm:$0xff] %v211
                %v213 = vld [vmem:[%s175 + $0x120] sm:$0xff]
                %214 = vst [vmem:[%s176 + $0x90] sm:$0xff] %v213
                %v215 = vld [vmem:[%s175 + $0x128] sm:$0xff]
                %216 = vst [vmem:[%s176 + $0x98] sm:$0xff] %v215
                %v217 = vld [vmem:[%s175 + $0x140] sm:$0xff]
                %218 = vst [vmem:[%s176 + $0xa0] sm:$0xff] %v217
                %v219 = vld [vmem:[%s175 + $0x148] sm:$0xff]
                %220 = vst [vmem:[%s176 + $0xa8] sm:$0xff] %v219
                %v221 = vld [vmem:[%s175 + $0x160] sm:$0xff]
                %222 = vst [vmem:[%s176 + $0xb0] sm:$0xff] %v221
                %v223 = vld [vmem:[%s175 + $0x168] sm:$0xff]
                %224 = vst [vmem:[%s176 + $0xb8] sm:$0xff] %v223
                %v225 = vld [vmem:[%s175 + $0x180] sm:$0xff]
                %226 = vst [vmem:[%s176 + $0xc0] sm:$0xff] %v225
                %v227 = vld [vmem:[%s175 + $0x188] sm:$0xff]
                %228 = vst [vmem:[%s176 + $0xc8] sm:$0xff] %v227
                %v229 = vld [vmem:[%s175 + $0x1a0] sm:$0xff]
                %230 = vst [vmem:[%s176 + $0xd0] sm:$0xff] %v229
                %v231 = vld [vmem:[%s175 + $0x1a8] sm:$0xff]
                %232 = vst [vmem:[%s176 + $0xd8] sm:$0xff] %v231
                %v233 = vld [vmem:[%s175 + $0x1c0] sm:$0xff]
                %234 = vst [vmem:[%s176 + $0xe0] sm:$0xff] %v233
                %v235 = vld [vmem:[%s175 + $0x1c8] sm:$0xff]
                %236 = vst [vmem:[%s176 + $0xe8] sm:$0xff] %v235
                %v237 = vld [vmem:[%s175 + $0x1e0] sm:$0xff]
                %238 = vst [vmem:[%s176 + $0xf0] sm:$0xff] %v237
                %v239 = vld [vmem:[%s175 + $0x1e8] sm:$0xff]
                %240 = vst [vmem:[%s176 + $0xf8] sm:$0xff] %v239
                %v241 = vld [vmem:[%s175 + $0x200] sm:$0xff]
                %242 = vst [vmem:[%s176 + $0x100] sm:$0xff] %v241
                %v243 = vld [vmem:[%s175 + $0x208] sm:$0xff]
                %244 = vst [vmem:[%s176 + $0x108] sm:$0xff] %v243
                %v245 = vld [vmem:[%s175 + $0x220] sm:$0xff]
                %246 = vst [vmem:[%s176 + $0x110] sm:$0xff] %v245
                %v247 = vld [vmem:[%s175 + $0x228] sm:$0xff]
                %248 = vst [vmem:[%s176 + $0x118] sm:$0xff] %v247
              $region41: #{mobilevit_residual_block.11} parent=35 // loop_footer
                %s174 = sadd.s32 1, %s170
              $region42: #{mobilevit_residual_block.11} parent=35 // loop_footer_branch
                %169 = sbr.rel target = $region38
              $region43: #{mobilevit_residual_block.11} parent=35 // loop_exit
                _
            $region36: #{mobilevit_residual_block.11} parent=31 // pred_fallthru
              _
            // Predicated region
            $region44: #{mobilevit_residual_block.11} parent=31 // pred_check
              _
            $region45: #{mobilevit_residual_block.11} parent=31 // pred_check_branch
              %250 = sbr.rel target = $region47
            $region46: #{mobilevit_residual_block.11} parent=31 // pred_region
              _
            $region47: #{mobilevit_residual_block.11} parent=31 // pred_fallthru
              _
          $region32: #{mobilevit_residual_block.11} parent=27 // pred_fallthru
            _
          %251 = vnop
        $region28: #{mobilevit_residual_block.11} parent=23 // pred_fallthru
          _
        // Predicated region
        $region48: #{mobilevit_residual_block.11} parent=23 // pred_check
          %p252 = pneg %p98
        $region49: #{mobilevit_residual_block.11} parent=23 // pred_check_branch
          %254 = sbr.rel (%p252) target = $region51
        $region50: #{mobilevit_residual_block.11} parent=23 // pred_region
          %s255 = smul.u32 2, %s10
          %p256 = scmp.lt.s32.totalorder %s255, 3
          %s257 = scalar_select %p256, %s255, 3
          %s258 = smul.addr %s257, 8
          %s259 = scalar_lea.vmem %s3, %s258
          %s260 = smul.u32 2, %s10
        $region51: #{mobilevit_residual_block.11} parent=23 // pred_fallthru
          _
      $region24: #{mobilevit_residual_block.11} parent=5 // pred_fallthru
        _
      %p261 = scmp.le.s32.totalorder 1, %s10
      %p262 = scmp.lt.s32.totalorder %s10, 3
      %p263 = pnand %p261, %p262
      %p264 = pneg %p263
      // Predicated region
      $region52: #{mobilevit_residual_block.11} parent=5 // pred_check
        _
      $region53: #{mobilevit_residual_block.11} parent=5 // pred_check_branch
        %266 = sbr.rel (%p263) target = $region55
      $region54: #{mobilevit_residual_block.11} parent=5 // pred_region
        %s267 = ssub.s32 %s10, 1
        %s268 = sand.u32 %s23, 1
        %s269 = sand.u32 %s23, 1
        %s270 = smul.addr %s269, 288
        %s271 = scalar_lea.vmem [#allocation2], %s270
        // Predicated region
        $region56: #{mobilevit_residual_block.11} parent=54 // pred_check
          %p272 = pneg %p36
        $region57: #{mobilevit_residual_block.11} parent=54 // pred_check_branch
          %274 = sbr.rel (%p272) target = $region59
        $region58: #{mobilevit_residual_block.11} parent=54 // pred_region
          _
        $region59: #{mobilevit_residual_block.11} parent=54 // pred_fallthru
          _
        %s275 = sand.u32 %s23, 1
        %s276 = sand.u32 %s23, 1
        %s277 = smul.addr %s276, 288
        %s278 = scalar_lea.vmem [#allocation2], %s277
        %p279 = pneg %p36
        %p280 = pneg %p33
        %p281 = pneg %p57
        %p282 = pneg %p54
        %p283 = pneg %p78
        %p284 = pneg %p75
        %s285 = smul.u32 2, %s15
        %p286 = scmp.lt.s32.totalorder %s285, 3
        %s287 = scalar_select %p286, %s285, 3
        %s288 = smul.addr %s287, 8
        %s289 = scalar_lea.vmem %s3, %s288
        %p290 = pneg %p104
        %p291 = pneg %p101
        %p292 = pneg %p130
        %p293 = pneg %p127
        %s294 = smul.u32 2, %s15
        %p295 = scmp.lt.s32.totalorder %s294, 3
        %s296 = scalar_select %p295, %s294, 3
        %s297 = smul.addr %s296, 8
        %s298 = scalar_lea.vmem %s4, %s297
        %s299 = smul.u32 2, %s15
        %s300 = smul.u32 2, %s15
        %p301 = scmp.lt.s32.totalorder %s300, 3
        %s302 = scalar_select %p301, %s300, 3
        %s303 = smul.addr %s302, 8
        %s304 = scalar_lea.vmem %s3, %s303
        %s305 = smul.u32 2, %s15
        %s306 = smul.u32 2, %s15
        %p307 = scmp.lt.s32.totalorder %s306, 3
        %s308 = scalar_select %p307, %s306, 3
        %s309 = smul.addr %s308, 8
        %s310 = scalar_lea.vmem %s4, %s309
        %s311 = smul.u32 2, %s15
        %v312 = vld [vmem:[%s1] sm:$0xff]
        %v313 = vld [vmem:[%s1 + $0x8] sm:$0xff]
        %v314 = vld [vmem:[%s271] sm:$0xff]
        %v315 = vld [vmem:[%s271 + $0x8] sm:$0xff]
        %v316 = vld [vmem:[%s271 + $0x10] sm:$0xff]
        %v317 = vld [vmem:[%s271 + $0x18] sm:$0xff]
        %v318 = vld [vmem:[%s271 + $0x20] sm:$0xff]
        %v319 = vld [vmem:[%s271 + $0x28] sm:$0xff]
        %v320 = vld [vmem:[%s271 + $0x30] sm:$0xff]
        %v321 = vld [vmem:[%s271 + $0x38] sm:$0xff]
        %v322 = vld [vmem:[%s271 + $0x40] sm:$0xff]
        %v323 = vld [vmem:[%s271 + $0x48] sm:$0xff]
        %v324 = vld [vmem:[%s271 + $0x50] sm:$0xff]
        %v325 = vld [vmem:[%s271 + $0x58] sm:$0xff]
        %v326 = vld [vmem:[%s271 + $0x60] sm:$0xff]
        %v327 = vld [vmem:[%s271 + $0x68] sm:$0xff]
        %v328 = vld [vmem:[%s271 + $0x70] sm:$0xff]
        %v329 = vld [vmem:[%s271 + $0x78] sm:$0xff]
        %v330 = vld [vmem:[%s271 + $0x80] sm:$0xff]
        %v331 = vld [vmem:[%s271 + $0x88] sm:$0xff]
        %v332 = vld [vmem:[%s271 + $0x90] sm:$0xff]
        %v333 = vld [vmem:[%s271 + $0x98] sm:$0xff]
        %v334 = vld [vmem:[%s271 + $0xa0] sm:$0xff]
        %v335 = vld [vmem:[%s271 + $0xa8] sm:$0xff]
        %v336 = vld [vmem:[%s271 + $0xb0] sm:$0xff]
        %v337 = vld [vmem:[%s271 + $0xb8] sm:$0xff]
        %v338 = vld [vmem:[%s271 + $0xc0] sm:$0xff]
        %v339 = vld [vmem:[%s271 + $0xc8] sm:$0xff]
        %v340 = vld [vmem:[%s271 + $0xd0] sm:$0xff]
        %v341 = vld [vmem:[%s271 + $0xd8] sm:$0xff]
        %v342 = vld [vmem:[%s271 + $0xe0] sm:$0xff]
        %v343 = vld [vmem:[%s271 + $0xe8] sm:$0xff]
        %v344 = vld [vmem:[%s271 + $0xf0] sm:$0xff]
        %v345 = vld [vmem:[%s271 + $0xf8] sm:$0xff]
        %v346 = vld [vmem:[%s271 + $0x100] sm:$0xff]
        %v347 = vld [vmem:[%s271 + $0x108] sm:$0xff]
        %v348 = vld [vmem:[%s271 + $0x110] sm:$0xff]
        %v349 = vld [vmem:[%s271 + $0x118] sm:$0xff]
        %v350 = vld [vmem:[%s2] sm:$0xff]
        %352 = vset.pattern.permute.xlu0 0
        %353 = vperm.xlu0 %352, %v350
        %v354 = vpop.permute.xlu0 %353
        %vm356 = vcmask 130048
        %v358 = vsel %vm356, %v313, 0
        %360 = vmatpush.msra.mxu0 %v344
        %361 = vmatpush.msra.mxu0 %v342
        %362 = vmatpush.msra.mxu0 %v340
        %363 = vmatpush.msra.mxu0 %v338
        %364 = vmatpush.msra.mxu0 %v336
        %365 = vmatpush.msra.mxu0 %v334
        %366 = vmatpush.msra.mxu0 %v332
        %367 = vmatpush.msra.mxu0 %v330
        %368 = vmatpush.msra.mxu0 %v328
        %369 = vmatpush.msra.mxu0 %v326
        %370 = vmatpush.msra.mxu0 %v324
        %371 = vmatpush.msra.mxu0 %v322
        %372 = vmatpush.msra.mxu0 %v320
        %373 = vmatpush.msra.mxu0 %v318
        %374 = vmatpush.msra.mxu0 %v316
        %375 = vmatpush.msra.mxu0 %v314
        %376 = vmatmul.f32.gmra.mxu0 %v312
        %v377 = vpop.f32.mrf.mxu0
        %v378 = vadd.f32 %v354, %v377
        %379 = vdwg.mxu0
        %380 = vmatpush.msra.mxu0 0.0
        %381 = vmatpush.msra.mxu0 0.0
        %382 = vmatpush.msra.mxu0 0.0
        %383 = vmatpush.msra.mxu0 0.0
        %384 = vmatpush.msra.mxu0 0.0
        %385 = vmatpush.msra.mxu0 0.0
        %386 = vmatpush.msra.mxu0 0.0
        %387 = vmatpush.msra.mxu0 0.0
        %388 = vmatpush.msra.mxu0 0.0
        %389 = vmatpush.msra.mxu0 0.0
        %390 = vmatpush.msra.mxu0 0.0
        %391 = vmatpush.msra.mxu0 0.0
        %392 = vmatpush.msra.mxu0 0.0
        %393 = vmatpush.msra.mxu0 0.0
        %394 = vmatpush.msra.mxu0 %v348
        %395 = vmatpush.msra.mxu0 %v346
        %396 = vmatmul.f32.gmra.mxu0 %v358
        %v397 = vpop.f32.mrf.mxu0
        %v398 = vadd.f32 %v378, %v397
        %399 = vdwg.mxu0
        %400 = vmatpush.msra.mxu0 %v345
        %401 = vmatpush.msra.mxu0 %v343
        %402 = vmatpush.msra.mxu0 %v341
        %403 = vmatpush.msra.mxu0 %v339
        %404 = vmatpush.msra.mxu0 %v337
        %405 = vmatpush.msra.mxu0 %v335
        %406 = vmatpush.msra.mxu0 %v333
        %407 = vmatpush.msra.mxu0 %v331
        %408 = vmatpush.msra.mxu0 %v329
        %409 = vmatpush.msra.mxu0 %v327
        %410 = vmatpush.msra.mxu0 %v325
        %411 = vmatpush.msra.mxu0 %v323
        %412 = vmatpush.msra.mxu0 %v321
        %413 = vmatpush.msra.mxu0 %v319
        %414 = vmatpush.msra.mxu0 %v317
        %415 = vmatpush.msra.mxu0 %v315
        %416 = vmatmul.f32.gmra.mxu0 %v312
        %v417 = vpop.f32.mrf.mxu0
        %v418 = vadd.f32 %v354, %v417
        %419 = vdwg.mxu0
        %420 = vmatpush.msra.mxu0 0.0
        %421 = vmatpush.msra.mxu0 0.0
        %422 = vmatpush.msra.mxu0 0.0
        %423 = vmatpush.msra.mxu0 0.0
        %424 = vmatpush.msra.mxu0 0.0
        %425 = vmatpush.msra.mxu0 0.0
        %426 = vmatpush.msra.mxu0 0.0
        %427 = vmatpush.msra.mxu0 0.0
        %428 = vmatpush.msra.mxu0 0.0
        %429 = vmatpush.msra.mxu0 0.0
        %430 = vmatpush.msra.mxu0 0.0
        %431 = vmatpush.msra.mxu0 0.0
        %432 = vmatpush.msra.mxu0 0.0
        %433 = vmatpush.msra.mxu0 0.0
        %434 = vmatpush.msra.mxu0 %v349
        %435 = vmatpush.msra.mxu0 %v347
        %436 = vmatmul.f32.gmra.mxu0 %v358
        %v437 = vpop.f32.mrf.mxu0
        %v438 = vadd.f32 %v418, %v437
        %439 = vdwg.mxu0
        %v440 = vand.u32 2147483647, %v398
        %v441 = vand.u32 2147483647, %v438
        %v442 = vsub.f32 0.0, %v440
        %v443 = vsub.f32 0.0, %v441
        %v444 = vmul.f32 %v442, 1.442695
        %v445 = vpow.pop %v444
        %v446 = vmul.f32 %v443, 1.442695
        %v447 = vpow.pop %v446
        %v448 = vadd.f32 %v445, 1.0
        %v449 = vadd.f32 %v447, 1.0
        %v450 = vrcp.pop %v448
        %v451 = vrcp.pop %v449
        %vm452 = vcmp.ge.f32.partialorder %v398, 0.0
        %vm453 = vcmp.ge.f32.partialorder %v438, 0.0
        %v454 = vmul.f32 %v445, %v450
        %v455 = vmul.f32 %v447, %v451
        %v456 = vsel %vm452, %v450, %v454
        %v457 = vsel %vm453, %v451, %v455
        %v458 = vmul.f32 %v398, %v456
        %v459 = vmul.f32 %v438, %v457
        %v460 = vld [vmem:[%s304] sm:$0xff]
        %v461 = vld [vmem:[%s304 + $0x8] sm:$0xff]
        %v462 = vadd.f32 %v458, %v460
        %v463 = vadd.f32 %v459, %v461
        %464 = vst [vmem:[%s310] sm:$0xff] %v462
        %465 = vst [vmem:[%s310 + $0x8] sm:$0xff] %v463
        %s466 = smul.u32 2, %s15
        %p467 = scmp.lt.s32.totalorder %s466, 3
        %s468 = scalar_select %p467, %s466, 3
        %s469 = smul.addr %s468, 8
        %s470 = scalar_lea.vmem %s4, %s469
        // Predicated region
        $region60: #{mobilevit_residual_block.11} parent=54 // pred_check
          %p471 = pneg %p127
        $region61: #{mobilevit_residual_block.11} parent=54 // pred_check_branch
          %473 = sbr.rel (%p471) target = $region63
        $region62: #{mobilevit_residual_block.11} parent=54 // pred_region
          %s474 = smul.u32 2, %s15
        $region63: #{mobilevit_residual_block.11} parent=54 // pred_fallthru
          _
      $region55: #{mobilevit_residual_block.11} parent=5 // pred_fallthru
        _
      %p475 = scmp.le.s32.totalorder 2, %s10
      // Predicated region
      $region64: #{mobilevit_residual_block.11} parent=5 // pred_check
        %p476 = pneg %p475
      $region65: #{mobilevit_residual_block.11} parent=5 // pred_check_branch
        %478 = sbr.rel (%p476) target = $region67
      $region66: #{mobilevit_residual_block.11} parent=5 // pred_region
        %s479 = ssub.s32 %s10, 2
        // Predicated region
        $region68: #{mobilevit_residual_block.11} parent=66 // pred_check
          %p480 = pneg %p133
        $region69: #{mobilevit_residual_block.11} parent=66 // pred_check_branch
          %482 = sbr.rel (%p480) target = $region71
        $region70: #{mobilevit_residual_block.11} parent=66 // pred_region
          %s483 = smul.u32 2, %s16
          %p484 = scmp.lt.s32.totalorder %s483, 3
          %s485 = scalar_select %p484, %s483, 3
          %s486 = smul.addr %s485, 8
          %s487 = scalar_lea.vmem %s4, %s486
        $region71: #{mobilevit_residual_block.11} parent=66 // pred_fallthru
          _
      $region67: #{mobilevit_residual_block.11} parent=5 // pred_fallthru
        _
    $region6: #{mobilevit_residual_block.11} parent=1 // loop_footer
      %s14 = sadd.s32 1, %s10
    $region7: #{mobilevit_residual_block.11} parent=1 // loop_footer_branch
      %9 = sbr.rel target = $region3
    $region8: #{mobilevit_residual_block.11} parent=1 // loop_exit
      _

// kernel: mobilevit_residual_block.9
$region0: #{mobilevit_residual_block.9}
  #allocation0 [shape = 'u32[]', space=smem, size = 0x4, offset = 0x4, fixed_abs, tag = 'smem constant byte address 0x4 - core index']
  #allocation1 [shape = 'u32[72,128]{1,0:T(1,128)}', space=vmem, size = 0x9000, scoped, tag = 'internal scratch']
  %s0 = inlined_call_operand.vmem [shape: f32[8,64,16], index: 0, kind: input, shape index: {}]
  %s1 = inlined_call_operand.vmem [shape: f32[2,1,16], index: 1, kind: input, shape index: {}]
  %s2 = inlined_call_operand.vmem [shape: f32[2,1,16], index: 2, kind: input, shape index: {}]
  %s3 = inlined_call_operand.vmem [shape: f32[2,16,96], index: 3, kind: input, shape index: {}]
  %s4 = inlined_call_operand.vmem [shape: f32[2,32,16], index: 4, kind: input, shape index: {}]
  %s5 = inlined_call_operand.vmem [shape: f32[2,1,16], index: 5, kind: input, shape index: {}]
  %s6 = inlined_call_operand.vmem [shape: f32[2,1,16], index: 6, kind: input, shape index: {}]
  %s7 = inlined_call_operand.vmem [shape: f32[2,1,16], index: 7, kind: input, shape index: {}]
  %s8 = inlined_call_operand.vmem [shape: f32[2,16,32], index: 8, kind: input, shape index: {}]
  %s9 = inlined_call_operand.vmem [shape: f32[2,1,32], index: 9, kind: input, shape index: {}]
  %s10 = inlined_call_operand.vmem [shape: f32[2,32,16], index: 10, kind: input, shape index: {}]
  %s11 = inlined_call_operand.vmem [shape: f32[2,1,16], index: 11, kind: input, shape index: {}]
  %s12 = inlined_call_operand.vmem [shape: f32[8,64,16], index: 12, kind: output, shape index: {}]
  %s13 = sld [smem:[#allocation0]]
  $region81: #{mobilevit_residual_block.9} parent=0
    _
  %s15 = ssub.s32 1, %s13
  %s16 = scalar_select 0, %s15, %s13
  loop: start=0, step=1, limit=10
  $region2: #{mobilevit_residual_block.9} parent=0 // loop_pre_header
    _
  $region3: #{mobilevit_residual_block.9} parent=0 // loop_header
    %s18 = sphi 0, %s22
    %p19 = scmp.ge.s32.totalorder %s18, 10
    %s28 = sphi 0, %s30
    %s31 = sphi 0, %s28
    %s32 = sphi 0, %s31
    %s48 = sphi 0, %s32
    %s52 = sphi 0, %s52
    %s54 = sphi 0, %s52
    %s55 = sphi 0, %s54
    %s69 = sphi 0, %s55
    %s73 = sphi 0, %s73
    %s75 = sphi 0, %s73
    %s76 = sphi 0, %s75
    %s90 = sphi 0, %s76
    %s94 = sphi 0, %s94
    %s96 = sphi 0, %s94
    %s97 = sphi 0, %s96
    %s111 = sphi 0, %s97
    %s115 = sphi 0, %s115
    %s117 = sphi 0, %s115
    %s118 = sphi 0, %s117
    %s132 = sphi 0, %s118
    %s136 = sphi 0, %s136
    %s138 = sphi 0, %s136
    %s139 = sphi 0, %s138
    %s153 = sphi 0, %s139
    %s157 = sphi 0, %s157
    %s159 = sphi 0, %s157
    %s160 = sphi 0, %s159
    %s174 = sphi 0, %s160
    %s178 = sphi 0, %s178
    %s180 = sphi 0, %s178
    %s181 = sphi 0, %s180
    %s195 = sphi 0, %s181
    %s199 = sphi 0, %s199
    %s201 = sphi 0, %s199
    %s202 = sphi 0, %s201
    %s216 = sphi 0, %s202
    %s220 = sphi 0, %s220
    %s222 = sphi 0, %s220
    %s223 = sphi 0, %s222
    %s237 = sphi 0, %s223
    %s241 = sphi 0, %s241
    %s243 = sphi 0, %s241
    %s244 = sphi 0, %s243
    %s258 = sphi 0, %s244
    %s262 = sphi 0, %s262
    %s264 = sphi 0, %s262
    %s265 = sphi 0, %s264
    %s279 = sphi 0, %s265
    %s285 = sphi 0, %s287
    %s288 = sphi 0, %s285
    %s289 = sphi 0, %s288
    %s305 = sphi 0, %s289
  $region4: #{mobilevit_residual_block.9} parent=0 // loop_header_branch
    %21 = sbr.rel (%p19) target = $region8
  $region5: #{mobilevit_residual_block.9} parent=0 // loop_body
    %s23 = ssub.s32 %s18, 1
    %s24 = ssub.s32 %s18, 2
    %s25 = sadd.s32 %s18, 1
    %s26 = ssub.s32 %s18, %s25
    %p27 = scmp.eq.s32.totalorder %s26, 0
    %s29 = sadd.s32 %s28, 1
    %s30 = scalar_select %p27, %s28, %s29
    %p33 = pneg %p27
    %p34 = scmp.eq.s32.totalorder %s18, 7
    %p35 = por %p33, %p34
    %p36 = scmp.ne.s32.totalorder %s28, %s31
    %p37 = scmp.eq.s32.totalorder %s18, 0
    %p38 = por %p36, %p37
    %p39 = scmp.ne.s32.totalorder %s28, %s31
    %p40 = scmp.eq.s32.totalorder %s23, 7
    %p41 = por %p39, %p40
    %p42 = scmp.ne.s32.totalorder %s31, %s32
    %p43 = scmp.eq.s32.totalorder %s23, 0
    %p44 = por %p42, %p43
    %p45 = scmp.ne.s32.totalorder %s31, %s32
    %p46 = scmp.eq.s32.totalorder %s24, 7
    %p47 = por %p45, %p46
    %p49 = scmp.ne.s32.totalorder %s32, %s48
    %p50 = scmp.eq.s32.totalorder %s24, 0
    %p51 = por %p49, %p50
    %s53 = sadd.s32 %s52, 1
    %p56 = scmp.eq.s32.totalorder %s18, 7
    %p57 = scmp.ne.s32.totalorder %s52, %s54
    %p58 = scmp.eq.s32.totalorder %s18, 0
    %p59 = por %p57, %p58
    %p60 = scmp.ne.s32.totalorder %s52, %s54
    %p61 = scmp.eq.s32.totalorder %s23, 7
    %p62 = por %p60, %p61
    %p63 = scmp.ne.s32.totalorder %s54, %s55
    %p64 = scmp.eq.s32.totalorder %s23, 0
    %p65 = por %p63, %p64
    %p66 = scmp.ne.s32.totalorder %s54, %s55
    %p67 = scmp.eq.s32.totalorder %s24, 7
    %p68 = por %p66, %p67
    %p70 = scmp.ne.s32.totalorder %s55, %s69
    %p71 = scmp.eq.s32.totalorder %s24, 0
    %p72 = por %p70, %p71
    %s74 = sadd.s32 %s73, 1
    %p77 = scmp.eq.s32.totalorder %s18, 7
    %p78 = scmp.ne.s32.totalorder %s73, %s75
    %p79 = scmp.eq.s32.totalorder %s18, 0
    %p80 = por %p78, %p79
    %p81 = scmp.ne.s32.totalorder %s73, %s75
    %p82 = scmp.eq.s32.totalorder %s23, 7
    %p83 = por %p81, %p82
    %p84 = scmp.ne.s32.totalorder %s75, %s76
    %p85 = scmp.eq.s32.totalorder %s23, 0
    %p86 = por %p84, %p85
    %p87 = scmp.ne.s32.totalorder %s75, %s76
    %p88 = scmp.eq.s32.totalorder %s24, 7
    %p89 = por %p87, %p88
    %p91 = scmp.ne.s32.totalorder %s76, %s90
    %p92 = scmp.eq.s32.totalorder %s24, 0
    %p93 = por %p91, %p92
    %s95 = sadd.s32 %s94, 1
    %p98 = scmp.eq.s32.totalorder %s18, 7
    %p99 = scmp.ne.s32.totalorder %s94, %s96
    %p100 = scmp.eq.s32.totalorder %s18, 0
    %p101 = por %p99, %p100
    %p102 = scmp.ne.s32.totalorder %s94, %s96
    %p103 = scmp.eq.s32.totalorder %s23, 7
    %p104 = por %p102, %p103
    %p105 = scmp.ne.s32.totalorder %s96, %s97
    %p106 = scmp.eq.s32.totalorder %s23, 0
    %p107 = por %p105, %p106
    %p108 = scmp.ne.s32.totalorder %s96, %s97
    %p109 = scmp.eq.s32.totalorder %s24, 7
    %p110 = por %p108, %p109
    %p112 = scmp.ne.s32.totalorder %s97, %s111
    %p113 = scmp.eq.s32.totalorder %s24, 0
    %p114 = por %p112, %p113
    %s116 = sadd.s32 %s115, 1
    %p119 = scmp.eq.s32.totalorder %s18, 7
    %p120 = scmp.ne.s32.totalorder %s115, %s117
    %p121 = scmp.eq.s32.totalorder %s18, 0
    %p122 = por %p120, %p121
    %p123 = scmp.ne.s32.totalorder %s115, %s117
    %p124 = scmp.eq.s32.totalorder %s23, 7
    %p125 = por %p123, %p124
    %p126 = scmp.ne.s32.totalorder %s117, %s118
    %p127 = scmp.eq.s32.totalorder %s23, 0
    %p128 = por %p126, %p127
    %p129 = scmp.ne.s32.totalorder %s117, %s118
    %p130 = scmp.eq.s32.totalorder %s24, 7
    %p131 = por %p129, %p130
    %p133 = scmp.ne.s32.totalorder %s118, %s132
    %p134 = scmp.eq.s32.totalorder %s24, 0
    %p135 = por %p133, %p134
    %s137 = sadd.s32 %s136, 1
    %p140 = scmp.eq.s32.totalorder %s18, 7
    %p141 = scmp.ne.s32.totalorder %s136, %s138
    %p142 = scmp.eq.s32.totalorder %s18, 0
    %p143 = por %p141, %p142
    %p144 = scmp.ne.s32.totalorder %s136, %s138
    %p145 = scmp.eq.s32.totalorder %s23, 7
    %p146 = por %p144, %p145
    %p147 = scmp.ne.s32.totalorder %s138, %s139
    %p148 = scmp.eq.s32.totalorder %s23, 0
    %p149 = por %p147, %p148
    %p150 = scmp.ne.s32.totalorder %s138, %s139
    %p151 = scmp.eq.s32.totalorder %s24, 7
    %p152 = por %p150, %p151
    %p154 = scmp.ne.s32.totalorder %s139, %s153
    %p155 = scmp.eq.s32.totalorder %s24, 0
    %p156 = por %p154, %p155
    %s158 = sadd.s32 %s157, 1
    %p161 = scmp.eq.s32.totalorder %s18, 7
    %p162 = scmp.ne.s32.totalorder %s157, %s159
    %p163 = scmp.eq.s32.totalorder %s18, 0
    %p164 = por %p162, %p163
    %p165 = scmp.ne.s32.totalorder %s157, %s159
    %p166 = scmp.eq.s32.totalorder %s23, 7
    %p167 = por %p165, %p166
    %p168 = scmp.ne.s32.totalorder %s159, %s160
    %p169 = scmp.eq.s32.totalorder %s23, 0
    %p170 = por %p168, %p169
    %p171 = scmp.ne.s32.totalorder %s159, %s160
    %p172 = scmp.eq.s32.totalorder %s24, 7
    %p173 = por %p171, %p172
    %p175 = scmp.ne.s32.totalorder %s160, %s174
    %p176 = scmp.eq.s32.totalorder %s24, 0
    %p177 = por %p175, %p176
    %s179 = sadd.s32 %s178, 1
    %p182 = scmp.eq.s32.totalorder %s18, 7
    %p183 = scmp.ne.s32.totalorder %s178, %s180
    %p184 = scmp.eq.s32.totalorder %s18, 0
    %p185 = por %p183, %p184
    %p186 = scmp.ne.s32.totalorder %s178, %s180
    %p187 = scmp.eq.s32.totalorder %s23, 7
    %p188 = por %p186, %p187
    %p189 = scmp.ne.s32.totalorder %s180, %s181
    %p190 = scmp.eq.s32.totalorder %s23, 0
    %p191 = por %p189, %p190
    %p192 = scmp.ne.s32.totalorder %s180, %s181
    %p193 = scmp.eq.s32.totalorder %s24, 7
    %p194 = por %p192, %p193
    %p196 = scmp.ne.s32.totalorder %s181, %s195
    %p197 = scmp.eq.s32.totalorder %s24, 0
    %p198 = por %p196, %p197
    %s200 = sadd.s32 %s199, 1
    %p203 = scmp.eq.s32.totalorder %s18, 7
    %p204 = scmp.ne.s32.totalorder %s199, %s201
    %p205 = scmp.eq.s32.totalorder %s18, 0
    %p206 = por %p204, %p205
    %p207 = scmp.ne.s32.totalorder %s199, %s201
    %p208 = scmp.eq.s32.totalorder %s23, 7
    %p209 = por %p207, %p208
    %p210 = scmp.ne.s32.totalorder %s201, %s202
    %p211 = scmp.eq.s32.totalorder %s23, 0
    %p212 = por %p210, %p211
    %p213 = scmp.ne.s32.totalorder %s201, %s202
    %p214 = scmp.eq.s32.totalorder %s24, 7
    %p215 = por %p213, %p214
    %p217 = scmp.ne.s32.totalorder %s202, %s216
    %p218 = scmp.eq.s32.totalorder %s24, 0
    %p219 = por %p217, %p218
    %s221 = sadd.s32 %s220, 1
    %p224 = scmp.eq.s32.totalorder %s18, 7
    %p225 = scmp.ne.s32.totalorder %s220, %s222
    %p226 = scmp.eq.s32.totalorder %s18, 0
    %p227 = por %p225, %p226
    %p228 = scmp.ne.s32.totalorder %s220, %s222
    %p229 = scmp.eq.s32.totalorder %s23, 7
    %p230 = por %p228, %p229
    %p231 = scmp.ne.s32.totalorder %s222, %s223
    %p232 = scmp.eq.s32.totalorder %s23, 0
    %p233 = por %p231, %p232
    %p234 = scmp.ne.s32.totalorder %s222, %s223
    %p235 = scmp.eq.s32.totalorder %s24, 7
    %p236 = por %p234, %p235
    %p238 = scmp.ne.s32.totalorder %s223, %s237
    %p239 = scmp.eq.s32.totalorder %s24, 0
    %p240 = por %p238, %p239
    %s242 = sadd.s32 %s241, 1
    %p245 = scmp.eq.s32.totalorder %s18, 7
    %p246 = scmp.ne.s32.totalorder %s241, %s243
    %p247 = scmp.eq.s32.totalorder %s18, 0
    %p248 = por %p246, %p247
    %p249 = scmp.ne.s32.totalorder %s241, %s243
    %p250 = scmp.eq.s32.totalorder %s23, 7
    %p251 = por %p249, %p250
    %p252 = scmp.ne.s32.totalorder %s243, %s244
    %p253 = scmp.eq.s32.totalorder %s23, 0
    %p254 = por %p252, %p253
    %p255 = scmp.ne.s32.totalorder %s243, %s244
    %p256 = scmp.eq.s32.totalorder %s24, 7
    %p257 = por %p255, %p256
    %p259 = scmp.ne.s32.totalorder %s244, %s258
    %p260 = scmp.eq.s32.totalorder %s24, 0
    %p261 = por %p259, %p260
    %s263 = sadd.s32 %s262, 1
    %p266 = scmp.eq.s32.totalorder %s18, 7
    %p267 = scmp.ne.s32.totalorder %s262, %s264
    %p268 = scmp.eq.s32.totalorder %s18, 0
    %p269 = por %p267, %p268
    %p270 = scmp.ne.s32.totalorder %s262, %s264
    %p271 = scmp.eq.s32.totalorder %s23, 7
    %p272 = por %p270, %p271
    %p273 = scmp.ne.s32.totalorder %s264, %s265
    %p274 = scmp.eq.s32.totalorder %s23, 0
    %p275 = por %p273, %p274
    %p276 = scmp.ne.s32.totalorder %s264, %s265
    %p277 = scmp.eq.s32.totalorder %s24, 7
    %p278 = por %p276, %p277
    %p280 = scmp.ne.s32.totalorder %s265, %s279
    %p281 = scmp.eq.s32.totalorder %s24, 0
    %p282 = por %p280, %p281
    %s283 = ssub.s32 %s18, %s25
    %p284 = scmp.eq.s32.totalorder %s283, 0
    %s286 = sadd.s32 %s285, 1
    %s287 = scalar_select %p284, %s285, %s286
    %p290 = pneg %p284
    %p291 = scmp.eq.s32.totalorder %s18, 7
    %p292 = por %p290, %p291
    %p293 = scmp.ne.s32.totalorder %s285, %s288
    %p294 = scmp.eq.s32.totalorder %s18, 0
    %p295 = por %p293, %p294
    %p296 = scmp.ne.s32.totalorder %s285, %s288
    %p297 = scmp.eq.s32.totalorder %s23, 7
    %p298 = por %p296, %p297
    %p299 = scmp.ne.s32.totalorder %s288, %s289
    %p300 = scmp.eq.s32.totalorder %s23, 0
    %p301 = por %p299, %p300
    %p302 = scmp.ne.s32.totalorder %s288, %s289
    %p303 = scmp.eq.s32.totalorder %s24, 7
    %p304 = por %p302, %p303
    %p306 = scmp.ne.s32.totalorder %s289, %s305
    %p307 = scmp.eq.s32.totalorder %s24, 0
    %p308 = por %p306, %p307
    %p309 = scmp.le.s32.totalorder 1, %s18
    %p310 = scmp.lt.s32.totalorder %s18, 9
    %p311 = pnand %p309, %p310
    %p312 = pneg %p311
    // Predicated region
    $region9: #{mobilevit_residual_block.9} parent=5 // pred_check
      _
    $region10: #{mobilevit_residual_block.9} parent=5 // pred_check_branch
      %314 = sbr.rel (%p311) target = $region12
    $region11: #{mobilevit_residual_block.9} parent=5 // pred_region
      %s315 = ssub.s32 %s18, 1
      // Predicated region
      $region13: #{mobilevit_residual_block.9} parent=11 // pred_check
        %p316 = pneg %p65
      $region14: #{mobilevit_residual_block.9} parent=11 // pred_check_branch
        %318 = sbr.rel (%p316) target = $region16
      $region15: #{mobilevit_residual_block.9} parent=11 // pred_region
        _
      $region16: #{mobilevit_residual_block.9} parent=11 // pred_fallthru
        _
      // Predicated region
      $region17: #{mobilevit_residual_block.9} parent=11 // pred_check
        %p319 = pneg %p86
      $region18: #{mobilevit_residual_block.9} parent=11 // pred_check_branch
        %321 = sbr.rel (%p319) target = $region20
      $region19: #{mobilevit_residual_block.9} parent=11 // pred_region
        _
      $region20: #{mobilevit_residual_block.9} parent=11 // pred_fallthru
        _
      // Predicated region
      $region21: #{mobilevit_residual_block.9} parent=11 // pred_check
        %p322 = pneg %p107
      $region22: #{mobilevit_residual_block.9} parent=11 // pred_check_branch
        %324 = sbr.rel (%p322) target = $region24
      $region23: #{mobilevit_residual_block.9} parent=11 // pred_region
        _
      $region24: #{mobilevit_residual_block.9} parent=11 // pred_fallthru
        _
      // Predicated region
      $region25: #{mobilevit_residual_block.9} parent=11 // pred_check
        %p325 = pneg %p128
      $region26: #{mobilevit_residual_block.9} parent=11 // pred_check_branch
        %327 = sbr.rel (%p325) target = $region28
      $region27: #{mobilevit_residual_block.9} parent=11 // pred_region
        _
      $region28: #{mobilevit_residual_block.9} parent=11 // pred_fallthru
        _
      // Predicated region
      $region29: #{mobilevit_residual_block.9} parent=11 // pred_check
        %p328 = pneg %p149
      $region30: #{mobilevit_residual_block.9} parent=11 // pred_check_branch
        %330 = sbr.rel (%p328) target = $region32
      $region31: #{mobilevit_residual_block.9} parent=11 // pred_region
        _
      $region32: #{mobilevit_residual_block.9} parent=11 // pred_fallthru
        _
      // Predicated region
      $region33: #{mobilevit_residual_block.9} parent=11 // pred_check
        %p331 = pneg %p170
      $region34: #{mobilevit_residual_block.9} parent=11 // pred_check_branch
        %333 = sbr.rel (%p331) target = $region36
      $region35: #{mobilevit_residual_block.9} parent=11 // pred_region
        _
      $region36: #{mobilevit_residual_block.9} parent=11 // pred_fallthru
        _
      // Predicated region
      $region37: #{mobilevit_residual_block.9} parent=11 // pred_check
        %p334 = pneg %p191
      $region38: #{mobilevit_residual_block.9} parent=11 // pred_check_branch
        %336 = sbr.rel (%p334) target = $region40
      $region39: #{mobilevit_residual_block.9} parent=11 // pred_region
        _
      $region40: #{mobilevit_residual_block.9} parent=11 // pred_fallthru
        _
      // Predicated region
      $region41: #{mobilevit_residual_block.9} parent=11 // pred_check
        %p337 = pneg %p212
      $region42: #{mobilevit_residual_block.9} parent=11 // pred_check_branch
        %339 = sbr.rel (%p337) target = $region44
      $region43: #{mobilevit_residual_block.9} parent=11 // pred_region
        _
      $region44: #{mobilevit_residual_block.9} parent=11 // pred_fallthru
        _
      // Predicated region
      $region45: #{mobilevit_residual_block.9} parent=11 // pred_check
        %p340 = pneg %p233
      $region46: #{mobilevit_residual_block.9} parent=11 // pred_check_branch
        %342 = sbr.rel (%p340) target = $region48
      $region47: #{mobilevit_residual_block.9} parent=11 // pred_region
        _
      $region48: #{mobilevit_residual_block.9} parent=11 // pred_fallthru
        _
      // Predicated region
      $region49: #{mobilevit_residual_block.9} parent=11 // pred_check
        %p343 = pneg %p254
      $region50: #{mobilevit_residual_block.9} parent=11 // pred_check_branch
        %345 = sbr.rel (%p343) target = $region52
      $region51: #{mobilevit_residual_block.9} parent=11 // pred_region
        _
      $region52: #{mobilevit_residual_block.9} parent=11 // pred_fallthru
        _
      // Predicated region
      $region53: #{mobilevit_residual_block.9} parent=11 // pred_check
        %p346 = pneg %p275
      $region54: #{mobilevit_residual_block.9} parent=11 // pred_check_branch
        %348 = sbr.rel (%p346) target = $region56
      $region55: #{mobilevit_residual_block.9} parent=11 // pred_region
        _
      $region56: #{mobilevit_residual_block.9} parent=11 // pred_fallthru
        _
    $region12: #{mobilevit_residual_block.9} parent=5 // pred_fallthru
      _
    %p349 = scmp.lt.s32.totalorder %s18, 8
    // Predicated region
    $region57: #{mobilevit_residual_block.9} parent=5 // pred_check
      %p350 = pneg %p349
    $region58: #{mobilevit_residual_block.9} parent=5 // pred_check_branch
      %352 = sbr.rel (%p350) target = $region60
    $region59: #{mobilevit_residual_block.9} parent=5 // pred_region
      // Predicated region
      $region61: #{mobilevit_residual_block.9} parent=59 // pred_check
        %p353 = pneg %p38
      $region62: #{mobilevit_residual_block.9} parent=59 // pred_check_branch
        %355 = sbr.rel (%p353) target = $region64
      $region63: #{mobilevit_residual_block.9} parent=59 // pred_region
        %p356 = scmp.lt.s32.totalorder %s18, 7
        %s357 = scalar_select %p356, %s18, 7
        %s358 = smul.addr %s357, 8
        %s359 = smul.addr %s358, 8
        %s360 = scalar_lea.vmem %s0, %s359
      $region64: #{mobilevit_residual_block.9} parent=59 // pred_fallthru
        _
    $region60: #{mobilevit_residual_block.9} parent=5 // pred_fallthru
      _
    %p361 = scmp.le.s32.totalorder 1, %s18
    %p362 = scmp.lt.s32.totalorder %s18, 9
    %p363 = pnand %p361, %p362
    %p364 = pneg %p363
    // Predicated region
    $region65: #{mobilevit_residual_block.9} parent=5 // pred_check
      _
    $region66: #{mobilevit_residual_block.9} parent=5 // pred_check_branch
      %366 = sbr.rel (%p363) target = $region68
    $region67: #{mobilevit_residual_block.9} parent=5 // pred_region
      %s367 = ssub.s32 %s18, 1
      %p368 = scmp.lt.s32.totalorder %s23, 7
      %s369 = scalar_select %p368, %s23, 7
      %s370 = smul.addr %s369, 8
      %s371 = smul.addr %s370, 8
      %s372 = scalar_lea.vmem %s0, %s371
      %p373 = pneg %p44
      %p374 = pneg %p41
      %p375 = pneg %p65
      %p376 = pneg %p62
      %p377 = pneg %p86
      %p378 = pneg %p83
      %p379 = pneg %p107
      %p380 = pneg %p104
      %p381 = pneg %p128
      %p382 = pneg %p125
      %p383 = pneg %p149
      %p384 = pneg %p146
      %p385 = pneg %p170
      %p386 = pneg %p167
      %p387 = pneg %p191
      %p388 = pneg %p188
      %p389 = pneg %p212
      %p390 = pneg %p209
      %p391 = pneg %p233
      %p392 = pneg %p230
      %p393 = pneg %p254
      %p394 = pneg %p251
      %p395 = pneg %p275
      %p396 = pneg %p272
      %p397 = pneg %p301
      %p398 = pneg %p298
      %p399 = scmp.lt.s32.totalorder %s23, 7
      %s400 = scalar_select %p399, %s23, 7
      %s401 = smul.addr %s400, 8
      %s402 = smul.addr %s401, 8
      %s403 = scalar_lea.vmem %s12, %s402
      %p404 = scmp.lt.s32.totalorder %s23, 7
      %s405 = scalar_select %p404, %s23, 7
      %s406 = smul.addr %s405, 8
      %s407 = smul.addr %s406, 8
      %s408 = scalar_lea.vmem %s0, %s407
      %p409 = scmp.lt.s32.totalorder %s23, 7
      %s410 = scalar_select %p409, %s23, 7
      %s411 = smul.addr %s410, 8
      %s412 = smul.addr %s411, 8
      %s413 = scalar_lea.vmem %s12, %s412
      %v414 = vld [vmem:[%s408] sm:$0xff]
      %v415 = vld [vmem:[%s408 + $0x8] sm:$0xff]
      %v416 = vld [vmem:[%s408 + $0x10] sm:$0xff]
      %v417 = vld [vmem:[%s408 + $0x18] sm:$0xff]
      %v418 = vld [vmem:[%s408 + $0x20] sm:$0xff]
      %v419 = vld [vmem:[%s408 + $0x28] sm:$0xff]
      %v420 = vld [vmem:[%s408 + $0x30] sm:$0xff]
      %v421 = vld [vmem:[%s408 + $0x38] sm:$0xff]
      %v422 = vld [vmem:[%s1] sm:$0x1]
      %v423 = vld [vmem:[%s2] sm:$0x1]
      %vm424 = vcmask 130048
      %v425 = vsel %vm424, %v414, 0.0
      %426 = vadd.xlane.f32.xlu0 %v425
      %v427 = vpop.xlane.xlu0 %426
      %v428 = vsel %vm424, %v415, 0.0
      %429 = vadd.xlane.f32.xlu0 %v428
      %v430 = vpop.xlane.xlu0 %429
      %v431 = vsel %vm424, %v416, 0.0
      %432 = vadd.xlane.f32.xlu0 %v431
      %v433 = vpop.xlane.xlu0 %432
      %v434 = vsel %vm424, %v417, 0.0
      %435 = vadd.xlane.f32.xlu0 %v434
      %v436 = vpop.xlane.xlu0 %435
      %v437 = vsel %vm424, %v418, 0.0
      %438 = vadd.xlane.f32.xlu0 %v437
      %v439 = vpop.xlane.xlu0 %438
      %v440 = vsel %vm424, %v419, 0.0
      %441 = vadd.xlane.f32.xlu0 %v440
      %v442 = vpop.xlane.xlu0 %441
      %v443 = vsel %vm424, %v420, 0.0
      %444 = vadd.xlane.f32.xlu0 %v443
      %v445 = vpop.xlane.xlu0 %444
      %v446 = vsel %vm424, %v421, 0.0
      %447 = vadd.xlane.f32.xlu0 %v446
      %v448 = vpop.xlane.xlu0 %447
      %v449 = vrcp.pop 16.0
      %v450 = vmul.f32 16.0, %v449
      %v451 = vsub.f32 1.0, %v450
      %v452 = vmul.f32 %v449, %v451
      %v453 = vadd.f32 %v449, %v452
      %vm454 = vweird.f32 %v449
      %v455 = vsel %vm454, %v449, %v453
      %v456 = vmul.f32 %v427, %v455
      %v457 = vmul.f32 %v430, %v455
      %v458 = vmul.f32 %v433, %v455
      %v459 = vmul.f32 %v436, %v455
      %v460 = vmul.f32 %v439, %v455
      %v461 = vmul.f32 %v442, %v455
      %v462 = vmul.f32 %v445, %v455
      %v463 = vmul.f32 %v448, %v455
      %v464 = vsub.f32 %v414, %v456
      %v465 = vsub.f32 %v415, %v457
      %v466 = vsub.f32 %v416, %v458
      %v467 = vsub.f32 %v417, %v459
      %v468 = vsub.f32 %v418, %v460
      %v469 = vsub.f32 %v419, %v461
      %v470 = vsub.f32 %v420, %v462
      %v471 = vsub.f32 %v421, %v463
      %v472 = vmul.f32 %v464, %v464
      %v473 = vmul.f32 %v465, %v465
      %v474 = vmul.f32 %v466, %v466
      %v475 = vmul.f32 %v467, %v467
      %v476 = vmul.f32 %v468, %v468
      %v477 = vmul.f32 %v469, %v469
      %v478 = vmul.f32 %v470, %v470
      %v479 = vmul.f32 %v471, %v471
      %v480 = vsel %vm424, %v472, 0.0
      %481 = vadd.xlane.f32.xlu0 %v480
      %v482 = vpop.xlane.xlu0 %481
      %v483 = vsel %vm424, %v473, 0.0
      %484 = vadd.xlane.f32.xlu0 %v483
      %v485 = vpop.xlane.xlu0 %484
      %v486 = vsel %vm424, %v474, 0.0
      %487 = vadd.xlane.f32.xlu0 %v486
      %v488 = vpop.xlane.xlu0 %487
      %v489 = vsel %vm424, %v475, 0.0
      %490 = vadd.xlane.f32.xlu0 %v489
      %v491 = vpop.xlane.xlu0 %490
      %v492 = vsel %vm424, %v476, 0.0
      %493 = vadd.xlane.f32.xlu0 %v492
      %v494 = vpop.xlane.xlu0 %493
      %v495 = vsel %vm424, %v477, 0.0
      %496 = vadd.xlane.f32.xlu0 %v495
      %v497 = vpop.xlane.xlu0 %496
      %v498 = vsel %vm424, %v478, 0.0
      %499 = vadd.xlane.f32.xlu0 %v498
      %v500 = vpop.xlane.xlu0 %499
      %v501 = vsel %vm424, %v479, 0.0
      %502 = vadd.xlane.f32.xlu0 %v501
      %v503 = vpop.xlane.xlu0 %502
      %v504 = vmul.f32 %v482, %v455
      %v505 = vmul.f32 %v485, %v455
      %v506 = vmul.f32 %v488, %v455
      %v507 = vmul.f32 %v491, %v455
      %v508 = vmul.f32 %v494, %v455
      %v509 = vmul.f32 %v497, %v455
      %v510 = vmul.f32 %v500, %v455
      %v511 = vmul.f32 %v503, %v455
      %v512 = vadd.f32 %v504, 1e-05
      %v513 = vadd.f32 %v505, 1e-05
      %v514 = vadd.f32 %v506, 1e-05
      %v515 = vadd.f32 %v507, 1e-05
      %v516 = vadd.f32 %v508, 1e-05
      %v517 = vadd.f32 %v509, 1e-05
      %v518 = vadd.f32 %v510, 1e-05
      %v519 = vadd.f32 %v511, 1e-05
      %v520 = vrsqrt.pop %v512
      %v521 = vmul.f32 %v520, %v512
      %v522 = vmul.f32 %v521, %v520
      %v523 = vmul.f32 0.5, %v522
      %v524 = vsub.f32 1.5, %v523
      %v525 = vmul.f32 %v520, %v524
      %vm526 = vweird.f32 %v512
      %vm527 = vweird.f32 %v520
      %vm528 = vmor %vm526, %vm527
      %v529 = vsel %vm528, %v520, %v525
      %v530 = vrsqrt.pop %v513
      %v531 = vmul.f32 %v530, %v513
      %v532 = vmul.f32 %v531, %v530
      %v533 = vmul.f32 0.5, %v532
      %v534 = vsub.f32 1.5, %v533
      %v535 = vmul.f32 %v530, %v534
      %vm536 = vweird.f32 %v513
      %vm537 = vweird.f32 %v530
      %vm538 = vmor %vm536, %vm537
      %v539 = vsel %vm538, %v530, %v535
      %v540 = vrsqrt.pop %v514
      %v541 = vmul.f32 %v540, %v514
      %v542 = vmul.f32 %v541, %v540
      %v543 = vmul.f32 0.5, %v542
      %v544 = vsub.f32 1.5, %v543
      %v545 = vmul.f32 %v540, %v544
      %vm546 = vweird.f32 %v514
      %vm547 = vweird.f32 %v540
      %vm548 = vmor %vm546, %vm547
      %v549 = vsel %vm548, %v540, %v545
      %v550 = vrsqrt.pop %v515
      %v551 = vmul.f32 %v550, %v515
      %v552 = vmul.f32 %v551, %v550
      %v553 = vmul.f32 0.5, %v552
      %v554 = vsub.f32 1.5, %v553
      %v555 = vmul.f32 %v550, %v554
      %vm556 = vweird.f32 %v515
      %vm557 = vweird.f32 %v550
      %vm558 = vmor %vm556, %vm557
      %v559 = vsel %vm558, %v550, %v555
      %v560 = vrsqrt.pop %v516
      %v561 = vmul.f32 %v560, %v516
      %v562 = vmul.f32 %v561, %v560
      %v563 = vmul.f32 0.5, %v562
      %v564 = vsub.f32 1.5, %v563
      %v565 = vmul.f32 %v560, %v564
      %vm566 = vweird.f32 %v516
      %vm567 = vweird.f32 %v560
      %vm568 = vmor %vm566, %vm567
      %v569 = vsel %vm568, %v560, %v565
      %v570 = vrsqrt.pop %v517
      %v571 = vmul.f32 %v570, %v517
      %v572 = vmul.f32 %v571, %v570
      %v573 = vmul.f32 0.5, %v572
      %v574 = vsub.f32 1.5, %v573
      %v575 = vmul.f32 %v570, %v574
      %vm576 = vweird.f32 %v517
      %vm577 = vweird.f32 %v570
      %vm578 = vmor %vm576, %vm577
      %v579 = vsel %vm578, %v570, %v575
      %v580 = vrsqrt.pop %v518
      %v581 = vmul.f32 %v580, %v518
      %v582 = vmul.f32 %v581, %v580
      %v583 = vmul.f32 0.5, %v582
      %v584 = vsub.f32 1.5, %v583
      %v585 = vmul.f32 %v580, %v584
      %vm586 = vweird.f32 %v518
      %vm587 = vweird.f32 %v580
      %vm588 = vmor %vm586, %vm587
      %v589 = vsel %vm588, %v580, %v585
      %v590 = vrsqrt.pop %v519
      %v591 = vmul.f32 %v590, %v519
      %v592 = vmul.f32 %v591, %v590
      %v593 = vmul.f32 0.5, %v592
      %v594 = vsub.f32 1.5, %v593
      %v595 = vmul.f32 %v590, %v594
      %vm596 = vweird.f32 %v519
      %vm597 = vweird.f32 %v590
      %vm598 = vmor %vm596, %vm597
      %v599 = vsel %vm598, %v590, %v595
      %v600 = vmul.f32 %v464, %v529
      %v601 = vmul.f32 %v465, %v539
      %v602 = vmul.f32 %v466, %v549
      %v603 = vmul.f32 %v467, %v559
      %v604 = vmul.f32 %v468, %v569
      %v605 = vmul.f32 %v469, %v579
      %v606 = vmul.f32 %v470, %v589
      %v607 = vmul.f32 %v471, %v599
      %v609 = vperm.slane %v422, 0
      %v611 = vmul.f32 %v600, %v609
      %v612 = vmul.f32 %v601, %v609
      %v613 = vmul.f32 %v602, %v609
      %v614 = vmul.f32 %v603, %v609
      %v615 = vmul.f32 %v604, %v609
      %v616 = vmul.f32 %v605, %v609
      %v617 = vmul.f32 %v606, %v609
      %v618 = vmul.f32 %v607, %v609
      %v620 = vperm.slane %v423, 0
      %v622 = vadd.f32 %v611, %v620
      %v623 = vadd.f32 %v612, %v620
      %v624 = vadd.f32 %v613, %v620
      %v625 = vadd.f32 %v614, %v620
      %v626 = vadd.f32 %v615, %v620
      %v627 = vadd.f32 %v616, %v620
      %v628 = vadd.f32 %v617, %v620
      %v629 = vadd.f32 %v618, %v620
      %v630 = vld [vmem:[%s3] sm:$0xff]
      %v631 = vld [vmem:[%s3 + $0x8] sm:$0xff]
      %v633 = vsel %vm424, %v622, 0
      %v636 = vsel %vm424, %v623, 0
      %v639 = vsel %vm424, %v624, 0
      %v642 = vsel %vm424, %v625, 0
      %v645 = vsel %vm424, %v626, 0
      %v648 = vsel %vm424, %v627, 0
      %v651 = vsel %vm424, %v628, 0
      %v654 = vsel %vm424, %v629, 0
      %656 = vmatpush.msra.mxu0 0.0
      %657 = vmatpush.msra.mxu0 0.0
      %658 = vmatpush.msra.mxu0 0.0
      %659 = vmatpush.msra.mxu0 0.0
      %660 = vmatpush.msra.mxu0 0.0
      %661 = vmatpush.msra.mxu0 0.0
      %662 = vmatpush.msra.mxu0 0.0
      %663 = vmatpush.msra.mxu0 0.0
      %664 = vmatpush.msra.mxu0 0.0
      %665 = vmatpush.msra.mxu0 0.0
      %666 = vmatpush.msra.mxu0 0.0
      %667 = vmatpush.msra.mxu0 0.0
      %668 = vmatpush.msra.mxu0 0.0
      %669 = vmatpush.msra.mxu0 0.0
      %670 = vmatpush.msra.mxu0 %v631
      %671 = vmatpush.msra.mxu0 %v630
      %672 = vmatmul.f32.gmra.mxu0 %v633
      %v673 = vpop.f32.mrf.mxu0
      %v674 = vadd.f32 0.0, %v673
      %675 = vmatmul.f32.gmra.mxu0 %v636
      %v676 = vpop.f32.mrf.mxu0
      %v677 = vadd.f32 0.0, %v676
      %678 = vmatmul.f32.gmra.mxu0 %v639
      %v679 = vpop.f32.mrf.mxu0
      %v680 = vadd.f32 0.0, %v679
      %681 = vmatmul.f32.gmra.mxu0 %v642
      %v682 = vpop.f32.mrf.mxu0
      %v683 = vadd.f32 0.0, %v682
      %684 = vmatmul.f32.gmra.mxu0 %v645
      %v685 = vpop.f32.mrf.mxu0
      %v686 = vadd.f32 0.0, %v685
      %687 = vmatmul.f32.gmra.mxu0 %v648
      %v688 = vpop.f32.mrf.mxu0
      %v689 = vadd.f32 0.0, %v688
      %690 = vmatmul.f32.gmra.mxu0 %v651
      %v691 = vpop.f32.mrf.mxu0
      %v692 = vadd.f32 0.0, %v691
      %693 = vmatmul.f32.gmra.mxu0 %v654
      %v694 = vpop.f32.mrf.mxu0
      %v695 = vadd.f32 0.0, %v694
      %696 = vdwg.mxu0
      %705 = vrot.lane.b32.xlu0 %v674, 96
      %v706 = vpop.permute.xlu0 %705
      %707 = vrot.lane.b32.xlu0 %v677, 96
      %v708 = vpop.permute.xlu0 %707
      %709 = vrot.lane.b32.xlu0 %v680, 96
      %v710 = vpop.permute.xlu0 %709
      %711 = vrot.lane.b32.xlu0 %v683, 96
      %v712 = vpop.permute.xlu0 %711
      %713 = vrot.lane.b32.xlu0 %v686, 96
      %v714 = vpop.permute.xlu0 %713
      %715 = vrot.lane.b32.xlu0 %v689, 96
      %v716 = vpop.permute.xlu0 %715
      %717 = vrot.lane.b32.xlu0 %v692, 96
      %v718 = vpop.permute.xlu0 %717
      %719 = vrot.lane.b32.xlu0 %v695, 96
      %v720 = vpop.permute.xlu0 %719
      %vm721 = vcmask 64512
      %v722 = vsel %vm721, %v674, 0
      %v724 = vsel %vm721, %v677, 0
      %v726 = vsel %vm721, %v680, 0
      %v728 = vsel %vm721, %v683, 0
      %v730 = vsel %vm721, %v686, 0
      %v732 = vsel %vm721, %v689, 0
      %v734 = vsel %vm721, %v692, 0
      %v736 = vsel %vm721, %v695, 0
      %v738 = vsel %vm721, %v706, 0
      %v740 = vsel %vm721, %v708, 0
      %v742 = vsel %vm721, %v710, 0
      %v744 = vsel %vm721, %v712, 0
      %v746 = vsel %vm721, %v714, 0
      %v748 = vsel %vm721, %v716, 0
      %v750 = vsel %vm721, %v718, 0
      %v752 = vsel %vm721, %v720, 0
      %754 = vmatpush.xpose.msra.mxu0 0.0
      %755 = vmatpush.xpose.msra.mxu0 0.0
      %756 = vmatpush.xpose.msra.mxu0 0.0
      %757 = vmatpush.xpose.msra.mxu0 0.0
      %758 = vmatpush.xpose.msra.mxu0 0.0
      %759 = vmatpush.xpose.msra.mxu0 0.0
      %760 = vmatpush.xpose.msra.mxu0 0.0
      %761 = vmatpush.xpose.msra.mxu0 0.0
      %762 = vmatpush.xpose.msra.mxu0 %v752
      %763 = vmatpush.xpose.msra.mxu0 %v750
      %764 = vmatpush.xpose.msra.mxu0 %v748
      %765 = vmatpush.xpose.msra.mxu0 %v746
      %766 = vmatpush.xpose.msra.mxu0 %v744
      %767 = vmatpush.xpose.msra.mxu0 %v742
      %768 = vmatpush.xpose.msra.mxu0 %v740
      %769 = vmatpush.xpose.msra.mxu0 %v738
      %770 = vmatmul.f32.gmra.mxu0 %v722
      %v771 = vpop.f32.mrf.mxu0
      %v772 = vadd.f32 0.0, %v771
      %773 = vmatmul.f32.gmra.mxu0 %v724
      %v774 = vpop.f32.mrf.mxu0
      %v775 = vadd.f32 0.0, %v774
      %776 = vmatmul.f32.gmra.mxu0 %v726
      %v777 = vpop.f32.mrf.mxu0
      %v778 = vadd.f32 0.0, %v777
      %779 = vmatmul.f32.gmra.mxu0 %v728
      %v780 = vpop.f32.mrf.mxu0
      %v781 = vadd.f32 0.0, %v780
      %782 = vmatmul.f32.gmra.mxu0 %v730
      %v783 = vpop.f32.mrf.mxu0
      %v784 = vadd.f32 0.0, %v783
      %785 = vmatmul.f32.gmra.mxu0 %v732
      %v786 = vpop.f32.mrf.mxu0
      %v787 = vadd.f32 0.0, %v786
      %788 = vmatmul.f32.gmra.mxu0 %v734
      %v789 = vpop.f32.mrf.mxu0
      %v790 = vadd.f32 0.0, %v789
      %791 = vmatmul.f32.gmra.mxu0 %v736
      %v792 = vpop.f32.mrf.mxu0
      %v793 = vadd.f32 0.0, %v792
      %794 = vdwg.mxu0
      %v795 = vmul.f32 %v772, 0.35355338
      %v796 = vmul.f32 %v775, 0.35355338
      %v797 = vmul.f32 %v778, 0.35355338
      %v798 = vmul.f32 %v781, 0.35355338
      %v799 = vmul.f32 %v784, 0.35355338
      %v800 = vmul.f32 %v787, 0.35355338
      %v801 = vmul.f32 %v790, 0.35355338
      %v802 = vmul.f32 %v793, 0.35355338
      %vm803 = vcmask 523264
      %v804 = vsel %vm803, %v795, -inf
      %805 = vmax.xlane.f32.xlu0 %v804
      %v806 = vpop.xlane.xlu0 %805
      %v807 = vsel %vm803, %v796, -inf
      %808 = vmax.xlane.f32.xlu0 %v807
      %v809 = vpop.xlane.xlu0 %808
      %v810 = vsel %vm803, %v797, -inf
      %811 = vmax.xlane.f32.xlu0 %v810
      %v812 = vpop.xlane.xlu0 %811
      %v813 = vsel %vm803, %v798, -inf
      %814 = vmax.xlane.f32.xlu0 %v813
      %v815 = vpop.xlane.xlu0 %814
      %v816 = vsel %vm803, %v799, -inf
      %817 = vmax.xlane.f32.xlu0 %v816
      %v818 = vpop.xlane.xlu0 %817
      %v819 = vsel %vm803, %v800, -inf
      %820 = vmax.xlane.f32.xlu0 %v819
      %v821 = vpop.xlane.xlu0 %820
      %v822 = vsel %vm803, %v801, -inf
      %823 = vmax.xlane.f32.xlu0 %v822
      %v824 = vpop.xlane.xlu0 %823
      %v825 = vsel %vm803, %v802, -inf
      %826 = vmax.xlane.f32.xlu0 %v825
      %v827 = vpop.xlane.xlu0 %826
      %v828 = vsub.f32 %v795, %v806
      %v829 = vsub.f32 %v796, %v809
      %v830 = vsub.f32 %v797, %v812
      %v831 = vsub.f32 %v798, %v815
      %v832 = vsub.f32 %v799, %v818
      %v833 = vsub.f32 %v800, %v821
      %v834 = vsub.f32 %v801, %v824
      %v835 = vsub.f32 %v802, %v827
      %v836 = vmul.f32 %v828, 1.442695
      %v837 = vpow.pop %v836
      %v838 = vmul.f32 %v829, 1.442695
      %v839 = vpow.pop %v838
      %v840 = vmul.f32 %v830, 1.442695
      %v841 = vpow.pop %v840
      %v842 = vmul.f32 %v831, 1.442695
      %v843 = vpow.pop %v842
      %v844 = vmul.f32 %v832, 1.442695
      %v845 = vpow.pop %v844
      %v846 = vmul.f32 %v833, 1.442695
      %v847 = vpow.pop %v846
      %v848 = vmul.f32 %v834, 1.442695
      %v849 = vpow.pop %v848
      %v850 = vmul.f32 %v835, 1.442695
      %v851 = vpow.pop %v850
      %v852 = vsel %vm803, %v837, 0.0
      %853 = vadd.xlane.f32.xlu0 %v852
      %v854 = vpop.xlane.xlu0 %853
      %v855 = vsel %vm803, %v839, 0.0
      %856 = vadd.xlane.f32.xlu0 %v855
      %v857 = vpop.xlane.xlu0 %856
      %v858 = vsel %vm803, %v841, 0.0
      %859 = vadd.xlane.f32.xlu0 %v858
      %v860 = vpop.xlane.xlu0 %859
      %v861 = vsel %vm803, %v843, 0.0
      %862 = vadd.xlane.f32.xlu0 %v861
      %v863 = vpop.xlane.xlu0 %862
      %v864 = vsel %vm803, %v845, 0.0
      %865 = vadd.xlane.f32.xlu0 %v864
      %v866 = vpop.xlane.xlu0 %865
      %v867 = vsel %vm803, %v847, 0.0
      %868 = vadd.xlane.f32.xlu0 %v867
      %v869 = vpop.xlane.xlu0 %868
      %v870 = vsel %vm803, %v849, 0.0
      %871 = vadd.xlane.f32.xlu0 %v870
      %v872 = vpop.xlane.xlu0 %871
      %v873 = vsel %vm803, %v851, 0.0
      %874 = vadd.xlane.f32.xlu0 %v873
      %v875 = vpop.xlane.xlu0 %874
      %v876 = vrcp.pop %v854
      %v877 = vrcp.pop %v857
      %v878 = vrcp.pop %v860
      %v879 = vrcp.pop %v863
      %v880 = vrcp.pop %v866
      %v881 = vrcp.pop %v869
      %v882 = vrcp.pop %v872
      %v883 = vrcp.pop %v875
      %v884 = vmul.f32 %v837, %v876
      %v885 = vmul.f32 %v839, %v877
      %v886 = vmul.f32 %v841, %v878
      %v887 = vmul.f32 %v843, %v879
      %v888 = vmul.f32 %v845, %v880
      %v889 = vmul.f32 %v847, %v881
      %v890 = vmul.f32 %v849, %v882
      %v891 = vmul.f32 %v851, %v883
      %892 = vrot.lane.b32.xlu0 %v674, 64
      %v893 = vpop.permute.xlu0 %892
      %894 = vrot.lane.b32.xlu0 %v677, 64
      %v895 = vpop.permute.xlu0 %894
      %896 = vrot.lane.b32.xlu0 %v680, 64
      %v897 = vpop.permute.xlu0 %896
      %898 = vrot.lane.b32.xlu0 %v683, 64
      %v899 = vpop.permute.xlu0 %898
      %900 = vrot.lane.b32.xlu0 %v686, 64
      %v901 = vpop.permute.xlu0 %900
      %902 = vrot.lane.b32.xlu0 %v689, 64
      %v903 = vpop.permute.xlu0 %902
      %904 = vrot.lane.b32.xlu0 %v692, 64
      %v905 = vpop.permute.xlu0 %904
      %906 = vrot.lane.b32.xlu0 %v695, 64
      %v907 = vpop.permute.xlu0 %906
      %v917 = vsel %vm803, %v884, 0
      %v920 = vsel %vm803, %v885, 0
      %v923 = vsel %vm803, %v886, 0
      %v926 = vsel %vm803, %v887, 0
      %v929 = vsel %vm803, %v888, 0
      %v932 = vsel %vm803, %v889, 0
      %v935 = vsel %vm803, %v890, 0
      %v938 = vsel %vm803, %v891, 0
      %940 = vmatpush.msra.mxu0 0.0
      %941 = vmatpush.msra.mxu0 0.0
      %942 = vmatpush.msra.mxu0 0.0
      %943 = vmatpush.msra.mxu0 0.0
      %944 = vmatpush.msra.mxu0 0.0
      %945 = vmatpush.msra.mxu0 0.0
      %946 = vmatpush.msra.mxu0 0.0
      %947 = vmatpush.msra.mxu0 0.0
      %948 = vmatpush.msra.mxu0 %v907
      %949 = vmatpush.msra.mxu0 %v905
      %950 = vmatpush.msra.mxu0 %v903
      %951 = vmatpush.msra.mxu0 %v901
      %952 = vmatpush.msra.mxu0 %v899
      %953 = vmatpush.msra.mxu0 %v897
      %954 = vmatpush.msra.mxu0 %v895
      %955 = vmatpush.msra.mxu0 %v893
      %956 = vmatmul.f32.gmra.mxu0 %v917
      %v957 = vpop.f32.mrf.mxu0
      %v958 = vadd.f32 0.0, %v957
      %959 = vmatmul.f32.gmra.mxu0 %v920
      %v960 = vpop.f32.mrf.mxu0
      %v961 = vadd.f32 0.0, %v960
      %962 = vmatmul.f32.gmra.mxu0 %v923
      %v963 = vpop.f32.mrf.mxu0
      %v964 = vadd.f32 0.0, %v963
      %965 = vmatmul.f32.gmra.mxu0 %v926
      %v966 = vpop.f32.mrf.mxu0
      %v967 = vadd.f32 0.0, %v966
      %968 = vmatmul.f32.gmra.mxu0 %v929
      %v969 = vpop.f32.mrf.mxu0
      %v970 = vadd.f32 0.0, %v969
      %971 = vmatmul.f32.gmra.mxu0 %v932
      %v972 = vpop.f32.mrf.mxu0
      %v973 = vadd.f32 0.0, %v972
      %974 = vmatmul.f32.gmra.mxu0 %v935
      %v975 = vpop.f32.mrf.mxu0
      %v976 = vadd.f32 0.0, %v975
      %977 = vmatmul.f32.gmra.mxu0 %v938
      %v978 = vpop.f32.mrf.mxu0
      %v979 = vadd.f32 0.0, %v978
      %980 = vdwg.mxu0
      %981 = vrot.lane.b32.xlu0 %v674, 120
      %v982 = vpop.permute.xlu0 %981
      %983 = vrot.lane.b32.xlu0 %v677, 120
      %v984 = vpop.permute.xlu0 %983
      %985 = vrot.lane.b32.xlu0 %v680, 120
      %v986 = vpop.permute.xlu0 %985
      %987 = vrot.lane.b32.xlu0 %v683, 120
      %v988 = vpop.permute.xlu0 %987
      %989 = vrot.lane.b32.xlu0 %v686, 120
      %v990 = vpop.permute.xlu0 %989
      %991 = vrot.lane.b32.xlu0 %v689, 120
      %v992 = vpop.permute.xlu0 %991
      %993 = vrot.lane.b32.xlu0 %v692, 120
      %v994 = vpop.permute.xlu0 %993
      %995 = vrot.lane.b32.xlu0 %v695, 120
      %v996 = vpop.permute.xlu0 %995
      %997 = vrot.lane.b32.xlu0 %v674, 88
      %v998 = vpop.permute.xlu0 %997
      %999 = vrot.lane.b32.xlu0 %v677, 88
      %v1000 = vpop.permute.xlu0 %999
      %1001 = vrot.lane.b32.xlu0 %v680, 88
      %v1002 = vpop.permute.xlu0 %1001
      %1003 = vrot.lane.b32.xlu0 %v683, 88
      %v1004 = vpop.permute.xlu0 %1003
      %1005 = vrot.lane.b32.xlu0 %v686, 88
      %v1006 = vpop.permute.xlu0 %1005
      %1007 = vrot.lane.b32.xlu0 %v689, 88
      %v1008 = vpop.permute.xlu0 %1007
      %1009 = vrot.lane.b32.xlu0 %v692, 88
      %v1010 = vpop.permute.xlu0 %1009
      %1011 = vrot.lane.b32.xlu0 %v695, 88
      %v1012 = vpop.permute.xlu0 %1011
      %v1013 = vsel %vm721, %v982, 0
      %v1015 = vsel %vm721, %v984, 0
      %v1017 = vsel %vm721, %v986, 0
      %v1019 = vsel %vm721, %v988, 0
      %v1021 = vsel %vm721, %v990, 0
      %v1023 = vsel %vm721, %v992, 0
      %v1025 = vsel %vm721, %v994, 0
      %v1027 = vsel %vm721, %v996, 0
      %v1029 = vsel %vm721, %v998, 0
      %v1031 = vsel %vm721, %v1000, 0
      %v1033 = vsel %vm721, %v1002, 0
      %v1035 = vsel %vm721, %v1004, 0
      %v1037 = vsel %vm721, %v1006, 0
      %v1039 = vsel %vm721, %v1008, 0
      %v1041 = vsel %vm721, %v1010, 0
      %v1043 = vsel %vm721, %v1012, 0
      %1045 = vmatpush.xpose.msra.mxu0 0.0
      %1046 = vmatpush.xpose.msra.mxu0 0.0
      %1047 = vmatpush.xpose.msra.mxu0 0.0
      %1048 = vmatpush.xpose.msra.mxu0 0.0
      %1049 = vmatpush.xpose.msra.mxu0 0.0
      %1050 = vmatpush.xpose.msra.mxu0 0.0
      %1051 = vmatpush.xpose.msra.mxu0 0.0
      %1052 = vmatpush.xpose.msra.mxu0 0.0
      %1053 = vmatpush.xpose.msra.mxu0 %v1043
      %1054 = vmatpush.xpose.msra.mxu0 %v1041
      %1055 = vmatpush.xpose.msra.mxu0 %v1039
      %1056 = vmatpush.xpose.msra.mxu0 %v1037
      %1057 = vmatpush.xpose.msra.mxu0 %v1035
      %1058 = vmatpush.xpose.msra.mxu0 %v1033
      %1059 = vmatpush.xpose.msra.mxu0 %v1031
      %1060 = vmatpush.xpose.msra.mxu0 %v1029
      %1061 = vmatmul.f32.gmra.mxu0 %v1013
      %v1062 = vpop.f32.mrf.mxu0
      %v1063 = vadd.f32 0.0, %v1062
      %1064 = vmatmul.f32.gmra.mxu0 %v1015
      %v1065 = vpop.f32.mrf.mxu0
      %v1066 = vadd.f32 0.0, %v1065
      %1067 = vmatmul.f32.gmra.mxu0 %v1017
      %v1068 = vpop.f32.mrf.mxu0
      %v1069 = vadd.f32 0.0, %v1068
      %1070 = vmatmul.f32.gmra.mxu0 %v1019
      %v1071 = vpop.f32.mrf.mxu0
      %v1072 = vadd.f32 0.0, %v1071
      %1073 = vmatmul.f32.gmra.mxu0 %v1021
      %v1074 = vpop.f32.mrf.mxu0
      %v1075 = vadd.f32 0.0, %v1074
      %1076 = vmatmul.f32.gmra.mxu0 %v1023
      %v1077 = vpop.f32.mrf.mxu0
      %v1078 = vadd.f32 0.0, %v1077
      %1079 = vmatmul.f32.gmra.mxu0 %v1025
      %v1080 = vpop.f32.mrf.mxu0
      %v1081 = vadd.f32 0.0, %v1080
      %1082 = vmatmul.f32.gmra.mxu0 %v1027
      %v1083 = vpop.f32.mrf.mxu0
      %v1084 = vadd.f32 0.0, %v1083
      %1085 = vdwg.mxu0
      %v1086 = vmul.f32 %v1063, 0.35355338
      %v1087 = vmul.f32 %v1066, 0.35355338
      %v1088 = vmul.f32 %v1069, 0.35355338
      %v1089 = vmul.f32 %v1072, 0.35355338
      %v1090 = vmul.f32 %v1075, 0.35355338
      %v1091 = vmul.f32 %v1078, 0.35355338
      %v1092 = vmul.f32 %v1081, 0.35355338
      %v1093 = vmul.f32 %v1084, 0.35355338
      %v1094 = vsel %vm803, %v1086, -inf
      %1095 = vmax.xlane.f32.xlu0 %v1094
      %v1096 = vpop.xlane.xlu0 %1095
      %v1097 = vsel %vm803, %v1087, -inf
      %1098 = vmax.xlane.f32.xlu0 %v1097
      %v1099 = vpop.xlane.xlu0 %1098
      %v1100 = vsel %vm803, %v1088, -inf
      %1101 = vmax.xlane.f32.xlu0 %v1100
      %v1102 = vpop.xlane.xlu0 %1101
      %v1103 = vsel %vm803, %v1089, -inf
      %1104 = vmax.xlane.f32.xlu0 %v1103
      %v1105 = vpop.xlane.xlu0 %1104
      %v1106 = vsel %vm803, %v1090, -inf
      %1107 = vmax.xlane.f32.xlu0 %v1106
      %v1108 = vpop.xlane.xlu0 %1107
      %v1109 = vsel %vm803, %v1091, -inf
      %1110 = vmax.xlane.f32.xlu0 %v1109
      %v1111 = vpop.xlane.xlu0 %1110
      %v1112 = vsel %vm803, %v1092, -inf
      %1113 = vmax.xlane.f32.xlu0 %v1112
      %v1114 = vpop.xlane.xlu0 %1113
      %v1115 = vsel %vm803, %v1093, -inf
      %1116 = vmax.xlane.f32.xlu0 %v1115
      %v1117 = vpop.xlane.xlu0 %1116
      %v1118 = vsub.f32 %v1086, %v1096
      %v1119 = vsub.f32 %v1087, %v1099
      %v1120 = vsub.f32 %v1088, %v1102
      %v1121 = vsub.f32 %v1089, %v1105
      %v1122 = vsub.f32 %v1090, %v1108
      %v1123 = vsub.f32 %v1091, %v1111
      %v1124 = vsub.f32 %v1092, %v1114
      %v1125 = vsub.f32 %v1093, %v1117
      %v1126 = vmul.f32 %v1118, 1.442695
      %v1127 = vpow.pop %v1126
      %v1128 = vmul.f32 %v1119, 1.442695
      %v1129 = vpow.pop %v1128
      %v1130 = vmul.f32 %v1120, 1.442695
      %v1131 = vpow.pop %v1130
      %v1132 = vmul.f32 %v1121, 1.442695
      %v1133 = vpow.pop %v1132
      %v1134 = vmul.f32 %v1122, 1.442695
      %v1135 = vpow.pop %v1134
      %v1136 = vmul.f32 %v1123, 1.442695
      %v1137 = vpow.pop %v1136
      %v1138 = vmul.f32 %v1124, 1.442695
      %v1139 = vpow.pop %v1138
      %v1140 = vmul.f32 %v1125, 1.442695
      %v1141 = vpow.pop %v1140
      %v1142 = vsel %vm803, %v1127, 0.0
      %1143 = vadd.xlane.f32.xlu0 %v1142
      %v1144 = vpop.xlane.xlu0 %1143
      %v1145 = vsel %vm803, %v1129, 0.0
      %1146 = vadd.xlane.f32.xlu0 %v1145
      %v1147 = vpop.xlane.xlu0 %1146
      %v1148 = vsel %vm803, %v1131, 0.0
      %1149 = vadd.xlane.f32.xlu0 %v1148
      %v1150 = vpop.xlane.xlu0 %1149
      %v1151 = vsel %vm803, %v1133, 0.0
      %1152 = vadd.xlane.f32.xlu0 %v1151
      %v1153 = vpop.xlane.xlu0 %1152
      %v1154 = vsel %vm803, %v1135, 0.0
      %1155 = vadd.xlane.f32.xlu0 %v1154
      %v1156 = vpop.xlane.xlu0 %1155
      %v1157 = vsel %vm803, %v1137, 0.0
      %1158 = vadd.xlane.f32.xlu0 %v1157
      %v1159 = vpop.xlane.xlu0 %1158
      %v1160 = vsel %vm803, %v1139, 0.0
      %1161 = vadd.xlane.f32.xlu0 %v1160
      %v1162 = vpop.xlane.xlu0 %1161
      %v1163 = vsel %vm803, %v1141, 0.0
      %1164 = vadd.xlane.f32.xlu0 %v1163
      %v1165 = vpop.xlane.xlu0 %1164
      %v1166 = vrcp.pop %v1144
      %v1167 = vrcp.pop %v1147
      %v1168 = vrcp.pop %v1150
      %v1169 = vrcp.pop %v1153
      %v1170 = vrcp.pop %v1156
      %v1171 = vrcp.pop %v1159
      %v1172 = vrcp.pop %v1162
      %v1173 = vrcp.pop %v1165
      %v1174 = vmul.f32 %v1127, %v1166
      %v1175 = vmul.f32 %v1129, %v1167
      %v1176 = vmul.f32 %v1131, %v1168
      %v1177 = vmul.f32 %v1133, %v1169
      %v1178 = vmul.f32 %v1135, %v1170
      %v1179 = vmul.f32 %v1137, %v1171
      %v1180 = vmul.f32 %v1139, %v1172
      %v1181 = vmul.f32 %v1141, %v1173
      %1182 = vrot.lane.b32.xlu0 %v674, 56
      %v1183 = vpop.permute.xlu0 %1182
      %1184 = vrot.lane.b32.xlu0 %v677, 56
      %v1185 = vpop.permute.xlu0 %1184
      %1186 = vrot.lane.b32.xlu0 %v680, 56
      %v1187 = vpop.permute.xlu0 %1186
      %1188 = vrot.lane.b32.xlu0 %v683, 56
      %v1189 = vpop.permute.xlu0 %1188
      %1190 = vrot.lane.b32.xlu0 %v686, 56
      %v1191 = vpop.permute.xlu0 %1190
      %1192 = vrot.lane.b32.xlu0 %v689, 56
      %v1193 = vpop.permute.xlu0 %1192
      %1194 = vrot.lane.b32.xlu0 %v692, 56
      %v1195 = vpop.permute.xlu0 %1194
      %1196 = vrot.lane.b32.xlu0 %v695, 56
      %v1197 = vpop.permute.xlu0 %1196
      %v1207 = vsel %vm803, %v1174, 0
      %v1210 = vsel %vm803, %v1175, 0
      %v1213 = vsel %vm803, %v1176, 0
      %v1216 = vsel %vm803, %v1177, 0
      %v1219 = vsel %vm803, %v1178, 0
      %v1222 = vsel %vm803, %v1179, 0
      %v1225 = vsel %vm803, %v1180, 0
      %v1228 = vsel %vm803, %v1181, 0
      %1230 = vmatpush.msra.mxu0 0.0
      %1231 = vmatpush.msra.mxu0 0.0
      %1232 = vmatpush.msra.mxu0 0.0
      %1233 = vmatpush.msra.mxu0 0.0
      %1234 = vmatpush.msra.mxu0 0.0
      %1235 = vmatpush.msra.mxu0 0.0
      %1236 = vmatpush.msra.mxu0 0.0
      %1237 = vmatpush.msra.mxu0 0.0
      %1238 = vmatpush.msra.mxu0 %v1197
      %1239 = vmatpush.msra.mxu0 %v1195
      %1240 = vmatpush.msra.mxu0 %v1193
      %1241 = vmatpush.msra.mxu0 %v1191
      %1242 = vmatpush.msra.mxu0 %v1189
      %1243 = vmatpush.msra.mxu0 %v1187
      %1244 = vmatpush.msra.mxu0 %v1185
      %1245 = vmatpush.msra.mxu0 %v1183
      %1246 = vmatmul.f32.gmra.mxu0 %v1207
      %v1247 = vpop.f32.mrf.mxu0
      %v1248 = vadd.f32 0.0, %v1247
      %1249 = vmatmul.f32.gmra.mxu0 %v1210
      %v1250 = vpop.f32.mrf.mxu0
      %v1251 = vadd.f32 0.0, %v1250
      %1252 = vmatmul.f32.gmra.mxu0 %v1213
      %v1253 = vpop.f32.mrf.mxu0
      %v1254 = vadd.f32 0.0, %v1253
      %1255 = vmatmul.f32.gmra.mxu0 %v1216
      %v1256 = vpop.f32.mrf.mxu0
      %v1257 = vadd.f32 0.0, %v1256
      %1258 = vmatmul.f32.gmra.mxu0 %v1219
      %v1259 = vpop.f32.mrf.mxu0
      %v1260 = vadd.f32 0.0, %v1259
      %1261 = vmatmul.f32.gmra.mxu0 %v1222
      %v1262 = vpop.f32.mrf.mxu0
      %v1263 = vadd.f32 0.0, %v1262
      %1264 = vmatmul.f32.gmra.mxu0 %v1225
      %v1265 = vpop.f32.mrf.mxu0
      %v1266 = vadd.f32 0.0, %v1265
      %1267 = vmatmul.f32.gmra.mxu0 %v1228
      %v1268 = vpop.f32.mrf.mxu0
      %v1269 = vadd.f32 0.0, %v1268
      %1270 = vdwg.mxu0
      %1271 = vrot.lane.b32.xlu0 %v674, 112
      %v1272 = vpop.permute.xlu0 %1271
      %1273 = vrot.lane.b32.xlu0 %v677, 112
      %v1274 = vpop.permute.xlu0 %1273
      %1275 = vrot.lane.b32.xlu0 %v680, 112
      %v1276 = vpop.permute.xlu0 %1275
      %1277 = vrot.lane.b32.xlu0 %v683, 112
      %v1278 = vpop.permute.xlu0 %1277
      %1279 = vrot.lane.b32.xlu0 %v686, 112
      %v1280 = vpop.permute.xlu0 %1279
      %1281 = vrot.lane.b32.xlu0 %v689, 112
      %v1282 = vpop.permute.xlu0 %1281
      %1283 = vrot.lane.b32.xlu0 %v692, 112
      %v1284 = vpop.permute.xlu0 %1283
      %1285 = vrot.lane.b32.xlu0 %v695, 112
      %v1286 = vpop.permute.xlu0 %1285
      %1287 = vrot.lane.b32.xlu0 %v674, 80
      %v1288 = vpop.permute.xlu0 %1287
      %1289 = vrot.lane.b32.xlu0 %v677, 80
      %v1290 = vpop.permute.xlu0 %1289
      %1291 = vrot.lane.b32.xlu0 %v680, 80
      %v1292 = vpop.permute.xlu0 %1291
      %1293 = vrot.lane.b32.xlu0 %v683, 80
      %v1294 = vpop.permute.xlu0 %1293
      %1295 = vrot.lane.b32.xlu0 %v686, 80
      %v1296 = vpop.permute.xlu0 %1295
      %1297 = vrot.lane.b32.xlu0 %v689, 80
      %v1298 = vpop.permute.xlu0 %1297
      %1299 = vrot.lane.b32.xlu0 %v692, 80
      %v1300 = vpop.permute.xlu0 %1299
      %1301 = vrot.lane.b32.xlu0 %v695, 80
      %v1302 = vpop.permute.xlu0 %1301
      %v1303 = vsel %vm721, %v1272, 0
      %v1305 = vsel %vm721, %v1274, 0
      %v1307 = vsel %vm721, %v1276, 0
      %v1309 = vsel %vm721, %v1278, 0
      %v1311 = vsel %vm721, %v1280, 0
      %v1313 = vsel %vm721, %v1282, 0
      %v1315 = vsel %vm721, %v1284, 0
      %v1317 = vsel %vm721, %v1286, 0
      %v1319 = vsel %vm721, %v1288, 0
      %v1321 = vsel %vm721, %v1290, 0
      %v1323 = vsel %vm721, %v1292, 0
      %v1325 = vsel %vm721, %v1294, 0
      %v1327 = vsel %vm721, %v1296, 0
      %v1329 = vsel %vm721, %v1298, 0
      %v1331 = vsel %vm721, %v1300, 0
      %v1333 = vsel %vm721, %v1302, 0
      %1335 = vmatpush.xpose.msra.mxu0 0.0
      %1336 = vmatpush.xpose.msra.mxu0 0.0
      %1337 = vmatpush.xpose.msra.mxu0 0.0
      %1338 = vmatpush.xpose.msra.mxu0 0.0
      %1339 = vmatpush.xpose.msra.mxu0 0.0
      %1340 = vmatpush.xpose.msra.mxu0 0.0
      %1341 = vmatpush.xpose.msra.mxu0 0.0
      %1342 = vmatpush.xpose.msra.mxu0 0.0
      %1343 = vmatpush.xpose.msra.mxu0 %v1333
      %1344 = vmatpush.xpose.msra.mxu0 %v1331
      %1345 = vmatpush.xpose.msra.mxu0 %v1329
      %1346 = vmatpush.xpose.msra.mxu0 %v1327
      %1347 = vmatpush.xpose.msra.mxu0 %v1325
      %1348 = vmatpush.xpose.msra.mxu0 %v1323
      %1349 = vmatpush.xpose.msra.mxu0 %v1321
      %1350 = vmatpush.xpose.msra.mxu0 %v1319
      %1351 = vmatmul.f32.gmra.mxu0 %v1303
      %v1352 = vpop.f32.mrf.mxu0
      %v1353 = vadd.f32 0.0, %v1352
      %1354 = vmatmul.f32.gmra.mxu0 %v1305
      %v1355 = vpop.f32.mrf.mxu0
      %v1356 = vadd.f32 0.0, %v1355
      %1357 = vmatmul.f32.gmra.mxu0 %v1307
      %v1358 = vpop.f32.mrf.mxu0
      %v1359 = vadd.f32 0.0, %v1358
      %1360 = vmatmul.f32.gmra.mxu0 %v1309
      %v1361 = vpop.f32.mrf.mxu0
      %v1362 = vadd.f32 0.0, %v1361
      %1363 = vmatmul.f32.gmra.mxu0 %v1311
      %v1364 = vpop.f32.mrf.mxu0
      %v1365 = vadd.f32 0.0, %v1364
      %1366 = vmatmul.f32.gmra.mxu0 %v1313
      %v1367 = vpop.f32.mrf.mxu0
      %v1368 = vadd.f32 0.0, %v1367
      %1369 = vmatmul.f32.gmra.mxu0 %v1315
      %v1370 = vpop.f32.mrf.mxu0
      %v1371 = vadd.f32 0.0, %v1370
      %1372 = vmatmul.f32.gmra.mxu0 %v1317
      %v1373 = vpop.f32.mrf.mxu0
      %v1374 = vadd.f32 0.0, %v1373
      %1375 = vdwg.mxu0
      %v1376 = vmul.f32 %v1353, 0.35355338
      %v1377 = vmul.f32 %v1356, 0.35355338
      %v1378 = vmul.f32 %v1359, 0.35355338
      %v1379 = vmul.f32 %v1362, 0.35355338
      %v1380 = vmul.f32 %v1365, 0.35355338
      %v1381 = vmul.f32 %v1368, 0.35355338
      %v1382 = vmul.f32 %v1371, 0.35355338
      %v1383 = vmul.f32 %v1374, 0.35355338
      %v1384 = vsel %vm803, %v1376, -inf
      %1385 = vmax.xlane.f32.xlu0 %v1384
      %v1386 = vpop.xlane.xlu0 %1385
      %v1387 = vsel %vm803, %v1377, -inf
      %1388 = vmax.xlane.f32.xlu0 %v1387
      %v1389 = vpop.xlane.xlu0 %1388
      %v1390 = vsel %vm803, %v1378, -inf
      %1391 = vmax.xlane.f32.xlu0 %v1390
      %v1392 = vpop.xlane.xlu0 %1391
      %v1393 = vsel %vm803, %v1379, -inf
      %1394 = vmax.xlane.f32.xlu0 %v1393
      %v1395 = vpop.xlane.xlu0 %1394
      %v1396 = vsel %vm803, %v1380, -inf
      %1397 = vmax.xlane.f32.xlu0 %v1396
      %v1398 = vpop.xlane.xlu0 %1397
      %v1399 = vsel %vm803, %v1381, -inf
      %1400 = vmax.xlane.f32.xlu0 %v1399
      %v1401 = vpop.xlane.xlu0 %1400
      %v1402 = vsel %vm803, %v1382, -inf
      %1403 = vmax.xlane.f32.xlu0 %v1402
      %v1404 = vpop.xlane.xlu0 %1403
      %v1405 = vsel %vm803, %v1383, -inf
      %1406 = vmax.xlane.f32.xlu0 %v1405
      %v1407 = vpop.xlane.xlu0 %1406
      %v1408 = vsub.f32 %v1376, %v1386
      %v1409 = vsub.f32 %v1377, %v1389
      %v1410 = vsub.f32 %v1378, %v1392
      %v1411 = vsub.f32 %v1379, %v1395
      %v1412 = vsub.f32 %v1380, %v1398
      %v1413 = vsub.f32 %v1381, %v1401
      %v1414 = vsub.f32 %v1382, %v1404
      %v1415 = vsub.f32 %v1383, %v1407
      %v1416 = vmul.f32 %v1408, 1.442695
      %v1417 = vpow.pop %v1416
      %v1418 = vmul.f32 %v1409, 1.442695
      %v1419 = vpow.pop %v1418
      %v1420 = vmul.f32 %v1410, 1.442695
      %v1421 = vpow.pop %v1420
      %v1422 = vmul.f32 %v1411, 1.442695
      %v1423 = vpow.pop %v1422
      %v1424 = vmul.f32 %v1412, 1.442695
      %v1425 = vpow.pop %v1424
      %v1426 = vmul.f32 %v1413, 1.442695
      %v1427 = vpow.pop %v1426
      %v1428 = vmul.f32 %v1414, 1.442695
      %v1429 = vpow.pop %v1428
      %v1430 = vmul.f32 %v1415, 1.442695
      %v1431 = vpow.pop %v1430
      %v1432 = vsel %vm803, %v1417, 0.0
      %1433 = vadd.xlane.f32.xlu0 %v1432
      %v1434 = vpop.xlane.xlu0 %1433
      %v1435 = vsel %vm803, %v1419, 0.0
      %1436 = vadd.xlane.f32.xlu0 %v1435
      %v1437 = vpop.xlane.xlu0 %1436
      %v1438 = vsel %vm803, %v1421, 0.0
      %1439 = vadd.xlane.f32.xlu0 %v1438
      %v1440 = vpop.xlane.xlu0 %1439
      %v1441 = vsel %vm803, %v1423, 0.0
      %1442 = vadd.xlane.f32.xlu0 %v1441
      %v1443 = vpop.xlane.xlu0 %1442
      %v1444 = vsel %vm803, %v1425, 0.0
      %1445 = vadd.xlane.f32.xlu0 %v1444
      %v1446 = vpop.xlane.xlu0 %1445
      %v1447 = vsel %vm803, %v1427, 0.0
      %1448 = vadd.xlane.f32.xlu0 %v1447
      %v1449 = vpop.xlane.xlu0 %1448
      %v1450 = vsel %vm803, %v1429, 0.0
      %1451 = vadd.xlane.f32.xlu0 %v1450
      %v1452 = vpop.xlane.xlu0 %1451
      %v1453 = vsel %vm803, %v1431, 0.0
      %1454 = vadd.xlane.f32.xlu0 %v1453
      %v1455 = vpop.xlane.xlu0 %1454
      %v1456 = vrcp.pop %v1434
      %v1457 = vrcp.pop %v1437
      %v1458 = vrcp.pop %v1440
      %v1459 = vrcp.pop %v1443
      %v1460 = vrcp.pop %v1446
      %v1461 = vrcp.pop %v1449
      %v1462 = vrcp.pop %v1452
      %v1463 = vrcp.pop %v1455
      %v1464 = vmul.f32 %v1417, %v1456
      %v1465 = vmul.f32 %v1419, %v1457
      %v1466 = vmul.f32 %v1421, %v1458
      %v1467 = vmul.f32 %v1423, %v1459
      %v1468 = vmul.f32 %v1425, %v1460
      %v1469 = vmul.f32 %v1427, %v1461
      %v1470 = vmul.f32 %v1429, %v1462
      %v1471 = vmul.f32 %v1431, %v1463
      %1472 = vrot.lane.b32.xlu0 %v674, 48
      %v1473 = vpop.permute.xlu0 %1472
      %1474 = vrot.lane.b32.xlu0 %v677, 48
      %v1475 = vpop.permute.xlu0 %1474
      %1476 = vrot.lane.b32.xlu0 %v680, 48
      %v1477 = vpop.permute.xlu0 %1476
      %1478 = vrot.lane.b32.xlu0 %v683, 48
      %v1479 = vpop.permute.xlu0 %1478
      %1480 = vrot.lane.b32.xlu0 %v686, 48
      %v1481 = vpop.permute.xlu0 %1480
      %1482 = vrot.lane.b32.xlu0 %v689, 48
      %v1483 = vpop.permute.xlu0 %1482
      %1484 = vrot.lane.b32.xlu0 %v692, 48
      %v1485 = vpop.permute.xlu0 %1484
      %1486 = vrot.lane.b32.xlu0 %v695, 48
      %v1487 = vpop.permute.xlu0 %1486
      %v1497 = vsel %vm803, %v1464, 0
      %v1500 = vsel %vm803, %v1465, 0
      %v1503 = vsel %vm803, %v1466, 0
      %v1506 = vsel %vm803, %v1467, 0
      %v1509 = vsel %vm803, %v1468, 0
      %v1512 = vsel %vm803, %v1469, 0
      %v1515 = vsel %vm803, %v1470, 0
      %v1518 = vsel %vm803, %v1471, 0
      %1520 = vmatpush.msra.mxu0 0.0
      %1521 = vmatpush.msra.mxu0 0.0
      %1522 = vmatpush.msra.mxu0 0.0
      %1523 = vmatpush.msra.mxu0 0.0
      %1524 = vmatpush.msra.mxu0 0.0
      %1525 = vmatpush.msra.mxu0 0.0
      %1526 = vmatpush.msra.mxu0 0.0
      %1527 = vmatpush.msra.mxu0 0.0
      %1528 = vmatpush.msra.mxu0 %v1487
      %1529 = vmatpush.msra.mxu0 %v1485
      %1530 = vmatpush.msra.mxu0 %v1483
      %1531 = vmatpush.msra.mxu0 %v1481
      %1532 = vmatpush.msra.mxu0 %v1479
      %1533 = vmatpush.msra.mxu0 %v1477
      %1534 = vmatpush.msra.mxu0 %v1475
      %1535 = vmatpush.msra.mxu0 %v1473
      %1536 = vmatmul.f32.gmra.mxu0 %v1497
      %v1537 = vpop.f32.mrf.mxu0
      %v1538 = vadd.f32 0.0, %v1537
      %1539 = vmatmul.f32.gmra.mxu0 %v1500
      %v1540 = vpop.f32.mrf.mxu0
      %v1541 = vadd.f32 0.0, %v1540
      %1542 = vmatmul.f32.gmra.mxu0 %v1503
      %v1543 = vpop.f32.mrf.mxu0
      %v1544 = vadd.f32 0.0, %v1543
      %1545 = vmatmul.f32.gmra.mxu0 %v1506
      %v1546 = vpop.f32.mrf.mxu0
      %v1547 = vadd.f32 0.0, %v1546
      %1548 = vmatmul.f32.gmra.mxu0 %v1509
      %v1549 = vpop.f32.mrf.mxu0
      %v1550 = vadd.f32 0.0, %v1549
      %1551 = vmatmul.f32.gmra.mxu0 %v1512
      %v1552 = vpop.f32.mrf.mxu0
      %v1553 = vadd.f32 0.0, %v1552
      %1554 = vmatmul.f32.gmra.mxu0 %v1515
      %v1555 = vpop.f32.mrf.mxu0
      %v1556 = vadd.f32 0.0, %v1555
      %1557 = vmatmul.f32.gmra.mxu0 %v1518
      %v1558 = vpop.f32.mrf.mxu0
      %v1559 = vadd.f32 0.0, %v1558
      %1560 = vdwg.mxu0
      %1561 = vrot.lane.b32.xlu0 %v674, 104
      %v1562 = vpop.permute.xlu0 %1561
      %1563 = vrot.lane.b32.xlu0 %v677, 104
      %v1564 = vpop.permute.xlu0 %1563
      %1565 = vrot.lane.b32.xlu0 %v680, 104
      %v1566 = vpop.permute.xlu0 %1565
      %1567 = vrot.lane.b32.xlu0 %v683, 104
      %v1568 = vpop.permute.xlu0 %1567
      %1569 = vrot.lane.b32.xlu0 %v686, 104
      %v1570 = vpop.permute.xlu0 %1569
      %1571 = vrot.lane.b32.xlu0 %v689, 104
      %v1572 = vpop.permute.xlu0 %1571
      %1573 = vrot.lane.b32.xlu0 %v692, 104
      %v1574 = vpop.permute.xlu0 %1573
      %1575 = vrot.lane.b32.xlu0 %v695, 104
      %v1576 = vpop.permute.xlu0 %1575
      %1577 = vrot.lane.b32.xlu0 %v674, 72
      %v1578 = vpop.permute.xlu0 %1577
      %1579 = vrot.lane.b32.xlu0 %v677, 72
      %v1580 = vpop.permute.xlu0 %1579
      %1581 = vrot.lane.b32.xlu0 %v680, 72
      %v1582 = vpop.permute.xlu0 %1581
      %1583 = vrot.lane.b32.xlu0 %v683, 72
      %v1584 = vpop.permute.xlu0 %1583
      %1585 = vrot.lane.b32.xlu0 %v686, 72
      %v1586 = vpop.permute.xlu0 %1585
      %1587 = vrot.lane.b32.xlu0 %v689, 72
      %v1588 = vpop.permute.xlu0 %1587
      %1589 = vrot.lane.b32.xlu0 %v692, 72
      %v1590 = vpop.permute.xlu0 %1589
      %1591 = vrot.lane.b32.xlu0 %v695, 72
      %v1592 = vpop.permute.xlu0 %1591
      %v1593 = vsel %vm721, %v1562, 0
      %v1595 = vsel %vm721, %v1564, 0
      %v1597 = vsel %vm721, %v1566, 0
      %v1599 = vsel %vm721, %v1568, 0
      %v1601 = vsel %vm721, %v1570, 0
      %v1603 = vsel %vm721, %v1572, 0
      %v1605 = vsel %vm721, %v1574, 0
      %v1607 = vsel %vm721, %v1576, 0
      %v1609 = vsel %vm721, %v1578, 0
      %v1611 = vsel %vm721, %v1580, 0
      %v1613 = vsel %vm721, %v1582, 0
      %v1615 = vsel %vm721, %v1584, 0
      %v1617 = vsel %vm721, %v1586, 0
      %v1619 = vsel %vm721, %v1588, 0
      %v1621 = vsel %vm721, %v1590, 0
      %v1623 = vsel %vm721, %v1592, 0
      %1625 = vmatpush.xpose.msra.mxu0 0.0
      %1626 = vmatpush.xpose.msra.mxu0 0.0
      %1627 = vmatpush.xpose.msra.mxu0 0.0
      %1628 = vmatpush.xpose.msra.mxu0 0.0
      %1629 = vmatpush.xpose.msra.mxu0 0.0
      %1630 = vmatpush.xpose.msra.mxu0 0.0
      %1631 = vmatpush.xpose.msra.mxu0 0.0
      %1632 = vmatpush.xpose.msra.mxu0 0.0
      %1633 = vmatpush.xpose.msra.mxu0 %v1623
      %1634 = vmatpush.xpose.msra.mxu0 %v1621
      %1635 = vmatpush.xpose.msra.mxu0 %v1619
      %1636 = vmatpush.xpose.msra.mxu0 %v1617
      %1637 = vmatpush.xpose.msra.mxu0 %v1615
      %1638 = vmatpush.xpose.msra.mxu0 %v1613
      %1639 = vmatpush.xpose.msra.mxu0 %v1611
      %1640 = vmatpush.xpose.msra.mxu0 %v1609
      %1641 = vmatmul.f32.gmra.mxu0 %v1593
      %v1642 = vpop.f32.mrf.mxu0
      %v1643 = vadd.f32 0.0, %v1642
      %1644 = vmatmul.f32.gmra.mxu0 %v1595
      %v1645 = vpop.f32.mrf.mxu0
      %v1646 = vadd.f32 0.0, %v1645
      %1647 = vmatmul.f32.gmra.mxu0 %v1597
      %v1648 = vpop.f32.mrf.mxu0
      %v1649 = vadd.f32 0.0, %v1648
      %1650 = vmatmul.f32.gmra.mxu0 %v1599
      %v1651 = vpop.f32.mrf.mxu0
      %v1652 = vadd.f32 0.0, %v1651
      %1653 = vmatmul.f32.gmra.mxu0 %v1601
      %v1654 = vpop.f32.mrf.mxu0
      %v1655 = vadd.f32 0.0, %v1654
      %1656 = vmatmul.f32.gmra.mxu0 %v1603
      %v1657 = vpop.f32.mrf.mxu0
      %v1658 = vadd.f32 0.0, %v1657
      %1659 = vmatmul.f32.gmra.mxu0 %v1605
      %v1660 = vpop.f32.mrf.mxu0
      %v1661 = vadd.f32 0.0, %v1660
      %1662 = vmatmul.f32.gmra.mxu0 %v1607
      %v1663 = vpop.f32.mrf.mxu0
      %v1664 = vadd.f32 0.0, %v1663
      %1665 = vdwg.mxu0
      %v1666 = vmul.f32 %v1643, 0.35355338
      %v1667 = vmul.f32 %v1646, 0.35355338
      %v1668 = vmul.f32 %v1649, 0.35355338
      %v1669 = vmul.f32 %v1652, 0.35355338
      %v1670 = vmul.f32 %v1655, 0.35355338
      %v1671 = vmul.f32 %v1658, 0.35355338
      %v1672 = vmul.f32 %v1661, 0.35355338
      %v1673 = vmul.f32 %v1664, 0.35355338
      %v1674 = vsel %vm803, %v1666, -inf
      %1675 = vmax.xlane.f32.xlu0 %v1674
      %v1676 = vpop.xlane.xlu0 %1675
      %v1677 = vsel %vm803, %v1667, -inf
      %1678 = vmax.xlane.f32.xlu0 %v1677
      %v1679 = vpop.xlane.xlu0 %1678
      %v1680 = vsel %vm803, %v1668, -inf
      %1681 = vmax.xlane.f32.xlu0 %v1680
      %v1682 = vpop.xlane.xlu0 %1681
      %v1683 = vsel %vm803, %v1669, -inf
      %1684 = vmax.xlane.f32.xlu0 %v1683
      %v1685 = vpop.xlane.xlu0 %1684
      %v1686 = vsel %vm803, %v1670, -inf
      %1687 = vmax.xlane.f32.xlu0 %v1686
      %v1688 = vpop.xlane.xlu0 %1687
      %v1689 = vsel %vm803, %v1671, -inf
      %1690 = vmax.xlane.f32.xlu0 %v1689
      %v1691 = vpop.xlane.xlu0 %1690
      %v1692 = vsel %vm803, %v1672, -inf
      %1693 = vmax.xlane.f32.xlu0 %v1692
      %v1694 = vpop.xlane.xlu0 %1693
      %v1695 = vsel %vm803, %v1673, -inf
      %1696 = vmax.xlane.f32.xlu0 %v1695
      %v1697 = vpop.xlane.xlu0 %1696
      %v1698 = vsub.f32 %v1666, %v1676
      %v1699 = vsub.f32 %v1667, %v1679
      %v1700 = vsub.f32 %v1668, %v1682
      %v1701 = vsub.f32 %v1669, %v1685
      %v1702 = vsub.f32 %v1670, %v1688
      %v1703 = vsub.f32 %v1671, %v1691
      %v1704 = vsub.f32 %v1672, %v1694
      %v1705 = vsub.f32 %v1673, %v1697
      %v1706 = vmul.f32 %v1698, 1.442695
      %v1707 = vpow.pop %v1706
      %v1708 = vmul.f32 %v1699, 1.442695
      %v1709 = vpow.pop %v1708
      %v1710 = vmul.f32 %v1700, 1.442695
      %v1711 = vpow.pop %v1710
      %v1712 = vmul.f32 %v1701, 1.442695
      %v1713 = vpow.pop %v1712
      %v1714 = vmul.f32 %v1702, 1.442695
      %v1715 = vpow.pop %v1714
      %v1716 = vmul.f32 %v1703, 1.442695
      %v1717 = vpow.pop %v1716
      %v1718 = vmul.f32 %v1704, 1.442695
      %v1719 = vpow.pop %v1718
      %v1720 = vmul.f32 %v1705, 1.442695
      %v1721 = vpow.pop %v1720
      %v1722 = vsel %vm803, %v1707, 0.0
      %1723 = vadd.xlane.f32.xlu0 %v1722
      %v1724 = vpop.xlane.xlu0 %1723
      %v1725 = vsel %vm803, %v1709, 0.0
      %1726 = vadd.xlane.f32.xlu0 %v1725
      %v1727 = vpop.xlane.xlu0 %1726
      %v1728 = vsel %vm803, %v1711, 0.0
      %1729 = vadd.xlane.f32.xlu0 %v1728
      %v1730 = vpop.xlane.xlu0 %1729
      %v1731 = vsel %vm803, %v1713, 0.0
      %1732 = vadd.xlane.f32.xlu0 %v1731
      %v1733 = vpop.xlane.xlu0 %1732
      %v1734 = vsel %vm803, %v1715, 0.0
      %1735 = vadd.xlane.f32.xlu0 %v1734
      %v1736 = vpop.xlane.xlu0 %1735
      %v1737 = vsel %vm803, %v1717, 0.0
      %1738 = vadd.xlane.f32.xlu0 %v1737
      %v1739 = vpop.xlane.xlu0 %1738
      %v1740 = vsel %vm803, %v1719, 0.0
      %1741 = vadd.xlane.f32.xlu0 %v1740
      %v1742 = vpop.xlane.xlu0 %1741
      %v1743 = vsel %vm803, %v1721, 0.0
      %1744 = vadd.xlane.f32.xlu0 %v1743
      %v1745 = vpop.xlane.xlu0 %1744
      %v1746 = vrcp.pop %v1724
      %v1747 = vrcp.pop %v1727
      %v1748 = vrcp.pop %v1730
      %v1749 = vrcp.pop %v1733
      %v1750 = vrcp.pop %v1736
      %v1751 = vrcp.pop %v1739
      %v1752 = vrcp.pop %v1742
      %v1753 = vrcp.pop %v1745
      %v1754 = vmul.f32 %v1707, %v1746
      %v1755 = vmul.f32 %v1709, %v1747
      %v1756 = vmul.f32 %v1711, %v1748
      %v1757 = vmul.f32 %v1713, %v1749
      %v1758 = vmul.f32 %v1715, %v1750
      %v1759 = vmul.f32 %v1717, %v1751
      %v1760 = vmul.f32 %v1719, %v1752
      %v1761 = vmul.f32 %v1721, %v1753
      %1762 = vrot.lane.b32.xlu0 %v674, 40
      %v1763 = vpop.permute.xlu0 %1762
      %1764 = vrot.lane.b32.xlu0 %v677, 40
      %v1765 = vpop.permute.xlu0 %1764
      %1766 = vrot.lane.b32.xlu0 %v680, 40
      %v1767 = vpop.permute.xlu0 %1766
      %1768 = vrot.lane.b32.xlu0 %v683, 40
      %v1769 = vpop.permute.xlu0 %1768
      %1770 = vrot.lane.b32.xlu0 %v686, 40
      %v1771 = vpop.permute.xlu0 %1770
      %1772 = vrot.lane.b32.xlu0 %v689, 40
      %v1773 = vpop.permute.xlu0 %1772
      %1774 = vrot.lane.b32.xlu0 %v692, 40
      %v1775 = vpop.permute.xlu0 %1774
      %1776 = vrot.lane.b32.xlu0 %v695, 40
      %v1777 = vpop.permute.xlu0 %1776
      %v1787 = vsel %vm803, %v1754, 0
      %v1790 = vsel %vm803, %v1755, 0
      %v1793 = vsel %vm803, %v1756, 0
      %v1796 = vsel %vm803, %v1757, 0
      %v1799 = vsel %vm803, %v1758, 0
      %v1802 = vsel %vm803, %v1759, 0
      %v1805 = vsel %vm803, %v1760, 0
      %v1808 = vsel %vm803, %v1761, 0
      %1810 = vmatpush.msra.mxu0 0.0
      %1811 = vmatpush.msra.mxu0 0.0
      %1812 = vmatpush.msra.mxu0 0.0
      %1813 = vmatpush.msra.mxu0 0.0
      %1814 = vmatpush.msra.mxu0 0.0
      %1815 = vmatpush.msra.mxu0 0.0
      %1816 = vmatpush.msra.mxu0 0.0
      %1817 = vmatpush.msra.mxu0 0.0
      %1818 = vmatpush.msra.mxu0 %v1777
      %1819 = vmatpush.msra.mxu0 %v1775
      %1820 = vmatpush.msra.mxu0 %v1773
      %1821 = vmatpush.msra.mxu0 %v1771
      %1822 = vmatpush.msra.mxu0 %v1769
      %1823 = vmatpush.msra.mxu0 %v1767
      %1824 = vmatpush.msra.mxu0 %v1765
      %1825 = vmatpush.msra.mxu0 %v1763
      %1826 = vmatmul.f32.gmra.mxu0 %v1787
      %v1827 = vpop.f32.mrf.mxu0
      %v1828 = vadd.f32 0.0, %v1827
      %1829 = vmatmul.f32.gmra.mxu0 %v1790
      %v1830 = vpop.f32.mrf.mxu0
      %v1831 = vadd.f32 0.0, %v1830
      %1832 = vmatmul.f32.gmra.mxu0 %v1793
      %v1833 = vpop.f32.mrf.mxu0
      %v1834 = vadd.f32 0.0, %v1833
      %1835 = vmatmul.f32.gmra.mxu0 %v1796
      %v1836 = vpop.f32.mrf.mxu0
      %v1837 = vadd.f32 0.0, %v1836
      %1838 = vmatmul.f32.gmra.mxu0 %v1799
      %v1839 = vpop.f32.mrf.mxu0
      %v1840 = vadd.f32 0.0, %v1839
      %1841 = vmatmul.f32.gmra.mxu0 %v1802
      %v1842 = vpop.f32.mrf.mxu0
      %v1843 = vadd.f32 0.0, %v1842
      %1844 = vmatmul.f32.gmra.mxu0 %v1805
      %v1845 = vpop.f32.mrf.mxu0
      %v1846 = vadd.f32 0.0, %v1845
      %1847 = vmatmul.f32.gmra.mxu0 %v1808
      %v1848 = vpop.f32.mrf.mxu0
      %v1849 = vadd.f32 0.0, %v1848
      %1850 = vdwg.mxu0
      %1859 = vrot.lane.b32.xlu0 %v1248, 8
      %v1860 = vpop.permute.xlu0 %1859
      %1861 = vrot.lane.b32.xlu0 %v1251, 8
      %v1862 = vpop.permute.xlu0 %1861
      %1863 = vrot.lane.b32.xlu0 %v1254, 8
      %v1864 = vpop.permute.xlu0 %1863
      %1865 = vrot.lane.b32.xlu0 %v1257, 8
      %v1866 = vpop.permute.xlu0 %1865
      %1867 = vrot.lane.b32.xlu0 %v1260, 8
      %v1868 = vpop.permute.xlu0 %1867
      %1869 = vrot.lane.b32.xlu0 %v1263, 8
      %v1870 = vpop.permute.xlu0 %1869
      %1871 = vrot.lane.b32.xlu0 %v1266, 8
      %v1872 = vpop.permute.xlu0 %1871
      %1873 = vrot.lane.b32.xlu0 %v1269, 8
      %v1874 = vpop.permute.xlu0 %1873
      %1891 = vrot.lane.b32.xlu0 %v1538, 16
      %v1892 = vpop.permute.xlu0 %1891
      %1893 = vrot.lane.b32.xlu0 %v1541, 16
      %v1894 = vpop.permute.xlu0 %1893
      %1895 = vrot.lane.b32.xlu0 %v1544, 16
      %v1896 = vpop.permute.xlu0 %1895
      %1897 = vrot.lane.b32.xlu0 %v1547, 16
      %v1898 = vpop.permute.xlu0 %1897
      %1899 = vrot.lane.b32.xlu0 %v1550, 16
      %v1900 = vpop.permute.xlu0 %1899
      %1901 = vrot.lane.b32.xlu0 %v1553, 16
      %v1902 = vpop.permute.xlu0 %1901
      %1903 = vrot.lane.b32.xlu0 %v1556, 16
      %v1904 = vpop.permute.xlu0 %1903
      %1905 = vrot.lane.b32.xlu0 %v1559, 16
      %v1906 = vpop.permute.xlu0 %1905
      %1923 = vrot.lane.b32.xlu0 %v1828, 24
      %v1924 = vpop.permute.xlu0 %1923
      %1925 = vrot.lane.b32.xlu0 %v1831, 24
      %v1926 = vpop.permute.xlu0 %1925
      %1927 = vrot.lane.b32.xlu0 %v1834, 24
      %v1928 = vpop.permute.xlu0 %1927
      %1929 = vrot.lane.b32.xlu0 %v1837, 24
      %v1930 = vpop.permute.xlu0 %1929
      %1931 = vrot.lane.b32.xlu0 %v1840, 24
      %v1932 = vpop.permute.xlu0 %1931
      %1933 = vrot.lane.b32.xlu0 %v1843, 24
      %v1934 = vpop.permute.xlu0 %1933
      %1935 = vrot.lane.b32.xlu0 %v1846, 24
      %v1936 = vpop.permute.xlu0 %1935
      %1937 = vrot.lane.b32.xlu0 %v1849, 24
      %v1938 = vpop.permute.xlu0 %1937
      %v1947 = vsel %vm721, %v958, %v1860
      %v1948 = vsel %vm721, %v961, %v1862
      %v1949 = vsel %vm721, %v964, %v1864
      %v1950 = vsel %vm721, %v967, %v1866
      %v1951 = vsel %vm721, %v970, %v1868
      %v1952 = vsel %vm721, %v973, %v1870
      %v1953 = vsel %vm721, %v976, %v1872
      %v1954 = vsel %vm721, %v979, %v1874
      %v1955 = vsel %vm424, %v1947, %v1892
      %v1956 = vsel %vm424, %v1948, %v1894
      %v1957 = vsel %vm424, %v1949, %v1896
      %v1958 = vsel %vm424, %v1950, %v1898
      %v1959 = vsel %vm424, %v1951, %v1900
      %v1960 = vsel %vm424, %v1952, %v1902
      %v1961 = vsel %vm424, %v1953, %v1904
      %v1962 = vsel %vm424, %v1954, %v1906
      %vm1963 = vcmask 195584
      %v1964 = vsel %vm1963, %v1955, %v1924
      %v1965 = vsel %vm1963, %v1956, %v1926
      %v1966 = vsel %vm1963, %v1957, %v1928
      %v1967 = vsel %vm1963, %v1958, %v1930
      %v1968 = vsel %vm1963, %v1959, %v1932
      %v1969 = vsel %vm1963, %v1960, %v1934
      %v1970 = vsel %vm1963, %v1961, %v1936
      %v1971 = vsel %vm1963, %v1962, %v1938
      %v1972 = vld [vmem:[%s4] sm:$0xff]
      %v1973 = vld [vmem:[%s4 + $0x8] sm:$0xff]
      %v1974 = vld [vmem:[%s4 + $0x10] sm:$0xff]
      %v1975 = vld [vmem:[%s4 + $0x18] sm:$0xff]
      %v1976 = vld [vmem:[%s5] sm:$0x1]
      %v1978 = vperm.slane %v1976, 0
      %vm1980 = vcmask 261120
      %v1982 = vsel %vm1980, %v1964, 0
      %v1985 = vsel %vm1980, %v1965, 0
      %v1988 = vsel %vm1980, %v1966, 0
      %v1991 = vsel %vm1980, %v1967, 0
      %v1994 = vsel %vm1980, %v1968, 0
      %v1997 = vsel %vm1980, %v1969, 0
      %v2000 = vsel %vm1980, %v1970, 0
      %v2003 = vsel %vm1980, %v1971, 0
      %2005 = vmatpush.msra.mxu0 0.0
      %2006 = vmatpush.msra.mxu0 0.0
      %2007 = vmatpush.msra.mxu0 0.0
      %2008 = vmatpush.msra.mxu0 0.0
      %2009 = vmatpush.msra.mxu0 0.0
      %2010 = vmatpush.msra.mxu0 0.0
      %2011 = vmatpush.msra.mxu0 0.0
      %2012 = vmatpush.msra.mxu0 0.0
      %2013 = vmatpush.msra.mxu0 0.0
      %2014 = vmatpush.msra.mxu0 0.0
      %2015 = vmatpush.msra.mxu0 0.0
      %2016 = vmatpush.msra.mxu0 0.0
      %2017 = vmatpush.msra.mxu0 %v1975
      %2018 = vmatpush.msra.mxu0 %v1974
      %2019 = vmatpush.msra.mxu0 %v1973
      %2020 = vmatpush.msra.mxu0 %v1972
      %2021 = vmatmul.f32.gmra.mxu0 %v1982
      %v2022 = vpop.f32.mrf.mxu0
      %v2023 = vadd.f32 %v1978, %v2022
      %2024 = vmatmul.f32.gmra.mxu0 %v1985
      %v2025 = vpop.f32.mrf.mxu0
      %v2026 = vadd.f32 %v1978, %v2025
      %2027 = vmatmul.f32.gmra.mxu0 %v1988
      %v2028 = vpop.f32.mrf.mxu0
      %v2029 = vadd.f32 %v1978, %v2028
      %2030 = vmatmul.f32.gmra.mxu0 %v1991
      %v2031 = vpop.f32.mrf.mxu0
      %v2032 = vadd.f32 %v1978, %v2031
      %2033 = vmatmul.f32.gmra.mxu0 %v1994
      %v2034 = vpop.f32.mrf.mxu0
      %v2035 = vadd.f32 %v1978, %v2034
      %2036 = vmatmul.f32.gmra.mxu0 %v1997
      %v2037 = vpop.f32.mrf.mxu0
      %v2038 = vadd.f32 %v1978, %v2037
      %2039 = vmatmul.f32.gmra.mxu0 %v2000
      %v2040 = vpop.f32.mrf.mxu0
      %v2041 = vadd.f32 %v1978, %v2040
      %2042 = vmatmul.f32.gmra.mxu0 %v2003
      %v2043 = vpop.f32.mrf.mxu0
      %v2044 = vadd.f32 %v1978, %v2043
      %2045 = vdwg.mxu0
      %v2046 = vadd.f32 %v414, %v2023
      %v2047 = vadd.f32 %v415, %v2026
      %v2048 = vadd.f32 %v416, %v2029
      %v2049 = vadd.f32 %v417, %v2032
      %v2050 = vadd.f32 %v418, %v2035
      %v2051 = vadd.f32 %v419, %v2038
      %v2052 = vadd.f32 %v420, %v2041
      %v2053 = vadd.f32 %v421, %v2044
      %v2054 = vld [vmem:[%s6] sm:$0x1]
      %v2055 = vld [vmem:[%s7] sm:$0x1]
      %v2056 = vsel %vm424, %v2046, 0.0
      %2057 = vadd.xlane.f32.xlu0 %v2056
      %v2058 = vpop.xlane.xlu0 %2057
      %v2059 = vsel %vm424, %v2047, 0.0
      %2060 = vadd.xlane.f32.xlu0 %v2059
      %v2061 = vpop.xlane.xlu0 %2060
      %v2062 = vsel %vm424, %v2048, 0.0
      %2063 = vadd.xlane.f32.xlu0 %v2062
      %v2064 = vpop.xlane.xlu0 %2063
      %v2065 = vsel %vm424, %v2049, 0.0
      %2066 = vadd.xlane.f32.xlu0 %v2065
      %v2067 = vpop.xlane.xlu0 %2066
      %v2068 = vsel %vm424, %v2050, 0.0
      %2069 = vadd.xlane.f32.xlu0 %v2068
      %v2070 = vpop.xlane.xlu0 %2069
      %v2071 = vsel %vm424, %v2051, 0.0
      %2072 = vadd.xlane.f32.xlu0 %v2071
      %v2073 = vpop.xlane.xlu0 %2072
      %v2074 = vsel %vm424, %v2052, 0.0
      %2075 = vadd.xlane.f32.xlu0 %v2074
      %v2076 = vpop.xlane.xlu0 %2075
      %v2077 = vsel %vm424, %v2053, 0.0
      %2078 = vadd.xlane.f32.xlu0 %v2077
      %v2079 = vpop.xlane.xlu0 %2078
      %v2080 = vmul.f32 %v2058, %v455
      %v2081 = vmul.f32 %v2061, %v455
      %v2082 = vmul.f32 %v2064, %v455
      %v2083 = vmul.f32 %v2067, %v455
      %v2084 = vmul.f32 %v2070, %v455
      %v2085 = vmul.f32 %v2073, %v455
      %v2086 = vmul.f32 %v2076, %v455
      %v2087 = vmul.f32 %v2079, %v455
      %v2088 = vsub.f32 %v2046, %v2080
      %v2089 = vsub.f32 %v2047, %v2081
      %v2090 = vsub.f32 %v2048, %v2082
      %v2091 = vsub.f32 %v2049, %v2083
      %v2092 = vsub.f32 %v2050, %v2084
      %v2093 = vsub.f32 %v2051, %v2085
      %v2094 = vsub.f32 %v2052, %v2086
      %v2095 = vsub.f32 %v2053, %v2087
      %v2096 = vmul.f32 %v2088, %v2088
      %v2097 = vmul.f32 %v2089, %v2089
      %v2098 = vmul.f32 %v2090, %v2090
      %v2099 = vmul.f32 %v2091, %v2091
      %v2100 = vmul.f32 %v2092, %v2092
      %v2101 = vmul.f32 %v2093, %v2093
      %v2102 = vmul.f32 %v2094, %v2094
      %v2103 = vmul.f32 %v2095, %v2095
      %v2104 = vsel %vm424, %v2096, 0.0
      %2105 = vadd.xlane.f32.xlu0 %v2104
      %v2106 = vpop.xlane.xlu0 %2105
      %v2107 = vsel %vm424, %v2097, 0.0
      %2108 = vadd.xlane.f32.xlu0 %v2107
      %v2109 = vpop.xlane.xlu0 %2108
      %v2110 = vsel %vm424, %v2098, 0.0
      %2111 = vadd.xlane.f32.xlu0 %v2110
      %v2112 = vpop.xlane.xlu0 %2111
      %v2113 = vsel %vm424, %v2099, 0.0
      %2114 = vadd.xlane.f32.xlu0 %v2113
      %v2115 = vpop.xlane.xlu0 %2114
      %v2116 = vsel %vm424, %v2100, 0.0
      %2117 = vadd.xlane.f32.xlu0 %v2116
      %v2118 = vpop.xlane.xlu0 %2117
      %v2119 = vsel %vm424, %v2101, 0.0
      %2120 = vadd.xlane.f32.xlu0 %v2119
      %v2121 = vpop.xlane.xlu0 %2120
      %v2122 = vsel %vm424, %v2102, 0.0
      %2123 = vadd.xlane.f32.xlu0 %v2122
      %v2124 = vpop.xlane.xlu0 %2123
      %v2125 = vsel %vm424, %v2103, 0.0
      %2126 = vadd.xlane.f32.xlu0 %v2125
      %v2127 = vpop.xlane.xlu0 %2126
      %v2128 = vmul.f32 %v2106, %v455
      %v2129 = vmul.f32 %v2109, %v455
      %v2130 = vmul.f32 %v2112, %v455
      %v2131 = vmul.f32 %v2115, %v455
      %v2132 = vmul.f32 %v2118, %v455
      %v2133 = vmul.f32 %v2121, %v455
      %v2134 = vmul.f32 %v2124, %v455
      %v2135 = vmul.f32 %v2127, %v455
      %v2136 = vadd.f32 %v2128, 1e-05
      %v2137 = vadd.f32 %v2129, 1e-05
      %v2138 = vadd.f32 %v2130, 1e-05
      %v2139 = vadd.f32 %v2131, 1e-05
      %v2140 = vadd.f32 %v2132, 1e-05
      %v2141 = vadd.f32 %v2133, 1e-05
      %v2142 = vadd.f32 %v2134, 1e-05
      %v2143 = vadd.f32 %v2135, 1e-05
      %v2144 = vrsqrt.pop %v2136
      %v2145 = vmul.f32 %v2144, %v2136
      %v2146 = vmul.f32 %v2145, %v2144
      %v2147 = vmul.f32 0.5, %v2146
      %v2148 = vsub.f32 1.5, %v2147
      %v2149 = vmul.f32 %v2144, %v2148
      %vm2150 = vweird.f32 %v2136
      %vm2151 = vweird.f32 %v2144
      %vm2152 = vmor %vm2150, %vm2151
      %v2153 = vsel %vm2152, %v2144, %v2149
      %v2154 = vrsqrt.pop %v2137
      %v2155 = vmul.f32 %v2154, %v2137
      %v2156 = vmul.f32 %v2155, %v2154
      %v2157 = vmul.f32 0.5, %v2156
      %v2158 = vsub.f32 1.5, %v2157
      %v2159 = vmul.f32 %v2154, %v2158
      %vm2160 = vweird.f32 %v2137
      %vm2161 = vweird.f32 %v2154
      %vm2162 = vmor %vm2160, %vm2161
      %v2163 = vsel %vm2162, %v2154, %v2159
      %v2164 = vrsqrt.pop %v2138
      %v2165 = vmul.f32 %v2164, %v2138
      %v2166 = vmul.f32 %v2165, %v2164
      %v2167 = vmul.f32 0.5, %v2166
      %v2168 = vsub.f32 1.5, %v2167
      %v2169 = vmul.f32 %v2164, %v2168
      %vm2170 = vweird.f32 %v2138
      %vm2171 = vweird.f32 %v2164
      %vm2172 = vmor %vm2170, %vm2171
      %v2173 = vsel %vm2172, %v2164, %v2169
      %v2174 = vrsqrt.pop %v2139
      %v2175 = vmul.f32 %v2174, %v2139
      %v2176 = vmul.f32 %v2175, %v2174
      %v2177 = vmul.f32 0.5, %v2176
      %v2178 = vsub.f32 1.5, %v2177
      %v2179 = vmul.f32 %v2174, %v2178
      %vm2180 = vweird.f32 %v2139
      %vm2181 = vweird.f32 %v2174
      %vm2182 = vmor %vm2180, %vm2181
      %v2183 = vsel %vm2182, %v2174, %v2179
      %v2184 = vrsqrt.pop %v2140
      %v2185 = vmul.f32 %v2184, %v2140
      %v2186 = vmul.f32 %v2185, %v2184
      %v2187 = vmul.f32 0.5, %v2186
      %v2188 = vsub.f32 1.5, %v2187
      %v2189 = vmul.f32 %v2184, %v2188
      %vm2190 = vweird.f32 %v2140
      %vm2191 = vweird.f32 %v2184
      %vm2192 = vmor %vm2190, %vm2191
      %v2193 = vsel %vm2192, %v2184, %v2189
      %v2194 = vrsqrt.pop %v2141
      %v2195 = vmul.f32 %v2194, %v2141
      %v2196 = vmul.f32 %v2195, %v2194
      %v2197 = vmul.f32 0.5, %v2196
      %v2198 = vsub.f32 1.5, %v2197
      %v2199 = vmul.f32 %v2194, %v2198
      %vm2200 = vweird.f32 %v2141
      %vm2201 = vweird.f32 %v2194
      %vm2202 = vmor %vm2200, %vm2201
      %v2203 = vsel %vm2202, %v2194, %v2199
      %v2204 = vrsqrt.pop %v2142
      %v2205 = vmul.f32 %v2204, %v2142
      %v2206 = vmul.f32 %v2205, %v2204
      %v2207 = vmul.f32 0.5, %v2206
      %v2208 = vsub.f32 1.5, %v2207
      %v2209 = vmul.f32 %v2204, %v2208
      %vm2210 = vweird.f32 %v2142
      %vm2211 = vweird.f32 %v2204
      %vm2212 = vmor %vm2210, %vm2211
      %v2213 = vsel %vm2212, %v2204, %v2209
      %v2214 = vrsqrt.pop %v2143
      %v2215 = vmul.f32 %v2214, %v2143
      %v2216 = vmul.f32 %v2215, %v2214
      %v2217 = vmul.f32 0.5, %v2216
      %v2218 = vsub.f32 1.5, %v2217
      %v2219 = vmul.f32 %v2214, %v2218
      %vm2220 = vweird.f32 %v2143
      %vm2221 = vweird.f32 %v2214
      %vm2222 = vmor %vm2220, %vm2221
      %v2223 = vsel %vm2222, %v2214, %v2219
      %v2224 = vmul.f32 %v2088, %v2153
      %v2225 = vmul.f32 %v2089, %v2163
      %v2226 = vmul.f32 %v2090, %v2173
      %v2227 = vmul.f32 %v2091, %v2183
      %v2228 = vmul.f32 %v2092, %v2193
      %v2229 = vmul.f32 %v2093, %v2203
      %v2230 = vmul.f32 %v2094, %v2213
      %v2231 = vmul.f32 %v2095, %v2223
      %v2233 = vperm.slane %v2054, 0
      %v2235 = vmul.f32 %v2224, %v2233
      %v2236 = vmul.f32 %v2225, %v2233
      %v2237 = vmul.f32 %v2226, %v2233
      %v2238 = vmul.f32 %v2227, %v2233
      %v2239 = vmul.f32 %v2228, %v2233
      %v2240 = vmul.f32 %v2229, %v2233
      %v2241 = vmul.f32 %v2230, %v2233
      %v2242 = vmul.f32 %v2231, %v2233
      %v2244 = vperm.slane %v2055, 0
      %v2246 = vadd.f32 %v2235, %v2244
      %v2247 = vadd.f32 %v2236, %v2244
      %v2248 = vadd.f32 %v2237, %v2244
      %v2249 = vadd.f32 %v2238, %v2244
      %v2250 = vadd.f32 %v2239, %v2244
      %v2251 = vadd.f32 %v2240, %v2244
      %v2252 = vadd.f32 %v2241, %v2244
      %v2253 = vadd.f32 %v2242, %v2244
      %v2254 = vld [vmem:[%s8] sm:$0xff]
      %v2255 = vld [vmem:[%s8 + $0x8] sm:$0xff]
      %v2256 = vld [vmem:[%s9] sm:$0x1]
      %v2258 = vperm.slane %v2256, 0
      %v2261 = vsel %vm424, %v2246, 0
      %v2264 = vsel %vm424, %v2247, 0
      %v2267 = vsel %vm424, %v2248, 0
      %v2270 = vsel %vm424, %v2249, 0
      %v2273 = vsel %vm424, %v2250, 0
      %v2276 = vsel %vm424, %v2251, 0
      %v2279 = vsel %vm424, %v2252, 0
      %v2282 = vsel %vm424, %v2253, 0
      %2284 = vmatpush.msra.mxu0 0.0
      %2285 = vmatpush.msra.mxu0 0.0
      %2286 = vmatpush.msra.mxu0 0.0
      %2287 = vmatpush.msra.mxu0 0.0
      %2288 = vmatpush.msra.mxu0 0.0
      %2289 = vmatpush.msra.mxu0 0.0
      %2290 = vmatpush.msra.mxu0 0.0
      %2291 = vmatpush.msra.mxu0 0.0
      %2292 = vmatpush.msra.mxu0 0.0
      %2293 = vmatpush.msra.mxu0 0.0
      %2294 = vmatpush.msra.mxu0 0.0
      %2295 = vmatpush.msra.mxu0 0.0
      %2296 = vmatpush.msra.mxu0 0.0
      %2297 = vmatpush.msra.mxu0 0.0
      %2298 = vmatpush.msra.mxu0 %v2255
      %2299 = vmatpush.msra.mxu0 %v2254
      %2300 = vmatmul.f32.gmra.mxu0 %v2261
      %v2301 = vpop.f32.mrf.mxu0
      %v2302 = vadd.f32 %v2258, %v2301
      %2303 = vmatmul.f32.gmra.mxu0 %v2264
      %v2304 = vpop.f32.mrf.mxu0
      %v2305 = vadd.f32 %v2258, %v2304
      %2306 = vmatmul.f32.gmra.mxu0 %v2267
      %v2307 = vpop.f32.mrf.mxu0
      %v2308 = vadd.f32 %v2258, %v2307
      %2309 = vmatmul.f32.gmra.mxu0 %v2270
      %v2310 = vpop.f32.mrf.mxu0
      %v2311 = vadd.f32 %v2258, %v2310
      %2312 = vmatmul.f32.gmra.mxu0 %v2273
      %v2313 = vpop.f32.mrf.mxu0
      %v2314 = vadd.f32 %v2258, %v2313
      %2315 = vmatmul.f32.gmra.mxu0 %v2276
      %v2316 = vpop.f32.mrf.mxu0
      %v2317 = vadd.f32 %v2258, %v2316
      %2318 = vmatmul.f32.gmra.mxu0 %v2279
      %v2319 = vpop.f32.mrf.mxu0
      %v2320 = vadd.f32 %v2258, %v2319
      %2321 = vmatmul.f32.gmra.mxu0 %v2282
      %v2322 = vpop.f32.mrf.mxu0
      %v2323 = vadd.f32 %v2258, %v2322
      %2324 = vdwg.mxu0
      %v2325 = vand.u32 2147483647, %v2302
      %v2326 = vand.u32 2147483647, %v2305
      %v2327 = vand.u32 2147483647, %v2308
      %v2328 = vand.u32 2147483647, %v2311
      %v2329 = vand.u32 2147483647, %v2314
      %v2330 = vand.u32 2147483647, %v2317
      %v2331 = vand.u32 2147483647, %v2320
      %v2332 = vand.u32 2147483647, %v2323
      %v2333 = vsub.f32 0.0, %v2325
      %v2334 = vsub.f32 0.0, %v2326
      %v2335 = vsub.f32 0.0, %v2327
      %v2336 = vsub.f32 0.0, %v2328
      %v2337 = vsub.f32 0.0, %v2329
      %v2338 = vsub.f32 0.0, %v2330
      %v2339 = vsub.f32 0.0, %v2331
      %v2340 = vsub.f32 0.0, %v2332
      %v2341 = vmul.f32 %v2333, 1.442695
      %v2342 = vpow.pop %v2341
      %v2343 = vmul.f32 %v2334, 1.442695
      %v2344 = vpow.pop %v2343
      %v2345 = vmul.f32 %v2335, 1.442695
      %v2346 = vpow.pop %v2345
      %v2347 = vmul.f32 %v2336, 1.442695
      %v2348 = vpow.pop %v2347
      %v2349 = vmul.f32 %v2337, 1.442695
      %v2350 = vpow.pop %v2349
      %v2351 = vmul.f32 %v2338, 1.442695
      %v2352 = vpow.pop %v2351
      %v2353 = vmul.f32 %v2339, 1.442695
      %v2354 = vpow.pop %v2353
      %v2355 = vmul.f32 %v2340, 1.442695
      %v2356 = vpow.pop %v2355
      %v2357 = vadd.f32 %v2342, 1.0
      %v2358 = vadd.f32 %v2344, 1.0
      %v2359 = vadd.f32 %v2346, 1.0
      %v2360 = vadd.f32 %v2348, 1.0
      %v2361 = vadd.f32 %v2350, 1.0
      %v2362 = vadd.f32 %v2352, 1.0
      %v2363 = vadd.f32 %v2354, 1.0
      %v2364 = vadd.f32 %v2356, 1.0
      %v2365 = vrcp.pop %v2357
      %v2366 = vrcp.pop %v2358
      %v2367 = vrcp.pop %v2359
      %v2368 = vrcp.pop %v2360
      %v2369 = vrcp.pop %v2361
      %v2370 = vrcp.pop %v2362
      %v2371 = vrcp.pop %v2363
      %v2372 = vrcp.pop %v2364
      %vm2373 = vcmp.ge.f32.partialorder %v2302, 0.0
      %vm2374 = vcmp.ge.f32.partialorder %v2305, 0.0
      %vm2375 = vcmp.ge.f32.partialorder %v2308, 0.0
      %vm2376 = vcmp.ge.f32.partialorder %v2311, 0.0
      %vm2377 = vcmp.ge.f32.partialorder %v2314, 0.0
      %vm2378 = vcmp.ge.f32.partialorder %v2317, 0.0
      %vm2379 = vcmp.ge.f32.partialorder %v2320, 0.0
      %vm2380 = vcmp.ge.f32.partialorder %v2323, 0.0
      %v2381 = vmul.f32 %v2342, %v2365
      %v2382 = vmul.f32 %v2344, %v2366
      %v2383 = vmul.f32 %v2346, %v2367
      %v2384 = vmul.f32 %v2348, %v2368
      %v2385 = vmul.f32 %v2350, %v2369
      %v2386 = vmul.f32 %v2352, %v2370
      %v2387 = vmul.f32 %v2354, %v2371
      %v2388 = vmul.f32 %v2356, %v2372
      %v2389 = vsel %vm2373, %v2365, %v2381
      %v2390 = vsel %vm2374, %v2366, %v2382
      %v2391 = vsel %vm2375, %v2367, %v2383
      %v2392 = vsel %vm2376, %v2368, %v2384
      %v2393 = vsel %vm2377, %v2369, %v2385
      %v2394 = vsel %vm2378, %v2370, %v2386
      %v2395 = vsel %vm2379, %v2371, %v2387
      %v2396 = vsel %vm2380, %v2372, %v2388
      %v2397 = vmul.f32 %v2302, %v2389
      %v2398 = vmul.f32 %v2305, %v2390
      %v2399 = vmul.f32 %v2308, %v2391
      %v2400 = vmul.f32 %v2311, %v2392
      %v2401 = vmul.f32 %v2314, %v2393
      %v2402 = vmul.f32 %v2317, %v2394
      %v2403 = vmul.f32 %v2320, %v2395
      %v2404 = vmul.f32 %v2323, %v2396
      %v2405 = vld [vmem:[%s10] sm:$0xff]
      %v2406 = vld [vmem:[%s10 + $0x8] sm:$0xff]
      %v2407 = vld [vmem:[%s10 + $0x10] sm:$0xff]
      %v2408 = vld [vmem:[%s10 + $0x18] sm:$0xff]
      %v2410 = vsel %vm1980, %v2397, 0
      %v2413 = vsel %vm1980, %v2398, 0
      %v2416 = vsel %vm1980, %v2399, 0
      %v2419 = vsel %vm1980, %v2400, 0
      %v2422 = vsel %vm1980, %v2401, 0
      %v2425 = vsel %vm1980, %v2402, 0
      %v2428 = vsel %vm1980, %v2403, 0
      %v2431 = vsel %vm1980, %v2404, 0
      %2433 = vmatpush.msra.mxu0 0.0
      %2434 = vmatpush.msra.mxu0 0.0
      %2435 = vmatpush.msra.mxu0 0.0
      %2436 = vmatpush.msra.mxu0 0.0
      %2437 = vmatpush.msra.mxu0 0.0
      %2438 = vmatpush.msra.mxu0 0.0
      %2439 = vmatpush.msra.mxu0 0.0
      %2440 = vmatpush.msra.mxu0 0.0
      %2441 = vmatpush.msra.mxu0 0.0
      %2442 = vmatpush.msra.mxu0 0.0
      %2443 = vmatpush.msra.mxu0 0.0
      %2444 = vmatpush.msra.mxu0 0.0
      %2445 = vmatpush.msra.mxu0 %v2408
      %2446 = vmatpush.msra.mxu0 %v2407
      %2447 = vmatpush.msra.mxu0 %v2406
      %2448 = vmatpush.msra.mxu0 %v2405
      %2449 = vmatmul.f32.gmra.mxu0 %v2410
      %v2450 = vpop.f32.mrf.mxu0
      %v2451 = vadd.f32 0.0, %v2450
      %2452 = vmatmul.f32.gmra.mxu0 %v2413
      %v2453 = vpop.f32.mrf.mxu0
      %v2454 = vadd.f32 0.0, %v2453
      %2455 = vmatmul.f32.gmra.mxu0 %v2416
      %v2456 = vpop.f32.mrf.mxu0
      %v2457 = vadd.f32 0.0, %v2456
      %2458 = vmatmul.f32.gmra.mxu0 %v2419
      %v2459 = vpop.f32.mrf.mxu0
      %v2460 = vadd.f32 0.0, %v2459
      %2461 = vmatmul.f32.gmra.mxu0 %v2422
      %v2462 = vpop.f32.mrf.mxu0
      %v2463 = vadd.f32 0.0, %v2462
      %2464 = vmatmul.f32.gmra.mxu0 %v2425
      %v2465 = vpop.f32.mrf.mxu0
      %v2466 = vadd.f32 0.0, %v2465
      %2467 = vmatmul.f32.gmra.mxu0 %v2428
      %v2468 = vpop.f32.mrf.mxu0
      %v2469 = vadd.f32 0.0, %v2468
      %2470 = vmatmul.f32.gmra.mxu0 %v2431
      %v2471 = vpop.f32.mrf.mxu0
      %v2472 = vadd.f32 0.0, %v2471
      %2473 = vdwg.mxu0
      %v2474 = vadd.f32 %v2046, %v2451
      %v2475 = vadd.f32 %v2047, %v2454
      %v2476 = vadd.f32 %v2048, %v2457
      %v2477 = vadd.f32 %v2049, %v2460
      %v2478 = vadd.f32 %v2050, %v2463
      %v2479 = vadd.f32 %v2051, %v2466
      %v2480 = vadd.f32 %v2052, %v2469
      %v2481 = vadd.f32 %v2053, %v2472
      %v2482 = vld [vmem:[%s11] sm:$0x1]
      %v2484 = vperm.slane %v2482, 0
      %v2486 = vadd.f32 %v2474, %v2484
      %v2487 = vadd.f32 %v2475, %v2484
      %v2488 = vadd.f32 %v2476, %v2484
      %v2489 = vadd.f32 %v2477, %v2484
      %v2490 = vadd.f32 %v2478, %v2484
      %v2491 = vadd.f32 %v2479, %v2484
      %v2492 = vadd.f32 %v2480, %v2484
      %v2493 = vadd.f32 %v2481, %v2484
      %s2494 = scalar_lea.vmem %s1, 1
      %v2495 = vld [vmem:[%s2494] sm:$0x1]
      %s2496 = scalar_lea.vmem %s2, 1
      %v2497 = vld [vmem:[%s2496] sm:$0x1]
      %v2498 = vsel %vm424, %v2486, 0.0
      %2499 = vadd.xlane.f32.xlu0 %v2498
      %v2500 = vpop.xlane.xlu0 %2499
      %v2501 = vsel %vm424, %v2487, 0.0
      %2502 = vadd.xlane.f32.xlu0 %v2501
      %v2503 = vpop.xlane.xlu0 %2502
      %v2504 = vsel %vm424, %v2488, 0.0
      %2505 = vadd.xlane.f32.xlu0 %v2504
      %v2506 = vpop.xlane.xlu0 %2505
      %v2507 = vsel %vm424, %v2489, 0.0
      %2508 = vadd.xlane.f32.xlu0 %v2507
      %v2509 = vpop.xlane.xlu0 %2508
      %v2510 = vsel %vm424, %v2490, 0.0
      %2511 = vadd.xlane.f32.xlu0 %v2510
      %v2512 = vpop.xlane.xlu0 %2511
      %v2513 = vsel %vm424, %v2491, 0.0
      %2514 = vadd.xlane.f32.xlu0 %v2513
      %v2515 = vpop.xlane.xlu0 %2514
      %v2516 = vsel %vm424, %v2492, 0.0
      %2517 = vadd.xlane.f32.xlu0 %v2516
      %v2518 = vpop.xlane.xlu0 %2517
      %v2519 = vsel %vm424, %v2493, 0.0
      %2520 = vadd.xlane.f32.xlu0 %v2519
      %v2521 = vpop.xlane.xlu0 %2520
      %v2522 = vmul.f32 %v2500, %v455
      %v2523 = vmul.f32 %v2503, %v455
      %v2524 = vmul.f32 %v2506, %v455
      %v2525 = vmul.f32 %v2509, %v455
      %v2526 = vmul.f32 %v2512, %v455
      %v2527 = vmul.f32 %v2515, %v455
      %v2528 = vmul.f32 %v2518, %v455
      %v2529 = vmul.f32 %v2521, %v455
      %v2530 = vsub.f32 %v2486, %v2522
      %v2531 = vsub.f32 %v2487, %v2523
      %v2532 = vsub.f32 %v2488, %v2524
      %v2533 = vsub.f32 %v2489, %v2525
      %v2534 = vsub.f32 %v2490, %v2526
      %v2535 = vsub.f32 %v2491, %v2527
      %v2536 = vsub.f32 %v2492, %v2528
      %v2537 = vsub.f32 %v2493, %v2529
      %v2538 = vmul.f32 %v2530, %v2530
      %v2539 = vmul.f32 %v2531, %v2531
      %v2540 = vmul.f32 %v2532, %v2532
      %v2541 = vmul.f32 %v2533, %v2533
      %v2542 = vmul.f32 %v2534, %v2534
      %v2543 = vmul.f32 %v2535, %v2535
      %v2544 = vmul.f32 %v2536, %v2536
      %v2545 = vmul.f32 %v2537, %v2537
      %v2546 = vsel %vm424, %v2538, 0.0
      %2547 = vadd.xlane.f32.xlu0 %v2546
      %v2548 = vpop.xlane.xlu0 %2547
      %v2549 = vsel %vm424, %v2539, 0.0
      %2550 = vadd.xlane.f32.xlu0 %v2549
      %v2551 = vpop.xlane.xlu0 %2550
      %v2552 = vsel %vm424, %v2540, 0.0
      %2553 = vadd.xlane.f32.xlu0 %v2552
      %v2554 = vpop.xlane.xlu0 %2553
      %v2555 = vsel %vm424, %v2541, 0.0
      %2556 = vadd.xlane.f32.xlu0 %v2555
      %v2557 = vpop.xlane.xlu0 %2556
      %v2558 = vsel %vm424, %v2542, 0.0
      %2559 = vadd.xlane.f32.xlu0 %v2558
      %v2560 = vpop.xlane.xlu0 %2559
      %v2561 = vsel %vm424, %v2543, 0.0
      %2562 = vadd.xlane.f32.xlu0 %v2561
      %v2563 = vpop.xlane.xlu0 %2562
      %v2564 = vsel %vm424, %v2544, 0.0
      %2565 = vadd.xlane.f32.xlu0 %v2564
      %v2566 = vpop.xlane.xlu0 %2565
      %v2567 = vsel %vm424, %v2545, 0.0
      %2568 = vadd.xlane.f32.xlu0 %v2567
      %v2569 = vpop.xlane.xlu0 %2568
      %v2570 = vmul.f32 %v2548, %v455
      %v2571 = vmul.f32 %v2551, %v455
      %v2572 = vmul.f32 %v2554, %v455
      %v2573 = vmul.f32 %v2557, %v455
      %v2574 = vmul.f32 %v2560, %v455
      %v2575 = vmul.f32 %v2563, %v455
      %v2576 = vmul.f32 %v2566, %v455
      %v2577 = vmul.f32 %v2569, %v455
      %v2578 = vadd.f32 %v2570, 1e-05
      %v2579 = vadd.f32 %v2571, 1e-05
      %v2580 = vadd.f32 %v2572, 1e-05
      %v2581 = vadd.f32 %v2573, 1e-05
      %v2582 = vadd.f32 %v2574, 1e-05
      %v2583 = vadd.f32 %v2575, 1e-05
      %v2584 = vadd.f32 %v2576, 1e-05
      %v2585 = vadd.f32 %v2577, 1e-05
      %v2586 = vrsqrt.pop %v2578
      %v2587 = vmul.f32 %v2586, %v2578
      %v2588 = vmul.f32 %v2587, %v2586
      %v2589 = vmul.f32 0.5, %v2588
      %v2590 = vsub.f32 1.5, %v2589
      %v2591 = vmul.f32 %v2586, %v2590
      %vm2592 = vweird.f32 %v2578
      %vm2593 = vweird.f32 %v2586
      %vm2594 = vmor %vm2592, %vm2593
      %v2595 = vsel %vm2594, %v2586, %v2591
      %v2596 = vrsqrt.pop %v2579
      %v2597 = vmul.f32 %v2596, %v2579
      %v2598 = vmul.f32 %v2597, %v2596
      %v2599 = vmul.f32 0.5, %v2598
      %v2600 = vsub.f32 1.5, %v2599
      %v2601 = vmul.f32 %v2596, %v2600
      %vm2602 = vweird.f32 %v2579
      %vm2603 = vweird.f32 %v2596
      %vm2604 = vmor %vm2602, %vm2603
      %v2605 = vsel %vm2604, %v2596, %v2601
      %v2606 = vrsqrt.pop %v2580
      %v2607 = vmul.f32 %v2606, %v2580
      %v2608 = vmul.f32 %v2607, %v2606
      %v2609 = vmul.f32 0.5, %v2608
      %v2610 = vsub.f32 1.5, %v2609
      %v2611 = vmul.f32 %v2606, %v2610
      %vm2612 = vweird.f32 %v2580
      %vm2613 = vweird.f32 %v2606
      %vm2614 = vmor %vm2612, %vm2613
      %v2615 = vsel %vm2614, %v2606, %v2611
      %v2616 = vrsqrt.pop %v2581
      %v2617 = vmul.f32 %v2616, %v2581
      %v2618 = vmul.f32 %v2617, %v2616
      %v2619 = vmul.f32 0.5, %v2618
      %v2620 = vsub.f32 1.5, %v2619
      %v2621 = vmul.f32 %v2616, %v2620
      %vm2622 = vweird.f32 %v2581
      %vm2623 = vweird.f32 %v2616
      %vm2624 = vmor %vm2622, %vm2623
      %v2625 = vsel %vm2624, %v2616, %v2621
      %v2626 = vrsqrt.pop %v2582
      %v2627 = vmul.f32 %v2626, %v2582
      %v2628 = vmul.f32 %v2627, %v2626
      %v2629 = vmul.f32 0.5, %v2628
      %v2630 = vsub.f32 1.5, %v2629
      %v2631 = vmul.f32 %v2626, %v2630
      %vm2632 = vweird.f32 %v2582
      %vm2633 = vweird.f32 %v2626
      %vm2634 = vmor %vm2632, %vm2633
      %v2635 = vsel %vm2634, %v2626, %v2631
      %v2636 = vrsqrt.pop %v2583
      %v2637 = vmul.f32 %v2636, %v2583
      %v2638 = vmul.f32 %v2637, %v2636
      %v2639 = vmul.f32 0.5, %v2638
      %v2640 = vsub.f32 1.5, %v2639
      %v2641 = vmul.f32 %v2636, %v2640
      %vm2642 = vweird.f32 %v2583
      %vm2643 = vweird.f32 %v2636
      %vm2644 = vmor %vm2642, %vm2643
      %v2645 = vsel %vm2644, %v2636, %v2641
      %v2646 = vrsqrt.pop %v2584
      %v2647 = vmul.f32 %v2646, %v2584
      %v2648 = vmul.f32 %v2647, %v2646
      %v2649 = vmul.f32 0.5, %v2648
      %v2650 = vsub.f32 1.5, %v2649
      %v2651 = vmul.f32 %v2646, %v2650
      %vm2652 = vweird.f32 %v2584
      %vm2653 = vweird.f32 %v2646
      %vm2654 = vmor %vm2652, %vm2653
      %v2655 = vsel %vm2654, %v2646, %v2651
      %v2656 = vrsqrt.pop %v2585
      %v2657 = vmul.f32 %v2656, %v2585
      %v2658 = vmul.f32 %v2657, %v2656
      %v2659 = vmul.f32 0.5, %v2658
      %v2660 = vsub.f32 1.5, %v2659
      %v2661 = vmul.f32 %v2656, %v2660
      %vm2662 = vweird.f32 %v2585
      %vm2663 = vweird.f32 %v2656
      %vm2664 = vmor %vm2662, %vm2663
      %v2665 = vsel %vm2664, %v2656, %v2661
      %v2666 = vmul.f32 %v2530, %v2595
      %v2667 = vmul.f32 %v2531, %v2605
      %v2668 = vmul.f32 %v2532, %v2615
      %v2669 = vmul.f32 %v2533, %v2625
      %v2670 = vmul.f32 %v2534, %v2635
      %v2671 = vmul.f32 %v2535, %v2645
      %v2672 = vmul.f32 %v2536, %v2655
      %v2673 = vmul.f32 %v2537, %v2665
      %v2675 = vperm.slane %v2495, 0
      %v2677 = vmul.f32 %v2666, %v2675
      %v2678 = vmul.f32 %v2667, %v2675
      %v2679 = vmul.f32 %v2668, %v2675
      %v2680 = vmul.f32 %v2669, %v2675
      %v2681 = vmul.f32 %v2670, %v2675
      %v2682 = vmul.f32 %v2671, %v2675
      %v2683 = vmul.f32 %v2672, %v2675
      %v2684 = vmul.f32 %v2673, %v2675
      %v2686 = vperm.slane %v2497, 0
      %v2688 = vadd.f32 %v2677, %v2686
      %v2689 = vadd.f32 %v2678, %v2686
      %v2690 = vadd.f32 %v2679, %v2686
      %v2691 = vadd.f32 %v2680, %v2686
      %v2692 = vadd.f32 %v2681, %v2686
      %v2693 = vadd.f32 %v2682, %v2686
      %v2694 = vadd.f32 %v2683, %v2686
      %v2695 = vadd.f32 %v2684, %v2686
      %s2696 = scalar_lea.vmem %s3, 16
      %v2697 = vld [vmem:[%s2696] sm:$0xff]
      %v2698 = vld [vmem:[%s2696 + $0x8] sm:$0xff]
      %v2700 = vsel %vm424, %v2688, 0
      %v2703 = vsel %vm424, %v2689, 0
      %v2706 = vsel %vm424, %v2690, 0
      %v2709 = vsel %vm424, %v2691, 0
      %v2712 = vsel %vm424, %v2692, 0
      %v2715 = vsel %vm424, %v2693, 0
      %v2718 = vsel %vm424, %v2694, 0
      %v2721 = vsel %vm424, %v2695, 0
      %2723 = vmatpush.msra.mxu0 0.0
      %2724 = vmatpush.msra.mxu0 0.0
      %2725 = vmatpush.msra.mxu0 0.0
      %2726 = vmatpush.msra.mxu0 0.0
      %2727 = vmatpush.msra.mxu0 0.0
      %2728 = vmatpush.msra.mxu0 0.0
      %2729 = vmatpush.msra.mxu0 0.0
      %2730 = vmatpush.msra.mxu0 0.0
      %2731 = vmatpush.msra.mxu0 0.0
      %2732 = vmatpush.msra.mxu0 0.0
      %2733 = vmatpush.msra.mxu0 0.0
      %2734 = vmatpush.msra.mxu0 0.0
      %2735 = vmatpush.msra.mxu0 0.0
      %2736 = vmatpush.msra.mxu0 0.0
      %2737 = vmatpush.msra.mxu0 %v2698
      %2738 = vmatpush.msra.mxu0 %v2697
      %2739 = vmatmul.f32.gmra.mxu0 %v2700
      %v2740 = vpop.f32.mrf.mxu0
      %v2741 = vadd.f32 0.0, %v2740
      %2742 = vmatmul.f32.gmra.mxu0 %v2703
      %v2743 = vpop.f32.mrf.mxu0
      %v2744 = vadd.f32 0.0, %v2743
      %2745 = vmatmul.f32.gmra.mxu0 %v2706
      %v2746 = vpop.f32.mrf.mxu0
      %v2747 = vadd.f32 0.0, %v2746
      %2748 = vmatmul.f32.gmra.mxu0 %v2709
      %v2749 = vpop.f32.mrf.mxu0
      %v2750 = vadd.f32 0.0, %v2749
      %2751 = vmatmul.f32.gmra.mxu0 %v2712
      %v2752 = vpop.f32.mrf.mxu0
      %v2753 = vadd.f32 0.0, %v2752
      %2754 = vmatmul.f32.gmra.mxu0 %v2715
      %v2755 = vpop.f32.mrf.mxu0
      %v2756 = vadd.f32 0.0, %v2755
      %2757 = vmatmul.f32.gmra.mxu0 %v2718
      %v2758 = vpop.f32.mrf.mxu0
      %v2759 = vadd.f32 0.0, %v2758
      %2760 = vmatmul.f32.gmra.mxu0 %v2721
      %v2761 = vpop.f32.mrf.mxu0
      %v2762 = vadd.f32 0.0, %v2761
      %2763 = vdwg.mxu0
      %2772 = vrot.lane.b32.xlu0 %v2741, 96
      %v2773 = vpop.permute.xlu0 %2772
      %2774 = vrot.lane.b32.xlu0 %v2744, 96
      %v2775 = vpop.permute.xlu0 %2774
      %2776 = vrot.lane.b32.xlu0 %v2747, 96
      %v2777 = vpop.permute.xlu0 %2776
      %2778 = vrot.lane.b32.xlu0 %v2750, 96
      %v2779 = vpop.permute.xlu0 %2778
      %2780 = vrot.lane.b32.xlu0 %v2753, 96
      %v2781 = vpop.permute.xlu0 %2780
      %2782 = vrot.lane.b32.xlu0 %v2756, 96
      %v2783 = vpop.permute.xlu0 %2782
      %2784 = vrot.lane.b32.xlu0 %v2759, 96
      %v2785 = vpop.permute.xlu0 %2784
      %2786 = vrot.lane.b32.xlu0 %v2762, 96
      %v2787 = vpop.permute.xlu0 %2786
      %v2788 = vsel %vm721, %v2741, 0
      %v2790 = vsel %vm721, %v2744, 0
      %v2792 = vsel %vm721, %v2747, 0
      %v2794 = vsel %vm721, %v2750, 0
      %v2796 = vsel %vm721, %v2753, 0
      %v2798 = vsel %vm721, %v2756, 0
      %v2800 = vsel %vm721, %v2759, 0
      %v2802 = vsel %vm721, %v2762, 0
      %v2804 = vsel %vm721, %v2773, 0
      %v2806 = vsel %vm721, %v2775, 0
      %v2808 = vsel %vm721, %v2777, 0
      %v2810 = vsel %vm721, %v2779, 0
      %v2812 = vsel %vm721, %v2781, 0
      %v2814 = vsel %vm721, %v2783, 0
      %v2816 = vsel %vm721, %v2785, 0
      %v2818 = vsel %vm721, %v2787, 0
      %2820 = vmatpush.xpose.msra.mxu0 0.0
      %2821 = vmatpush.xpose.msra.mxu0 0.0
      %2822 = vmatpush.xpose.msra.mxu0 0.0
      %2823 = vmatpush.xpose.msra.mxu0 0.0
      %2824 = vmatpush.xpose.msra.mxu0 0.0
      %2825 = vmatpush.xpose.msra.mxu0 0.0
      %2826 = vmatpush.xpose.msra.mxu0 0.0
      %2827 = vmatpush.xpose.msra.mxu0 0.0
      %2828 = vmatpush.xpose.msra.mxu0 %v2818
      %2829 = vmatpush.xpose.msra.mxu0 %v2816
      %2830 = vmatpush.xpose.msra.mxu0 %v2814
      %2831 = vmatpush.xpose.msra.mxu0 %v2812
      %2832 = vmatpush.xpose.msra.mxu0 %v2810
      %2833 = vmatpush.xpose.msra.mxu0 %v2808
      %2834 = vmatpush.xpose.msra.mxu0 %v2806
      %2835 = vmatpush.xpose.msra.mxu0 %v2804
      %2836 = vmatmul.f32.gmra.mxu0 %v2788
      %v2837 = vpop.f32.mrf.mxu0
      %v2838 = vadd.f32 0.0, %v2837
      %2839 = vmatmul.f32.gmra.mxu0 %v2790
      %v2840 = vpop.f32.mrf.mxu0
      %v2841 = vadd.f32 0.0, %v2840
      %2842 = vmatmul.f32.gmra.mxu0 %v2792
      %v2843 = vpop.f32.mrf.mxu0
      %v2844 = vadd.f32 0.0, %v2843
      %2845 = vmatmul.f32.gmra.mxu0 %v2794
      %v2846 = vpop.f32.mrf.mxu0
      %v2847 = vadd.f32 0.0, %v2846
      %2848 = vmatmul.f32.gmra.mxu0 %v2796
      %v2849 = vpop.f32.mrf.mxu0
      %v2850 = vadd.f32 0.0, %v2849
      %2851 = vmatmul.f32.gmra.mxu0 %v2798
      %v2852 = vpop.f32.mrf.mxu0
      %v2853 = vadd.f32 0.0, %v2852
      %2854 = vmatmul.f32.gmra.mxu0 %v2800
      %v2855 = vpop.f32.mrf.mxu0
      %v2856 = vadd.f32 0.0, %v2855
      %2857 = vmatmul.f32.gmra.mxu0 %v2802
      %v2858 = vpop.f32.mrf.mxu0
      %v2859 = vadd.f32 0.0, %v2858
      %2860 = vdwg.mxu0
      %v2861 = vmul.f32 %v2838, 0.35355338
      %v2862 = vmul.f32 %v2841, 0.35355338
      %v2863 = vmul.f32 %v2844, 0.35355338
      %v2864 = vmul.f32 %v2847, 0.35355338
      %v2865 = vmul.f32 %v2850, 0.35355338
      %v2866 = vmul.f32 %v2853, 0.35355338
      %v2867 = vmul.f32 %v2856, 0.35355338
      %v2868 = vmul.f32 %v2859, 0.35355338
      %v2869 = vsel %vm803, %v2861, -inf
      %2870 = vmax.xlane.f32.xlu0 %v2869
      %v2871 = vpop.xlane.xlu0 %2870
      %v2872 = vsel %vm803, %v2862, -inf
      %2873 = vmax.xlane.f32.xlu0 %v2872
      %v2874 = vpop.xlane.xlu0 %2873
      %v2875 = vsel %vm803, %v2863, -inf
      %2876 = vmax.xlane.f32.xlu0 %v2875
      %v2877 = vpop.xlane.xlu0 %2876
      %v2878 = vsel %vm803, %v2864, -inf
      %2879 = vmax.xlane.f32.xlu0 %v2878
      %v2880 = vpop.xlane.xlu0 %2879
      %v2881 = vsel %vm803, %v2865, -inf
      %2882 = vmax.xlane.f32.xlu0 %v2881
      %v2883 = vpop.xlane.xlu0 %2882
      %v2884 = vsel %vm803, %v2866, -inf
      %2885 = vmax.xlane.f32.xlu0 %v2884
      %v2886 = vpop.xlane.xlu0 %2885
      %v2887 = vsel %vm803, %v2867, -inf
      %2888 = vmax.xlane.f32.xlu0 %v2887
      %v2889 = vpop.xlane.xlu0 %2888
      %v2890 = vsel %vm803, %v2868, -inf
      %2891 = vmax.xlane.f32.xlu0 %v2890
      %v2892 = vpop.xlane.xlu0 %2891
      %v2893 = vsub.f32 %v2861, %v2871
      %v2894 = vsub.f32 %v2862, %v2874
      %v2895 = vsub.f32 %v2863, %v2877
      %v2896 = vsub.f32 %v2864, %v2880
      %v2897 = vsub.f32 %v2865, %v2883
      %v2898 = vsub.f32 %v2866, %v2886
      %v2899 = vsub.f32 %v2867, %v2889
      %v2900 = vsub.f32 %v2868, %v2892
      %v2901 = vmul.f32 %v2893, 1.442695
      %v2902 = vpow.pop %v2901
      %v2903 = vmul.f32 %v2894, 1.442695
      %v2904 = vpow.pop %v2903
      %v2905 = vmul.f32 %v2895, 1.442695
      %v2906 = vpow.pop %v2905
      %v2907 = vmul.f32 %v2896, 1.442695
      %v2908 = vpow.pop %v2907
      %v2909 = vmul.f32 %v2897, 1.442695
      %v2910 = vpow.pop %v2909
      %v2911 = vmul.f32 %v2898, 1.442695
      %v2912 = vpow.pop %v2911
      %v2913 = vmul.f32 %v2899, 1.442695
      %v2914 = vpow.pop %v2913
      %v2915 = vmul.f32 %v2900, 1.442695
      %v2916 = vpow.pop %v2915
      %v2917 = vsel %vm803, %v2902, 0.0
      %2918 = vadd.xlane.f32.xlu0 %v2917
      %v2919 = vpop.xlane.xlu0 %2918
      %v2920 = vsel %vm803, %v2904, 0.0
      %2921 = vadd.xlane.f32.xlu0 %v2920
      %v2922 = vpop.xlane.xlu0 %2921
      %v2923 = vsel %vm803, %v2906, 0.0
      %2924 = vadd.xlane.f32.xlu0 %v2923
      %v2925 = vpop.xlane.xlu0 %2924
      %v2926 = vsel %vm803, %v2908, 0.0
      %2927 = vadd.xlane.f32.xlu0 %v2926
      %v2928 = vpop.xlane.xlu0 %2927
      %v2929 = vsel %vm803, %v2910, 0.0
      %2930 = vadd.xlane.f32.xlu0 %v2929
      %v2931 = vpop.xlane.xlu0 %2930
      %v2932 = vsel %vm803, %v2912, 0.0
      %2933 = vadd.xlane.f32.xlu0 %v2932
      %v2934 = vpop.xlane.xlu0 %2933
      %v2935 = vsel %vm803, %v2914, 0.0
      %2936 = vadd.xlane.f32.xlu0 %v2935
      %v2937 = vpop.xlane.xlu0 %2936
      %v2938 = vsel %vm803, %v2916, 0.0
      %2939 = vadd.xlane.f32.xlu0 %v2938
      %v2940 = vpop.xlane.xlu0 %2939
      %v2941 = vrcp.pop %v2919
      %v2942 = vrcp.pop %v2922
      %v2943 = vrcp.pop %v2925
      %v2944 = vrcp.pop %v2928
      %v2945 = vrcp.pop %v2931
      %v2946 = vrcp.pop %v2934
      %v2947 = vrcp.pop %v2937
      %v2948 = vrcp.pop %v2940
      %v2949 = vmul.f32 %v2902, %v2941
      %v2950 = vmul.f32 %v2904, %v2942
      %v2951 = vmul.f32 %v2906, %v2943
      %v2952 = vmul.f32 %v2908, %v2944
      %v2953 = vmul.f32 %v2910, %v2945
      %v2954 = vmul.f32 %v2912, %v2946
      %v2955 = vmul.f32 %v2914, %v2947
      %v2956 = vmul.f32 %v2916, %v2948
      %2957 = vrot.lane.b32.xlu0 %v2741, 64
      %v2958 = vpop.permute.xlu0 %2957
      %2959 = vrot.lane.b32.xlu0 %v2744, 64
      %v2960 = vpop.permute.xlu0 %2959
      %2961 = vrot.lane.b32.xlu0 %v2747, 64
      %v2962 = vpop.permute.xlu0 %2961
      %2963 = vrot.lane.b32.xlu0 %v2750, 64
      %v2964 = vpop.permute.xlu0 %2963
      %2965 = vrot.lane.b32.xlu0 %v2753, 64
      %v2966 = vpop.permute.xlu0 %2965
      %2967 = vrot.lane.b32.xlu0 %v2756, 64
      %v2968 = vpop.permute.xlu0 %2967
      %2969 = vrot.lane.b32.xlu0 %v2759, 64
      %v2970 = vpop.permute.xlu0 %2969
      %2971 = vrot.lane.b32.xlu0 %v2762, 64
      %v2972 = vpop.permute.xlu0 %2971
      %v2982 = vsel %vm803, %v2949, 0
      %v2985 = vsel %vm803, %v2950, 0
      %v2988 = vsel %vm803, %v2951, 0
      %v2991 = vsel %vm803, %v2952, 0
      %v2994 = vsel %vm803, %v2953, 0
      %v2997 = vsel %vm803, %v2954, 0
      %v3000 = vsel %vm803, %v2955, 0
      %v3003 = vsel %vm803, %v2956, 0
      %3005 = vmatpush.msra.mxu0 0.0
      %3006 = vmatpush.msra.mxu0 0.0
      %3007 = vmatpush.msra.mxu0 0.0
      %3008 = vmatpush.msra.mxu0 0.0
      %3009 = vmatpush.msra.mxu0 0.0
      %3010 = vmatpush.msra.mxu0 0.0
      %3011 = vmatpush.msra.mxu0 0.0
      %3012 = vmatpush.msra.mxu0 0.0
      %3013 = vmatpush.msra.mxu0 %v2972
      %3014 = vmatpush.msra.mxu0 %v2970
      %3015 = vmatpush.msra.mxu0 %v2968
      %3016 = vmatpush.msra.mxu0 %v2966
      %3017 = vmatpush.msra.mxu0 %v2964
      %3018 = vmatpush.msra.mxu0 %v2962
      %3019 = vmatpush.msra.mxu0 %v2960
      %3020 = vmatpush.msra.mxu0 %v2958
      %3021 = vmatmul.f32.gmra.mxu0 %v2982
      %v3022 = vpop.f32.mrf.mxu0
      %v3023 = vadd.f32 0.0, %v3022
      %3024 = vmatmul.f32.gmra.mxu0 %v2985
      %v3025 = vpop.f32.mrf.mxu0
      %v3026 = vadd.f32 0.0, %v3025
      %3027 = vmatmul.f32.gmra.mxu0 %v2988
      %v3028 = vpop.f32.mrf.mxu0
      %v3029 = vadd.f32 0.0, %v3028
      %3030 = vmatmul.f32.gmra.mxu0 %v2991
      %v3031 = vpop.f32.mrf.mxu0
      %v3032 = vadd.f32 0.0, %v3031
      %3033 = vmatmul.f32.gmra.mxu0 %v2994
      %v3034 = vpop.f32.mrf.mxu0
      %v3035 = vadd.f32 0.0, %v3034
      %3036 = vmatmul.f32.gmra.mxu0 %v2997
      %v3037 = vpop.f32.mrf.mxu0
      %v3038 = vadd.f32 0.0, %v3037
      %3039 = vmatmul.f32.gmra.mxu0 %v3000
      %v3040 = vpop.f32.mrf.mxu0
      %v3041 = vadd.f32 0.0, %v3040
      %3042 = vmatmul.f32.gmra.mxu0 %v3003
      %v3043 = vpop.f32.mrf.mxu0
      %v3044 = vadd.f32 0.0, %v3043
      %3045 = vdwg.mxu0
      %3046 = vrot.lane.b32.xlu0 %v2741, 120
      %v3047 = vpop.permute.xlu0 %3046
      %3048 = vrot.lane.b32.xlu0 %v2744, 120
      %v3049 = vpop.permute.xlu0 %3048
      %3050 = vrot.lane.b32.xlu0 %v2747, 120
      %v3051 = vpop.permute.xlu0 %3050
      %3052 = vrot.lane.b32.xlu0 %v2750, 120
      %v3053 = vpop.permute.xlu0 %3052
      %3054 = vrot.lane.b32.xlu0 %v2753, 120
      %v3055 = vpop.permute.xlu0 %3054
      %3056 = vrot.lane.b32.xlu0 %v2756, 120
      %v3057 = vpop.permute.xlu0 %3056
      %3058 = vrot.lane.b32.xlu0 %v2759, 120
      %v3059 = vpop.permute.xlu0 %3058
      %3060 = vrot.lane.b32.xlu0 %v2762, 120
      %v3061 = vpop.permute.xlu0 %3060
      %3062 = vrot.lane.b32.xlu0 %v2741, 88
      %v3063 = vpop.permute.xlu0 %3062
      %3064 = vrot.lane.b32.xlu0 %v2744, 88
      %v3065 = vpop.permute.xlu0 %3064
      %3066 = vrot.lane.b32.xlu0 %v2747, 88
      %v3067 = vpop.permute.xlu0 %3066
      %3068 = vrot.lane.b32.xlu0 %v2750, 88
      %v3069 = vpop.permute.xlu0 %3068
      %3070 = vrot.lane.b32.xlu0 %v2753, 88
      %v3071 = vpop.permute.xlu0 %3070
      %3072 = vrot.lane.b32.xlu0 %v2756, 88
      %v3073 = vpop.permute.xlu0 %3072
      %3074 = vrot.lane.b32.xlu0 %v2759, 88
      %v3075 = vpop.permute.xlu0 %3074
      %3076 = vrot.lane.b32.xlu0 %v2762, 88
      %v3077 = vpop.permute.xlu0 %3076
      %v3078 = vsel %vm721, %v3047, 0
      %v3080 = vsel %vm721, %v3049, 0
      %v3082 = vsel %vm721, %v3051, 0
      %v3084 = vsel %vm721, %v3053, 0
      %v3086 = vsel %vm721, %v3055, 0
      %v3088 = vsel %vm721, %v3057, 0
      %v3090 = vsel %vm721, %v3059, 0
      %v3092 = vsel %vm721, %v3061, 0
      %v3094 = vsel %vm721, %v3063, 0
      %v3096 = vsel %vm721, %v3065, 0
      %v3098 = vsel %vm721, %v3067, 0
      %v3100 = vsel %vm721, %v3069, 0
      %v3102 = vsel %vm721, %v3071, 0
      %v3104 = vsel %vm721, %v3073, 0
      %v3106 = vsel %vm721, %v3075, 0
      %v3108 = vsel %vm721, %v3077, 0
      %3110 = vmatpush.xpose.msra.mxu0 0.0
      %3111 = vmatpush.xpose.msra.mxu0 0.0
      %3112 = vmatpush.xpose.msra.mxu0 0.0
      %3113 = vmatpush.xpose.msra.mxu0 0.0
      %3114 = vmatpush.xpose.msra.mxu0 0.0
      %3115 = vmatpush.xpose.msra.mxu0 0.0
      %3116 = vmatpush.xpose.msra.mxu0 0.0
      %3117 = vmatpush.xpose.msra.mxu0 0.0
      %3118 = vmatpush.xpose.msra.mxu0 %v3108
      %3119 = vmatpush.xpose.msra.mxu0 %v3106
      %3120 = vmatpush.xpose.msra.mxu0 %v3104
      %3121 = vmatpush.xpose.msra.mxu0 %v3102
      %3122 = vmatpush.xpose.msra.mxu0 %v3100
      %3123 = vmatpush.xpose.msra.mxu0 %v3098
      %3124 = vmatpush.xpose.msra.mxu0 %v3096
      %3125 = vmatpush.xpose.msra.mxu0 %v3094
      %3126 = vmatmul.f32.gmra.mxu0 %v3078
      %v3127 = vpop.f32.mrf.mxu0
      %v3128 = vadd.f32 0.0, %v3127
      %3129 = vmatmul.f32.gmra.mxu0 %v3080
      %v3130 = vpop.f32.mrf.mxu0
      %v3131 = vadd.f32 0.0, %v3130
      %3132 = vmatmul.f32.gmra.mxu0 %v3082
      %v3133 = vpop.f32.mrf.mxu0
      %v3134 = vadd.f32 0.0, %v3133
      %3135 = vmatmul.f32.gmra.mxu0 %v3084
      %v3136 = vpop.f32.mrf.mxu0
      %v3137 = vadd.f32 0.0, %v3136
      %3138 = vmatmul.f32.gmra.mxu0 %v3086
      %v3139 = vpop.f32.mrf.mxu0
      %v3140 = vadd.f32 0.0, %v3139
      %3141 = vmatmul.f32.gmra.mxu0 %v3088
      %v3142 = vpop.f32.mrf.mxu0
      %v3143 = vadd.f32 0.0, %v3142
      %3144 = vmatmul.f32.gmra.mxu0 %v3090
      %v3145 = vpop.f32.mrf.mxu0
      %v3146 = vadd.f32 0.0, %v3145
      %3147 = vmatmul.f32.gmra.mxu0 %v3092
      %v3148 = vpop.f32.mrf.mxu0
      %v3149 = vadd.f32 0.0, %v3148
      %3150 = vdwg.mxu0
      %v3151 = vmul.f32 %v3128, 0.35355338
      %v3152 = vmul.f32 %v3131, 0.35355338
      %v3153 = vmul.f32 %v3134, 0.35355338
      %v3154 = vmul.f32 %v3137, 0.35355338
      %v3155 = vmul.f32 %v3140, 0.35355338
      %v3156 = vmul.f32 %v3143, 0.35355338
      %v3157 = vmul.f32 %v3146, 0.35355338
      %v3158 = vmul.f32 %v3149, 0.35355338
      %v3159 = vsel %vm803, %v3151, -inf
      %3160 = vmax.xlane.f32.xlu0 %v3159
      %v3161 = vpop.xlane.xlu0 %3160
      %v3162 = vsel %vm803, %v3152, -inf
      %3163 = vmax.xlane.f32.xlu0 %v3162
      %v3164 = vpop.xlane.xlu0 %3163
      %v3165 = vsel %vm803, %v3153, -inf
      %3166 = vmax.xlane.f32.xlu0 %v3165
      %v3167 = vpop.xlane.xlu0 %3166
      %v3168 = vsel %vm803, %v3154, -inf
      %3169 = vmax.xlane.f32.xlu0 %v3168
      %v3170 = vpop.xlane.xlu0 %3169
      %v3171 = vsel %vm803, %v3155, -inf
      %3172 = vmax.xlane.f32.xlu0 %v3171
      %v3173 = vpop.xlane.xlu0 %3172
      %v3174 = vsel %vm803, %v3156, -inf
      %3175 = vmax.xlane.f32.xlu0 %v3174
      %v3176 = vpop.xlane.xlu0 %3175
      %v3177 = vsel %vm803, %v3157, -inf
      %3178 = vmax.xlane.f32.xlu0 %v3177
      %v3179 = vpop.xlane.xlu0 %3178
      %v3180 = vsel %vm803, %v3158, -inf
      %3181 = vmax.xlane.f32.xlu0 %v3180
      %v3182 = vpop.xlane.xlu0 %3181
      %v3183 = vsub.f32 %v3151, %v3161
      %v3184 = vsub.f32 %v3152, %v3164
      %v3185 = vsub.f32 %v3153, %v3167
      %v3186 = vsub.f32 %v3154, %v3170
      %v3187 = vsub.f32 %v3155, %v3173
      %v3188 = vsub.f32 %v3156, %v3176
      %v3189 = vsub.f32 %v3157, %v3179
      %v3190 = vsub.f32 %v3158, %v3182
      %v3191 = vmul.f32 %v3183, 1.442695
      %v3192 = vpow.pop %v3191
      %v3193 = vmul.f32 %v3184, 1.442695
      %v3194 = vpow.pop %v3193
      %v3195 = vmul.f32 %v3185, 1.442695
      %v3196 = vpow.pop %v3195
      %v3197 = vmul.f32 %v3186, 1.442695
      %v3198 = vpow.pop %v3197
      %v3199 = vmul.f32 %v3187, 1.442695
      %v3200 = vpow.pop %v3199
      %v3201 = vmul.f32 %v3188, 1.442695
      %v3202 = vpow.pop %v3201
      %v3203 = vmul.f32 %v3189, 1.442695
      %v3204 = vpow.pop %v3203
      %v3205 = vmul.f32 %v3190, 1.442695
      %v3206 = vpow.pop %v3205
      %v3207 = vsel %vm803, %v3192, 0.0
      %3208 = vadd.xlane.f32.xlu0 %v3207
      %v3209 = vpop.xlane.xlu0 %3208
      %v3210 = vsel %vm803, %v3194, 0.0
      %3211 = vadd.xlane.f32.xlu0 %v3210
      %v3212 = vpop.xlane.xlu0 %3211
      %v3213 = vsel %vm803, %v3196, 0.0
      %3214 = vadd.xlane.f32.xlu0 %v3213
      %v3215 = vpop.xlane.xlu0 %3214
      %v3216 = vsel %vm803, %v3198, 0.0
      %3217 = vadd.xlane.f32.xlu0 %v3216
      %v3218 = vpop.xlane.xlu0 %3217
      %v3219 = vsel %vm803, %v3200, 0.0
      %3220 = vadd.xlane.f32.xlu0 %v3219
      %v3221 = vpop.xlane.xlu0 %3220
      %v3222 = vsel %vm803, %v3202, 0.0
      %3223 = vadd.xlane.f32.xlu0 %v3222
      %v3224 = vpop.xlane.xlu0 %3223
      %v3225 = vsel %vm803, %v3204, 0.0
      %3226 = vadd.xlane.f32.xlu0 %v3225
      %v3227 = vpop.xlane.xlu0 %3226
      %v3228 = vsel %vm803, %v3206, 0.0
      %3229 = vadd.xlane.f32.xlu0 %v3228
      %v3230 = vpop.xlane.xlu0 %3229
      %v3231 = vrcp.pop %v3209
      %v3232 = vrcp.pop %v3212
      %v3233 = vrcp.pop %v3215
      %v3234 = vrcp.pop %v3218
      %v3235 = vrcp.pop %v3221
      %v3236 = vrcp.pop %v3224
      %v3237 = vrcp.pop %v3227
      %v3238 = vrcp.pop %v3230
      %v3239 = vmul.f32 %v3192, %v3231
      %v3240 = vmul.f32 %v3194, %v3232
      %v3241 = vmul.f32 %v3196, %v3233
      %v3242 = vmul.f32 %v3198, %v3234
      %v3243 = vmul.f32 %v3200, %v3235
      %v3244 = vmul.f32 %v3202, %v3236
      %v3245 = vmul.f32 %v3204, %v3237
      %v3246 = vmul.f32 %v3206, %v3238
      %3247 = vrot.lane.b32.xlu0 %v2741, 56
      %v3248 = vpop.permute.xlu0 %3247
      %3249 = vrot.lane.b32.xlu0 %v2744, 56
      %v3250 = vpop.permute.xlu0 %3249
      %3251 = vrot.lane.b32.xlu0 %v2747, 56
      %v3252 = vpop.permute.xlu0 %3251
      %3253 = vrot.lane.b32.xlu0 %v2750, 56
      %v3254 = vpop.permute.xlu0 %3253
      %3255 = vrot.lane.b32.xlu0 %v2753, 56
      %v3256 = vpop.permute.xlu0 %3255
      %3257 = vrot.lane.b32.xlu0 %v2756, 56
      %v3258 = vpop.permute.xlu0 %3257
      %3259 = vrot.lane.b32.xlu0 %v2759, 56
      %v3260 = vpop.permute.xlu0 %3259
      %3261 = vrot.lane.b32.xlu0 %v2762, 56
      %v3262 = vpop.permute.xlu0 %3261
      %v3272 = vsel %vm803, %v3239, 0
      %v3275 = vsel %vm803, %v3240, 0
      %v3278 = vsel %vm803, %v3241, 0
      %v3281 = vsel %vm803, %v3242, 0
      %v3284 = vsel %vm803, %v3243, 0
      %v3287 = vsel %vm803, %v3244, 0
      %v3290 = vsel %vm803, %v3245, 0
      %v3293 = vsel %vm803, %v3246, 0
      %3295 = vmatpush.msra.mxu0 0.0
      %3296 = vmatpush.msra.mxu0 0.0
      %3297 = vmatpush.msra.mxu0 0.0
      %3298 = vmatpush.msra.mxu0 0.0
      %3299 = vmatpush.msra.mxu0 0.0
      %3300 = vmatpush.msra.mxu0 0.0
      %3301 = vmatpush.msra.mxu0 0.0
      %3302 = vmatpush.msra.mxu0 0.0
      %3303 = vmatpush.msra.mxu0 %v3262
      %3304 = vmatpush.msra.mxu0 %v3260
      %3305 = vmatpush.msra.mxu0 %v3258
      %3306 = vmatpush.msra.mxu0 %v3256
      %3307 = vmatpush.msra.mxu0 %v3254
      %3308 = vmatpush.msra.mxu0 %v3252
      %3309 = vmatpush.msra.mxu0 %v3250
      %3310 = vmatpush.msra.mxu0 %v3248
      %3311 = vmatmul.f32.gmra.mxu0 %v3272
      %v3312 = vpop.f32.mrf.mxu0
      %v3313 = vadd.f32 0.0, %v3312
      %3314 = vmatmul.f32.gmra.mxu0 %v3275
      %v3315 = vpop.f32.mrf.mxu0
      %v3316 = vadd.f32 0.0, %v3315
      %3317 = vmatmul.f32.gmra.mxu0 %v3278
      %v3318 = vpop.f32.mrf.mxu0
      %v3319 = vadd.f32 0.0, %v3318
      %3320 = vmatmul.f32.gmra.mxu0 %v3281
      %v3321 = vpop.f32.mrf.mxu0
      %v3322 = vadd.f32 0.0, %v3321
      %3323 = vmatmul.f32.gmra.mxu0 %v3284
      %v3324 = vpop.f32.mrf.mxu0
      %v3325 = vadd.f32 0.0, %v3324
      %3326 = vmatmul.f32.gmra.mxu0 %v3287
      %v3327 = vpop.f32.mrf.mxu0
      %v3328 = vadd.f32 0.0, %v3327
      %3329 = vmatmul.f32.gmra.mxu0 %v3290
      %v3330 = vpop.f32.mrf.mxu0
      %v3331 = vadd.f32 0.0, %v3330
      %3332 = vmatmul.f32.gmra.mxu0 %v3293
      %v3333 = vpop.f32.mrf.mxu0
      %v3334 = vadd.f32 0.0, %v3333
      %3335 = vdwg.mxu0
      %3336 = vrot.lane.b32.xlu0 %v2741, 112
      %v3337 = vpop.permute.xlu0 %3336
      %3338 = vrot.lane.b32.xlu0 %v2744, 112
      %v3339 = vpop.permute.xlu0 %3338
      %3340 = vrot.lane.b32.xlu0 %v2747, 112
      %v3341 = vpop.permute.xlu0 %3340
      %3342 = vrot.lane.b32.xlu0 %v2750, 112
      %v3343 = vpop.permute.xlu0 %3342
      %3344 = vrot.lane.b32.xlu0 %v2753, 112
      %v3345 = vpop.permute.xlu0 %3344
      %3346 = vrot.lane.b32.xlu0 %v2756, 112
      %v3347 = vpop.permute.xlu0 %3346
      %3348 = vrot.lane.b32.xlu0 %v2759, 112
      %v3349 = vpop.permute.xlu0 %3348
      %3350 = vrot.lane.b32.xlu0 %v2762, 112
      %v3351 = vpop.permute.xlu0 %3350
      %3352 = vrot.lane.b32.xlu0 %v2741, 80
      %v3353 = vpop.permute.xlu0 %3352
      %3354 = vrot.lane.b32.xlu0 %v2744, 80
      %v3355 = vpop.permute.xlu0 %3354
      %3356 = vrot.lane.b32.xlu0 %v2747, 80
      %v3357 = vpop.permute.xlu0 %3356
      %3358 = vrot.lane.b32.xlu0 %v2750, 80
      %v3359 = vpop.permute.xlu0 %3358
      %3360 = vrot.lane.b32.xlu0 %v2753, 80
      %v3361 = vpop.permute.xlu0 %3360
      %3362 = vrot.lane.b32.xlu0 %v2756, 80
      %v3363 = vpop.permute.xlu0 %3362
      %3364 = vrot.lane.b32.xlu0 %v2759, 80
      %v3365 = vpop.permute.xlu0 %3364
      %3366 = vrot.lane.b32.xlu0 %v2762, 80
      %v3367 = vpop.permute.xlu0 %3366
      %v3368 = vsel %vm721, %v3337, 0
      %v3370 = vsel %vm721, %v3339, 0
      %v3372 = vsel %vm721, %v3341, 0
      %v3374 = vsel %vm721, %v3343, 0
      %v3376 = vsel %vm721, %v3345, 0
      %v3378 = vsel %vm721, %v3347, 0
      %v3380 = vsel %vm721, %v3349, 0
      %v3382 = vsel %vm721, %v3351, 0
      %v3384 = vsel %vm721, %v3353, 0
      %v3386 = vsel %vm721, %v3355, 0
      %v3388 = vsel %vm721, %v3357, 0
      %v3390 = vsel %vm721, %v3359, 0
      %v3392 = vsel %vm721, %v3361, 0
      %v3394 = vsel %vm721, %v3363, 0
      %v3396 = vsel %vm721, %v3365, 0
      %v3398 = vsel %vm721, %v3367, 0
      %3400 = vmatpush.xpose.msra.mxu0 0.0
      %3401 = vmatpush.xpose.msra.mxu0 0.0
      %3402 = vmatpush.xpose.msra.mxu0 0.0
      %3403 = vmatpush.xpose.msra.mxu0 0.0
      %3404 = vmatpush.xpose.msra.mxu0 0.0
      %3405 = vmatpush.xpose.msra.mxu0 0.0
      %3406 = vmatpush.xpose.msra.mxu0 0.0
      %3407 = vmatpush.xpose.msra.mxu0 0.0
      %3408 = vmatpush.xpose.msra.mxu0 %v3398
      %3409 = vmatpush.xpose.msra.mxu0 %v3396
      %3410 = vmatpush.xpose.msra.mxu0 %v3394
      %3411 = vmatpush.xpose.msra.mxu0 %v3392
      %3412 = vmatpush.xpose.msra.mxu0 %v3390
      %3413 = vmatpush.xpose.msra.mxu0 %v3388
      %3414 = vmatpush.xpose.msra.mxu0 %v3386
      %3415 = vmatpush.xpose.msra.mxu0 %v3384
      %3416 = vmatmul.f32.gmra.mxu0 %v3368
      %v3417 = vpop.f32.mrf.mxu0
      %v3418 = vadd.f32 0.0, %v3417
      %3419 = vmatmul.f32.gmra.mxu0 %v3370
      %v3420 = vpop.f32.mrf.mxu0
      %v3421 = vadd.f32 0.0, %v3420
      %3422 = vmatmul.f32.gmra.mxu0 %v3372
      %v3423 = vpop.f32.mrf.mxu0
      %v3424 = vadd.f32 0.0, %v3423
      %3425 = vmatmul.f32.gmra.mxu0 %v3374
      %v3426 = vpop.f32.mrf.mxu0
      %v3427 = vadd.f32 0.0, %v3426
      %3428 = vmatmul.f32.gmra.mxu0 %v3376
      %v3429 = vpop.f32.mrf.mxu0
      %v3430 = vadd.f32 0.0, %v3429
      %3431 = vmatmul.f32.gmra.mxu0 %v3378
      %v3432 = vpop.f32.mrf.mxu0
      %v3433 = vadd.f32 0.0, %v3432
      %3434 = vmatmul.f32.gmra.mxu0 %v3380
      %v3435 = vpop.f32.mrf.mxu0
      %v3436 = vadd.f32 0.0, %v3435
      %3437 = vmatmul.f32.gmra.mxu0 %v3382
      %v3438 = vpop.f32.mrf.mxu0
      %v3439 = vadd.f32 0.0, %v3438
      %3440 = vdwg.mxu0
      %v3441 = vmul.f32 %v3418, 0.35355338
      %v3442 = vmul.f32 %v3421, 0.35355338
      %v3443 = vmul.f32 %v3424, 0.35355338
      %v3444 = vmul.f32 %v3427, 0.35355338
      %v3445 = vmul.f32 %v3430, 0.35355338
      %v3446 = vmul.f32 %v3433, 0.35355338
      %v3447 = vmul.f32 %v3436, 0.35355338
      %v3448 = vmul.f32 %v3439, 0.35355338
      %v3449 = vsel %vm803, %v3441, -inf
      %3450 = vmax.xlane.f32.xlu0 %v3449
      %v3451 = vpop.xlane.xlu0 %3450
      %v3452 = vsel %vm803, %v3442, -inf
      %3453 = vmax.xlane.f32.xlu0 %v3452
      %v3454 = vpop.xlane.xlu0 %3453
      %v3455 = vsel %vm803, %v3443, -inf
      %3456 = vmax.xlane.f32.xlu0 %v3455
      %v3457 = vpop.xlane.xlu0 %3456
      %v3458 = vsel %vm803, %v3444, -inf
      %3459 = vmax.xlane.f32.xlu0 %v3458
      %v3460 = vpop.xlane.xlu0 %3459
      %v3461 = vsel %vm803, %v3445, -inf
      %3462 = vmax.xlane.f32.xlu0 %v3461
      %v3463 = vpop.xlane.xlu0 %3462
      %v3464 = vsel %vm803, %v3446, -inf
      %3465 = vmax.xlane.f32.xlu0 %v3464
      %v3466 = vpop.xlane.xlu0 %3465
      %v3467 = vsel %vm803, %v3447, -inf
      %3468 = vmax.xlane.f32.xlu0 %v3467
      %v3469 = vpop.xlane.xlu0 %3468
      %v3470 = vsel %vm803, %v3448, -inf
      %3471 = vmax.xlane.f32.xlu0 %v3470
      %v3472 = vpop.xlane.xlu0 %3471
      %v3473 = vsub.f32 %v3441, %v3451
      %v3474 = vsub.f32 %v3442, %v3454
      %v3475 = vsub.f32 %v3443, %v3457
      %v3476 = vsub.f32 %v3444, %v3460
      %v3477 = vsub.f32 %v3445, %v3463
      %v3478 = vsub.f32 %v3446, %v3466
      %v3479 = vsub.f32 %v3447, %v3469
      %v3480 = vsub.f32 %v3448, %v3472
      %v3481 = vmul.f32 %v3473, 1.442695
      %v3482 = vpow.pop %v3481
      %v3483 = vmul.f32 %v3474, 1.442695
      %v3484 = vpow.pop %v3483
      %v3485 = vmul.f32 %v3475, 1.442695
      %v3486 = vpow.pop %v3485
      %v3487 = vmul.f32 %v3476, 1.442695
      %v3488 = vpow.pop %v3487
      %v3489 = vmul.f32 %v3477, 1.442695
      %v3490 = vpow.pop %v3489
      %v3491 = vmul.f32 %v3478, 1.442695
      %v3492 = vpow.pop %v3491
      %v3493 = vmul.f32 %v3479, 1.442695
      %v3494 = vpow.pop %v3493
      %v3495 = vmul.f32 %v3480, 1.442695
      %v3496 = vpow.pop %v3495
      %v3497 = vsel %vm803, %v3482, 0.0
      %3498 = vadd.xlane.f32.xlu0 %v3497
      %v3499 = vpop.xlane.xlu0 %3498
      %v3500 = vsel %vm803, %v3484, 0.0
      %3501 = vadd.xlane.f32.xlu0 %v3500
      %v3502 = vpop.xlane.xlu0 %3501
      %v3503 = vsel %vm803, %v3486, 0.0
      %3504 = vadd.xlane.f32.xlu0 %v3503
      %v3505 = vpop.xlane.xlu0 %3504
      %v3506 = vsel %vm803, %v3488, 0.0
      %3507 = vadd.xlane.f32.xlu0 %v3506
      %v3508 = vpop.xlane.xlu0 %3507
      %v3509 = vsel %vm803, %v3490, 0.0
      %3510 = vadd.xlane.f32.xlu0 %v3509
      %v3511 = vpop.xlane.xlu0 %3510
      %v3512 = vsel %vm803, %v3492, 0.0
      %3513 = vadd.xlane.f32.xlu0 %v3512
      %v3514 = vpop.xlane.xlu0 %3513
      %v3515 = vsel %vm803, %v3494, 0.0
      %3516 = vadd.xlane.f32.xlu0 %v3515
      %v3517 = vpop.xlane.xlu0 %3516
      %v3518 = vsel %vm803, %v3496, 0.0
      %3519 = vadd.xlane.f32.xlu0 %v3518
      %v3520 = vpop.xlane.xlu0 %3519
      %v3521 = vrcp.pop %v3499
      %v3522 = vrcp.pop %v3502
      %v3523 = vrcp.pop %v3505
      %v3524 = vrcp.pop %v3508
      %v3525 = vrcp.pop %v3511
      %v3526 = vrcp.pop %v3514
      %v3527 = vrcp.pop %v3517
      %v3528 = vrcp.pop %v3520
      %v3529 = vmul.f32 %v3482, %v3521
      %v3530 = vmul.f32 %v3484, %v3522
      %v3531 = vmul.f32 %v3486, %v3523
      %v3532 = vmul.f32 %v3488, %v3524
      %v3533 = vmul.f32 %v3490, %v3525
      %v3534 = vmul.f32 %v3492, %v3526
      %v3535 = vmul.f32 %v3494, %v3527
      %v3536 = vmul.f32 %v3496, %v3528
      %3537 = vrot.lane.b32.xlu0 %v2741, 48
      %v3538 = vpop.permute.xlu0 %3537
      %3539 = vrot.lane.b32.xlu0 %v2744, 48
      %v3540 = vpop.permute.xlu0 %3539
      %3541 = vrot.lane.b32.xlu0 %v2747, 48
      %v3542 = vpop.permute.xlu0 %3541
      %3543 = vrot.lane.b32.xlu0 %v2750, 48
      %v3544 = vpop.permute.xlu0 %3543
      %3545 = vrot.lane.b32.xlu0 %v2753, 48
      %v3546 = vpop.permute.xlu0 %3545
      %3547 = vrot.lane.b32.xlu0 %v2756, 48
      %v3548 = vpop.permute.xlu0 %3547
      %3549 = vrot.lane.b32.xlu0 %v2759, 48
      %v3550 = vpop.permute.xlu0 %3549
      %3551 = vrot.lane.b32.xlu0 %v2762, 48
      %v3552 = vpop.permute.xlu0 %3551
      %v3562 = vsel %vm803, %v3529, 0
      %v3565 = vsel %vm803, %v3530, 0
      %v3568 = vsel %vm803, %v3531, 0
      %v3571 = vsel %vm803, %v3532, 0
      %v3574 = vsel %vm803, %v3533, 0
      %v3577 = vsel %vm803, %v3534, 0
      %v3580 = vsel %vm803, %v3535, 0
      %v3583 = vsel %vm803, %v3536, 0
      %3585 = vmatpush.msra.mxu0 0.0
      %3586 = vmatpush.msra.mxu0 0.0
      %3587 = vmatpush.msra.mxu0 0.0
      %3588 = vmatpush.msra.mxu0 0.0
      %3589 = vmatpush.msra.mxu0 0.0
      %3590 = vmatpush.msra.mxu0 0.0
      %3591 = vmatpush.msra.mxu0 0.0
      %3592 = vmatpush.msra.mxu0 0.0
      %3593 = vmatpush.msra.mxu0 %v3552
      %3594 = vmatpush.msra.mxu0 %v3550
      %3595 = vmatpush.msra.mxu0 %v3548
      %3596 = vmatpush.msra.mxu0 %v3546
      %3597 = vmatpush.msra.mxu0 %v3544
      %3598 = vmatpush.msra.mxu0 %v3542
      %3599 = vmatpush.msra.mxu0 %v3540
      %3600 = vmatpush.msra.mxu0 %v3538
      %3601 = vmatmul.f32.gmra.mxu0 %v3562
      %v3602 = vpop.f32.mrf.mxu0
      %v3603 = vadd.f32 0.0, %v3602
      %3604 = vmatmul.f32.gmra.mxu0 %v3565
      %v3605 = vpop.f32.mrf.mxu0
      %v3606 = vadd.f32 0.0, %v3605
      %3607 = vmatmul.f32.gmra.mxu0 %v3568
      %v3608 = vpop.f32.mrf.mxu0
      %v3609 = vadd.f32 0.0, %v3608
      %3610 = vmatmul.f32.gmra.mxu0 %v3571
      %v3611 = vpop.f32.mrf.mxu0
      %v3612 = vadd.f32 0.0, %v3611
      %3613 = vmatmul.f32.gmra.mxu0 %v3574
      %v3614 = vpop.f32.mrf.mxu0
      %v3615 = vadd.f32 0.0, %v3614
      %3616 = vmatmul.f32.gmra.mxu0 %v3577
      %v3617 = vpop.f32.mrf.mxu0
      %v3618 = vadd.f32 0.0, %v3617
      %3619 = vmatmul.f32.gmra.mxu0 %v3580
      %v3620 = vpop.f32.mrf.mxu0
      %v3621 = vadd.f32 0.0, %v3620
      %3622 = vmatmul.f32.gmra.mxu0 %v3583
      %v3623 = vpop.f32.mrf.mxu0
      %v3624 = vadd.f32 0.0, %v3623
      %3625 = vdwg.mxu0
      %3626 = vrot.lane.b32.xlu0 %v2741, 104
      %v3627 = vpop.permute.xlu0 %3626
      %3628 = vrot.lane.b32.xlu0 %v2744, 104
      %v3629 = vpop.permute.xlu0 %3628
      %3630 = vrot.lane.b32.xlu0 %v2747, 104
      %v3631 = vpop.permute.xlu0 %3630
      %3632 = vrot.lane.b32.xlu0 %v2750, 104
      %v3633 = vpop.permute.xlu0 %3632
      %3634 = vrot.lane.b32.xlu0 %v2753, 104
      %v3635 = vpop.permute.xlu0 %3634
      %3636 = vrot.lane.b32.xlu0 %v2756, 104
      %v3637 = vpop.permute.xlu0 %3636
      %3638 = vrot.lane.b32.xlu0 %v2759, 104
      %v3639 = vpop.permute.xlu0 %3638
      %3640 = vrot.lane.b32.xlu0 %v2762, 104
      %v3641 = vpop.permute.xlu0 %3640
      %3642 = vrot.lane.b32.xlu0 %v2741, 72
      %v3643 = vpop.permute.xlu0 %3642
      %3644 = vrot.lane.b32.xlu0 %v2744, 72
      %v3645 = vpop.permute.xlu0 %3644
      %3646 = vrot.lane.b32.xlu0 %v2747, 72
      %v3647 = vpop.permute.xlu0 %3646
      %3648 = vrot.lane.b32.xlu0 %v2750, 72
      %v3649 = vpop.permute.xlu0 %3648
      %3650 = vrot.lane.b32.xlu0 %v2753, 72
      %v3651 = vpop.permute.xlu0 %3650
      %3652 = vrot.lane.b32.xlu0 %v2756, 72
      %v3653 = vpop.permute.xlu0 %3652
      %3654 = vrot.lane.b32.xlu0 %v2759, 72
      %v3655 = vpop.permute.xlu0 %3654
      %3656 = vrot.lane.b32.xlu0 %v2762, 72
      %v3657 = vpop.permute.xlu0 %3656
      %v3658 = vsel %vm721, %v3627, 0
      %v3660 = vsel %vm721, %v3629, 0
      %v3662 = vsel %vm721, %v3631, 0
      %v3664 = vsel %vm721, %v3633, 0
      %v3666 = vsel %vm721, %v3635, 0
      %v3668 = vsel %vm721, %v3637, 0
      %v3670 = vsel %vm721, %v3639, 0
      %v3672 = vsel %vm721, %v3641, 0
      %v3674 = vsel %vm721, %v3643, 0
      %v3676 = vsel %vm721, %v3645, 0
      %v3678 = vsel %vm721, %v3647, 0
      %v3680 = vsel %vm721, %v3649, 0
      %v3682 = vsel %vm721, %v3651, 0
      %v3684 = vsel %vm721, %v3653, 0
      %v3686 = vsel %vm721, %v3655, 0
      %v3688 = vsel %vm721, %v3657, 0
      %3690 = vmatpush.xpose.msra.mxu0 0.0
      %3691 = vmatpush.xpose.msra.mxu0 0.0
      %3692 = vmatpush.xpose.msra.mxu0 0.0
      %3693 = vmatpush.xpose.msra.mxu0 0.0
      %3694 = vmatpush.xpose.msra.mxu0 0.0
      %3695 = vmatpush.xpose.msra.mxu0 0.0
      %3696 = vmatpush.xpose.msra.mxu0 0.0
      %3697 = vmatpush.xpose.msra.mxu0 0.0
      %3698 = vmatpush.xpose.msra.mxu0 %v3688
      %3699 = vmatpush.xpose.msra.mxu0 %v3686
      %3700 = vmatpush.xpose.msra.mxu0 %v3684
      %3701 = vmatpush.xpose.msra.mxu0 %v3682
      %3702 = vmatpush.xpose.msra.mxu0 %v3680
      %3703 = vmatpush.xpose.msra.mxu0 %v3678
      %3704 = vmatpush.xpose.msra.mxu0 %v3676
      %3705 = vmatpush.xpose.msra.mxu0 %v3674
      %3706 = vmatmul.f32.gmra.mxu0 %v3658
      %v3707 = vpop.f32.mrf.mxu0
      %v3708 = vadd.f32 0.0, %v3707
      %3709 = vmatmul.f32.gmra.mxu0 %v3660
      %v3710 = vpop.f32.mrf.mxu0
      %v3711 = vadd.f32 0.0, %v3710
      %3712 = vmatmul.f32.gmra.mxu0 %v3662
      %v3713 = vpop.f32.mrf.mxu0
      %v3714 = vadd.f32 0.0, %v3713
      %3715 = vmatmul.f32.gmra.mxu0 %v3664
      %v3716 = vpop.f32.mrf.mxu0
      %v3717 = vadd.f32 0.0, %v3716
      %3718 = vmatmul.f32.gmra.mxu0 %v3666
      %v3719 = vpop.f32.mrf.mxu0
      %v3720 = vadd.f32 0.0, %v3719
      %3721 = vmatmul.f32.gmra.mxu0 %v3668
      %v3722 = vpop.f32.mrf.mxu0
      %v3723 = vadd.f32 0.0, %v3722
      %3724 = vmatmul.f32.gmra.mxu0 %v3670
      %v3725 = vpop.f32.mrf.mxu0
      %v3726 = vadd.f32 0.0, %v3725
      %3727 = vmatmul.f32.gmra.mxu0 %v3672
      %v3728 = vpop.f32.mrf.mxu0
      %v3729 = vadd.f32 0.0, %v3728
      %3730 = vdwg.mxu0
      %v3731 = vmul.f32 %v3708, 0.35355338
      %v3732 = vmul.f32 %v3711, 0.35355338
      %v3733 = vmul.f32 %v3714, 0.35355338
      %v3734 = vmul.f32 %v3717, 0.35355338
      %v3735 = vmul.f32 %v3720, 0.35355338
      %v3736 = vmul.f32 %v3723, 0.35355338
      %v3737 = vmul.f32 %v3726, 0.35355338
      %v3738 = vmul.f32 %v3729, 0.35355338
      %v3739 = vsel %vm803, %v3731, -inf
      %3740 = vmax.xlane.f32.xlu0 %v3739
      %v3741 = vpop.xlane.xlu0 %3740
      %v3742 = vsel %vm803, %v3732, -inf
      %3743 = vmax.xlane.f32.xlu0 %v3742
      %v3744 = vpop.xlane.xlu0 %3743
      %v3745 = vsel %vm803, %v3733, -inf
      %3746 = vmax.xlane.f32.xlu0 %v3745
      %v3747 = vpop.xlane.xlu0 %3746
      %v3748 = vsel %vm803, %v3734, -inf
      %3749 = vmax.xlane.f32.xlu0 %v3748
      %v3750 = vpop.xlane.xlu0 %3749
      %v3751 = vsel %vm803, %v3735, -inf
      %3752 = vmax.xlane.f32.xlu0 %v3751
      %v3753 = vpop.xlane.xlu0 %3752
      %v3754 = vsel %vm803, %v3736, -inf
      %3755 = vmax.xlane.f32.xlu0 %v3754
      %v3756 = vpop.xlane.xlu0 %3755
      %v3757 = vsel %vm803, %v3737, -inf
      %3758 = vmax.xlane.f32.xlu0 %v3757
      %v3759 = vpop.xlane.xlu0 %3758
      %v3760 = vsel %vm803, %v3738, -inf
      %3761 = vmax.xlane.f32.xlu0 %v3760
      %v3762 = vpop.xlane.xlu0 %3761
      %v3763 = vsub.f32 %v3731, %v3741
      %v3764 = vsub.f32 %v3732, %v3744
      %v3765 = vsub.f32 %v3733, %v3747
      %v3766 = vsub.f32 %v3734, %v3750
      %v3767 = vsub.f32 %v3735, %v3753
      %v3768 = vsub.f32 %v3736, %v3756
      %v3769 = vsub.f32 %v3737, %v3759
      %v3770 = vsub.f32 %v3738, %v3762
      %v3771 = vmul.f32 %v3763, 1.442695
      %v3772 = vpow.pop %v3771
      %v3773 = vmul.f32 %v3764, 1.442695
      %v3774 = vpow.pop %v3773
      %v3775 = vmul.f32 %v3765, 1.442695
      %v3776 = vpow.pop %v3775
      %v3777 = vmul.f32 %v3766, 1.442695
      %v3778 = vpow.pop %v3777
      %v3779 = vmul.f32 %v3767, 1.442695
      %v3780 = vpow.pop %v3779
      %v3781 = vmul.f32 %v3768, 1.442695
      %v3782 = vpow.pop %v3781
      %v3783 = vmul.f32 %v3769, 1.442695
      %v3784 = vpow.pop %v3783
      %v3785 = vmul.f32 %v3770, 1.442695
      %v3786 = vpow.pop %v3785
      %v3787 = vsel %vm803, %v3772, 0.0
      %3788 = vadd.xlane.f32.xlu0 %v3787
      %v3789 = vpop.xlane.xlu0 %3788
      %v3790 = vsel %vm803, %v3774, 0.0
      %3791 = vadd.xlane.f32.xlu0 %v3790
      %v3792 = vpop.xlane.xlu0 %3791
      %v3793 = vsel %vm803, %v3776, 0.0
      %3794 = vadd.xlane.f32.xlu0 %v3793
      %v3795 = vpop.xlane.xlu0 %3794
      %v3796 = vsel %vm803, %v3778, 0.0
      %3797 = vadd.xlane.f32.xlu0 %v3796
      %v3798 = vpop.xlane.xlu0 %3797
      %v3799 = vsel %vm803, %v3780, 0.0
      %3800 = vadd.xlane.f32.xlu0 %v3799
      %v3801 = vpop.xlane.xlu0 %3800
      %v3802 = vsel %vm803, %v3782, 0.0
      %3803 = vadd.xlane.f32.xlu0 %v3802
      %v3804 = vpop.xlane.xlu0 %3803
      %v3805 = vsel %vm803, %v3784, 0.0
      %3806 = vadd.xlane.f32.xlu0 %v3805
      %v3807 = vpop.xlane.xlu0 %3806
      %v3808 = vsel %vm803, %v3786, 0.0
      %3809 = vadd.xlane.f32.xlu0 %v3808
      %v3810 = vpop.xlane.xlu0 %3809
      %v3811 = vrcp.pop %v3789
      %v3812 = vrcp.pop %v3792
      %v3813 = vrcp.pop %v3795
      %v3814 = vrcp.pop %v3798
      %v3815 = vrcp.pop %v3801
      %v3816 = vrcp.pop %v3804
      %v3817 = vrcp.pop %v3807
      %v3818 = vrcp.pop %v3810
      %v3819 = vmul.f32 %v3772, %v3811
      %v3820 = vmul.f32 %v3774, %v3812
      %v3821 = vmul.f32 %v3776, %v3813
      %v3822 = vmul.f32 %v3778, %v3814
      %v3823 = vmul.f32 %v3780, %v3815
      %v3824 = vmul.f32 %v3782, %v3816
      %v3825 = vmul.f32 %v3784, %v3817
      %v3826 = vmul.f32 %v3786, %v3818
      %3827 = vrot.lane.b32.xlu0 %v2741, 40
      %v3828 = vpop.permute.xlu0 %3827
      %3829 = vrot.lane.b32.xlu0 %v2744, 40
      %v3830 = vpop.permute.xlu0 %3829
      %3831 = vrot.lane.b32.xlu0 %v2747, 40
      %v3832 = vpop.permute.xlu0 %3831
      %3833 = vrot.lane.b32.xlu0 %v2750, 40
      %v3834 = vpop.permute.xlu0 %3833
      %3835 = vrot.lane.b32.xlu0 %v2753, 40
      %v3836 = vpop.permute.xlu0 %3835
      %3837 = vrot.lane.b32.xlu0 %v2756, 40
      %v3838 = vpop.permute.xlu0 %3837
      %3839 = vrot.lane.b32.xlu0 %v2759, 40
      %v3840 = vpop.permute.xlu0 %3839
      %3841 = vrot.lane.b32.xlu0 %v2762, 40
      %v3842 = vpop.permute.xlu0 %3841
      %v3852 = vsel %vm803, %v3819, 0
      %v3855 = vsel %vm803, %v3820, 0
      %v3858 = vsel %vm803, %v3821, 0
      %v3861 = vsel %vm803, %v3822, 0
      %v3864 = vsel %vm803, %v3823, 0
      %v3867 = vsel %vm803, %v3824, 0
      %v3870 = vsel %vm803, %v3825, 0
      %v3873 = vsel %vm803, %v3826, 0
      %3875 = vmatpush.msra.mxu0 0.0
      %3876 = vmatpush.msra.mxu0 0.0
      %3877 = vmatpush.msra.mxu0 0.0
      %3878 = vmatpush.msra.mxu0 0.0
      %3879 = vmatpush.msra.mxu0 0.0
      %3880 = vmatpush.msra.mxu0 0.0
      %3881 = vmatpush.msra.mxu0 0.0
      %3882 = vmatpush.msra.mxu0 0.0
      %3883 = vmatpush.msra.mxu0 %v3842
      %3884 = vmatpush.msra.mxu0 %v3840
      %3885 = vmatpush.msra.mxu0 %v3838
      %3886 = vmatpush.msra.mxu0 %v3836
      %3887 = vmatpush.msra.mxu0 %v3834
      %3888 = vmatpush.msra.mxu0 %v3832
      %3889 = vmatpush.msra.mxu0 %v3830
      %3890 = vmatpush.msra.mxu0 %v3828
      %3891 = vmatmul.f32.gmra.mxu0 %v3852
      %v3892 = vpop.f32.mrf.mxu0
      %v3893 = vadd.f32 0.0, %v3892
      %3894 = vmatmul.f32.gmra.mxu0 %v3855
      %v3895 = vpop.f32.mrf.mxu0
      %v3896 = vadd.f32 0.0, %v3895
      %3897 = vmatmul.f32.gmra.mxu0 %v3858
      %v3898 = vpop.f32.mrf.mxu0
      %v3899 = vadd.f32 0.0, %v3898
      %3900 = vmatmul.f32.gmra.mxu0 %v3861
      %v3901 = vpop.f32.mrf.mxu0
      %v3902 = vadd.f32 0.0, %v3901
      %3903 = vmatmul.f32.gmra.mxu0 %v3864
      %v3904 = vpop.f32.mrf.mxu0
      %v3905 = vadd.f32 0.0, %v3904
      %3906 = vmatmul.f32.gmra.mxu0 %v3867
      %v3907 = vpop.f32.mrf.mxu0
      %v3908 = vadd.f32 0.0, %v3907
      %3909 = vmatmul.f32.gmra.mxu0 %v3870
      %v3910 = vpop.f32.mrf.mxu0
      %v3911 = vadd.f32 0.0, %v3910
      %3912 = vmatmul.f32.gmra.mxu0 %v3873
      %v3913 = vpop.f32.mrf.mxu0
      %v3914 = vadd.f32 0.0, %v3913
      %3915 = vdwg.mxu0
      %3924 = vrot.lane.b32.xlu0 %v3313, 8
      %v3925 = vpop.permute.xlu0 %3924
      %3926 = vrot.lane.b32.xlu0 %v3316, 8
      %v3927 = vpop.permute.xlu0 %3926
      %3928 = vrot.lane.b32.xlu0 %v3319, 8
      %v3929 = vpop.permute.xlu0 %3928
      %3930 = vrot.lane.b32.xlu0 %v3322, 8
      %v3931 = vpop.permute.xlu0 %3930
      %3932 = vrot.lane.b32.xlu0 %v3325, 8
      %v3933 = vpop.permute.xlu0 %3932
      %3934 = vrot.lane.b32.xlu0 %v3328, 8
      %v3935 = vpop.permute.xlu0 %3934
      %3936 = vrot.lane.b32.xlu0 %v3331, 8
      %v3937 = vpop.permute.xlu0 %3936
      %3938 = vrot.lane.b32.xlu0 %v3334, 8
      %v3939 = vpop.permute.xlu0 %3938
      %3956 = vrot.lane.b32.xlu0 %v3603, 16
      %v3957 = vpop.permute.xlu0 %3956
      %3958 = vrot.lane.b32.xlu0 %v3606, 16
      %v3959 = vpop.permute.xlu0 %3958
      %3960 = vrot.lane.b32.xlu0 %v3609, 16
      %v3961 = vpop.permute.xlu0 %3960
      %3962 = vrot.lane.b32.xlu0 %v3612, 16
      %v3963 = vpop.permute.xlu0 %3962
      %3964 = vrot.lane.b32.xlu0 %v3615, 16
      %v3965 = vpop.permute.xlu0 %3964
      %3966 = vrot.lane.b32.xlu0 %v3618, 16
      %v3967 = vpop.permute.xlu0 %3966
      %3968 = vrot.lane.b32.xlu0 %v3621, 16
      %v3969 = vpop.permute.xlu0 %3968
      %3970 = vrot.lane.b32.xlu0 %v3624, 16
      %v3971 = vpop.permute.xlu0 %3970
      %3988 = vrot.lane.b32.xlu0 %v3893, 24
      %v3989 = vpop.permute.xlu0 %3988
      %3990 = vrot.lane.b32.xlu0 %v3896, 24
      %v3991 = vpop.permute.xlu0 %3990
      %3992 = vrot.lane.b32.xlu0 %v3899, 24
      %v3993 = vpop.permute.xlu0 %3992
      %3994 = vrot.lane.b32.xlu0 %v3902, 24
      %v3995 = vpop.permute.xlu0 %3994
      %3996 = vrot.lane.b32.xlu0 %v3905, 24
      %v3997 = vpop.permute.xlu0 %3996
      %3998 = vrot.lane.b32.xlu0 %v3908, 24
      %v3999 = vpop.permute.xlu0 %3998
      %4000 = vrot.lane.b32.xlu0 %v3911, 24
      %v4001 = vpop.permute.xlu0 %4000
      %4002 = vrot.lane.b32.xlu0 %v3914, 24
      %v4003 = vpop.permute.xlu0 %4002
      %v4012 = vsel %vm721, %v3023, %v3925
      %v4013 = vsel %vm721, %v3026, %v3927
      %v4014 = vsel %vm721, %v3029, %v3929
      %v4015 = vsel %vm721, %v3032, %v3931
      %v4016 = vsel %vm721, %v3035, %v3933
      %v4017 = vsel %vm721, %v3038, %v3935
      %v4018 = vsel %vm721, %v3041, %v3937
      %v4019 = vsel %vm721, %v3044, %v3939
      %v4020 = vsel %vm424, %v4012, %v3957
      %v4021 = vsel %vm424, %v4013, %v3959
      %v4022 = vsel %vm424, %v4014, %v3961
      %v4023 = vsel %vm424, %v4015, %v3963
      %v4024 = vsel %vm424, %v4016, %v3965
      %v4025 = vsel %vm424, %v4017, %v3967
      %v4026 = vsel %vm424, %v4018, %v3969
      %v4027 = vsel %vm424, %v4019, %v3971
      %v4028 = vsel %vm1963, %v4020, %v3989
      %v4029 = vsel %vm1963, %v4021, %v3991
      %v4030 = vsel %vm1963, %v4022, %v3993
      %v4031 = vsel %vm1963, %v4023, %v3995
      %v4032 = vsel %vm1963, %v4024, %v3997
      %v4033 = vsel %vm1963, %v4025, %v3999
      %v4034 = vsel %vm1963, %v4026, %v4001
      %v4035 = vsel %vm1963, %v4027, %v4003
      %s4036 = scalar_lea.vmem %s4, 32
      %v4037 = vld [vmem:[%s4036] sm:$0xff]
      %v4038 = vld [vmem:[%s4036 + $0x8] sm:$0xff]
      %v4039 = vld [vmem:[%s4036 + $0x10] sm:$0xff]
      %v4040 = vld [vmem:[%s4036 + $0x18] sm:$0xff]
      %s4041 = scalar_lea.vmem %s5, 1
      %v4042 = vld [vmem:[%s4041] sm:$0x1]
      %v4044 = vperm.slane %v4042, 0
      %v4047 = vsel %vm1980, %v4028, 0
      %v4050 = vsel %vm1980, %v4029, 0
      %v4053 = vsel %vm1980, %v4030, 0
      %v4056 = vsel %vm1980, %v4031, 0
      %v4059 = vsel %vm1980, %v4032, 0
      %v4062 = vsel %vm1980, %v4033, 0
      %v4065 = vsel %vm1980, %v4034, 0
      %v4068 = vsel %vm1980, %v4035, 0
      %4070 = vmatpush.msra.mxu0 0.0
      %4071 = vmatpush.msra.mxu0 0.0
      %4072 = vmatpush.msra.mxu0 0.0
      %4073 = vmatpush.msra.mxu0 0.0
      %4074 = vmatpush.msra.mxu0 0.0
      %4075 = vmatpush.msra.mxu0 0.0
      %4076 = vmatpush.msra.mxu0 0.0
      %4077 = vmatpush.msra.mxu0 0.0
      %4078 = vmatpush.msra.mxu0 0.0
      %4079 = vmatpush.msra.mxu0 0.0
      %4080 = vmatpush.msra.mxu0 0.0
      %4081 = vmatpush.msra.mxu0 0.0
      %4082 = vmatpush.msra.mxu0 %v4040
      %4083 = vmatpush.msra.mxu0 %v4039
      %4084 = vmatpush.msra.mxu0 %v4038
      %4085 = vmatpush.msra.mxu0 %v4037
      %4086 = vmatmul.f32.gmra.mxu0 %v4047
      %v4087 = vpop.f32.mrf.mxu0
      %v4088 = vadd.f32 %v4044, %v4087
      %4089 = vmatmul.f32.gmra.mxu0 %v4050
      %v4090 = vpop.f32.mrf.mxu0
      %v4091 = vadd.f32 %v4044, %v4090
      %4092 = vmatmul.f32.gmra.mxu0 %v4053
      %v4093 = vpop.f32.mrf.mxu0
      %v4094 = vadd.f32 %v4044, %v4093
      %4095 = vmatmul.f32.gmra.mxu0 %v4056
      %v4096 = vpop.f32.mrf.mxu0
      %v4097 = vadd.f32 %v4044, %v4096
      %4098 = vmatmul.f32.gmra.mxu0 %v4059
      %v4099 = vpop.f32.mrf.mxu0
      %v4100 = vadd.f32 %v4044, %v4099
      %4101 = vmatmul.f32.gmra.mxu0 %v4062
      %v4102 = vpop.f32.mrf.mxu0
      %v4103 = vadd.f32 %v4044, %v4102
      %4104 = vmatmul.f32.gmra.mxu0 %v4065
      %v4105 = vpop.f32.mrf.mxu0
      %v4106 = vadd.f32 %v4044, %v4105
      %4107 = vmatmul.f32.gmra.mxu0 %v4068
      %v4108 = vpop.f32.mrf.mxu0
      %v4109 = vadd.f32 %v4044, %v4108
      %4110 = vdwg.mxu0
      %v4111 = vadd.f32 %v2486, %v4088
      %v4112 = vadd.f32 %v2487, %v4091
      %v4113 = vadd.f32 %v2488, %v4094
      %v4114 = vadd.f32 %v2489, %v4097
      %v4115 = vadd.f32 %v2490, %v4100
      %v4116 = vadd.f32 %v2491, %v4103
      %v4117 = vadd.f32 %v2492, %v4106
      %v4118 = vadd.f32 %v2493, %v4109
      %s4119 = scalar_lea.vmem %s6, 1
      %v4120 = vld [vmem:[%s4119] sm:$0x1]
      %s4121 = scalar_lea.vmem %s7, 1
      %v4122 = vld [vmem:[%s4121] sm:$0x1]
      %v4123 = vsel %vm424, %v4111, 0.0
      %4124 = vadd.xlane.f32.xlu0 %v4123
      %v4125 = vpop.xlane.xlu0 %4124
      %v4126 = vsel %vm424, %v4112, 0.0
      %4127 = vadd.xlane.f32.xlu0 %v4126
      %v4128 = vpop.xlane.xlu0 %4127
      %v4129 = vsel %vm424, %v4113, 0.0
      %4130 = vadd.xlane.f32.xlu0 %v4129
      %v4131 = vpop.xlane.xlu0 %4130
      %v4132 = vsel %vm424, %v4114, 0.0
      %4133 = vadd.xlane.f32.xlu0 %v4132
      %v4134 = vpop.xlane.xlu0 %4133
      %v4135 = vsel %vm424, %v4115, 0.0
      %4136 = vadd.xlane.f32.xlu0 %v4135
      %v4137 = vpop.xlane.xlu0 %4136
      %v4138 = vsel %vm424, %v4116, 0.0
      %4139 = vadd.xlane.f32.xlu0 %v4138
      %v4140 = vpop.xlane.xlu0 %4139
      %v4141 = vsel %vm424, %v4117, 0.0
      %4142 = vadd.xlane.f32.xlu0 %v4141
      %v4143 = vpop.xlane.xlu0 %4142
      %v4144 = vsel %vm424, %v4118, 0.0
      %4145 = vadd.xlane.f32.xlu0 %v4144
      %v4146 = vpop.xlane.xlu0 %4145
      %v4147 = vmul.f32 %v4125, %v455
      %v4148 = vmul.f32 %v4128, %v455
      %v4149 = vmul.f32 %v4131, %v455
      %v4150 = vmul.f32 %v4134, %v455
      %v4151 = vmul.f32 %v4137, %v455
      %v4152 = vmul.f32 %v4140, %v455
      %v4153 = vmul.f32 %v4143, %v455
      %v4154 = vmul.f32 %v4146, %v455
      %v4155 = vsub.f32 %v4111, %v4147
      %v4156 = vsub.f32 %v4112, %v4148
      %v4157 = vsub.f32 %v4113, %v4149
      %v4158 = vsub.f32 %v4114, %v4150
      %v4159 = vsub.f32 %v4115, %v4151
      %v4160 = vsub.f32 %v4116, %v4152
      %v4161 = vsub.f32 %v4117, %v4153
      %v4162 = vsub.f32 %v4118, %v4154
      %v4163 = vmul.f32 %v4155, %v4155
      %v4164 = vmul.f32 %v4156, %v4156
      %v4165 = vmul.f32 %v4157, %v4157
      %v4166 = vmul.f32 %v4158, %v4158
      %v4167 = vmul.f32 %v4159, %v4159
      %v4168 = vmul.f32 %v4160, %v4160
      %v4169 = vmul.f32 %v4161, %v4161
      %v4170 = vmul.f32 %v4162, %v4162
      %v4171 = vsel %vm424, %v4163, 0.0
      %4172 = vadd.xlane.f32.xlu0 %v4171
      %v4173 = vpop.xlane.xlu0 %4172
      %v4174 = vsel %vm424, %v4164, 0.0
      %4175 = vadd.xlane.f32.xlu0 %v4174
      %v4176 = vpop.xlane.xlu0 %4175
      %v4177 = vsel %vm424, %v4165, 0.0
      %4178 = vadd.xlane.f32.xlu0 %v4177
      %v4179 = vpop.xlane.xlu0 %4178
      %v4180 = vsel %vm424, %v4166, 0.0
      %4181 = vadd.xlane.f32.xlu0 %v4180
      %v4182 = vpop.xlane.xlu0 %4181
      %v4183 = vsel %vm424, %v4167, 0.0
      %4184 = vadd.xlane.f32.xlu0 %v4183
      %v4185 = vpop.xlane.xlu0 %4184
      %v4186 = vsel %vm424, %v4168, 0.0
      %4187 = vadd.xlane.f32.xlu0 %v4186
      %v4188 = vpop.xlane.xlu0 %4187
      %v4189 = vsel %vm424, %v4169, 0.0
      %4190 = vadd.xlane.f32.xlu0 %v4189
      %v4191 = vpop.xlane.xlu0 %4190
      %v4192 = vsel %vm424, %v4170, 0.0
      %4193 = vadd.xlane.f32.xlu0 %v4192
      %v4194 = vpop.xlane.xlu0 %4193
      %v4195 = vmul.f32 %v4173, %v455
      %v4196 = vmul.f32 %v4176, %v455
      %v4197 = vmul.f32 %v4179, %v455
      %v4198 = vmul.f32 %v4182, %v455
      %v4199 = vmul.f32 %v4185, %v455
      %v4200 = vmul.f32 %v4188, %v455
      %v4201 = vmul.f32 %v4191, %v455
      %v4202 = vmul.f32 %v4194, %v455
      %v4203 = vadd.f32 %v4195, 1e-05
      %v4204 = vadd.f32 %v4196, 1e-05
      %v4205 = vadd.f32 %v4197, 1e-05
      %v4206 = vadd.f32 %v4198, 1e-05
      %v4207 = vadd.f32 %v4199, 1e-05
      %v4208 = vadd.f32 %v4200, 1e-05
      %v4209 = vadd.f32 %v4201, 1e-05
      %v4210 = vadd.f32 %v4202, 1e-05
      %v4211 = vrsqrt.pop %v4203
      %v4212 = vmul.f32 %v4211, %v4203
      %v4213 = vmul.f32 %v4212, %v4211
      %v4214 = vmul.f32 0.5, %v4213
      %v4215 = vsub.f32 1.5, %v4214
      %v4216 = vmul.f32 %v4211, %v4215
      %vm4217 = vweird.f32 %v4203
      %vm4218 = vweird.f32 %v4211
      %vm4219 = vmor %vm4217, %vm4218
      %v4220 = vsel %vm4219, %v4211, %v4216
      %v4221 = vrsqrt.pop %v4204
      %v4222 = vmul.f32 %v4221, %v4204
      %v4223 = vmul.f32 %v4222, %v4221
      %v4224 = vmul.f32 0.5, %v4223
      %v4225 = vsub.f32 1.5, %v4224
      %v4226 = vmul.f32 %v4221, %v4225
      %vm4227 = vweird.f32 %v4204
      %vm4228 = vweird.f32 %v4221
      %vm4229 = vmor %vm4227, %vm4228
      %v4230 = vsel %vm4229, %v4221, %v4226
      %v4231 = vrsqrt.pop %v4205
      %v4232 = vmul.f32 %v4231, %v4205
      %v4233 = vmul.f32 %v4232, %v4231
      %v4234 = vmul.f32 0.5, %v4233
      %v4235 = vsub.f32 1.5, %v4234
      %v4236 = vmul.f32 %v4231, %v4235
      %vm4237 = vweird.f32 %v4205
      %vm4238 = vweird.f32 %v4231
      %vm4239 = vmor %vm4237, %vm4238
      %v4240 = vsel %vm4239, %v4231, %v4236
      %v4241 = vrsqrt.pop %v4206
      %v4242 = vmul.f32 %v4241, %v4206
      %v4243 = vmul.f32 %v4242, %v4241
      %v4244 = vmul.f32 0.5, %v4243
      %v4245 = vsub.f32 1.5, %v4244
      %v4246 = vmul.f32 %v4241, %v4245
      %vm4247 = vweird.f32 %v4206
      %vm4248 = vweird.f32 %v4241
      %vm4249 = vmor %vm4247, %vm4248
      %v4250 = vsel %vm4249, %v4241, %v4246
      %v4251 = vrsqrt.pop %v4207
      %v4252 = vmul.f32 %v4251, %v4207
      %v4253 = vmul.f32 %v4252, %v4251
      %v4254 = vmul.f32 0.5, %v4253
      %v4255 = vsub.f32 1.5, %v4254
      %v4256 = vmul.f32 %v4251, %v4255
      %vm4257 = vweird.f32 %v4207
      %vm4258 = vweird.f32 %v4251
      %vm4259 = vmor %vm4257, %vm4258
      %v4260 = vsel %vm4259, %v4251, %v4256
      %v4261 = vrsqrt.pop %v4208
      %v4262 = vmul.f32 %v4261, %v4208
      %v4263 = vmul.f32 %v4262, %v4261
      %v4264 = vmul.f32 0.5, %v4263
      %v4265 = vsub.f32 1.5, %v4264
      %v4266 = vmul.f32 %v4261, %v4265
      %vm4267 = vweird.f32 %v4208
      %vm4268 = vweird.f32 %v4261
      %vm4269 = vmor %vm4267, %vm4268
      %v4270 = vsel %vm4269, %v4261, %v4266
      %v4271 = vrsqrt.pop %v4209
      %v4272 = vmul.f32 %v4271, %v4209
      %v4273 = vmul.f32 %v4272, %v4271
      %v4274 = vmul.f32 0.5, %v4273
      %v4275 = vsub.f32 1.5, %v4274
      %v4276 = vmul.f32 %v4271, %v4275
      %vm4277 = vweird.f32 %v4209
      %vm4278 = vweird.f32 %v4271
      %vm4279 = vmor %vm4277, %vm4278
      %v4280 = vsel %vm4279, %v4271, %v4276
      %v4281 = vrsqrt.pop %v4210
      %v4282 = vmul.f32 %v4281, %v4210
      %v4283 = vmul.f32 %v4282, %v4281
      %v4284 = vmul.f32 0.5, %v4283
      %v4285 = vsub.f32 1.5, %v4284
      %v4286 = vmul.f32 %v4281, %v4285
      %vm4287 = vweird.f32 %v4210
      %vm4288 = vweird.f32 %v4281
      %vm4289 = vmor %vm4287, %vm4288
      %v4290 = vsel %vm4289, %v4281, %v4286
      %v4291 = vmul.f32 %v4155, %v4220
      %v4292 = vmul.f32 %v4156, %v4230
      %v4293 = vmul.f32 %v4157, %v4240
      %v4294 = vmul.f32 %v4158, %v4250
      %v4295 = vmul.f32 %v4159, %v4260
      %v4296 = vmul.f32 %v4160, %v4270
      %v4297 = vmul.f32 %v4161, %v4280
      %v4298 = vmul.f32 %v4162, %v4290
      %v4300 = vperm.slane %v4120, 0
      %v4302 = vmul.f32 %v4291, %v4300
      %v4303 = vmul.f32 %v4292, %v4300
      %v4304 = vmul.f32 %v4293, %v4300
      %v4305 = vmul.f32 %v4294, %v4300
      %v4306 = vmul.f32 %v4295, %v4300
      %v4307 = vmul.f32 %v4296, %v4300
      %v4308 = vmul.f32 %v4297, %v4300
      %v4309 = vmul.f32 %v4298, %v4300
      %v4311 = vperm.slane %v4122, 0
      %v4313 = vadd.f32 %v4302, %v4311
      %v4314 = vadd.f32 %v4303, %v4311
      %v4315 = vadd.f32 %v4304, %v4311
      %v4316 = vadd.f32 %v4305, %v4311
      %v4317 = vadd.f32 %v4306, %v4311
      %v4318 = vadd.f32 %v4307, %v4311
      %v4319 = vadd.f32 %v4308, %v4311
      %v4320 = vadd.f32 %v4309, %v4311
      %s4321 = scalar_lea.vmem %s8, 16
      %v4322 = vld [vmem:[%s4321] sm:$0xff]
      %v4323 = vld [vmem:[%s4321 + $0x8] sm:$0xff]
      %s4324 = scalar_lea.vmem %s9, 1
      %v4325 = vld [vmem:[%s4324] sm:$0x1]
      %v4327 = vperm.slane %v4325, 0
      %v4330 = vsel %vm424, %v4313, 0
      %v4333 = vsel %vm424, %v4314, 0
      %v4336 = vsel %vm424, %v4315, 0
      %v4339 = vsel %vm424, %v4316, 0
      %v4342 = vsel %vm424, %v4317, 0
      %v4345 = vsel %vm424, %v4318, 0
      %v4348 = vsel %vm424, %v4319, 0
      %v4351 = vsel %vm424, %v4320, 0
      %4353 = vmatpush.msra.mxu0 0.0
      %4354 = vmatpush.msra.mxu0 0.0
      %4355 = vmatpush.msra.mxu0 0.0
      %4356 = vmatpush.msra.mxu0 0.0
      %4357 = vmatpush.msra.mxu0 0.0
      %4358 = vmatpush.msra.mxu0 0.0
      %4359 = vmatpush.msra.mxu0 0.0
      %4360 = vmatpush.msra.mxu0 0.0
      %4361 = vmatpush.msra.mxu0 0.0
      %4362 = vmatpush.msra.mxu0 0.0
      %4363 = vmatpush.msra.mxu0 0.0
      %4364 = vmatpush.msra.mxu0 0.0
      %4365 = vmatpush.msra.mxu0 0.0
      %4366 = vmatpush.msra.mxu0 0.0
      %4367 = vmatpush.msra.mxu0 %v4323
      %4368 = vmatpush.msra.mxu0 %v4322
      %4369 = vmatmul.f32.gmra.mxu0 %v4330
      %v4370 = vpop.f32.mrf.mxu0
      %v4371 = vadd.f32 %v4327, %v4370
      %4372 = vmatmul.f32.gmra.mxu0 %v4333
      %v4373 = vpop.f32.mrf.mxu0
      %v4374 = vadd.f32 %v4327, %v4373
      %4375 = vmatmul.f32.gmra.mxu0 %v4336
      %v4376 = vpop.f32.mrf.mxu0
      %v4377 = vadd.f32 %v4327, %v4376
      %4378 = vmatmul.f32.gmra.mxu0 %v4339
      %v4379 = vpop.f32.mrf.mxu0
      %v4380 = vadd.f32 %v4327, %v4379
      %4381 = vmatmul.f32.gmra.mxu0 %v4342
      %v4382 = vpop.f32.mrf.mxu0
      %v4383 = vadd.f32 %v4327, %v4382
      %4384 = vmatmul.f32.gmra.mxu0 %v4345
      %v4385 = vpop.f32.mrf.mxu0
      %v4386 = vadd.f32 %v4327, %v4385
      %4387 = vmatmul.f32.gmra.mxu0 %v4348
      %v4388 = vpop.f32.mrf.mxu0
      %v4389 = vadd.f32 %v4327, %v4388
      %4390 = vmatmul.f32.gmra.mxu0 %v4351
      %v4391 = vpop.f32.mrf.mxu0
      %v4392 = vadd.f32 %v4327, %v4391
      %4393 = vdwg.mxu0
      %v4394 = vand.u32 2147483647, %v4371
      %v4395 = vand.u32 2147483647, %v4374
      %v4396 = vand.u32 2147483647, %v4377
      %v4397 = vand.u32 2147483647, %v4380
      %v4398 = vand.u32 2147483647, %v4383
      %v4399 = vand.u32 2147483647, %v4386
      %v4400 = vand.u32 2147483647, %v4389
      %v4401 = vand.u32 2147483647, %v4392
      %v4402 = vsub.f32 0.0, %v4394
      %v4403 = vsub.f32 0.0, %v4395
      %v4404 = vsub.f32 0.0, %v4396
      %v4405 = vsub.f32 0.0, %v4397
      %v4406 = vsub.f32 0.0, %v4398
      %v4407 = vsub.f32 0.0, %v4399
      %v4408 = vsub.f32 0.0, %v4400
      %v4409 = vsub.f32 0.0, %v4401
      %v4410 = vmul.f32 %v4402, 1.442695
      %v4411 = vpow.pop %v4410
      %v4412 = vmul.f32 %v4403, 1.442695
      %v4413 = vpow.pop %v4412
      %v4414 = vmul.f32 %v4404, 1.442695
      %v4415 = vpow.pop %v4414
      %v4416 = vmul.f32 %v4405, 1.442695
      %v4417 = vpow.pop %v4416
      %v4418 = vmul.f32 %v4406, 1.442695
      %v4419 = vpow.pop %v4418
      %v4420 = vmul.f32 %v4407, 1.442695
      %v4421 = vpow.pop %v4420
      %v4422 = vmul.f32 %v4408, 1.442695
      %v4423 = vpow.pop %v4422
      %v4424 = vmul.f32 %v4409, 1.442695
      %v4425 = vpow.pop %v4424
      %v4426 = vadd.f32 %v4411, 1.0
      %v4427 = vadd.f32 %v4413, 1.0
      %v4428 = vadd.f32 %v4415, 1.0
      %v4429 = vadd.f32 %v4417, 1.0
      %v4430 = vadd.f32 %v4419, 1.0
      %v4431 = vadd.f32 %v4421, 1.0
      %v4432 = vadd.f32 %v4423, 1.0
      %v4433 = vadd.f32 %v4425, 1.0
      %v4434 = vrcp.pop %v4426
      %v4435 = vrcp.pop %v4427
      %v4436 = vrcp.pop %v4428
      %v4437 = vrcp.pop %v4429
      %v4438 = vrcp.pop %v4430
      %v4439 = vrcp.pop %v4431
      %v4440 = vrcp.pop %v4432
      %v4441 = vrcp.pop %v4433
      %vm4442 = vcmp.ge.f32.partialorder %v4371, 0.0
      %vm4443 = vcmp.ge.f32.partialorder %v4374, 0.0
      %vm4444 = vcmp.ge.f32.partialorder %v4377, 0.0
      %vm4445 = vcmp.ge.f32.partialorder %v4380, 0.0
      %vm4446 = vcmp.ge.f32.partialorder %v4383, 0.0
      %vm4447 = vcmp.ge.f32.partialorder %v4386, 0.0
      %vm4448 = vcmp.ge.f32.partialorder %v4389, 0.0
      %vm4449 = vcmp.ge.f32.partialorder %v4392, 0.0
      %v4450 = vmul.f32 %v4411, %v4434
      %v4451 = vmul.f32 %v4413, %v4435
      %v4452 = vmul.f32 %v4415, %v4436
      %v4453 = vmul.f32 %v4417, %v4437
      %v4454 = vmul.f32 %v4419, %v4438
      %v4455 = vmul.f32 %v4421, %v4439
      %v4456 = vmul.f32 %v4423, %v4440
      %v4457 = vmul.f32 %v4425, %v4441
      %v4458 = vsel %vm4442, %v4434, %v4450
      %v4459 = vsel %vm4443, %v4435, %v4451
      %v4460 = vsel %vm4444, %v4436, %v4452
      %v4461 = vsel %vm4445, %v4437, %v4453
      %v4462 = vsel %vm4446, %v4438, %v4454
      %v4463 = vsel %vm4447, %v4439, %v4455
      %v4464 = vsel %vm4448, %v4440, %v4456
      %v4465 = vsel %vm4449, %v4441, %v4457
      %v4466 = vmul.f32 %v4371, %v4458
      %v4467 = vmul.f32 %v4374, %v4459
      %v4468 = vmul.f32 %v4377, %v4460
      %v4469 = vmul.f32 %v4380, %v4461
      %v4470 = vmul.f32 %v4383, %v4462
      %v4471 = vmul.f32 %v4386, %v4463
      %v4472 = vmul.f32 %v4389, %v4464
      %v4473 = vmul.f32 %v4392, %v4465
      %s4474 = scalar_lea.vmem %s10, 32
      %v4475 = vld [vmem:[%s4474] sm:$0xff]
      %v4476 = vld [vmem:[%s4474 + $0x8] sm:$0xff]
      %v4477 = vld [vmem:[%s4474 + $0x10] sm:$0xff]
      %v4478 = vld [vmem:[%s4474 + $0x18] sm:$0xff]
      %v4480 = vsel %vm1980, %v4466, 0
      %v4483 = vsel %vm1980, %v4467, 0
      %v4486 = vsel %vm1980, %v4468, 0
      %v4489 = vsel %vm1980, %v4469, 0
      %v4492 = vsel %vm1980, %v4470, 0
      %v4495 = vsel %vm1980, %v4471, 0
      %v4498 = vsel %vm1980, %v4472, 0
      %v4501 = vsel %vm1980, %v4473, 0
      %4503 = vmatpush.msra.mxu0 0.0
      %4504 = vmatpush.msra.mxu0 0.0
      %4505 = vmatpush.msra.mxu0 0.0
      %4506 = vmatpush.msra.mxu0 0.0
      %4507 = vmatpush.msra.mxu0 0.0
      %4508 = vmatpush.msra.mxu0 0.0
      %4509 = vmatpush.msra.mxu0 0.0
      %4510 = vmatpush.msra.mxu0 0.0
      %4511 = vmatpush.msra.mxu0 0.0
      %4512 = vmatpush.msra.mxu0 0.0
      %4513 = vmatpush.msra.mxu0 0.0
      %4514 = vmatpush.msra.mxu0 0.0
      %4515 = vmatpush.msra.mxu0 %v4478
      %4516 = vmatpush.msra.mxu0 %v4477
      %4517 = vmatpush.msra.mxu0 %v4476
      %4518 = vmatpush.msra.mxu0 %v4475
      %4519 = vmatmul.f32.gmra.mxu0 %v4480
      %v4520 = vpop.f32.mrf.mxu0
      %v4521 = vadd.f32 0.0, %v4520
      %4522 = vmatmul.f32.gmra.mxu0 %v4483
      %v4523 = vpop.f32.mrf.mxu0
      %v4524 = vadd.f32 0.0, %v4523
      %4525 = vmatmul.f32.gmra.mxu0 %v4486
      %v4526 = vpop.f32.mrf.mxu0
      %v4527 = vadd.f32 0.0, %v4526
      %4528 = vmatmul.f32.gmra.mxu0 %v4489
      %v4529 = vpop.f32.mrf.mxu0
      %v4530 = vadd.f32 0.0, %v4529
      %4531 = vmatmul.f32.gmra.mxu0 %v4492
      %v4532 = vpop.f32.mrf.mxu0
      %v4533 = vadd.f32 0.0, %v4532
      %4534 = vmatmul.f32.gmra.mxu0 %v4495
      %v4535 = vpop.f32.mrf.mxu0
      %v4536 = vadd.f32 0.0, %v4535
      %4537 = vmatmul.f32.gmra.mxu0 %v4498
      %v4538 = vpop.f32.mrf.mxu0
      %v4539 = vadd.f32 0.0, %v4538
      %4540 = vmatmul.f32.gmra.mxu0 %v4501
      %v4541 = vpop.f32.mrf.mxu0
      %v4542 = vadd.f32 0.0, %v4541
      %4543 = vdwg.mxu0
      %v4544 = vadd.f32 %v4111, %v4521
      %v4545 = vadd.f32 %v4112, %v4524
      %v4546 = vadd.f32 %v4113, %v4527
      %v4547 = vadd.f32 %v4114, %v4530
      %v4548 = vadd.f32 %v4115, %v4533
      %v4549 = vadd.f32 %v4116, %v4536
      %v4550 = vadd.f32 %v4117, %v4539
      %v4551 = vadd.f32 %v4118, %v4542
      %s4552 = scalar_lea.vmem %s11, 1
      %v4553 = vld [vmem:[%s4552] sm:$0x1]
      %v4555 = vperm.slane %v4553, 0
      %v4557 = vadd.f32 %v4544, %v4555
      %v4558 = vadd.f32 %v4545, %v4555
      %v4559 = vadd.f32 %v4546, %v4555
      %v4560 = vadd.f32 %v4547, %v4555
      %v4561 = vadd.f32 %v4548, %v4555
      %v4562 = vadd.f32 %v4549, %v4555
      %v4563 = vadd.f32 %v4550, %v4555
      %v4564 = vadd.f32 %v4551, %v4555
      %4565 = vst.msk [vmem:[%s413] sm:$0xff] %vm424, %v4557
      %4566 = vst.msk [vmem:[%s413 + $0x8] sm:$0xff] %vm424, %v4558
      %4567 = vst.msk [vmem:[%s413 + $0x10] sm:$0xff] %vm424, %v4559
      %4568 = vst.msk [vmem:[%s413 + $0x18] sm:$0xff] %vm424, %v4560
      %4569 = vst.msk [vmem:[%s413 + $0x20] sm:$0xff] %vm424, %v4561
      %4570 = vst.msk [vmem:[%s413 + $0x28] sm:$0xff] %vm424, %v4562
      %4571 = vst.msk [vmem:[%s413 + $0x30] sm:$0xff] %vm424, %v4563
      %4572 = vst.msk [vmem:[%s413 + $0x38] sm:$0xff] %vm424, %v4564
      %p4573 = scmp.lt.s32.totalorder %s23, 7
      %s4574 = scalar_select %p4573, %s23, 7
      %s4575 = smul.addr %s4574, 8
      %s4576 = smul.addr %s4575, 8
      %s4577 = scalar_lea.vmem %s12, %s4576
      // Predicated region
      $region69: #{mobilevit_residual_block.9} parent=67 // pred_check
        %p4578 = pneg %p298
      $region70: #{mobilevit_residual_block.9} parent=67 // pred_check_branch
        %4580 = sbr.rel (%p4578) target = $region72
      $region71: #{mobilevit_residual_block.9} parent=67 // pred_region
        _
      $region72: #{mobilevit_residual_block.9} parent=67 // pred_fallthru
        _
    $region68: #{mobilevit_residual_block.9} parent=5 // pred_fallthru
      _
    %p4581 = scmp.le.s32.totalorder 2, %s18
    // Predicated region
    $region73: #{mobilevit_residual_block.9} parent=5 // pred_check
      %p4582 = pneg %p4581
    $region74: #{mobilevit_residual_block.9} parent=5 // pred_check_branch
      %4584 = sbr.rel (%p4582) target = $region76
    $region75: #{mobilevit_residual_block.9} parent=5 // pred_region
      %s4585 = ssub.s32 %s18, 2
      // Predicated region
      $region77: #{mobilevit_residual_block.9} parent=75 // pred_check
        %p4586 = pneg %p304
      $region78: #{mobilevit_residual_block.9} parent=75 // pred_check_branch
        %4588 = sbr.rel (%p4586) target = $region80
      $region79: #{mobilevit_residual_block.9} parent=75 // pred_region
        %p4589 = scmp.lt.s32.totalorder %s24, 7
        %s4590 = scalar_select %p4589, %s24, 7
        %s4591 = smul.addr %s4590, 8
        %s4592 = smul.addr %s4591, 8
        %s4593 = scalar_lea.vmem %s12, %s4592
      $region80: #{mobilevit_residual_block.9} parent=75 // pred_fallthru
        _
    $region76: #{mobilevit_residual_block.9} parent=5 // pred_fallthru
      _
  $region6: #{mobilevit_residual_block.9} parent=0 // loop_footer
    %s22 = sadd.s32 1, %s18
  $region7: #{mobilevit_residual_block.9} parent=0 // loop_footer_branch
    %17 = sbr.rel target = $region3
  $region8: #{mobilevit_residual_block.9} parent=0 // loop_exit
    _

</llo_original>
